<compile_context>
chip_gen: v5e
topology: v5e:2x2
jax: 0.10.0
libtpu: 0.0.40
codegen_flags: <defaults>
</compile_context>

<pallas_src>
import jax
import jax.numpy as jnp
from jax import lax
from jax.experimental import pallas as pl
from jax.experimental.pallas import tpu as pltpu

# ----------------------------- small test config -----------------------------
BATCH = 2
MAX_SENTENCES = 8          # S
MAX_SEQ_LENGTH = 16        # L
VOCAB = 100
VOCAB_PAD = 128            # vocab padded to a full lane width
BERT_DIM = 64              # D  (surrogate sentence-encoder hidden size)
LSTM_HIDDEN = 32           # H
NUM_HEADS = 8
EMBED_DIM = 2 * LSTM_HIDDEN      # E = 64  (BiLSTM output width)
HEAD_DIM = EMBED_DIM // NUM_HEADS
NUM_CLASSES = 2
LOGIT_PAD = 128            # lane-dense logits store, sliced outside
ATTN_PAD = 128             # lane-dense attention-weight store, sliced outside


# --------------------------- in-kernel building blocks ---------------------------
def _bilstm_layer(x, wih, whh, b, out_sc):
    """One fused bidirectional LSTM layer for a single document.

    x: [S, I] f32.  wih: [I, 8H] bf16, whh: [2H, 8H] bf16, b: [1, 8H] f32, all in
    the activation-packed gate layout [i_f|i_b|f_f|f_b|o_f|o_b|g_f|g_b] (H each),
    so one sigmoid over 6H lanes + one tanh over 2H lanes covers every gate of
    both directions.  out_sc: VMEM scratch [S, 2H].  Returns [S, 2H] f32.
    """
    H = LSTM_HIDDEN
    S = MAX_SENTENCES

    # Hoisted input-to-hidden matmul: all timesteps x both directions at once.
    pre = jnp.dot(x.astype(jnp.bfloat16), wih,
                  preferred_element_type=jnp.float32) + b                 # [S, 8H]

    # Hoisted time alignment: at loop step t the backward direction consumes
    # timestep S-1-t, so reverse rows once (static slices, outside the serial
    # chain) and interleave fwd/bwd columns once.  The loop then reads a single
    # leading-axis row per step.
    pre_rev = jnp.concatenate([pre[S - 1 - t:S - t, :] for t in range(S)], axis=0)
    pre_al = jnp.concatenate(
        [pre[:, 0 * H:1 * H], pre_rev[:, 1 * H:2 * H],        # i_f, i_b
         pre[:, 2 * H:3 * H], pre_rev[:, 3 * H:4 * H],        # f_f, f_b
         pre[:, 4 * H:5 * H], pre_rev[:, 5 * H:6 * H],        # o_f, o_b
         pre[:, 6 * H:7 * H], pre_rev[:, 7 * H:8 * H]],       # g_f, g_b
        axis=1)                                                            # [S, 8H]

    h_cat = jnp.zeros((1, 2 * H), jnp.float32)       # [h_f | h_b], kept in f32
    c_cat = jnp.zeros((1, 2 * H), jnp.float32)       # [c_f | c_b]
    for t in range(S):                               # statically unrolled (S=8)
        tb = S - 1 - t
        if t == 0:
            gates = pre_al[0:1, :]                   # h == 0 -> skip W_hh matmul
        else:
            # One recurrent matmul serves both directions (block-structured W_hh).
            # TODO(synk): on v5e (128x128 MXU) two per-direction [1,H]@[H,4H]
            # matmuls may beat this zero-padded [1,2H]@[2H,8H]; verify with a dump.
            rec = jnp.dot(h_cat.astype(jnp.bfloat16), whh,
                          preferred_element_type=jnp.float32)             # [1, 8H]
            gates = rec + pre_al[t:t + 1, :]
        sig = jax.nn.sigmoid(gates[:, 0:6 * H])      # one sigmoid: i/f/o, both dirs
        g = jnp.tanh(gates[:, 6 * H:8 * H])          # one tanh: g, both dirs
        i_cat = sig[:, 0:2 * H]
        f_cat = sig[:, 2 * H:4 * H]
        o_cat = sig[:, 4 * H:6 * H]
        c_cat = f_cat * c_cat + i_cat * g
        h_cat = o_cat * jnp.tanh(c_cat)              # [1, 2H]
        out_sc[t:t + 1, 0:H] = h_cat[:, 0:H]         # forward output at time t
        out_sc[tb:tb + 1, H:2 * H] = h_cat[:, H:2 * H]  # backward output at time tb
    return out_sc[...]


# ------------------------------- fused kernel -------------------------------
def fused_kernel(ids_ref, mask_ref, emb_ref, pw_ref, pb_ref,
                 l1_wih_ref, l1_whh_ref, l1_b_ref,
                 l2_wih_ref, l2_whh_ref, l2_b_ref,
                 wqkv_ref, bqkv_ref, wo_ref, bo_ref,
                 cw1_ref, cb1_ref, cw2_ref, cb2_ref, cw3_ref, cb3_ref,
                 logits_ref, attn_ref,
                 lstm_sc1, lstm_sc2):
    S, L, Vp, D = MAX_SENTENCES, MAX_SEQ_LENGTH, VOCAB_PAD, BERT_DIM
    H, E, nh, hd = LSTM_HIDDEN, EMBED_DIM, NUM_HEADS, HEAD_DIM

    # ---- surrogate sentence encoder: masked one-hot gather + mean pool ------
    # TODO(synk): pretrained BERT [CLS] embedding is not reproduced; this is a
    # surrogate.  At real vocab sizes keep emb_table in HBM (memory_space=pl.ANY)
    # and DMA-gather rows instead of materializing a one-hot.
    ids = ids_ref[0]                                                      # [S, L] i32
    mask = mask_ref[0]                                                    # [S, L] f32
    iota_v = lax.broadcasted_iota(jnp.int32, (S, L, Vp), 2)
    valid = (ids[:, :, None] == iota_v) & (mask[:, :, None] > 0.5)
    onehot = jnp.where(valid, 1.0, 0.0).astype(jnp.bfloat16)              # [S, L, Vp]
    # Token reduction on the MXU: [S*L, Vp] @ [Vp, D], then sum over L.
    tok = jnp.dot(onehot.reshape(S * L, Vp), emb_ref[...],
                  preferred_element_type=jnp.float32)                     # [S*L, D]
    summed = jnp.sum(tok.reshape(S, L, D), axis=1)                        # [S, D]
    denom = jnp.maximum(jnp.sum(mask, axis=1, keepdims=True), 1.0)        # [S, 1]
    sent = summed * pl.reciprocal(denom, approx=True)                     # [S, D]

    # ---- projection + ReLU (dropout = identity in eval) ----------------------
    x = jnp.maximum(
        jnp.dot(sent.astype(jnp.bfloat16), pw_ref[...],
                preferred_element_type=jnp.float32) + pb_ref[...], 0.0)   # [S, H]

    # ---- 2-layer bidirectional LSTM ------------------------------------------
    x = _bilstm_layer(x, l1_wih_ref[...], l1_whh_ref[...], l1_b_ref[...], lstm_sc1)
    x = _bilstm_layer(x, l2_wih_ref[...], l2_whh_ref[...], l2_b_ref[...], lstm_sc2)  # [S, E]

    # ---- multi-head self-attention, all heads fused --------------------------
    # Note: the reference forward does not pass a key-padding mask to
    # nn.MultiheadAttention, so none is applied here either.
    qkv = jnp.dot(x.astype(jnp.bfloat16), wqkv_ref[...],
                  preferred_element_type=jnp.float32) + bqkv_ref[...]     # [S, 3E]
    scale = 1.0 / (float(hd) ** 0.5)
    q = (qkv[:, 0:E] * scale).reshape(S, nh, hd)
    k = qkv[:, E:2 * E].reshape(S, nh, hd)
    v = qkv[:, 2 * E:3 * E].reshape(S, nh, hd)
    scores = jnp.einsum('ihd,jhd->hij',
                        q.astype(jnp.bfloat16), k.astype(jnp.bfloat16),
                        preferred_element_type=jnp.float32)               # [nh, S, S]
    m = jnp.max(scores, axis=-1, keepdims=True)
    e = jnp.exp(scores - m)
    w = e * pl.reciprocal(jnp.sum(e, axis=-1, keepdims=True), approx=True)  # [nh, S, S]
    ctx = jnp.einsum('hij,jhd->ihd',
                     w.astype(jnp.bfloat16), v.astype(jnp.bfloat16),
                     preferred_element_type=jnp.float32)                  # [S, nh, hd]
    attended = jnp.dot(ctx.reshape(S, E).astype(jnp.bfloat16), wo_ref[...],
                       preferred_element_type=jnp.float32) + bo_ref[...]  # [S, E]
    attn_avg = jnp.sum(w, axis=0) * (1.0 / float(nh))                     # [S, S]
    # Lane-dense store: pad the 8-wide attention rows to 128 lanes.
    attn_ref[...] = jnp.concatenate(
        [attn_avg, jnp.zeros((S, ATTN_PAD - S), jnp.float32)],
        axis=1).reshape(1, S, ATTN_PAD)

    # ---- classifier MLP (logits padded to 128 lanes for a dense store) -------
    h1 = jnp.maximum(jnp.dot(attended.astype(jnp.bfloat16), cw1_ref[...],
                             preferred_element_type=jnp.float32) + cb1_ref[...], 0.0)
    h2 = jnp.maximum(jnp.dot(h1.astype(jnp.bfloat16), cw2_ref[...],
                             preferred_element_type=jnp.float32) + cb2_ref[...], 0.0)
    logits = jnp.dot(h2.astype(jnp.bfloat16), cw3_ref[...],
                     preferred_element_type=jnp.float32) + cb3_ref[...]   # [S, 128]
    logits_ref[...] = logits.reshape(1, S, LOGIT_PAD)


# ------------------------------- parameters -------------------------------
def init_params(key):
    ks = iter(jax.random.split(key, 40))

    def nrm(shape, scale=0.05):
        return (scale * jax.random.normal(next(ks), shape)).astype(jnp.float32)

    H, E, Hh = LSTM_HIDDEN, EMBED_DIM, LSTM_HIDDEN // 2
    p = {}

    # TODO(synk): pretrained BERT sentence encoder is not reproduced; replaced by
    # an embedding table + masked mean pooling surrogate (vocab zero-padded to 128).
    emb = nrm((VOCAB, BERT_DIM), scale=1.0)
    p["emb_table"] = jnp.pad(emb, ((0, VOCAB_PAD - VOCAB), (0, 0))).astype(jnp.bfloat16)

    # sentence_projector: Linear(D -> H) + ReLU
    p["proj_w"] = nrm((BERT_DIM, H)).astype(jnp.bfloat16)
    p["proj_b"] = nrm((1, H))

    def split_gates(w4):     # PyTorch gate order i, f, g, o along the 4H axis
        return w4[:, 0:H], w4[:, H:2 * H], w4[:, 2 * H:3 * H], w4[:, 3 * H:4 * H]

    def lstm_layer(in_size):
        # NOTE: real PyTorch checkpoints store weight_ih/hh as [4H, I]/[4H, H] per
        # direction; loading them requires a transpose, b = b_ih + b_hh, and the
        # activation-packed gate permutation below (i_f i_b f_f f_b o_f o_b g_f g_b).
        wih_f, whh_f, b_f = nrm((in_size, 4 * H)), nrm((H, 4 * H)), nrm((1, 4 * H))
        wih_b, whh_b, b_b = nrm((in_size, 4 * H)), nrm((H, 4 * H)), nrm((1, 4 * H))
        i_f, f_f, g_f, o_f = split_gates(wih_f)
        i_b, f_b, g_b, o_b = split_gates(wih_b)
        wih = jnp.concatenate([i_f, i_b, f_f, f_b, o_f, o_b, g_f, g_b], axis=1)   # [I, 8H]
        hi_f, hf_f, hg_f, ho_f = split_gates(whh_f)
        hi_b, hf_b, hg_b, ho_b = split_gates(whh_b)
        # Rows 0:H (h_fwd) feed forward-gate columns; rows H:2H (h_bwd) feed backward.
        whh = jnp.zeros((2 * H, 8 * H), jnp.float32)
        whh = whh.at[:H, 0 * H:1 * H].set(hi_f).at[H:, 1 * H:2 * H].set(hi_b)
        whh = whh.at[:H, 2 * H:3 * H].set(hf_f).at[H:, 3 * H:4 * H].set(hf_b)
        whh = whh.at[:H, 4 * H:5 * H].set(ho_f).at[H:, 5 * H:6 * H].set(ho_b)
        whh = whh.at[:H, 6 * H:7 * H].set(hg_f).at[H:, 7 * H:8 * H].set(hg_b)
        bi_f, bf_f, bg_f, bo_f = split_gates(b_f)
        bi_b, bf_b, bg_b, bo_b = split_gates(b_b)
        b = jnp.concatenate([bi_f, bi_b, bf_f, bf_b, bo_f, bo_b, bg_f, bg_b], axis=1)
        return wih.astype(jnp.bfloat16), whh.astype(jnp.bfloat16), b

    p["l1_wih"], p["l1_whh"], p["l1_b"] = lstm_layer(H)
    p["l2_wih"], p["l2_whh"], p["l2_b"] = lstm_layer(2 * H)

    # MultiheadAttention: fused QKV in-projection + out-projection.
    wq, wk, wv = nrm((E, E)), nrm((E, E)), nrm((E, E))
    bq, bk, bv = nrm((1, E)), nrm((1, E)), nrm((1, E))
    p["w_qkv"] = jnp.concatenate([wq, wk, wv], axis=1).astype(jnp.bfloat16)       # [E, 3E]
    p["b_qkv"] = jnp.concatenate([bq, bk, bv], axis=1)                            # [1, 3E]
    p["wo"], p["bo"] = nrm((E, E)).astype(jnp.bfloat16), nrm((1, E))

    # classifier MLP: E -> H -> H/2 -> num_classes (class dim zero-padded to 128)
    p["c_w1"], p["c_b1"] = nrm((E, H)).astype(jnp.bfloat16), nrm((1, H))
    p["c_w2"], p["c_b2"] = nrm((H, Hh)).astype(jnp.bfloat16), nrm((1, Hh))
    w3, b3 = nrm((Hh, NUM_CLASSES)), nrm((1, NUM_CLASSES))
    p["c_w3"] = jnp.pad(w3, ((0, 0), (0, LOGIT_PAD - NUM_CLASSES))).astype(jnp.bfloat16)
    p["c_b3"] = jnp.pad(b3, ((0, 0), (0, LOGIT_PAD - NUM_CLASSES)))
    return p


# --------------------------------- forward ---------------------------------
def forward(params, input_ids, attention_mask):
    B, S, L = input_ids.shape
    ids = input_ids.astype(jnp.int32)
    mask = attention_mask.astype(jnp.float32)

    def doc_spec(shape):                 # per-document block, indexed by the grid
        nz = len(shape)
        return pl.BlockSpec((1,) + tuple(shape), lambda i, _n=nz: (i,) + (0,) * _n)

    def rep_spec(shape):                 # whole-array block, same for every doc
        z = (0,) * len(shape)
        return pl.BlockSpec(tuple(shape), lambda i, _z=z: _z)

    weights = [
        params["emb_table"], params["proj_w"], params["proj_b"],
        params["l1_wih"], params["l1_whh"], params["l1_b"],
        params["l2_wih"], params["l2_whh"], params["l2_b"],
        params["w_qkv"], params["b_qkv"], params["wo"], params["bo"],
        params["c_w1"], params["c_b1"], params["c_w2"], params["c_b2"],
        params["c_w3"], params["c_b3"],
    ]
    in_specs = ([doc_spec((S, L)), doc_spec((S, L))]
                + [rep_spec(tuple(w.shape)) for w in weights])

    logits_pad, attn_pad = pl.pallas_call(
        fused_kernel,
        grid=(B,),
        in_specs=in_specs,
        out_specs=(doc_spec((S, LOGIT_PAD)), doc_spec((S, ATTN_PAD))),
        out_shape=(jax.ShapeDtypeStruct((B, S, LOGIT_PAD), jnp.float32),
                   jax.ShapeDtypeStruct((B, S, ATTN_PAD), jnp.float32)),
        scratch_shapes=[pltpu.VMEM((S, EMBED_DIM), jnp.float32),
                        pltpu.VMEM((S, EMBED_DIM), jnp.float32)],
        compiler_params=pltpu.CompilerParams(dimension_semantics=("parallel",)),
    )(ids, mask, *weights)

    logits = logits_pad[:, :, :NUM_CLASSES]     # [B, S, num_classes]
    attn_w = attn_pad[:, :, :S]                 # [B, S, S]
    return logits, attn_w


# ----------------------------------- main -----------------------------------
if __name__ == "__main__":
    key = jax.random.PRNGKey(0)
    k_ids, k_len, k_par = jax.random.split(key, 3)

    input_ids = jax.random.randint(
        k_ids, (BATCH, MAX_SENTENCES, MAX_SEQ_LENGTH), 0, VOCAB, dtype=jnp.int32)
    lengths = jax.random.randint(
        k_len, (BATCH, MAX_SENTENCES, 1), 4, MAX_SEQ_LENGTH + 1, dtype=jnp.int32)
    attention_mask = (jnp.arange(MAX_SEQ_LENGTH)[None, None, :] < lengths).astype(jnp.int32)

    params = init_params(k_par)

    logits, attn_w = jax.jit(forward)(params, input_ids, attention_mask)
    jax.block_until_ready((logits, attn_w))

    assert logits.shape == (BATCH, MAX_SENTENCES, NUM_CLASSES)
    assert attn_w.shape == (BATCH, MAX_SENTENCES, MAX_SENTENCES)
    assert bool(jnp.all(jnp.isfinite(logits)))
    assert bool(jnp.all(jnp.isfinite(attn_w)))
    print("KERNEL_OK")
</pallas_src>

<mosaic_0001>
module attributes {stable_mosaic.version = 11 : i64} {
  func.func @fused_kernel(%arg0: i32, %arg1: memref<1x8x16xi32, #tpu.memory_space<vmem>>, %arg2: memref<1x8x16xf32, #tpu.memory_space<vmem>>, %arg3: memref<128x64xbf16, #tpu.memory_space<vmem>>, %arg4: memref<64x32xbf16, #tpu.memory_space<vmem>>, %arg5: memref<1x32xf32, #tpu.memory_space<vmem>>, %arg6: memref<32x256xbf16, #tpu.memory_space<vmem>>, %arg7: memref<64x256xbf16, #tpu.memory_space<vmem>>, %arg8: memref<1x256xf32, #tpu.memory_space<vmem>>, %arg9: memref<64x256xbf16, #tpu.memory_space<vmem>>, %arg10: memref<64x256xbf16, #tpu.memory_space<vmem>>, %arg11: memref<1x256xf32, #tpu.memory_space<vmem>>, %arg12: memref<64x192xbf16, #tpu.memory_space<vmem>>, %arg13: memref<1x192xf32, #tpu.memory_space<vmem>>, %arg14: memref<64x64xbf16, #tpu.memory_space<vmem>>, %arg15: memref<1x64xf32, #tpu.memory_space<vmem>>, %arg16: memref<64x32xbf16, #tpu.memory_space<vmem>>, %arg17: memref<1x32xf32, #tpu.memory_space<vmem>>, %arg18: memref<32x16xbf16, #tpu.memory_space<vmem>>, %arg19: memref<1x16xf32, #tpu.memory_space<vmem>>, %arg20: memref<16x128xbf16, #tpu.memory_space<vmem>>, %arg21: memref<1x128xf32, #tpu.memory_space<vmem>>, %arg22: memref<1x8x128xf32, #tpu.memory_space<vmem>>, %arg23: memref<1x8x128xf32, #tpu.memory_space<vmem>>, %arg24: memref<8x64xf32, #tpu.memory_space<vmem>>, %arg25: memref<8x64xf32, #tpu.memory_space<vmem>>) attributes {dimension_semantics = [#tpu.dimension_semantics<parallel>], iteration_bounds = array<i64: 2>, scalar_prefetch = 0 : i64, scratch_operands = 2 : i64, tpu.core_type = #tpu.core_type<tc>, window_params = [{transform_indices = @transform_0, window_bounds = array<i64: 1, 8, 16>}, {transform_indices = @transform_1, window_bounds = array<i64: 1, 8, 16>}, {pipeline_mode = #tpu.pipeline_mode<synchronous>, transform_indices = @transform_2, window_bounds = array<i64: 128, 64>}, {pipeline_mode = #tpu.pipeline_mode<synchronous>, transform_indices = @transform_3, window_bounds = array<i64: 64, 32>}, {pipeline_mode = #tpu.pipeline_mode<synchronous>, transform_indices = @transform_4, window_bounds = array<i64: 1, 32>}, {pipeline_mode = #tpu.pipeline_mode<synchronous>, transform_indices = @transform_5, window_bounds = array<i64: 32, 256>}, {pipeline_mode = #tpu.pipeline_mode<synchronous>, transform_indices = @transform_6, window_bounds = array<i64: 64, 256>}, {pipeline_mode = #tpu.pipeline_mode<synchronous>, transform_indices = @transform_7, window_bounds = array<i64: 1, 256>}, {pipeline_mode = #tpu.pipeline_mode<synchronous>, transform_indices = @transform_8, window_bounds = array<i64: 64, 256>}, {pipeline_mode = #tpu.pipeline_mode<synchronous>, transform_indices = @transform_9, window_bounds = array<i64: 64, 256>}, {pipeline_mode = #tpu.pipeline_mode<synchronous>, transform_indices = @transform_10, window_bounds = array<i64: 1, 256>}, {pipeline_mode = #tpu.pipeline_mode<synchronous>, transform_indices = @transform_11, window_bounds = array<i64: 64, 192>}, {pipeline_mode = #tpu.pipeline_mode<synchronous>, transform_indices = @transform_12, window_bounds = array<i64: 1, 192>}, {pipeline_mode = #tpu.pipeline_mode<synchronous>, transform_indices = @transform_13, window_bounds = array<i64: 64, 64>}, {pipeline_mode = #tpu.pipeline_mode<synchronous>, transform_indices = @transform_14, window_bounds = array<i64: 1, 64>}, {pipeline_mode = #tpu.pipeline_mode<synchronous>, transform_indices = @transform_15, window_bounds = array<i64: 64, 32>}, {pipeline_mode = #tpu.pipeline_mode<synchronous>, transform_indices = @transform_16, window_bounds = array<i64: 1, 32>}, {pipeline_mode = #tpu.pipeline_mode<synchronous>, transform_indices = @transform_17, window_bounds = array<i64: 32, 16>}, {pipeline_mode = #tpu.pipeline_mode<synchronous>, transform_indices = @transform_18, window_bounds = array<i64: 1, 16>}, {pipeline_mode = #tpu.pipeline_mode<synchronous>, transform_indices = @transform_19, window_bounds = array<i64: 16, 128>}, {pipeline_mode = #tpu.pipeline_mode<synchronous>, transform_indices = @transform_20, window_bounds = array<i64: 1, 128>}, {transform_indices = @transform_21, window_bounds = array<i64: 1, 8, 128>}, {transform_indices = @transform_22, window_bounds = array<i64: 1, 8, 128>}]} {
    %c0 = arith.constant 0 : index
    %c0_0 = arith.constant 0 : index
    %c0_1 = arith.constant 0 : index
    %0 = vector.load %arg1[%c0, %c0_0, %c0_1] : memref<1x8x16xi32, #tpu.memory_space<vmem>>, vector<1x8x16xi32>
    %1 = vector.shape_cast %0 : vector<1x8x16xi32> to vector<8x16xi32>
    %c0_2 = arith.constant 0 : index
    %c0_3 = arith.constant 0 : index
    %c0_4 = arith.constant 0 : index
    %2 = vector.load %arg2[%c0_2, %c0_3, %c0_4] : memref<1x8x16xf32, #tpu.memory_space<vmem>>, vector<1x8x16xf32>
    %3 = vector.shape_cast %2 : vector<1x8x16xf32> to vector<8x16xf32>
    %4 = tpu.iota {dimensions = array<i32: 2>} : vector<8x16x128xi32>
    %5 = vector.shape_cast %1 : vector<8x16xi32> to vector<8x16x1xi32>
    %6 = vector.broadcast %5 : vector<8x16x1xi32> to vector<8x16x128xi32>
    %7 = arith.cmpi eq, %6, %4 : vector<8x16x128xi32>
    %8 = vector.shape_cast %3 : vector<8x16xf32> to vector<8x16x1xf32>
    %cst = arith.constant 5.000000e-01 : f32
    %9 = vector.broadcast %cst : f32 to vector<8x16x1xf32>
    %10 = arith.cmpf ogt, %8, %9 : vector<8x16x1xf32>
    %11 = vector.broadcast %10 : vector<8x16x1xi1> to vector<8x16x128xi1>
    %12 = arith.andi %7, %11 : vector<8x16x128xi1>
    %cst_5 = arith.constant 1.000000e+00 : f32
    %cst_6 = arith.constant 0.000000e+00 : f32
    %13 = vector.broadcast %cst_5 : f32 to vector<8x16x128xf32>
    %14 = vector.broadcast %cst_6 : f32 to vector<8x16x128xf32>
    %15 = arith.select %12, %13, %14 : vector<8x16x128xi1>, vector<8x16x128xf32>
    %16 = arith.truncf %15 : vector<8x16x128xf32> to vector<8x16x128xbf16>
    %17 = vector.shape_cast %16 : vector<8x16x128xbf16> to vector<128x128xbf16>
    %c0_7 = arith.constant 0 : index
    %c0_8 = arith.constant 0 : index
    %18 = vector.load %arg3[%c0_7, %c0_8] : memref<128x64xbf16, #tpu.memory_space<vmem>>, vector<128x64xbf16>
    %cst_9 = arith.constant dense<0.000000e+00> : vector<128x64xf32>
    %19 = tpu.matmul %17, %18, %cst_9 {dimension_numbers = #tpu.dot_dimension_numbers<[1], [0], [0], [1], [0, 0, 1, 1], [], []>} : vector<128x128xbf16>, vector<128x64xbf16>, vector<128x64xf32> -> vector<128x64xf32>
    %20 = vector.shape_cast %19 : vector<128x64xf32> to vector<8x16x64xf32>
    %cst_10 = arith.constant dense<0.000000e+00> : vector<8x64xf32>
    %21 = vector.multi_reduction <add>, %20, %cst_10 [1] : vector<8x16x64xf32> to vector<8x64xf32>
    %cst_11 = arith.constant dense<0.000000e+00> : vector<8xf32>
    %22 = vector.multi_reduction <add>, %3, %cst_11 [1] : vector<8x16xf32> to vector<8xf32>
    %23 = vector.shape_cast %22 : vector<8xf32> to vector<8x1xf32>
    %cst_12 = arith.constant 1.000000e+00 : f32
    %24 = vector.broadcast %cst_12 : f32 to vector<8x1xf32>
    %25 = arith.maximumf %23, %24 : vector<8x1xf32>
    %26 = tpu.reciprocal %25 {approx = true} : vector<8x1xf32> -> vector<8x1xf32>
    %27 = vector.broadcast %26 : vector<8x1xf32> to vector<8x64xf32>
    %28 = arith.mulf %21, %27 : vector<8x64xf32>
    %29 = arith.truncf %28 : vector<8x64xf32> to vector<8x64xbf16>
    %c0_13 = arith.constant 0 : index
    %c0_14 = arith.constant 0 : index
    %30 = vector.load %arg4[%c0_13, %c0_14] : memref<64x32xbf16, #tpu.memory_space<vmem>>, vector<64x32xbf16>
    %cst_15 = arith.constant dense<0.000000e+00> : vector<8x32xf32>
    %31 = tpu.matmul %29, %30, %cst_15 {dimension_numbers = #tpu.dot_dimension_numbers<[1], [0], [0], [1], [0, 0, 1, 1], [], []>} : vector<8x64xbf16>, vector<64x32xbf16>, vector<8x32xf32> -> vector<8x32xf32>
    %c0_16 = arith.constant 0 : index
    %c0_17 = arith.constant 0 : index
    %32 = vector.load %arg5[%c0_16, %c0_17] : memref<1x32xf32, #tpu.memory_space<vmem>>, vector<1x32xf32>
    %33 = vector.broadcast %32 : vector<1x32xf32> to vector<8x32xf32>
    %34 = arith.addf %31, %33 : vector<8x32xf32>
    %cst_18 = arith.constant 0.000000e+00 : f32
    %35 = vector.broadcast %cst_18 : f32 to vector<8x32xf32>
    %36 = arith.maximumf %34, %35 : vector<8x32xf32>
    %c0_19 = arith.constant 0 : index
    %c0_20 = arith.constant 0 : index
    %37 = vector.load %arg6[%c0_19, %c0_20] : memref<32x256xbf16, #tpu.memory_space<vmem>>, vector<32x256xbf16>
    %c0_21 = arith.constant 0 : index
    %c0_22 = arith.constant 0 : index
    %38 = vector.load %arg7[%c0_21, %c0_22] : memref<64x256xbf16, #tpu.memory_space<vmem>>, vector<64x256xbf16>
    %c0_23 = arith.constant 0 : index
    %c0_24 = arith.constant 0 : index
    %39 = vector.load %arg8[%c0_23, %c0_24] : memref<1x256xf32, #tpu.memory_space<vmem>>, vector<1x256xf32>
    %40 = arith.truncf %36 : vector<8x32xf32> to vector<8x32xbf16>
    %cst_25 = arith.constant dense<0.000000e+00> : vector<8x256xf32>
    %41 = tpu.matmul %40, %37, %cst_25 {dimension_numbers = #tpu.dot_dimension_numbers<[1], [0], [0], [1], [0, 0, 1, 1], [], []>} : vector<8x32xbf16>, vector<32x256xbf16>, vector<8x256xf32> -> vector<8x256xf32>
    %42 = vector.broadcast %39 : vector<1x256xf32> to vector<8x256xf32>
    %43 = arith.addf %41, %42 : vector<8x256xf32>
    %44 = vector.extract_strided_slice %43 {offsets = [7, 0], sizes = [1, 256], strides = [1, 1]} : vector<8x256xf32> to vector<1x256xf32>
    %45 = vector.extract_strided_slice %43 {offsets = [6, 0], sizes = [1, 256], strides = [1, 1]} : vector<8x256xf32> to vector<1x256xf32>
    %46 = vector.extract_strided_slice %43 {offsets = [5, 0], sizes = [1, 256], strides = [1, 1]} : vector<8x256xf32> to vector<1x256xf32>
    %47 = vector.extract_strided_slice %43 {offsets = [4, 0], sizes = [1, 256], strides = [1, 1]} : vector<8x256xf32> to vector<1x256xf32>
    %48 = vector.extract_strided_slice %43 {offsets = [3, 0], sizes = [1, 256], strides = [1, 1]} : vector<8x256xf32> to vector<1x256xf32>
    %49 = vector.extract_strided_slice %43 {offsets = [2, 0], sizes = [1, 256], strides = [1, 1]} : vector<8x256xf32> to vector<1x256xf32>
    %50 = vector.extract_strided_slice %43 {offsets = [1, 0], sizes = [1, 256], strides = [1, 1]} : vector<8x256xf32> to vector<1x256xf32>
    %51 = vector.extract_strided_slice %43 {offsets = [0, 0], sizes = [1, 256], strides = [1, 1]} : vector<8x256xf32> to vector<1x256xf32>
    %52 = tpu.concatenate %44, %45, %46, %47, %48, %49, %50, %51 in 0 : vector<1x256xf32>, vector<1x256xf32>, vector<1x256xf32>, vector<1x256xf32>, vector<1x256xf32>, vector<1x256xf32>, vector<1x256xf32>, vector<1x256xf32> -> vector<8x256xf32>
    %53 = vector.extract_strided_slice %43 {offsets = [0, 0], sizes = [8, 32], strides = [1, 1]} : vector<8x256xf32> to vector<8x32xf32>
    %54 = vector.extract_strided_slice %52 {offsets = [0, 32], sizes = [8, 32], strides = [1, 1]} : vector<8x256xf32> to vector<8x32xf32>
    %55 = vector.extract_strided_slice %43 {offsets = [0, 64], sizes = [8, 32], strides = [1, 1]} : vector<8x256xf32> to vector<8x32xf32>
    %56 = vector.extract_strided_slice %52 {offsets = [0, 96], sizes = [8, 32], strides = [1, 1]} : vector<8x256xf32> to vector<8x32xf32>
    %57 = vector.extract_strided_slice %43 {offsets = [0, 128], sizes = [8, 32], strides = [1, 1]} : vector<8x256xf32> to vector<8x32xf32>
    %58 = vector.extract_strided_slice %52 {offsets = [0, 160], sizes = [8, 32], strides = [1, 1]} : vector<8x256xf32> to vector<8x32xf32>
    %59 = vector.extract_strided_slice %43 {offsets = [0, 192], sizes = [8, 32], strides = [1, 1]} : vector<8x256xf32> to vector<8x32xf32>
    %60 = vector.extract_strided_slice %52 {offsets = [0, 224], sizes = [8, 32], strides = [1, 1]} : vector<8x256xf32> to vector<8x32xf32>
    %61 = tpu.concatenate %53, %54, %55, %56, %57, %58, %59, %60 in 1 : vector<8x32xf32>, vector<8x32xf32>, vector<8x32xf32>, vector<8x32xf32>, vector<8x32xf32>, vector<8x32xf32>, vector<8x32xf32>, vector<8x32xf32> -> vector<8x256xf32>
    %cst_26 = arith.constant 0.000000e+00 : f32
    %62 = vector.broadcast %cst_26 : f32 to vector<1x64xf32>
    %63 = vector.extract_strided_slice %61 {offsets = [0, 0], sizes = [1, 256], strides = [1, 1]} : vector<8x256xf32> to vector<1x256xf32>
    %64 = vector.extract_strided_slice %63 {offsets = [0, 0], sizes = [1, 192], strides = [1, 1]} : vector<1x256xf32> to vector<1x192xf32>
    %65 = arith.negf %64 : vector<1x192xf32>
    %66 = math.exp %65 : vector<1x192xf32>
    %cst_27 = arith.constant 1.000000e+00 : f32
    %67 = vector.broadcast %cst_27 : f32 to vector<1x192xf32>
    %68 = arith.addf %67, %66 : vector<1x192xf32>
    %69 = arith.divf %67, %68 : vector<1x192xf32>
    %70 = vector.extract_strided_slice %63 {offsets = [0, 192], sizes = [1, 64], strides = [1, 1]} : vector<1x256xf32> to vector<1x64xf32>
    %71 = math.tanh %70 : vector<1x64xf32>
    %72 = vector.extract_strided_slice %69 {offsets = [0, 0], sizes = [1, 64], strides = [1, 1]} : vector<1x192xf32> to vector<1x64xf32>
    %73 = vector.extract_strided_slice %69 {offsets = [0, 64], sizes = [1, 64], strides = [1, 1]} : vector<1x192xf32> to vector<1x64xf32>
    %74 = vector.extract_strided_slice %69 {offsets = [0, 128], sizes = [1, 64], strides = [1, 1]} : vector<1x192xf32> to vector<1x64xf32>
    %75 = arith.mulf %73, %62 : vector<1x64xf32>
    %76 = arith.mulf %72, %71 : vector<1x64xf32>
    %77 = arith.addf %75, %76 : vector<1x64xf32>
    %78 = math.tanh %77 : vector<1x64xf32>
    %79 = arith.mulf %74, %78 : vector<1x64xf32>
    %80 = vector.extract_strided_slice %79 {offsets = [0, 0], sizes = [1, 32], strides = [1, 1]} : vector<1x64xf32> to vector<1x32xf32>
    %c0_28 = arith.constant 0 : index
    %c0_29 = arith.constant 0 : index
    %81 = vector.load %arg24[%c0_28, %c0_29] : memref<8x64xf32, #tpu.memory_space<vmem>>, vector<1x32xf32>
    tpu.vector_store %arg24[%c0_28, %c0_29], %80 {strides = array<i32>} : memref<8x64xf32, #tpu.memory_space<vmem>>, vector<1x32xf32>,
    %82 = vector.extract_strided_slice %79 {offsets = [0, 32], sizes = [1, 32], strides = [1, 1]} : vector<1x64xf32> to vector<1x32xf32>
    %c7 = arith.constant 7 : index
    %c32 = arith.constant 32 : index
    %83 = vector.load %arg24[%c7, %c32] : memref<8x64xf32, #tpu.memory_space<vmem>>, vector<1x32xf32>
    tpu.vector_store %arg24[%c7, %c32], %82 {strides = array<i32>} : memref<8x64xf32, #tpu.memory_space<vmem>>, vector<1x32xf32>,
    %84 = arith.truncf %79 : vector<1x64xf32> to vector<1x64xbf16>
    %cst_30 = arith.constant dense<0.000000e+00> : vector<1x256xf32>
    %85 = tpu.matmul %84, %38, %cst_30 {dimension_numbers = #tpu.dot_dimension_numbers<[1], [0], [0], [1], [0, 0, 1, 1], [], []>} : vector<1x64xbf16>, vector<64x256xbf16>, vector<1x256xf32> -> vector<1x256xf32>
    %86 = vector.extract_strided_slice %61 {offsets = [1, 0], sizes = [1, 256], strides = [1, 1]} : vector<8x256xf32> to vector<1x256xf32>
    %87 = arith.addf %85, %86 : vector<1x256xf32>
    %88 = vector.extract_strided_slice %87 {offsets = [0, 0], sizes = [1, 192], strides = [1, 1]} : vector<1x256xf32> to vector<1x192xf32>
    %89 = arith.negf %88 : vector<1x192xf32>
    %90 = math.exp %89 : vector<1x192xf32>
    %cst_31 = arith.constant 1.000000e+00 : f32
    %91 = vector.broadcast %cst_31 : f32 to vector<1x192xf32>
    %92 = arith.addf %91, %90 : vector<1x192xf32>
    %93 = arith.divf %91, %92 : vector<1x192xf32>
    %94 = vector.extract_strided_slice %87 {offsets = [0, 192], sizes = [1, 64], strides = [1, 1]} : vector<1x256xf32> to vector<1x64xf32>
    %95 = math.tanh %94 : vector<1x64xf32>
    %96 = vector.extract_strided_slice %93 {offsets = [0, 0], sizes = [1, 64], strides = [1, 1]} : vector<1x192xf32> to vector<1x64xf32>
    %97 = vector.extract_strided_slice %93 {offsets = [0, 64], sizes = [1, 64], strides = [1, 1]} : vector<1x192xf32> to vector<1x64xf32>
    %98 = vector.extract_strided_slice %93 {offsets = [0, 128], sizes = [1, 64], strides = [1, 1]} : vector<1x192xf32> to vector<1x64xf32>
    %99 = arith.mulf %97, %77 : vector<1x64xf32>
    %100 = arith.mulf %96, %95 : vector<1x64xf32>
    %101 = arith.addf %99, %100 : vector<1x64xf32>
    %102 = math.tanh %101 : vector<1x64xf32>
    %103 = arith.mulf %98, %102 : vector<1x64xf32>
    %104 = vector.extract_strided_slice %103 {offsets = [0, 0], sizes = [1, 32], strides = [1, 1]} : vector<1x64xf32> to vector<1x32xf32>
    %c1 = arith.constant 1 : index
    %c0_32 = arith.constant 0 : index
    %105 = vector.load %arg24[%c1, %c0_32] : memref<8x64xf32, #tpu.memory_space<vmem>>, vector<1x32xf32>
    tpu.vector_store %arg24[%c1, %c0_32], %104 {strides = array<i32>} : memref<8x64xf32, #tpu.memory_space<vmem>>, vector<1x32xf32>,
    %106 = vector.extract_strided_slice %103 {offsets = [0, 32], sizes = [1, 32], strides = [1, 1]} : vector<1x64xf32> to vector<1x32xf32>
    %c6 = arith.constant 6 : index
    %c32_33 = arith.constant 32 : index
    %107 = vector.load %arg24[%c6, %c32_33] : memref<8x64xf32, #tpu.memory_space<vmem>>, vector<1x32xf32>
    tpu.vector_store %arg24[%c6, %c32_33], %106 {strides = array<i32>} : memref<8x64xf32, #tpu.memory_space<vmem>>, vector<1x32xf32>,
    %108 = arith.truncf %103 : vector<1x64xf32> to vector<1x64xbf16>
    %cst_34 = arith.constant dense<0.000000e+00> : vector<1x256xf32>
    %109 = tpu.matmul %108, %38, %cst_34 {dimension_numbers = #tpu.dot_dimension_numbers<[1], [0], [0], [1], [0, 0, 1, 1], [], []>} : vector<1x64xbf16>, vector<64x256xbf16>, vector<1x256xf32> -> vector<1x256xf32>
    %110 = vector.extract_strided_slice %61 {offsets = [2, 0], sizes = [1, 256], strides = [1, 1]} : vector<8x256xf32> to vector<1x256xf32>
    %111 = arith.addf %109, %110 : vector<1x256xf32>
    %112 = vector.extract_strided_slice %111 {offsets = [0, 0], sizes = [1, 192], strides = [1, 1]} : vector<1x256xf32> to vector<1x192xf32>
    %113 = arith.negf %112 : vector<1x192xf32>
    %114 = math.exp %113 : vector<1x192xf32>
    %cst_35 = arith.constant 1.000000e+00 : f32
    %115 = vector.broadcast %cst_35 : f32 to vector<1x192xf32>
    %116 = arith.addf %115, %114 : vector<1x192xf32>
    %117 = arith.divf %115, %116 : vector<1x192xf32>
    %118 = vector.extract_strided_slice %111 {offsets = [0, 192], sizes = [1, 64], strides = [1, 1]} : vector<1x256xf32> to vector<1x64xf32>
    %119 = math.tanh %118 : vector<1x64xf32>
    %120 = vector.extract_strided_slice %117 {offsets = [0, 0], sizes = [1, 64], strides = [1, 1]} : vector<1x192xf32> to vector<1x64xf32>
    %121 = vector.extract_strided_slice %117 {offsets = [0, 64], sizes = [1, 64], strides = [1, 1]} : vector<1x192xf32> to vector<1x64xf32>
    %122 = vector.extract_strided_slice %117 {offsets = [0, 128], sizes = [1, 64], strides = [1, 1]} : vector<1x192xf32> to vector<1x64xf32>
    %123 = arith.mulf %121, %101 : vector<1x64xf32>
    %124 = arith.mulf %120, %119 : vector<1x64xf32>
    %125 = arith.addf %123, %124 : vector<1x64xf32>
    %126 = math.tanh %125 : vector<1x64xf32>
    %127 = arith.mulf %122, %126 : vector<1x64xf32>
    %128 = vector.extract_strided_slice %127 {offsets = [0, 0], sizes = [1, 32], strides = [1, 1]} : vector<1x64xf32> to vector<1x32xf32>
    %c2 = arith.constant 2 : index
    %c0_36 = arith.constant 0 : index
    %129 = vector.load %arg24[%c2, %c0_36] : memref<8x64xf32, #tpu.memory_space<vmem>>, vector<1x32xf32>
    tpu.vector_store %arg24[%c2, %c0_36], %128 {strides = array<i32>} : memref<8x64xf32, #tpu.memory_space<vmem>>, vector<1x32xf32>,
    %130 = vector.extract_strided_slice %127 {offsets = [0, 32], sizes = [1, 32], strides = [1, 1]} : vector<1x64xf32> to vector<1x32xf32>
    %c5 = arith.constant 5 : index
    %c32_37 = arith.constant 32 : index
    %131 = vector.load %arg24[%c5, %c32_37] : memref<8x64xf32, #tpu.memory_space<vmem>>, vector<1x32xf32>
    tpu.vector_store %arg24[%c5, %c32_37], %130 {strides = array<i32>} : memref<8x64xf32, #tpu.memory_space<vmem>>, vector<1x32xf32>,
    %132 = arith.truncf %127 : vector<1x64xf32> to vector<1x64xbf16>
    %cst_38 = arith.constant dense<0.000000e+00> : vector<1x256xf32>
    %133 = tpu.matmul %132, %38, %cst_38 {dimension_numbers = #tpu.dot_dimension_numbers<[1], [0], [0], [1], [0, 0, 1, 1], [], []>} : vector<1x64xbf16>, vector<64x256xbf16>, vector<1x256xf32> -> vector<1x256xf32>
    %134 = vector.extract_strided_slice %61 {offsets = [3, 0], sizes = [1, 256], strides = [1, 1]} : vector<8x256xf32> to vector<1x256xf32>
    %135 = arith.addf %133, %134 : vector<1x256xf32>
    %136 = vector.extract_strided_slice %135 {offsets = [0, 0], sizes = [1, 192], strides = [1, 1]} : vector<1x256xf32> to vector<1x192xf32>
    %137 = arith.negf %136 : vector<1x192xf32>
    %138 = math.exp %137 : vector<1x192xf32>
    %cst_39 = arith.constant 1.000000e+00 : f32
    %139 = vector.broadcast %cst_39 : f32 to vector<1x192xf32>
    %140 = arith.addf %139, %138 : vector<1x192xf32>
    %141 = arith.divf %139, %140 : vector<1x192xf32>
    %142 = vector.extract_strided_slice %135 {offsets = [0, 192], sizes = [1, 64], strides = [1, 1]} : vector<1x256xf32> to vector<1x64xf32>
    %143 = math.tanh %142 : vector<1x64xf32>
    %144 = vector.extract_strided_slice %141 {offsets = [0, 0], sizes = [1, 64], strides = [1, 1]} : vector<1x192xf32> to vector<1x64xf32>
    %145 = vector.extract_strided_slice %141 {offsets = [0, 64], sizes = [1, 64], strides = [1, 1]} : vector<1x192xf32> to vector<1x64xf32>
    %146 = vector.extract_strided_slice %141 {offsets = [0, 128], sizes = [1, 64], strides = [1, 1]} : vector<1x192xf32> to vector<1x64xf32>
    %147 = arith.mulf %145, %125 : vector<1x64xf32>
    %148 = arith.mulf %144, %143 : vector<1x64xf32>
    %149 = arith.addf %147, %148 : vector<1x64xf32>
    %150 = math.tanh %149 : vector<1x64xf32>
    %151 = arith.mulf %146, %150 : vector<1x64xf32>
    %152 = vector.extract_strided_slice %151 {offsets = [0, 0], sizes = [1, 32], strides = [1, 1]} : vector<1x64xf32> to vector<1x32xf32>
    %c3 = arith.constant 3 : index
    %c0_40 = arith.constant 0 : index
    %153 = vector.load %arg24[%c3, %c0_40] : memref<8x64xf32, #tpu.memory_space<vmem>>, vector<1x32xf32>
    tpu.vector_store %arg24[%c3, %c0_40], %152 {strides = array<i32>} : memref<8x64xf32, #tpu.memory_space<vmem>>, vector<1x32xf32>,
    %154 = vector.extract_strided_slice %151 {offsets = [0, 32], sizes = [1, 32], strides = [1, 1]} : vector<1x64xf32> to vector<1x32xf32>
    %c4 = arith.constant 4 : index
    %c32_41 = arith.constant 32 : index
    %155 = vector.load %arg24[%c4, %c32_41] : memref<8x64xf32, #tpu.memory_space<vmem>>, vector<1x32xf32>
    tpu.vector_store %arg24[%c4, %c32_41], %154 {strides = array<i32>} : memref<8x64xf32, #tpu.memory_space<vmem>>, vector<1x32xf32>,
    %156 = arith.truncf %151 : vector<1x64xf32> to vector<1x64xbf16>
    %cst_42 = arith.constant dense<0.000000e+00> : vector<1x256xf32>
    %157 = tpu.matmul %156, %38, %cst_42 {dimension_numbers = #tpu.dot_dimension_numbers<[1], [0], [0], [1], [0, 0, 1, 1], [], []>} : vector<1x64xbf16>, vector<64x256xbf16>, vector<1x256xf32> -> vector<1x256xf32>
    %158 = vector.extract_strided_slice %61 {offsets = [4, 0], sizes = [1, 256], strides = [1, 1]} : vector<8x256xf32> to vector<1x256xf32>
    %159 = arith.addf %157, %158 : vector<1x256xf32>
    %160 = vector.extract_strided_slice %159 {offsets = [0, 0], sizes = [1, 192], strides = [1, 1]} : vector<1x256xf32> to vector<1x192xf32>
    %161 = arith.negf %160 : vector<1x192xf32>
    %162 = math.exp %161 : vector<1x192xf32>
    %cst_43 = arith.constant 1.000000e+00 : f32
    %163 = vector.broadcast %cst_43 : f32 to vector<1x192xf32>
    %164 = arith.addf %163, %162 : vector<1x192xf32>
    %165 = arith.divf %163, %164 : vector<1x192xf32>
    %166 = vector.extract_strided_slice %159 {offsets = [0, 192], sizes = [1, 64], strides = [1, 1]} : vector<1x256xf32> to vector<1x64xf32>
    %167 = math.tanh %166 : vector<1x64xf32>
    %168 = vector.extract_strided_slice %165 {offsets = [0, 0], sizes = [1, 64], strides = [1, 1]} : vector<1x192xf32> to vector<1x64xf32>
    %169 = vector.extract_strided_slice %165 {offsets = [0, 64], sizes = [1, 64], strides = [1, 1]} : vector<1x192xf32> to vector<1x64xf32>
    %170 = vector.extract_strided_slice %165 {offsets = [0, 128], sizes = [1, 64], strides = [1, 1]} : vector<1x192xf32> to vector<1x64xf32>
    %171 = arith.mulf %169, %149 : vector<1x64xf32>
    %172 = arith.mulf %168, %167 : vector<1x64xf32>
    %173 = arith.addf %171, %172 : vector<1x64xf32>
    %174 = math.tanh %173 : vector<1x64xf32>
    %175 = arith.mulf %170, %174 : vector<1x64xf32>
    %176 = vector.extract_strided_slice %175 {offsets = [0, 0], sizes = [1, 32], strides = [1, 1]} : vector<1x64xf32> to vector<1x32xf32>
    %c4_44 = arith.constant 4 : index
    %c0_45 = arith.constant 0 : index
    %177 = vector.load %arg24[%c4_44, %c0_45] : memref<8x64xf32, #tpu.memory_space<vmem>>, vector<1x32xf32>
    tpu.vector_store %arg24[%c4_44, %c0_45], %176 {strides = array<i32>} : memref<8x64xf32, #tpu.memory_space<vmem>>, vector<1x32xf32>,
    %178 = vector.extract_strided_slice %175 {offsets = [0, 32], sizes = [1, 32], strides = [1, 1]} : vector<1x64xf32> to vector<1x32xf32>
    %c3_46 = arith.constant 3 : index
    %c32_47 = arith.constant 32 : index
    %179 = vector.load %arg24[%c3_46, %c32_47] : memref<8x64xf32, #tpu.memory_space<vmem>>, vector<1x32xf32>
    tpu.vector_store %arg24[%c3_46, %c32_47], %178 {strides = array<i32>} : memref<8x64xf32, #tpu.memory_space<vmem>>, vector<1x32xf32>,
    %180 = arith.truncf %175 : vector<1x64xf32> to vector<1x64xbf16>
    %cst_48 = arith.constant dense<0.000000e+00> : vector<1x256xf32>
    %181 = tpu.matmul %180, %38, %cst_48 {dimension_numbers = #tpu.dot_dimension_numbers<[1], [0], [0], [1], [0, 0, 1, 1], [], []>} : vector<1x64xbf16>, vector<64x256xbf16>, vector<1x256xf32> -> vector<1x256xf32>
    %182 = vector.extract_strided_slice %61 {offsets = [5, 0], sizes = [1, 256], strides = [1, 1]} : vector<8x256xf32> to vector<1x256xf32>
    %183 = arith.addf %181, %182 : vector<1x256xf32>
    %184 = vector.extract_strided_slice %183 {offsets = [0, 0], sizes = [1, 192], strides = [1, 1]} : vector<1x256xf32> to vector<1x192xf32>
    %185 = arith.negf %184 : vector<1x192xf32>
    %186 = math.exp %185 : vector<1x192xf32>
    %cst_49 = arith.constant 1.000000e+00 : f32
    %187 = vector.broadcast %cst_49 : f32 to vector<1x192xf32>
    %188 = arith.addf %187, %186 : vector<1x192xf32>
    %189 = arith.divf %187, %188 : vector<1x192xf32>
    %190 = vector.extract_strided_slice %183 {offsets = [0, 192], sizes = [1, 64], strides = [1, 1]} : vector<1x256xf32> to vector<1x64xf32>
    %191 = math.tanh %190 : vector<1x64xf32>
    %192 = vector.extract_strided_slice %189 {offsets = [0, 0], sizes = [1, 64], strides = [1, 1]} : vector<1x192xf32> to vector<1x64xf32>
    %193 = vector.extract_strided_slice %189 {offsets = [0, 64], sizes = [1, 64], strides = [1, 1]} : vector<1x192xf32> to vector<1x64xf32>
    %194 = vector.extract_strided_slice %189 {offsets = [0, 128], sizes = [1, 64], strides = [1, 1]} : vector<1x192xf32> to vector<1x64xf32>
    %195 = arith.mulf %193, %173 : vector<1x64xf32>
    %196 = arith.mulf %192, %191 : vector<1x64xf32>
    %197 = arith.addf %195, %196 : vector<1x64xf32>
    %198 = math.tanh %197 : vector<1x64xf32>
    %199 = arith.mulf %194, %198 : vector<1x64xf32>
    %200 = vector.extract_strided_slice %199 {offsets = [0, 0], sizes = [1, 32], strides = [1, 1]} : vector<1x64xf32> to vector<1x32xf32>
    %c5_50 = arith.constant 5 : index
    %c0_51 = arith.constant 0 : index
    %201 = vector.load %arg24[%c5_50, %c0_51] : memref<8x64xf32, #tpu.memory_space<vmem>>, vector<1x32xf32>
    tpu.vector_store %arg24[%c5_50, %c0_51], %200 {strides = array<i32>} : memref<8x64xf32, #tpu.memory_space<vmem>>, vector<1x32xf32>,
    %202 = vector.extract_strided_slice %199 {offsets = [0, 32], sizes = [1, 32], strides = [1, 1]} : vector<1x64xf32> to vector<1x32xf32>
    %c2_52 = arith.constant 2 : index
    %c32_53 = arith.constant 32 : index
    %203 = vector.load %arg24[%c2_52, %c32_53] : memref<8x64xf32, #tpu.memory_space<vmem>>, vector<1x32xf32>
    tpu.vector_store %arg24[%c2_52, %c32_53], %202 {strides = array<i32>} : memref<8x64xf32, #tpu.memory_space<vmem>>, vector<1x32xf32>,
    %204 = arith.truncf %199 : vector<1x64xf32> to vector<1x64xbf16>
    %cst_54 = arith.constant dense<0.000000e+00> : vector<1x256xf32>
    %205 = tpu.matmul %204, %38, %cst_54 {dimension_numbers = #tpu.dot_dimension_numbers<[1], [0], [0], [1], [0, 0, 1, 1], [], []>} : vector<1x64xbf16>, vector<64x256xbf16>, vector<1x256xf32> -> vector<1x256xf32>
    %206 = vector.extract_strided_slice %61 {offsets = [6, 0], sizes = [1, 256], strides = [1, 1]} : vector<8x256xf32> to vector<1x256xf32>
    %207 = arith.addf %205, %206 : vector<1x256xf32>
    %208 = vector.extract_strided_slice %207 {offsets = [0, 0], sizes = [1, 192], strides = [1, 1]} : vector<1x256xf32> to vector<1x192xf32>
    %209 = arith.negf %208 : vector<1x192xf32>
    %210 = math.exp %209 : vector<1x192xf32>
    %cst_55 = arith.constant 1.000000e+00 : f32
    %211 = vector.broadcast %cst_55 : f32 to vector<1x192xf32>
    %212 = arith.addf %211, %210 : vector<1x192xf32>
    %213 = arith.divf %211, %212 : vector<1x192xf32>
    %214 = vector.extract_strided_slice %207 {offsets = [0, 192], sizes = [1, 64], strides = [1, 1]} : vector<1x256xf32> to vector<1x64xf32>
    %215 = math.tanh %214 : vector<1x64xf32>
    %216 = vector.extract_strided_slice %213 {offsets = [0, 0], sizes = [1, 64], strides = [1, 1]} : vector<1x192xf32> to vector<1x64xf32>
    %217 = vector.extract_strided_slice %213 {offsets = [0, 64], sizes = [1, 64], strides = [1, 1]} : vector<1x192xf32> to vector<1x64xf32>
    %218 = vector.extract_strided_slice %213 {offsets = [0, 128], sizes = [1, 64], strides = [1, 1]} : vector<1x192xf32> to vector<1x64xf32>
    %219 = arith.mulf %217, %197 : vector<1x64xf32>
    %220 = arith.mulf %216, %215 : vector<1x64xf32>
    %221 = arith.addf %219, %220 : vector<1x64xf32>
    %222 = math.tanh %221 : vector<1x64xf32>
    %223 = arith.mulf %218, %222 : vector<1x64xf32>
    %224 = vector.extract_strided_slice %223 {offsets = [0, 0], sizes = [1, 32], strides = [1, 1]} : vector<1x64xf32> to vector<1x32xf32>
    %c6_56 = arith.constant 6 : index
    %c0_57 = arith.constant 0 : index
    %225 = vector.load %arg24[%c6_56, %c0_57] : memref<8x64xf32, #tpu.memory_space<vmem>>, vector<1x32xf32>
    tpu.vector_store %arg24[%c6_56, %c0_57], %224 {strides = array<i32>} : memref<8x64xf32, #tpu.memory_space<vmem>>, vector<1x32xf32>,
    %226 = vector.extract_strided_slice %223 {offsets = [0, 32], sizes = [1, 32], strides = [1, 1]} : vector<1x64xf32> to vector<1x32xf32>
    %c1_58 = arith.constant 1 : index
    %c32_59 = arith.constant 32 : index
    %227 = vector.load %arg24[%c1_58, %c32_59] : memref<8x64xf32, #tpu.memory_space<vmem>>, vector<1x32xf32>
    tpu.vector_store %arg24[%c1_58, %c32_59], %226 {strides = array<i32>} : memref<8x64xf32, #tpu.memory_space<vmem>>, vector<1x32xf32>,
    %228 = arith.truncf %223 : vector<1x64xf32> to vector<1x64xbf16>
    %cst_60 = arith.constant dense<0.000000e+00> : vector<1x256xf32>
    %229 = tpu.matmul %228, %38, %cst_60 {dimension_numbers = #tpu.dot_dimension_numbers<[1], [0], [0], [1], [0, 0, 1, 1], [], []>} : vector<1x64xbf16>, vector<64x256xbf16>, vector<1x256xf32> -> vector<1x256xf32>
    %230 = vector.extract_strided_slice %61 {offsets = [7, 0], sizes = [1, 256], strides = [1, 1]} : vector<8x256xf32> to vector<1x256xf32>
    %231 = arith.addf %229, %230 : vector<1x256xf32>
    %232 = vector.extract_strided_slice %231 {offsets = [0, 0], sizes = [1, 192], strides = [1, 1]} : vector<1x256xf32> to vector<1x192xf32>
    %233 = arith.negf %232 : vector<1x192xf32>
    %234 = math.exp %233 : vector<1x192xf32>
    %cst_61 = arith.constant 1.000000e+00 : f32
    %235 = vector.broadcast %cst_61 : f32 to vector<1x192xf32>
    %236 = arith.addf %235, %234 : vector<1x192xf32>
    %237 = arith.divf %235, %236 : vector<1x192xf32>
    %238 = vector.extract_strided_slice %231 {offsets = [0, 192], sizes = [1, 64], strides = [1, 1]} : vector<1x256xf32> to vector<1x64xf32>
    %239 = math.tanh %238 : vector<1x64xf32>
    %240 = vector.extract_strided_slice %237 {offsets = [0, 0], sizes = [1, 64], strides = [1, 1]} : vector<1x192xf32> to vector<1x64xf32>
    %241 = vector.extract_strided_slice %237 {offsets = [0, 64], sizes = [1, 64], strides = [1, 1]} : vector<1x192xf32> to vector<1x64xf32>
    %242 = vector.extract_strided_slice %237 {offsets = [0, 128], sizes = [1, 64], strides = [1, 1]} : vector<1x192xf32> to vector<1x64xf32>
    %243 = arith.mulf %241, %221 : vector<1x64xf32>
    %244 = arith.mulf %240, %239 : vector<1x64xf32>
    %245 = arith.addf %243, %244 : vector<1x64xf32>
    %246 = math.tanh %245 : vector<1x64xf32>
    %247 = arith.mulf %242, %246 : vector<1x64xf32>
    %248 = vector.extract_strided_slice %247 {offsets = [0, 0], sizes = [1, 32], strides = [1, 1]} : vector<1x64xf32> to vector<1x32xf32>
    %c7_62 = arith.constant 7 : index
    %c0_63 = arith.constant 0 : index
    %249 = vector.load %arg24[%c7_62, %c0_63] : memref<8x64xf32, #tpu.memory_space<vmem>>, vector<1x32xf32>
    tpu.vector_store %arg24[%c7_62, %c0_63], %248 {strides = array<i32>} : memref<8x64xf32, #tpu.memory_space<vmem>>, vector<1x32xf32>,
    %250 = vector.extract_strided_slice %247 {offsets = [0, 32], sizes = [1, 32], strides = [1, 1]} : vector<1x64xf32> to vector<1x32xf32>
    %c0_64 = arith.constant 0 : index
    %c32_65 = arith.constant 32 : index
    %251 = vector.load %arg24[%c0_64, %c32_65] : memref<8x64xf32, #tpu.memory_space<vmem>>, vector<1x32xf32>
    tpu.vector_store %arg24[%c0_64, %c32_65], %250 {strides = array<i32>} : memref<8x64xf32, #tpu.memory_space<vmem>>, vector<1x32xf32>,
    %c0_66 = arith.constant 0 : index
    %c0_67 = arith.constant 0 : index
    %252 = vector.load %arg24[%c0_66, %c0_67] : memref<8x64xf32, #tpu.memory_space<vmem>>, vector<8x64xf32>
    %c0_68 = arith.constant 0 : index
    %c0_69 = arith.constant 0 : index
    %253 = vector.load %arg9[%c0_68, %c0_69] : memref<64x256xbf16, #tpu.memory_space<vmem>>, vector<64x256xbf16>
    %c0_70 = arith.constant 0 : index
    %c0_71 = arith.constant 0 : index
    %254 = vector.load %arg10[%c0_70, %c0_71] : memref<64x256xbf16, #tpu.memory_space<vmem>>, vector<64x256xbf16>
    %c0_72 = arith.constant 0 : index
    %c0_73 = arith.constant 0 : index
    %255 = vector.load %arg11[%c0_72, %c0_73] : memref<1x256xf32, #tpu.memory_space<vmem>>, vector<1x256xf32>
    %256 = arith.truncf %252 : vector<8x64xf32> to vector<8x64xbf16>
    %cst_74 = arith.constant dense<0.000000e+00> : vector<8x256xf32>
    %257 = tpu.matmul %256, %253, %cst_74 {dimension_numbers = #tpu.dot_dimension_numbers<[1], [0], [0], [1], [0, 0, 1, 1], [], []>} : vector<8x64xbf16>, vector<64x256xbf16>, vector<8x256xf32> -> vector<8x256xf32>
    %258 = vector.broadcast %255 : vector<1x256xf32> to vector<8x256xf32>
    %259 = arith.addf %257, %258 : vector<8x256xf32>
    %260 = vector.extract_strided_slice %259 {offsets = [7, 0], sizes = [1, 256], strides = [1, 1]} : vector<8x256xf32> to vector<1x256xf32>
    %261 = vector.extract_strided_slice %259 {offsets = [6, 0], sizes = [1, 256], strides = [1, 1]} : vector<8x256xf32> to vector<1x256xf32>
    %262 = vector.extract_strided_slice %259 {offsets = [5, 0], sizes = [1, 256], strides = [1, 1]} : vector<8x256xf32> to vector<1x256xf32>
    %263 = vector.extract_strided_slice %259 {offsets = [4, 0], sizes = [1, 256], strides = [1, 1]} : vector<8x256xf32> to vector<1x256xf32>
    %264 = vector.extract_strided_slice %259 {offsets = [3, 0], sizes = [1, 256], strides = [1, 1]} : vector<8x256xf32> to vector<1x256xf32>
    %265 = vector.extract_strided_slice %259 {offsets = [2, 0], sizes = [1, 256], strides = [1, 1]} : vector<8x256xf32> to vector<1x256xf32>
    %266 = vector.extract_strided_slice %259 {offsets = [1, 0], sizes = [1, 256], strides = [1, 1]} : vector<8x256xf32> to vector<1x256xf32>
    %267 = vector.extract_strided_slice %259 {offsets = [0, 0], sizes = [1, 256], strides = [1, 1]} : vector<8x256xf32> to vector<1x256xf32>
    %268 = tpu.concatenate %260, %261, %262, %263, %264, %265, %266, %267 in 0 : vector<1x256xf32>, vector<1x256xf32>, vector<1x256xf32>, vector<1x256xf32>, vector<1x256xf32>, vector<1x256xf32>, vector<1x256xf32>, vector<1x256xf32> -> vector<8x256xf32>
    %269 = vector.extract_strided_slice %259 {offsets = [0, 0], sizes = [8, 32], strides = [1, 1]} : vector<8x256xf32> to vector<8x32xf32>
    %270 = vector.extract_strided_slice %268 {offsets = [0, 32], sizes = [8, 32], strides = [1, 1]} : vector<8x256xf32> to vector<8x32xf32>
    %271 = vector.extract_strided_slice %259 {offsets = [0, 64], sizes = [8, 32], strides = [1, 1]} : vector<8x256xf32> to vector<8x32xf32>
    %272 = vector.extract_strided_slice %268 {offsets = [0, 96], sizes = [8, 32], strides = [1, 1]} : vector<8x256xf32> to vector<8x32xf32>
    %273 = vector.extract_strided_slice %259 {offsets = [0, 128], sizes = [8, 32], strides = [1, 1]} : vector<8x256xf32> to vector<8x32xf32>
    %274 = vector.extract_strided_slice %268 {offsets = [0, 160], sizes = [8, 32], strides = [1, 1]} : vector<8x256xf32> to vector<8x32xf32>
    %275 = vector.extract_strided_slice %259 {offsets = [0, 192], sizes = [8, 32], strides = [1, 1]} : vector<8x256xf32> to vector<8x32xf32>
    %276 = vector.extract_strided_slice %268 {offsets = [0, 224], sizes = [8, 32], strides = [1, 1]} : vector<8x256xf32> to vector<8x32xf32>
    %277 = tpu.concatenate %269, %270, %271, %272, %273, %274, %275, %276 in 1 : vector<8x32xf32>, vector<8x32xf32>, vector<8x32xf32>, vector<8x32xf32>, vector<8x32xf32>, vector<8x32xf32>, vector<8x32xf32>, vector<8x32xf32> -> vector<8x256xf32>
    %cst_75 = arith.constant 0.000000e+00 : f32
    %278 = vector.broadcast %cst_75 : f32 to vector<1x64xf32>
    %279 = vector.extract_strided_slice %277 {offsets = [0, 0], sizes = [1, 256], strides = [1, 1]} : vector<8x256xf32> to vector<1x256xf32>
    %280 = vector.extract_strided_slice %279 {offsets = [0, 0], sizes = [1, 192], strides = [1, 1]} : vector<1x256xf32> to vector<1x192xf32>
    %281 = arith.negf %280 : vector<1x192xf32>
    %282 = math.exp %281 : vector<1x192xf32>
    %cst_76 = arith.constant 1.000000e+00 : f32
    %283 = vector.broadcast %cst_76 : f32 to vector<1x192xf32>
    %284 = arith.addf %283, %282 : vector<1x192xf32>
    %285 = arith.divf %283, %284 : vector<1x192xf32>
    %286 = vector.extract_strided_slice %279 {offsets = [0, 192], sizes = [1, 64], strides = [1, 1]} : vector<1x256xf32> to vector<1x64xf32>
    %287 = math.tanh %286 : vector<1x64xf32>
    %288 = vector.extract_strided_slice %285 {offsets = [0, 0], sizes = [1, 64], strides = [1, 1]} : vector<1x192xf32> to vector<1x64xf32>
    %289 = vector.extract_strided_slice %285 {offsets = [0, 64], sizes = [1, 64], strides = [1, 1]} : vector<1x192xf32> to vector<1x64xf32>
    %290 = vector.extract_strided_slice %285 {offsets = [0, 128], sizes = [1, 64], strides = [1, 1]} : vector<1x192xf32> to vector<1x64xf32>
    %291 = arith.mulf %289, %278 : vector<1x64xf32>
    %292 = arith.mulf %288, %287 : vector<1x64xf32>
    %293 = arith.addf %291, %292 : vector<1x64xf32>
    %294 = math.tanh %293 : vector<1x64xf32>
    %295 = arith.mulf %290, %294 : vector<1x64xf32>
    %296 = vector.extract_strided_slice %295 {offsets = [0, 0], sizes = [1, 32], strides = [1, 1]} : vector<1x64xf32> to vector<1x32xf32>
    %c0_77 = arith.constant 0 : index
    %c0_78 = arith.constant 0 : index
    %297 = vector.load %arg25[%c0_77, %c0_78] : memref<8x64xf32, #tpu.memory_space<vmem>>, vector<1x32xf32>
    tpu.vector_store %arg25[%c0_77, %c0_78], %296 {strides = array<i32>} : memref<8x64xf32, #tpu.memory_space<vmem>>, vector<1x32xf32>,
    %298 = vector.extract_strided_slice %295 {offsets = [0, 32], sizes = [1, 32], strides = [1, 1]} : vector<1x64xf32> to vector<1x32xf32>
    %c7_79 = arith.constant 7 : index
    %c32_80 = arith.constant 32 : index
    %299 = vector.load %arg25[%c7_79, %c32_80] : memref<8x64xf32, #tpu.memory_space<vmem>>, vector<1x32xf32>
    tpu.vector_store %arg25[%c7_79, %c32_80], %298 {strides = array<i32>} : memref<8x64xf32, #tpu.memory_space<vmem>>, vector<1x32xf32>,
    %300 = arith.truncf %295 : vector<1x64xf32> to vector<1x64xbf16>
    %cst_81 = arith.constant dense<0.000000e+00> : vector<1x256xf32>
    %301 = tpu.matmul %300, %254, %cst_81 {dimension_numbers = #tpu.dot_dimension_numbers<[1], [0], [0], [1], [0, 0, 1, 1], [], []>} : vector<1x64xbf16>, vector<64x256xbf16>, vector<1x256xf32> -> vector<1x256xf32>
    %302 = vector.extract_strided_slice %277 {offsets = [1, 0], sizes = [1, 256], strides = [1, 1]} : vector<8x256xf32> to vector<1x256xf32>
    %303 = arith.addf %301, %302 : vector<1x256xf32>
    %304 = vector.extract_strided_slice %303 {offsets = [0, 0], sizes = [1, 192], strides = [1, 1]} : vector<1x256xf32> to vector<1x192xf32>
    %305 = arith.negf %304 : vector<1x192xf32>
    %306 = math.exp %305 : vector<1x192xf32>
    %cst_82 = arith.constant 1.000000e+00 : f32
    %307 = vector.broadcast %cst_82 : f32 to vector<1x192xf32>
    %308 = arith.addf %307, %306 : vector<1x192xf32>
    %309 = arith.divf %307, %308 : vector<1x192xf32>
    %310 = vector.extract_strided_slice %303 {offsets = [0, 192], sizes = [1, 64], strides = [1, 1]} : vector<1x256xf32> to vector<1x64xf32>
    %311 = math.tanh %310 : vector<1x64xf32>
    %312 = vector.extract_strided_slice %309 {offsets = [0, 0], sizes = [1, 64], strides = [1, 1]} : vector<1x192xf32> to vector<1x64xf32>
    %313 = vector.extract_strided_slice %309 {offsets = [0, 64], sizes = [1, 64], strides = [1, 1]} : vector<1x192xf32> to vector<1x64xf32>
    %314 = vector.extract_strided_slice %309 {offsets = [0, 128], sizes = [1, 64], strides = [1, 1]} : vector<1x192xf32> to vector<1x64xf32>
    %315 = arith.mulf %313, %293 : vector<1x64xf32>
    %316 = arith.mulf %312, %311 : vector<1x64xf32>
    %317 = arith.addf %315, %316 : vector<1x64xf32>
    %318 = math.tanh %317 : vector<1x64xf32>
    %319 = arith.mulf %314, %318 : vector<1x64xf32>
    %320 = vector.extract_strided_slice %319 {offsets = [0, 0], sizes = [1, 32], strides = [1, 1]} : vector<1x64xf32> to vector<1x32xf32>
    %c1_83 = arith.constant 1 : index
    %c0_84 = arith.constant 0 : index
    %321 = vector.load %arg25[%c1_83, %c0_84] : memref<8x64xf32, #tpu.memory_space<vmem>>, vector<1x32xf32>
    tpu.vector_store %arg25[%c1_83, %c0_84], %320 {strides = array<i32>} : memref<8x64xf32, #tpu.memory_space<vmem>>, vector<1x32xf32>,
    %322 = vector.extract_strided_slice %319 {offsets = [0, 32], sizes = [1, 32], strides = [1, 1]} : vector<1x64xf32> to vector<1x32xf32>
    %c6_85 = arith.constant 6 : index
    %c32_86 = arith.constant 32 : index
    %323 = vector.load %arg25[%c6_85, %c32_86] : memref<8x64xf32, #tpu.memory_space<vmem>>, vector<1x32xf32>
    tpu.vector_store %arg25[%c6_85, %c32_86], %322 {strides = array<i32>} : memref<8x64xf32, #tpu.memory_space<vmem>>, vector<1x32xf32>,
    %324 = arith.truncf %319 : vector<1x64xf32> to vector<1x64xbf16>
    %cst_87 = arith.constant dense<0.000000e+00> : vector<1x256xf32>
    %325 = tpu.matmul %324, %254, %cst_87 {dimension_numbers = #tpu.dot_dimension_numbers<[1], [0], [0], [1], [0, 0, 1, 1], [], []>} : vector<1x64xbf16>, vector<64x256xbf16>, vector<1x256xf32> -> vector<1x256xf32>
    %326 = vector.extract_strided_slice %277 {offsets = [2, 0], sizes = [1, 256], strides = [1, 1]} : vector<8x256xf32> to vector<1x256xf32>
    %327 = arith.addf %325, %326 : vector<1x256xf32>
    %328 = vector.extract_strided_slice %327 {offsets = [0, 0], sizes = [1, 192], strides = [1, 1]} : vector<1x256xf32> to vector<1x192xf32>
    %329 = arith.negf %328 : vector<1x192xf32>
    %330 = math.exp %329 : vector<1x192xf32>
    %cst_88 = arith.constant 1.000000e+00 : f32
    %331 = vector.broadcast %cst_88 : f32 to vector<1x192xf32>
    %332 = arith.addf %331, %330 : vector<1x192xf32>
    %333 = arith.divf %331, %332 : vector<1x192xf32>
    %334 = vector.extract_strided_slice %327 {offsets = [0, 192], sizes = [1, 64], strides = [1, 1]} : vector<1x256xf32> to vector<1x64xf32>
    %335 = math.tanh %334 : vector<1x64xf32>
    %336 = vector.extract_strided_slice %333 {offsets = [0, 0], sizes = [1, 64], strides = [1, 1]} : vector<1x192xf32> to vector<1x64xf32>
    %337 = vector.extract_strided_slice %333 {offsets = [0, 64], sizes = [1, 64], strides = [1, 1]} : vector<1x192xf32> to vector<1x64xf32>
    %338 = vector.extract_strided_slice %333 {offsets = [0, 128], sizes = [1, 64], strides = [1, 1]} : vector<1x192xf32> to vector<1x64xf32>
    %339 = arith.mulf %337, %317 : vector<1x64xf32>
    %340 = arith.mulf %336, %335 : vector<1x64xf32>
    %341 = arith.addf %339, %340 : vector<1x64xf32>
    %342 = math.tanh %341 : vector<1x64xf32>
    %343 = arith.mulf %338, %342 : vector<1x64xf32>
    %344 = vector.extract_strided_slice %343 {offsets = [0, 0], sizes = [1, 32], strides = [1, 1]} : vector<1x64xf32> to vector<1x32xf32>
    %c2_89 = arith.constant 2 : index
    %c0_90 = arith.constant 0 : index
    %345 = vector.load %arg25[%c2_89, %c0_90] : memref<8x64xf32, #tpu.memory_space<vmem>>, vector<1x32xf32>
    tpu.vector_store %arg25[%c2_89, %c0_90], %344 {strides = array<i32>} : memref<8x64xf32, #tpu.memory_space<vmem>>, vector<1x32xf32>,
    %346 = vector.extract_strided_slice %343 {offsets = [0, 32], sizes = [1, 32], strides = [1, 1]} : vector<1x64xf32> to vector<1x32xf32>
    %c5_91 = arith.constant 5 : index
    %c32_92 = arith.constant 32 : index
    %347 = vector.load %arg25[%c5_91, %c32_92] : memref<8x64xf32, #tpu.memory_space<vmem>>, vector<1x32xf32>
    tpu.vector_store %arg25[%c5_91, %c32_92], %346 {strides = array<i32>} : memref<8x64xf32, #tpu.memory_space<vmem>>, vector<1x32xf32>,
    %348 = arith.truncf %343 : vector<1x64xf32> to vector<1x64xbf16>
    %cst_93 = arith.constant dense<0.000000e+00> : vector<1x256xf32>
    %349 = tpu.matmul %348, %254, %cst_93 {dimension_numbers = #tpu.dot_dimension_numbers<[1], [0], [0], [1], [0, 0, 1, 1], [], []>} : vector<1x64xbf16>, vector<64x256xbf16>, vector<1x256xf32> -> vector<1x256xf32>
    %350 = vector.extract_strided_slice %277 {offsets = [3, 0], sizes = [1, 256], strides = [1, 1]} : vector<8x256xf32> to vector<1x256xf32>
    %351 = arith.addf %349, %350 : vector<1x256xf32>
    %352 = vector.extract_strided_slice %351 {offsets = [0, 0], sizes = [1, 192], strides = [1, 1]} : vector<1x256xf32> to vector<1x192xf32>
    %353 = arith.negf %352 : vector<1x192xf32>
    %354 = math.exp %353 : vector<1x192xf32>
    %cst_94 = arith.constant 1.000000e+00 : f32
    %355 = vector.broadcast %cst_94 : f32 to vector<1x192xf32>
    %356 = arith.addf %355, %354 : vector<1x192xf32>
    %357 = arith.divf %355, %356 : vector<1x192xf32>
    %358 = vector.extract_strided_slice %351 {offsets = [0, 192], sizes = [1, 64], strides = [1, 1]} : vector<1x256xf32> to vector<1x64xf32>
    %359 = math.tanh %358 : vector<1x64xf32>
    %360 = vector.extract_strided_slice %357 {offsets = [0, 0], sizes = [1, 64], strides = [1, 1]} : vector<1x192xf32> to vector<1x64xf32>
    %361 = vector.extract_strided_slice %357 {offsets = [0, 64], sizes = [1, 64], strides = [1, 1]} : vector<1x192xf32> to vector<1x64xf32>
    %362 = vector.extract_strided_slice %357 {offsets = [0, 128], sizes = [1, 64], strides = [1, 1]} : vector<1x192xf32> to vector<1x64xf32>
    %363 = arith.mulf %361, %341 : vector<1x64xf32>
    %364 = arith.mulf %360, %359 : vector<1x64xf32>
    %365 = arith.addf %363, %364 : vector<1x64xf32>
    %366 = math.tanh %365 : vector<1x64xf32>
    %367 = arith.mulf %362, %366 : vector<1x64xf32>
    %368 = vector.extract_strided_slice %367 {offsets = [0, 0], sizes = [1, 32], strides = [1, 1]} : vector<1x64xf32> to vector<1x32xf32>
    %c3_95 = arith.constant 3 : index
    %c0_96 = arith.constant 0 : index
    %369 = vector.load %arg25[%c3_95, %c0_96] : memref<8x64xf32, #tpu.memory_space<vmem>>, vector<1x32xf32>
    tpu.vector_store %arg25[%c3_95, %c0_96], %368 {strides = array<i32>} : memref<8x64xf32, #tpu.memory_space<vmem>>, vector<1x32xf32>,
    %370 = vector.extract_strided_slice %367 {offsets = [0, 32], sizes = [1, 32], strides = [1, 1]} : vector<1x64xf32> to vector<1x32xf32>
    %c4_97 = arith.constant 4 : index
    %c32_98 = arith.constant 32 : index
    %371 = vector.load %arg25[%c4_97, %c32_98] : memref<8x64xf32, #tpu.memory_space<vmem>>, vector<1x32xf32>
    tpu.vector_store %arg25[%c4_97, %c32_98], %370 {strides = array<i32>} : memref<8x64xf32, #tpu.memory_space<vmem>>, vector<1x32xf32>,
    %372 = arith.truncf %367 : vector<1x64xf32> to vector<1x64xbf16>
    %cst_99 = arith.constant dense<0.000000e+00> : vector<1x256xf32>
    %373 = tpu.matmul %372, %254, %cst_99 {dimension_numbers = #tpu.dot_dimension_numbers<[1], [0], [0], [1], [0, 0, 1, 1], [], []>} : vector<1x64xbf16>, vector<64x256xbf16>, vector<1x256xf32> -> vector<1x256xf32>
    %374 = vector.extract_strided_slice %277 {offsets = [4, 0], sizes = [1, 256], strides = [1, 1]} : vector<8x256xf32> to vector<1x256xf32>
    %375 = arith.addf %373, %374 : vector<1x256xf32>
    %376 = vector.extract_strided_slice %375 {offsets = [0, 0], sizes = [1, 192], strides = [1, 1]} : vector<1x256xf32> to vector<1x192xf32>
    %377 = arith.negf %376 : vector<1x192xf32>
    %378 = math.exp %377 : vector<1x192xf32>
    %cst_100 = arith.constant 1.000000e+00 : f32
    %379 = vector.broadcast %cst_100 : f32 to vector<1x192xf32>
    %380 = arith.addf %379, %378 : vector<1x192xf32>
    %381 = arith.divf %379, %380 : vector<1x192xf32>
    %382 = vector.extract_strided_slice %375 {offsets = [0, 192], sizes = [1, 64], strides = [1, 1]} : vector<1x256xf32> to vector<1x64xf32>
    %383 = math.tanh %382 : vector<1x64xf32>
    %384 = vector.extract_strided_slice %381 {offsets = [0, 0], sizes = [1, 64], strides = [1, 1]} : vector<1x192xf32> to vector<1x64xf32>
    %385 = vector.extract_strided_slice %381 {offsets = [0, 64], sizes = [1, 64], strides = [1, 1]} : vector<1x192xf32> to vector<1x64xf32>
    %386 = vector.extract_strided_slice %381 {offsets = [0, 128], sizes = [1, 64], strides = [1, 1]} : vector<1x192xf32> to vector<1x64xf32>
    %387 = arith.mulf %385, %365 : vector<1x64xf32>
    %388 = arith.mulf %384, %383 : vector<1x64xf32>
    %389 = arith.addf %387, %388 : vector<1x64xf32>
    %390 = math.tanh %389 : vector<1x64xf32>
    %391 = arith.mulf %386, %390 : vector<1x64xf32>
    %392 = vector.extract_strided_slice %391 {offsets = [0, 0], sizes = [1, 32], strides = [1, 1]} : vector<1x64xf32> to vector<1x32xf32>
    %c4_101 = arith.constant 4 : index
    %c0_102 = arith.constant 0 : index
    %393 = vector.load %arg25[%c4_101, %c0_102] : memref<8x64xf32, #tpu.memory_space<vmem>>, vector<1x32xf32>
    tpu.vector_store %arg25[%c4_101, %c0_102], %392 {strides = array<i32>} : memref<8x64xf32, #tpu.memory_space<vmem>>, vector<1x32xf32>,
    %394 = vector.extract_strided_slice %391 {offsets = [0, 32], sizes = [1, 32], strides = [1, 1]} : vector<1x64xf32> to vector<1x32xf32>
    %c3_103 = arith.constant 3 : index
    %c32_104 = arith.constant 32 : index
    %395 = vector.load %arg25[%c3_103, %c32_104] : memref<8x64xf32, #tpu.memory_space<vmem>>, vector<1x32xf32>
    tpu.vector_store %arg25[%c3_103, %c32_104], %394 {strides = array<i32>} : memref<8x64xf32, #tpu.memory_space<vmem>>, vector<1x32xf32>,
    %396 = arith.truncf %391 : vector<1x64xf32> to vector<1x64xbf16>
    %cst_105 = arith.constant dense<0.000000e+00> : vector<1x256xf32>
    %397 = tpu.matmul %396, %254, %cst_105 {dimension_numbers = #tpu.dot_dimension_numbers<[1], [0], [0], [1], [0, 0, 1, 1], [], []>} : vector<1x64xbf16>, vector<64x256xbf16>, vector<1x256xf32> -> vector<1x256xf32>
    %398 = vector.extract_strided_slice %277 {offsets = [5, 0], sizes = [1, 256], strides = [1, 1]} : vector<8x256xf32> to vector<1x256xf32>
    %399 = arith.addf %397, %398 : vector<1x256xf32>
    %400 = vector.extract_strided_slice %399 {offsets = [0, 0], sizes = [1, 192], strides = [1, 1]} : vector<1x256xf32> to vector<1x192xf32>
    %401 = arith.negf %400 : vector<1x192xf32>
    %402 = math.exp %401 : vector<1x192xf32>
    %cst_106 = arith.constant 1.000000e+00 : f32
    %403 = vector.broadcast %cst_106 : f32 to vector<1x192xf32>
    %404 = arith.addf %403, %402 : vector<1x192xf32>
    %405 = arith.divf %403, %404 : vector<1x192xf32>
    %406 = vector.extract_strided_slice %399 {offsets = [0, 192], sizes = [1, 64], strides = [1, 1]} : vector<1x256xf32> to vector<1x64xf32>
    %407 = math.tanh %406 : vector<1x64xf32>
    %408 = vector.extract_strided_slice %405 {offsets = [0, 0], sizes = [1, 64], strides = [1, 1]} : vector<1x192xf32> to vector<1x64xf32>
    %409 = vector.extract_strided_slice %405 {offsets = [0, 64], sizes = [1, 64], strides = [1, 1]} : vector<1x192xf32> to vector<1x64xf32>
    %410 = vector.extract_strided_slice %405 {offsets = [0, 128], sizes = [1, 64], strides = [1, 1]} : vector<1x192xf32> to vector<1x64xf32>
    %411 = arith.mulf %409, %389 : vector<1x64xf32>
    %412 = arith.mulf %408, %407 : vector<1x64xf32>
    %413 = arith.addf %411, %412 : vector<1x64xf32>
    %414 = math.tanh %413 : vector<1x64xf32>
    %415 = arith.mulf %410, %414 : vector<1x64xf32>
    %416 = vector.extract_strided_slice %415 {offsets = [0, 0], sizes = [1, 32], strides = [1, 1]} : vector<1x64xf32> to vector<1x32xf32>
    %c5_107 = arith.constant 5 : index
    %c0_108 = arith.constant 0 : index
    %417 = vector.load %arg25[%c5_107, %c0_108] : memref<8x64xf32, #tpu.memory_space<vmem>>, vector<1x32xf32>
    tpu.vector_store %arg25[%c5_107, %c0_108], %416 {strides = array<i32>} : memref<8x64xf32, #tpu.memory_space<vmem>>, vector<1x32xf32>,
    %418 = vector.extract_strided_slice %415 {offsets = [0, 32], sizes = [1, 32], strides = [1, 1]} : vector<1x64xf32> to vector<1x32xf32>
    %c2_109 = arith.constant 2 : index
    %c32_110 = arith.constant 32 : index
    %419 = vector.load %arg25[%c2_109, %c32_110] : memref<8x64xf32, #tpu.memory_space<vmem>>, vector<1x32xf32>
    tpu.vector_store %arg25[%c2_109, %c32_110], %418 {strides = array<i32>} : memref<8x64xf32, #tpu.memory_space<vmem>>, vector<1x32xf32>,
    %420 = arith.truncf %415 : vector<1x64xf32> to vector<1x64xbf16>
    %cst_111 = arith.constant dense<0.000000e+00> : vector<1x256xf32>
    %421 = tpu.matmul %420, %254, %cst_111 {dimension_numbers = #tpu.dot_dimension_numbers<[1], [0], [0], [1], [0, 0, 1, 1], [], []>} : vector<1x64xbf16>, vector<64x256xbf16>, vector<1x256xf32> -> vector<1x256xf32>
    %422 = vector.extract_strided_slice %277 {offsets = [6, 0], sizes = [1, 256], strides = [1, 1]} : vector<8x256xf32> to vector<1x256xf32>
    %423 = arith.addf %421, %422 : vector<1x256xf32>
    %424 = vector.extract_strided_slice %423 {offsets = [0, 0], sizes = [1, 192], strides = [1, 1]} : vector<1x256xf32> to vector<1x192xf32>
    %425 = arith.negf %424 : vector<1x192xf32>
    %426 = math.exp %425 : vector<1x192xf32>
    %cst_112 = arith.constant 1.000000e+00 : f32
    %427 = vector.broadcast %cst_112 : f32 to vector<1x192xf32>
    %428 = arith.addf %427, %426 : vector<1x192xf32>
    %429 = arith.divf %427, %428 : vector<1x192xf32>
    %430 = vector.extract_strided_slice %423 {offsets = [0, 192], sizes = [1, 64], strides = [1, 1]} : vector<1x256xf32> to vector<1x64xf32>
    %431 = math.tanh %430 : vector<1x64xf32>
    %432 = vector.extract_strided_slice %429 {offsets = [0, 0], sizes = [1, 64], strides = [1, 1]} : vector<1x192xf32> to vector<1x64xf32>
    %433 = vector.extract_strided_slice %429 {offsets = [0, 64], sizes = [1, 64], strides = [1, 1]} : vector<1x192xf32> to vector<1x64xf32>
    %434 = vector.extract_strided_slice %429 {offsets = [0, 128], sizes = [1, 64], strides = [1, 1]} : vector<1x192xf32> to vector<1x64xf32>
    %435 = arith.mulf %433, %413 : vector<1x64xf32>
    %436 = arith.mulf %432, %431 : vector<1x64xf32>
    %437 = arith.addf %435, %436 : vector<1x64xf32>
    %438 = math.tanh %437 : vector<1x64xf32>
    %439 = arith.mulf %434, %438 : vector<1x64xf32>
    %440 = vector.extract_strided_slice %439 {offsets = [0, 0], sizes = [1, 32], strides = [1, 1]} : vector<1x64xf32> to vector<1x32xf32>
    %c6_113 = arith.constant 6 : index
    %c0_114 = arith.constant 0 : index
    %441 = vector.load %arg25[%c6_113, %c0_114] : memref<8x64xf32, #tpu.memory_space<vmem>>, vector<1x32xf32>
    tpu.vector_store %arg25[%c6_113, %c0_114], %440 {strides = array<i32>} : memref<8x64xf32, #tpu.memory_space<vmem>>, vector<1x32xf32>,
    %442 = vector.extract_strided_slice %439 {offsets = [0, 32], sizes = [1, 32], strides = [1, 1]} : vector<1x64xf32> to vector<1x32xf32>
    %c1_115 = arith.constant 1 : index
    %c32_116 = arith.constant 32 : index
    %443 = vector.load %arg25[%c1_115, %c32_116] : memref<8x64xf32, #tpu.memory_space<vmem>>, vector<1x32xf32>
    tpu.vector_store %arg25[%c1_115, %c32_116], %442 {strides = array<i32>} : memref<8x64xf32, #tpu.memory_space<vmem>>, vector<1x32xf32>,
    %444 = arith.truncf %439 : vector<1x64xf32> to vector<1x64xbf16>
    %cst_117 = arith.constant dense<0.000000e+00> : vector<1x256xf32>
    %445 = tpu.matmul %444, %254, %cst_117 {dimension_numbers = #tpu.dot_dimension_numbers<[1], [0], [0], [1], [0, 0, 1, 1], [], []>} : vector<1x64xbf16>, vector<64x256xbf16>, vector<1x256xf32> -> vector<1x256xf32>
    %446 = vector.extract_strided_slice %277 {offsets = [7, 0], sizes = [1, 256], strides = [1, 1]} : vector<8x256xf32> to vector<1x256xf32>
    %447 = arith.addf %445, %446 : vector<1x256xf32>
    %448 = vector.extract_strided_slice %447 {offsets = [0, 0], sizes = [1, 192], strides = [1, 1]} : vector<1x256xf32> to vector<1x192xf32>
    %449 = arith.negf %448 : vector<1x192xf32>
    %450 = math.exp %449 : vector<1x192xf32>
    %cst_118 = arith.constant 1.000000e+00 : f32
    %451 = vector.broadcast %cst_118 : f32 to vector<1x192xf32>
    %452 = arith.addf %451, %450 : vector<1x192xf32>
    %453 = arith.divf %451, %452 : vector<1x192xf32>
    %454 = vector.extract_strided_slice %447 {offsets = [0, 192], sizes = [1, 64], strides = [1, 1]} : vector<1x256xf32> to vector<1x64xf32>
    %455 = math.tanh %454 : vector<1x64xf32>
    %456 = vector.extract_strided_slice %453 {offsets = [0, 0], sizes = [1, 64], strides = [1, 1]} : vector<1x192xf32> to vector<1x64xf32>
    %457 = vector.extract_strided_slice %453 {offsets = [0, 64], sizes = [1, 64], strides = [1, 1]} : vector<1x192xf32> to vector<1x64xf32>
    %458 = vector.extract_strided_slice %453 {offsets = [0, 128], sizes = [1, 64], strides = [1, 1]} : vector<1x192xf32> to vector<1x64xf32>
    %459 = arith.mulf %457, %437 : vector<1x64xf32>
    %460 = arith.mulf %456, %455 : vector<1x64xf32>
    %461 = arith.addf %459, %460 : vector<1x64xf32>
    %462 = math.tanh %461 : vector<1x64xf32>
    %463 = arith.mulf %458, %462 : vector<1x64xf32>
    %464 = vector.extract_strided_slice %463 {offsets = [0, 0], sizes = [1, 32], strides = [1, 1]} : vector<1x64xf32> to vector<1x32xf32>
    %c7_119 = arith.constant 7 : index
    %c0_120 = arith.constant 0 : index
    %465 = vector.load %arg25[%c7_119, %c0_120] : memref<8x64xf32, #tpu.memory_space<vmem>>, vector<1x32xf32>
    tpu.vector_store %arg25[%c7_119, %c0_120], %464 {strides = array<i32>} : memref<8x64xf32, #tpu.memory_space<vmem>>, vector<1x32xf32>,
    %466 = vector.extract_strided_slice %463 {offsets = [0, 32], sizes = [1, 32], strides = [1, 1]} : vector<1x64xf32> to vector<1x32xf32>
    %c0_121 = arith.constant 0 : index
    %c32_122 = arith.constant 32 : index
    %467 = vector.load %arg25[%c0_121, %c32_122] : memref<8x64xf32, #tpu.memory_space<vmem>>, vector<1x32xf32>
    tpu.vector_store %arg25[%c0_121, %c32_122], %466 {strides = array<i32>} : memref<8x64xf32, #tpu.memory_space<vmem>>, vector<1x32xf32>,
    %c0_123 = arith.constant 0 : index
    %c0_124 = arith.constant 0 : index
    %468 = vector.load %arg25[%c0_123, %c0_124] : memref<8x64xf32, #tpu.memory_space<vmem>>, vector<8x64xf32>
    %469 = arith.truncf %468 : vector<8x64xf32> to vector<8x64xbf16>
    %c0_125 = arith.constant 0 : index
    %c0_126 = arith.constant 0 : index
    %470 = vector.load %arg12[%c0_125, %c0_126] : memref<64x192xbf16, #tpu.memory_space<vmem>>, vector<64x192xbf16>
    %cst_127 = arith.constant dense<0.000000e+00> : vector<8x192xf32>
    %471 = tpu.matmul %469, %470, %cst_127 {dimension_numbers = #tpu.dot_dimension_numbers<[1], [0], [0], [1], [0, 0, 1, 1], [], []>} : vector<8x64xbf16>, vector<64x192xbf16>, vector<8x192xf32> -> vector<8x192xf32>
    %c0_128 = arith.constant 0 : index
    %c0_129 = arith.constant 0 : index
    %472 = vector.load %arg13[%c0_128, %c0_129] : memref<1x192xf32, #tpu.memory_space<vmem>>, vector<1x192xf32>
    %473 = vector.broadcast %472 : vector<1x192xf32> to vector<8x192xf32>
    %474 = arith.addf %471, %473 : vector<8x192xf32>
    %475 = vector.extract_strided_slice %474 {offsets = [0, 0], sizes = [8, 64], strides = [1, 1]} : vector<8x192xf32> to vector<8x64xf32>
    %cst_130 = arith.constant 0.353553385 : f32
    %476 = vector.broadcast %cst_130 : f32 to vector<8x64xf32>
    %477 = arith.mulf %475, %476 : vector<8x64xf32>
    %478 = vector.shape_cast %477 : vector<8x64xf32> to vector<8x8x8xf32>
    %479 = vector.extract_strided_slice %474 {offsets = [0, 64], sizes = [8, 64], strides = [1, 1]} : vector<8x192xf32> to vector<8x64xf32>
    %480 = vector.shape_cast %479 : vector<8x64xf32> to vector<8x8x8xf32>
    %481 = vector.extract_strided_slice %474 {offsets = [0, 128], sizes = [8, 64], strides = [1, 1]} : vector<8x192xf32> to vector<8x64xf32>
    %482 = vector.shape_cast %481 : vector<8x64xf32> to vector<8x8x8xf32>
    %483 = arith.truncf %478 : vector<8x8x8xf32> to vector<8x8x8xbf16>
    %484 = arith.truncf %480 : vector<8x8x8xf32> to vector<8x8x8xbf16>
    "tpu.trace_start"() <{level = 10 : i32, message = "ihd,jhd->hij"}> : () -> ()
    %cst_131 = arith.constant dense<0.000000e+00> : vector<8x8x8xf32>
    %485 = tpu.matmul %483, %484, %cst_131 {dimension_numbers = #tpu.dot_dimension_numbers<[2], [2], [0], [0], [0, 1, 0, 0, 1, 0], [1], [1]>} : vector<8x8x8xbf16>, vector<8x8x8xbf16>, vector<8x8x8xf32> -> vector<8x8x8xf32>
    "tpu.trace_stop"() : () -> ()
    %cst_132 = arith.constant dense<0xFF800000> : vector<8x8xf32>
    %486 = vector.multi_reduction <maximumf>, %485, %cst_132 [2] : vector<8x8x8xf32> to vector<8x8xf32>
    %487 = vector.shape_cast %486 : vector<8x8xf32> to vector<8x8x1xf32>
    %488 = vector.broadcast %487 : vector<8x8x1xf32> to vector<8x8x8xf32>
    %489 = arith.subf %485, %488 : vector<8x8x8xf32>
    %490 = math.exp %489 : vector<8x8x8xf32>
    %cst_133 = arith.constant dense<0.000000e+00> : vector<8x8xf32>
    %491 = vector.multi_reduction <add>, %490, %cst_133 [2] : vector<8x8x8xf32> to vector<8x8xf32>
    %492 = vector.shape_cast %491 : vector<8x8xf32> to vector<8x8x1xf32>
    %493 = tpu.reciprocal %492 {approx = true} : vector<8x8x1xf32> -> vector<8x8x1xf32>
    %494 = vector.broadcast %493 : vector<8x8x1xf32> to vector<8x8x8xf32>
    %495 = arith.mulf %490, %494 : vector<8x8x8xf32>
    %496 = arith.truncf %495 : vector<8x8x8xf32> to vector<8x8x8xbf16>
    %497 = arith.truncf %482 : vector<8x8x8xf32> to vector<8x8x8xbf16>
    "tpu.trace_start"() <{level = 10 : i32, message = "hij,jhd->ihd"}> : () -> ()
    %cst_134 = arith.constant dense<0.000000e+00> : vector<8x8x8xf32>
    %498 = tpu.matmul %497, %496, %cst_134 {dimension_numbers = #tpu.dot_dimension_numbers<[0], [2], [2], [1], [0, 1, 0, 2, 1, 1], [1], [0]>} : vector<8x8x8xbf16>, vector<8x8x8xbf16>, vector<8x8x8xf32> -> vector<8x8x8xf32>
    %499 = tpu.transpose %498, [2, 0, 1] : vector<8x8x8xf32> -> vector<8x8x8xf32>
    "tpu.trace_stop"() : () -> ()
    %500 = vector.shape_cast %499 : vector<8x8x8xf32> to vector<8x64xf32>
    %501 = arith.truncf %500 : vector<8x64xf32> to vector<8x64xbf16>
    %c0_135 = arith.constant 0 : index
    %c0_136 = arith.constant 0 : index
    %502 = vector.load %arg14[%c0_135, %c0_136] : memref<64x64xbf16, #tpu.memory_space<vmem>>, vector<64x64xbf16>
    %cst_137 = arith.constant dense<0.000000e+00> : vector<8x64xf32>
    %503 = tpu.matmul %501, %502, %cst_137 {dimension_numbers = #tpu.dot_dimension_numbers<[1], [0], [0], [1], [0, 0, 1, 1], [], []>} : vector<8x64xbf16>, vector<64x64xbf16>, vector<8x64xf32> -> vector<8x64xf32>
    %c0_138 = arith.constant 0 : index
    %c0_139 = arith.constant 0 : index
    %504 = vector.load %arg15[%c0_138, %c0_139] : memref<1x64xf32, #tpu.memory_space<vmem>>, vector<1x64xf32>
    %505 = vector.broadcast %504 : vector<1x64xf32> to vector<8x64xf32>
    %506 = arith.addf %503, %505 : vector<8x64xf32>
    %cst_140 = arith.constant dense<0.000000e+00> : vector<8x8xf32>
    %507 = vector.multi_reduction <add>, %495, %cst_140 [0] : vector<8x8x8xf32> to vector<8x8xf32>
    %cst_141 = arith.constant 1.250000e-01 : f32
    %508 = vector.broadcast %cst_141 : f32 to vector<8x8xf32>
    %509 = arith.mulf %507, %508 : vector<8x8xf32>
    %cst_142 = arith.constant 0.000000e+00 : f32
    %510 = vector.broadcast %cst_142 : f32 to vector<8x120xf32>
    %511 = tpu.concatenate %509, %510 in 1 : vector<8x8xf32>, vector<8x120xf32> -> vector<8x128xf32>
    %512 = vector.shape_cast %511 : vector<8x128xf32> to vector<1x8x128xf32>
    %c0_143 = arith.constant 0 : index
    %c0_144 = arith.constant 0 : index
    %c0_145 = arith.constant 0 : index
    %513 = vector.load %arg23[%c0_143, %c0_144, %c0_145] : memref<1x8x128xf32, #tpu.memory_space<vmem>>, vector<1x8x128xf32>
    tpu.vector_store %arg23[%c0_143, %c0_144, %c0_145], %512 {strides = array<i32>} : memref<1x8x128xf32, #tpu.memory_space<vmem>>, vector<1x8x128xf32>,
    %514 = arith.truncf %506 : vector<8x64xf32> to vector<8x64xbf16>
    %c0_146 = arith.constant 0 : index
    %c0_147 = arith.constant 0 : index
    %515 = vector.load %arg16[%c0_146, %c0_147] : memref<64x32xbf16, #tpu.memory_space<vmem>>, vector<64x32xbf16>
    %cst_148 = arith.constant dense<0.000000e+00> : vector<8x32xf32>
    %516 = tpu.matmul %514, %515, %cst_148 {dimension_numbers = #tpu.dot_dimension_numbers<[1], [0], [0], [1], [0, 0, 1, 1], [], []>} : vector<8x64xbf16>, vector<64x32xbf16>, vector<8x32xf32> -> vector<8x32xf32>
    %c0_149 = arith.constant 0 : index
    %c0_150 = arith.constant 0 : index
    %517 = vector.load %arg17[%c0_149, %c0_150] : memref<1x32xf32, #tpu.memory_space<vmem>>, vector<1x32xf32>
    %518 = vector.broadcast %517 : vector<1x32xf32> to vector<8x32xf32>
    %519 = arith.addf %516, %518 : vector<8x32xf32>
    %cst_151 = arith.constant 0.000000e+00 : f32
    %520 = vector.broadcast %cst_151 : f32 to vector<8x32xf32>
    %521 = arith.maximumf %519, %520 : vector<8x32xf32>
    %522 = arith.truncf %521 : vector<8x32xf32> to vector<8x32xbf16>
    %c0_152 = arith.constant 0 : index
    %c0_153 = arith.constant 0 : index
    %523 = vector.load %arg18[%c0_152, %c0_153] : memref<32x16xbf16, #tpu.memory_space<vmem>>, vector<32x16xbf16>
    %cst_154 = arith.constant dense<0.000000e+00> : vector<8x16xf32>
    %524 = tpu.matmul %522, %523, %cst_154 {dimension_numbers = #tpu.dot_dimension_numbers<[1], [0], [0], [1], [0, 0, 1, 1], [], []>} : vector<8x32xbf16>, vector<32x16xbf16>, vector<8x16xf32> -> vector<8x16xf32>
    %c0_155 = arith.constant 0 : index
    %c0_156 = arith.constant 0 : index
    %525 = vector.load %arg19[%c0_155, %c0_156] : memref<1x16xf32, #tpu.memory_space<vmem>>, vector<1x16xf32>
    %526 = vector.broadcast %525 : vector<1x16xf32> to vector<8x16xf32>
    %527 = arith.addf %524, %526 : vector<8x16xf32>
    %cst_157 = arith.constant 0.000000e+00 : f32
    %528 = vector.broadcast %cst_157 : f32 to vector<8x16xf32>
    %529 = arith.maximumf %527, %528 : vector<8x16xf32>
    %530 = arith.truncf %529 : vector<8x16xf32> to vector<8x16xbf16>
    %c0_158 = arith.constant 0 : index
    %c0_159 = arith.constant 0 : index
    %531 = vector.load %arg20[%c0_158, %c0_159] : memref<16x128xbf16, #tpu.memory_space<vmem>>, vector<16x128xbf16>
    %cst_160 = arith.constant dense<0.000000e+00> : vector<8x128xf32>
    %532 = tpu.matmul %530, %531, %cst_160 {dimension_numbers = #tpu.dot_dimension_numbers<[1], [0], [0], [1], [0, 0, 1, 1], [], []>} : vector<8x16xbf16>, vector<16x128xbf16>, vector<8x128xf32> -> vector<8x128xf32>
    %c0_161 = arith.constant 0 : index
    %c0_162 = arith.constant 0 : index
    %533 = vector.load %arg21[%c0_161, %c0_162] : memref<1x128xf32, #tpu.memory_space<vmem>>, vector<1x128xf32>
    %534 = vector.broadcast %533 : vector<1x128xf32> to vector<8x128xf32>
    %535 = arith.addf %532, %534 : vector<8x128xf32>
    %536 = vector.shape_cast %535 : vector<8x128xf32> to vector<1x8x128xf32>
    %c0_163 = arith.constant 0 : index
    %c0_164 = arith.constant 0 : index
    %c0_165 = arith.constant 0 : index
    %537 = vector.load %arg22[%c0_163, %c0_164, %c0_165] : memref<1x8x128xf32, #tpu.memory_space<vmem>>, vector<1x8x128xf32>
    tpu.vector_store %arg22[%c0_163, %c0_164, %c0_165], %536 {strides = array<i32>} : memref<1x8x128xf32, #tpu.memory_space<vmem>>, vector<1x8x128xf32>,
    return
  }
  func.func @transform_0(%arg0: i32) -> (i32, i32, i32) {
    %c0_i32 = arith.constant 0 : i32
    %c0_i32_0 = arith.constant 0 : i32
    %c0_i32_1 = arith.constant 0 : i32
    return %arg0, %c0_i32, %c0_i32_0 : i32, i32, i32
  }
  func.func @transform_1(%arg0: i32) -> (i32, i32, i32) {
    %c0_i32 = arith.constant 0 : i32
    %c0_i32_0 = arith.constant 0 : i32
    %c0_i32_1 = arith.constant 0 : i32
    return %arg0, %c0_i32, %c0_i32_0 : i32, i32, i32
  }
  func.func @transform_2(%arg0: i32) -> (i32, i32) {
    %c0_i32 = arith.constant 0 : i32
    %c0_i32_0 = arith.constant 0 : i32
    %c0_i32_1 = arith.constant 0 : i32
    return %c0_i32, %c0_i32_0 : i32, i32
  }
  func.func @transform_3(%arg0: i32) -> (i32, i32) {
    %c0_i32 = arith.constant 0 : i32
    %c0_i32_0 = arith.constant 0 : i32
    %c0_i32_1 = arith.constant 0 : i32
    return %c0_i32, %c0_i32_0 : i32, i32
  }
  func.func @transform_4(%arg0: i32) -> (i32, i32) {
    %c0_i32 = arith.constant 0 : i32
    %c0_i32_0 = arith.constant 0 : i32
    %c0_i32_1 = arith.constant 0 : i32
    return %c0_i32, %c0_i32_0 : i32, i32
  }
  func.func @transform_5(%arg0: i32) -> (i32, i32) {
    %c0_i32 = arith.constant 0 : i32
    %c0_i32_0 = arith.constant 0 : i32
    %c0_i32_1 = arith.constant 0 : i32
    return %c0_i32, %c0_i32_0 : i32, i32
  }
  func.func @transform_6(%arg0: i32) -> (i32, i32) {
    %c0_i32 = arith.constant 0 : i32
    %c0_i32_0 = arith.constant 0 : i32
    %c0_i32_1 = arith.constant 0 : i32
    return %c0_i32, %c0_i32_0 : i32, i32
  }
  func.func @transform_7(%arg0: i32) -> (i32, i32) {
    %c0_i32 = arith.constant 0 : i32
    %c0_i32_0 = arith.constant 0 : i32
    %c0_i32_1 = arith.constant 0 : i32
    return %c0_i32, %c0_i32_0 : i32, i32
  }
  func.func @transform_8(%arg0: i32) -> (i32, i32) {
    %c0_i32 = arith.constant 0 : i32
    %c0_i32_0 = arith.constant 0 : i32
    %c0_i32_1 = arith.constant 0 : i32
    return %c0_i32, %c0_i32_0 : i32, i32
  }
  func.func @transform_9(%arg0: i32) -> (i32, i32) {
    %c0_i32 = arith.constant 0 : i32
    %c0_i32_0 = arith.constant 0 : i32
    %c0_i32_1 = arith.constant 0 : i32
    return %c0_i32, %c0_i32_0 : i32, i32
  }
  func.func @transform_10(%arg0: i32) -> (i32, i32) {
    %c0_i32 = arith.constant 0 : i32
    %c0_i32_0 = arith.constant 0 : i32
    %c0_i32_1 = arith.constant 0 : i32
    return %c0_i32, %c0_i32_0 : i32, i32
  }
  func.func @transform_11(%arg0: i32) -> (i32, i32) {
    %c0_i32 = arith.constant 0 : i32
    %c0_i32_0 = arith.constant 0 : i32
    %c0_i32_1 = arith.constant 0 : i32
    return %c0_i32, %c0_i32_0 : i32, i32
  }
  func.func @transform_12(%arg0: i32) -> (i32, i32) {
    %c0_i32 = arith.constant 0 : i32
    %c0_i32_0 = arith.constant 0 : i32
    %c0_i32_1 = arith.constant 0 : i32
    return %c0_i32, %c0_i32_0 : i32, i32
  }
  func.func @transform_13(%arg0: i32) -> (i32, i32) {
    %c0_i32 = arith.constant 0 : i32
    %c0_i32_0 = arith.constant 0 : i32
    %c0_i32_1 = arith.constant 0 : i32
    return %c0_i32, %c0_i32_0 : i32, i32
  }
  func.func @transform_14(%arg0: i32) -> (i32, i32) {
    %c0_i32 = arith.constant 0 : i32
    %c0_i32_0 = arith.constant 0 : i32
    %c0_i32_1 = arith.constant 0 : i32
    return %c0_i32, %c0_i32_0 : i32, i32
  }
  func.func @transform_15(%arg0: i32) -> (i32, i32) {
    %c0_i32 = arith.constant 0 : i32
    %c0_i32_0 = arith.constant 0 : i32
    %c0_i32_1 = arith.constant 0 : i32
    return %c0_i32, %c0_i32_0 : i32, i32
  }
  func.func @transform_16(%arg0: i32) -> (i32, i32) {
    %c0_i32 = arith.constant 0 : i32
    %c0_i32_0 = arith.constant 0 : i32
    %c0_i32_1 = arith.constant 0 : i32
    return %c0_i32, %c0_i32_0 : i32, i32
  }
  func.func @transform_17(%arg0: i32) -> (i32, i32) {
    %c0_i32 = arith.constant 0 : i32
    %c0_i32_0 = arith.constant 0 : i32
    %c0_i32_1 = arith.constant 0 : i32
    return %c0_i32, %c0_i32_0 : i32, i32
  }
  func.func @transform_18(%arg0: i32) -> (i32, i32) {
    %c0_i32 = arith.constant 0 : i32
    %c0_i32_0 = arith.constant 0 : i32
    %c0_i32_1 = arith.constant 0 : i32
    return %c0_i32, %c0_i32_0 : i32, i32
  }
  func.func @transform_19(%arg0: i32) -> (i32, i32) {
    %c0_i32 = arith.constant 0 : i32
    %c0_i32_0 = arith.constant 0 : i32
    %c0_i32_1 = arith.constant 0 : i32
    return %c0_i32, %c0_i32_0 : i32, i32
  }
  func.func @transform_20(%arg0: i32) -> (i32, i32) {
    %c0_i32 = arith.constant 0 : i32
    %c0_i32_0 = arith.constant 0 : i32
    %c0_i32_1 = arith.constant 0 : i32
    return %c0_i32, %c0_i32_0 : i32, i32
  }
  func.func @transform_21(%arg0: i32) -> (i32, i32, i32) {
    %c0_i32 = arith.constant 0 : i32
    %c0_i32_0 = arith.constant 0 : i32
    %c0_i32_1 = arith.constant 0 : i32
    return %arg0, %c0_i32, %c0_i32_0 : i32, i32, i32
  }
  func.func @transform_22(%arg0: i32) -> (i32, i32, i32) {
    %c0_i32 = arith.constant 0 : i32
    %c0_i32_0 = arith.constant 0 : i32
    %c0_i32_1 = arith.constant 0 : i32
    return %arg0, %c0_i32, %c0_i32_0 : i32, i32, i32
  }
}

</mosaic_0001>

<llo_original>
// kernel: forward.1
$region0: #{forward.1}
  #allocation0 [shape = 'u32[]', space=smem, size = 0x4, offset = 0x4, fixed_abs, tag = 'smem constant byte address 0x4 - core index']
  #allocation1 [shape = 'u32[72,128]{1,0:T(1,128)}', space=vmem, size = 0x9000, scoped, tag = 'internal scratch']
  #allocation2 [shape = 'f32[8,64]{1,0:T(8,128)}', space=vmem, size = 0x1000, scoped, tag = 'scratch operand']
  #allocation3 [shape = 'f32[8,64]{1,0:T(8,128)}', space=vmem, size = 0x1000, scoped, tag = 'scratch operand']
  %s0 = inlined_call_operand.vmem [shape: s32[2,8,16], index: 0, kind: input, shape index: {}]
  %s1 = inlined_call_operand.vmem [shape: f32[2,8,16], index: 1, kind: input, shape index: {}]
  %s2 = inlined_call_operand.vmem [shape: bf16[128,64], index: 2, kind: input, shape index: {}]
  %s3 = inlined_call_operand.vmem [shape: bf16[64,32], index: 3, kind: input, shape index: {}]
  %s4 = inlined_call_operand.vmem [shape: f32[1,32], index: 4, kind: input, shape index: {}]
  %s5 = inlined_call_operand.vmem [shape: bf16[32,256], index: 5, kind: input, shape index: {}]
  %s6 = inlined_call_operand.vmem [shape: bf16[64,256], index: 6, kind: input, shape index: {}]
  %s7 = inlined_call_operand.vmem [shape: f32[1,256], index: 7, kind: input, shape index: {}]
  %s8 = inlined_call_operand.hbm [shape: bf16[64,256], index: 8, kind: input, shape index: {}]
  %s9 = inlined_call_operand.hbm [shape: bf16[64,256], index: 9, kind: input, shape index: {}]
  %s10 = inlined_call_operand.vmem [shape: f32[1,256], index: 10, kind: input, shape index: {}]
  %s11 = inlined_call_operand.hbm [shape: bf16[64,192], index: 11, kind: input, shape index: {}]
  %s12 = inlined_call_operand.vmem [shape: f32[1,192], index: 12, kind: input, shape index: {}]
  %s13 = inlined_call_operand.vmem [shape: bf16[64,64], index: 13, kind: input, shape index: {}]
  %s14 = inlined_call_operand.vmem [shape: f32[1,64], index: 14, kind: input, shape index: {}]
  %s15 = inlined_call_operand.vmem [shape: bf16[64,32], index: 15, kind: input, shape index: {}]
  %s16 = inlined_call_operand.vmem [shape: f32[1,32], index: 16, kind: input, shape index: {}]
  %s17 = inlined_call_operand.vmem [shape: bf16[32,16], index: 17, kind: input, shape index: {}]
  %s18 = inlined_call_operand.vmem [shape: f32[1,16], index: 18, kind: input, shape index: {}]
  %s19 = inlined_call_operand.vmem [shape: bf16[16,128], index: 19, kind: input, shape index: {}]
  %s20 = inlined_call_operand.vmem [shape: f32[1,128], index: 20, kind: input, shape index: {}]
  %s21 = inlined_call_operand.vmem [shape: f32[2,8,128], index: 21, kind: output, shape index: {0}]
  %s22 = inlined_call_operand.hbm [shape: f32[2,8,128], index: 22, kind: output, shape index: {1}]
  %23 = xla_tuple %s21, %s22
  %s24 = sld [smem:[#allocation0]]
  $region137: #{forward.1} parent=0
    _
  %s26 = ssub.s32 1, %s24
  %s27 = scalar_select 0, %s26, %s24
  $region1: #{forward.1} parent=0
    #allocation4 [shape = 'u8[32768]{0}', space=vmem, size = 0x8000, scoped, tag = 'input window, operand 8, single buffered']
    #allocation5 [shape = 's32[2]{0}', space=sflag, size = 0x8, scoped, tag = 'scoped memory for forward.1']
    #allocation6 [shape = 's32[2]{0}', space=sflag, size = 0x8, scoped, tag = 'scoped memory for forward.1']
    #allocation7 [shape = 'u8[32768]{0}', space=vmem, size = 0x8000, scoped, tag = 'input window, operand 9, single buffered']
    #allocation8 [shape = 's32[1]{0}', space=sflag, size = 0x4, scoped, tag = 'scoped memory for forward.1']
    #allocation9 [shape = 'u8[32768]{0}', space=vmem, size = 0x8000, scoped, tag = 'input window, operand 11, single buffered']
    #allocation10 [shape = 'u8[8192]{0}', space=vmem, size = 0x2000, scoped, tag = 'output window, operand 1']
    %28 = vsyncpa [#allocation5], 0
    %29 = vsyncpa [#allocation8], 0
    %30 = vsyncpa [#allocation6], 0
    %s31 = scalar_lea.sflag [#allocation6], 1
    %32 = vsyncpa %s31, 0
    loop: start=0, step=1, limit=4
    $region2: #{forward.1} parent=1 // loop_pre_header
      _
    $region3: #{forward.1} parent=1 // loop_header
      %s34 = sphi 0, %s38
      %p35 = scmp.ge.s32.totalorder %s34, 4
      %s44 = sphi 0, %s46
      %s47 = sphi 0, %s44
      %s48 = sphi 0, %s47
      %s64 = sphi 0, %s48
      %s70 = sphi 0, %s72
      %s73 = sphi 0, %s70
      %s74 = sphi 0, %s73
      %s90 = sphi 0, %s74
      %s94 = sphi 0, %s94
      %s96 = sphi 0, %s94
      %s97 = sphi 0, %s96
      %s111 = sphi 0, %s97
      %s115 = sphi 0, %s115
      %s117 = sphi 0, %s115
      %s118 = sphi 0, %s117
      %s132 = sphi 0, %s118
      %s136 = sphi 0, %s136
      %s138 = sphi 0, %s136
      %s139 = sphi 0, %s138
      %s153 = sphi 0, %s139
      %s157 = sphi 0, %s157
      %s159 = sphi 0, %s157
      %s160 = sphi 0, %s159
      %s174 = sphi 0, %s160
      %s178 = sphi 0, %s178
      %s180 = sphi 0, %s178
      %s181 = sphi 0, %s180
      %s195 = sphi 0, %s181
      %s199 = sphi 0, %s199
      %s201 = sphi 0, %s199
      %s202 = sphi 0, %s201
      %s216 = sphi 0, %s202
      %s220 = sphi 0, %s220
      %s222 = sphi 0, %s220
      %s223 = sphi 0, %s222
      %s237 = sphi 0, %s223
      %s241 = sphi 0, %s241
      %s243 = sphi 0, %s241
      %s244 = sphi 0, %s243
      %s258 = sphi 0, %s244
      %s262 = sphi 0, %s262
      %s264 = sphi 0, %s262
      %s265 = sphi 0, %s264
      %s279 = sphi 0, %s265
      %s283 = sphi 0, %s283
      %s285 = sphi 0, %s283
      %s286 = sphi 0, %s285
      %s300 = sphi 0, %s286
      %s304 = sphi 0, %s304
      %s306 = sphi 0, %s304
      %s307 = sphi 0, %s306
      %s321 = sphi 0, %s307
      %s325 = sphi 0, %s325
      %s327 = sphi 0, %s325
      %s328 = sphi 0, %s327
      %s342 = sphi 0, %s328
      %s346 = sphi 0, %s346
      %s348 = sphi 0, %s346
      %s349 = sphi 0, %s348
      %s363 = sphi 0, %s349
      %s367 = sphi 0, %s367
      %s369 = sphi 0, %s367
      %s370 = sphi 0, %s369
      %s384 = sphi 0, %s370
      %s388 = sphi 0, %s388
      %s390 = sphi 0, %s388
      %s391 = sphi 0, %s390
      %s405 = sphi 0, %s391
      %s409 = sphi 0, %s409
      %s411 = sphi 0, %s409
      %s412 = sphi 0, %s411
      %s426 = sphi 0, %s412
      %s430 = sphi 0, %s430
      %s432 = sphi 0, %s430
      %s433 = sphi 0, %s432
      %s447 = sphi 0, %s433
      %s451 = sphi 0, %s451
      %s453 = sphi 0, %s451
      %s454 = sphi 0, %s453
      %s468 = sphi 0, %s454
      %s472 = sphi 0, %s472
      %s474 = sphi 0, %s472
      %s475 = sphi 0, %s474
      %s489 = sphi 0, %s475
      %s495 = sphi 0, %s497
      %s498 = sphi 0, %s495
      %s499 = sphi 0, %s498
      %s515 = sphi 0, %s499
      %s521 = sphi 0, %s523
      %s524 = sphi 0, %s521
      %s525 = sphi 0, %s524
      %s541 = sphi 0, %s525
    $region4: #{forward.1} parent=1 // loop_header_branch
      %37 = sbr.rel (%p35) target = $region8
    $region5: #{forward.1} parent=1 // loop_body
      %s39 = ssub.s32 %s34, 1
      %s40 = ssub.s32 %s34, 2
      %s41 = sadd.s32 %s34, 1
      %s42 = ssub.s32 %s34, %s41
      %p43 = scmp.eq.s32.totalorder %s42, 0
      %s45 = sadd.s32 %s44, 1
      %s46 = scalar_select %p43, %s44, %s45
      %p49 = pneg %p43
      %p50 = scmp.eq.s32.totalorder %s34, 1
      %p51 = por %p49, %p50
      %p52 = scmp.ne.s32.totalorder %s44, %s47
      %p53 = scmp.eq.s32.totalorder %s34, 0
      %p54 = por %p52, %p53
      %p55 = scmp.ne.s32.totalorder %s44, %s47
      %p56 = scmp.eq.s32.totalorder %s39, 1
      %p57 = por %p55, %p56
      %p58 = scmp.ne.s32.totalorder %s47, %s48
      %p59 = scmp.eq.s32.totalorder %s39, 0
      %p60 = por %p58, %p59
      %p61 = scmp.ne.s32.totalorder %s47, %s48
      %p62 = scmp.eq.s32.totalorder %s40, 1
      %p63 = por %p61, %p62
      %p65 = scmp.ne.s32.totalorder %s48, %s64
      %p66 = scmp.eq.s32.totalorder %s40, 0
      %p67 = por %p65, %p66
      %s68 = ssub.s32 %s34, %s41
      %p69 = scmp.eq.s32.totalorder %s68, 0
      %s71 = sadd.s32 %s70, 1
      %s72 = scalar_select %p69, %s70, %s71
      %p75 = pneg %p69
      %p76 = scmp.eq.s32.totalorder %s34, 1
      %p77 = por %p75, %p76
      %p78 = scmp.ne.s32.totalorder %s70, %s73
      %p79 = scmp.eq.s32.totalorder %s34, 0
      %p80 = por %p78, %p79
      %p81 = scmp.ne.s32.totalorder %s70, %s73
      %p82 = scmp.eq.s32.totalorder %s39, 1
      %p83 = por %p81, %p82
      %p84 = scmp.ne.s32.totalorder %s73, %s74
      %p85 = scmp.eq.s32.totalorder %s39, 0
      %p86 = por %p84, %p85
      %p87 = scmp.ne.s32.totalorder %s73, %s74
      %p88 = scmp.eq.s32.totalorder %s40, 1
      %p89 = por %p87, %p88
      %p91 = scmp.ne.s32.totalorder %s74, %s90
      %p92 = scmp.eq.s32.totalorder %s40, 0
      %p93 = por %p91, %p92
      %s95 = sadd.s32 %s94, 1
      %p98 = scmp.eq.s32.totalorder %s34, 1
      %p99 = scmp.ne.s32.totalorder %s94, %s96
      %p100 = scmp.eq.s32.totalorder %s34, 0
      %p101 = por %p99, %p100
      %p102 = scmp.ne.s32.totalorder %s94, %s96
      %p103 = scmp.eq.s32.totalorder %s39, 1
      %p104 = por %p102, %p103
      %p105 = scmp.ne.s32.totalorder %s96, %s97
      %p106 = scmp.eq.s32.totalorder %s39, 0
      %p107 = por %p105, %p106
      %p108 = scmp.ne.s32.totalorder %s96, %s97
      %p109 = scmp.eq.s32.totalorder %s40, 1
      %p110 = por %p108, %p109
      %p112 = scmp.ne.s32.totalorder %s97, %s111
      %p113 = scmp.eq.s32.totalorder %s40, 0
      %p114 = por %p112, %p113
      %s116 = sadd.s32 %s115, 1
      %p119 = scmp.eq.s32.totalorder %s34, 1
      %p120 = scmp.ne.s32.totalorder %s115, %s117
      %p121 = scmp.eq.s32.totalorder %s34, 0
      %p122 = por %p120, %p121
      %p123 = scmp.ne.s32.totalorder %s115, %s117
      %p124 = scmp.eq.s32.totalorder %s39, 1
      %p125 = por %p123, %p124
      %p126 = scmp.ne.s32.totalorder %s117, %s118
      %p127 = scmp.eq.s32.totalorder %s39, 0
      %p128 = por %p126, %p127
      %p129 = scmp.ne.s32.totalorder %s117, %s118
      %p130 = scmp.eq.s32.totalorder %s40, 1
      %p131 = por %p129, %p130
      %p133 = scmp.ne.s32.totalorder %s118, %s132
      %p134 = scmp.eq.s32.totalorder %s40, 0
      %p135 = por %p133, %p134
      %s137 = sadd.s32 %s136, 1
      %p140 = scmp.eq.s32.totalorder %s34, 1
      %p141 = scmp.ne.s32.totalorder %s136, %s138
      %p142 = scmp.eq.s32.totalorder %s34, 0
      %p143 = por %p141, %p142
      %p144 = scmp.ne.s32.totalorder %s136, %s138
      %p145 = scmp.eq.s32.totalorder %s39, 1
      %p146 = por %p144, %p145
      %p147 = scmp.ne.s32.totalorder %s138, %s139
      %p148 = scmp.eq.s32.totalorder %s39, 0
      %p149 = por %p147, %p148
      %p150 = scmp.ne.s32.totalorder %s138, %s139
      %p151 = scmp.eq.s32.totalorder %s40, 1
      %p152 = por %p150, %p151
      %p154 = scmp.ne.s32.totalorder %s139, %s153
      %p155 = scmp.eq.s32.totalorder %s40, 0
      %p156 = por %p154, %p155
      %s158 = sadd.s32 %s157, 1
      %p161 = scmp.eq.s32.totalorder %s34, 1
      %p162 = scmp.ne.s32.totalorder %s157, %s159
      %p163 = scmp.eq.s32.totalorder %s34, 0
      %p164 = por %p162, %p163
      %p165 = scmp.ne.s32.totalorder %s157, %s159
      %p166 = scmp.eq.s32.totalorder %s39, 1
      %p167 = por %p165, %p166
      %p168 = scmp.ne.s32.totalorder %s159, %s160
      %p169 = scmp.eq.s32.totalorder %s39, 0
      %p170 = por %p168, %p169
      %p171 = scmp.ne.s32.totalorder %s159, %s160
      %p172 = scmp.eq.s32.totalorder %s40, 1
      %p173 = por %p171, %p172
      %p175 = scmp.ne.s32.totalorder %s160, %s174
      %p176 = scmp.eq.s32.totalorder %s40, 0
      %p177 = por %p175, %p176
      %s179 = sadd.s32 %s178, 1
      %p182 = scmp.eq.s32.totalorder %s34, 1
      %p183 = scmp.ne.s32.totalorder %s178, %s180
      %p184 = scmp.eq.s32.totalorder %s34, 0
      %p185 = por %p183, %p184
      %p186 = scmp.ne.s32.totalorder %s178, %s180
      %p187 = scmp.eq.s32.totalorder %s39, 1
      %p188 = por %p186, %p187
      %p189 = scmp.ne.s32.totalorder %s180, %s181
      %p190 = scmp.eq.s32.totalorder %s39, 0
      %p191 = por %p189, %p190
      %p192 = scmp.ne.s32.totalorder %s180, %s181
      %p193 = scmp.eq.s32.totalorder %s40, 1
      %p194 = por %p192, %p193
      %p196 = scmp.ne.s32.totalorder %s181, %s195
      %p197 = scmp.eq.s32.totalorder %s40, 0
      %p198 = por %p196, %p197
      %s200 = sadd.s32 %s199, 1
      %p203 = scmp.eq.s32.totalorder %s34, 1
      %p204 = scmp.ne.s32.totalorder %s199, %s201
      %p205 = scmp.eq.s32.totalorder %s34, 0
      %p206 = por %p204, %p205
      %p207 = scmp.ne.s32.totalorder %s199, %s201
      %p208 = scmp.eq.s32.totalorder %s39, 1
      %p209 = por %p207, %p208
      %p210 = scmp.ne.s32.totalorder %s201, %s202
      %p211 = scmp.eq.s32.totalorder %s39, 0
      %p212 = por %p210, %p211
      %p213 = scmp.ne.s32.totalorder %s201, %s202
      %p214 = scmp.eq.s32.totalorder %s40, 1
      %p215 = por %p213, %p214
      %p217 = scmp.ne.s32.totalorder %s202, %s216
      %p218 = scmp.eq.s32.totalorder %s40, 0
      %p219 = por %p217, %p218
      %s221 = sadd.s32 %s220, 1
      %p224 = scmp.eq.s32.totalorder %s34, 1
      %p225 = scmp.ne.s32.totalorder %s220, %s222
      %p226 = scmp.eq.s32.totalorder %s34, 0
      %p227 = por %p225, %p226
      %p228 = scmp.ne.s32.totalorder %s220, %s222
      %p229 = scmp.eq.s32.totalorder %s39, 1
      %p230 = por %p228, %p229
      %p231 = scmp.ne.s32.totalorder %s222, %s223
      %p232 = scmp.eq.s32.totalorder %s39, 0
      %p233 = por %p231, %p232
      %p234 = scmp.ne.s32.totalorder %s222, %s223
      %p235 = scmp.eq.s32.totalorder %s40, 1
      %p236 = por %p234, %p235
      %p238 = scmp.ne.s32.totalorder %s223, %s237
      %p239 = scmp.eq.s32.totalorder %s40, 0
      %p240 = por %p238, %p239
      %s242 = sadd.s32 %s241, 1
      %p245 = scmp.eq.s32.totalorder %s34, 1
      %p246 = scmp.ne.s32.totalorder %s241, %s243
      %p247 = scmp.eq.s32.totalorder %s34, 0
      %p248 = por %p246, %p247
      %p249 = scmp.ne.s32.totalorder %s241, %s243
      %p250 = scmp.eq.s32.totalorder %s39, 1
      %p251 = por %p249, %p250
      %p252 = scmp.ne.s32.totalorder %s243, %s244
      %p253 = scmp.eq.s32.totalorder %s39, 0
      %p254 = por %p252, %p253
      %p255 = scmp.ne.s32.totalorder %s243, %s244
      %p256 = scmp.eq.s32.totalorder %s40, 1
      %p257 = por %p255, %p256
      %p259 = scmp.ne.s32.totalorder %s244, %s258
      %p260 = scmp.eq.s32.totalorder %s40, 0
      %p261 = por %p259, %p260
      %s263 = sadd.s32 %s262, 1
      %p266 = scmp.eq.s32.totalorder %s34, 1
      %p267 = scmp.ne.s32.totalorder %s262, %s264
      %p268 = scmp.eq.s32.totalorder %s34, 0
      %p269 = por %p267, %p268
      %p270 = scmp.ne.s32.totalorder %s262, %s264
      %p271 = scmp.eq.s32.totalorder %s39, 1
      %p272 = por %p270, %p271
      %p273 = scmp.ne.s32.totalorder %s264, %s265
      %p274 = scmp.eq.s32.totalorder %s39, 0
      %p275 = por %p273, %p274
      %p276 = scmp.ne.s32.totalorder %s264, %s265
      %p277 = scmp.eq.s32.totalorder %s40, 1
      %p278 = por %p276, %p277
      %p280 = scmp.ne.s32.totalorder %s265, %s279
      %p281 = scmp.eq.s32.totalorder %s40, 0
      %p282 = por %p280, %p281
      %s284 = sadd.s32 %s283, 1
      %p287 = scmp.eq.s32.totalorder %s34, 1
      %p288 = scmp.ne.s32.totalorder %s283, %s285
      %p289 = scmp.eq.s32.totalorder %s34, 0
      %p290 = por %p288, %p289
      %p291 = scmp.ne.s32.totalorder %s283, %s285
      %p292 = scmp.eq.s32.totalorder %s39, 1
      %p293 = por %p291, %p292
      %p294 = scmp.ne.s32.totalorder %s285, %s286
      %p295 = scmp.eq.s32.totalorder %s39, 0
      %p296 = por %p294, %p295
      %p297 = scmp.ne.s32.totalorder %s285, %s286
      %p298 = scmp.eq.s32.totalorder %s40, 1
      %p299 = por %p297, %p298
      %p301 = scmp.ne.s32.totalorder %s286, %s300
      %p302 = scmp.eq.s32.totalorder %s40, 0
      %p303 = por %p301, %p302
      %s305 = sadd.s32 %s304, 1
      %p308 = scmp.eq.s32.totalorder %s34, 1
      %p309 = scmp.ne.s32.totalorder %s304, %s306
      %p310 = scmp.eq.s32.totalorder %s34, 0
      %p311 = por %p309, %p310
      %p312 = scmp.ne.s32.totalorder %s304, %s306
      %p313 = scmp.eq.s32.totalorder %s39, 1
      %p314 = por %p312, %p313
      %p315 = scmp.ne.s32.totalorder %s306, %s307
      %p316 = scmp.eq.s32.totalorder %s39, 0
      %p317 = por %p315, %p316
      %p318 = scmp.ne.s32.totalorder %s306, %s307
      %p319 = scmp.eq.s32.totalorder %s40, 1
      %p320 = por %p318, %p319
      %p322 = scmp.ne.s32.totalorder %s307, %s321
      %p323 = scmp.eq.s32.totalorder %s40, 0
      %p324 = por %p322, %p323
      %s326 = sadd.s32 %s325, 1
      %p329 = scmp.eq.s32.totalorder %s34, 1
      %p330 = scmp.ne.s32.totalorder %s325, %s327
      %p331 = scmp.eq.s32.totalorder %s34, 0
      %p332 = por %p330, %p331
      %p333 = scmp.ne.s32.totalorder %s325, %s327
      %p334 = scmp.eq.s32.totalorder %s39, 1
      %p335 = por %p333, %p334
      %p336 = scmp.ne.s32.totalorder %s327, %s328
      %p337 = scmp.eq.s32.totalorder %s39, 0
      %p338 = por %p336, %p337
      %p339 = scmp.ne.s32.totalorder %s327, %s328
      %p340 = scmp.eq.s32.totalorder %s40, 1
      %p341 = por %p339, %p340
      %p343 = scmp.ne.s32.totalorder %s328, %s342
      %p344 = scmp.eq.s32.totalorder %s40, 0
      %p345 = por %p343, %p344
      %s347 = sadd.s32 %s346, 1
      %p350 = scmp.eq.s32.totalorder %s34, 1
      %p351 = scmp.ne.s32.totalorder %s346, %s348
      %p352 = scmp.eq.s32.totalorder %s34, 0
      %p353 = por %p351, %p352
      %p354 = scmp.ne.s32.totalorder %s346, %s348
      %p355 = scmp.eq.s32.totalorder %s39, 1
      %p356 = por %p354, %p355
      %p357 = scmp.ne.s32.totalorder %s348, %s349
      %p358 = scmp.eq.s32.totalorder %s39, 0
      %p359 = por %p357, %p358
      %p360 = scmp.ne.s32.totalorder %s348, %s349
      %p361 = scmp.eq.s32.totalorder %s40, 1
      %p362 = por %p360, %p361
      %p364 = scmp.ne.s32.totalorder %s349, %s363
      %p365 = scmp.eq.s32.totalorder %s40, 0
      %p366 = por %p364, %p365
      %s368 = sadd.s32 %s367, 1
      %p371 = scmp.eq.s32.totalorder %s34, 1
      %p372 = scmp.ne.s32.totalorder %s367, %s369
      %p373 = scmp.eq.s32.totalorder %s34, 0
      %p374 = por %p372, %p373
      %p375 = scmp.ne.s32.totalorder %s367, %s369
      %p376 = scmp.eq.s32.totalorder %s39, 1
      %p377 = por %p375, %p376
      %p378 = scmp.ne.s32.totalorder %s369, %s370
      %p379 = scmp.eq.s32.totalorder %s39, 0
      %p380 = por %p378, %p379
      %p381 = scmp.ne.s32.totalorder %s369, %s370
      %p382 = scmp.eq.s32.totalorder %s40, 1
      %p383 = por %p381, %p382
      %p385 = scmp.ne.s32.totalorder %s370, %s384
      %p386 = scmp.eq.s32.totalorder %s40, 0
      %p387 = por %p385, %p386
      %s389 = sadd.s32 %s388, 1
      %p392 = scmp.eq.s32.totalorder %s34, 1
      %p393 = scmp.ne.s32.totalorder %s388, %s390
      %p394 = scmp.eq.s32.totalorder %s34, 0
      %p395 = por %p393, %p394
      %p396 = scmp.ne.s32.totalorder %s388, %s390
      %p397 = scmp.eq.s32.totalorder %s39, 1
      %p398 = por %p396, %p397
      %p399 = scmp.ne.s32.totalorder %s390, %s391
      %p400 = scmp.eq.s32.totalorder %s39, 0
      %p401 = por %p399, %p400
      %p402 = scmp.ne.s32.totalorder %s390, %s391
      %p403 = scmp.eq.s32.totalorder %s40, 1
      %p404 = por %p402, %p403
      %p406 = scmp.ne.s32.totalorder %s391, %s405
      %p407 = scmp.eq.s32.totalorder %s40, 0
      %p408 = por %p406, %p407
      %s410 = sadd.s32 %s409, 1
      %p413 = scmp.eq.s32.totalorder %s34, 1
      %p414 = scmp.ne.s32.totalorder %s409, %s411
      %p415 = scmp.eq.s32.totalorder %s34, 0
      %p416 = por %p414, %p415
      %p417 = scmp.ne.s32.totalorder %s409, %s411
      %p418 = scmp.eq.s32.totalorder %s39, 1
      %p419 = por %p417, %p418
      %p420 = scmp.ne.s32.totalorder %s411, %s412
      %p421 = scmp.eq.s32.totalorder %s39, 0
      %p422 = por %p420, %p421
      %p423 = scmp.ne.s32.totalorder %s411, %s412
      %p424 = scmp.eq.s32.totalorder %s40, 1
      %p425 = por %p423, %p424
      %p427 = scmp.ne.s32.totalorder %s412, %s426
      %p428 = scmp.eq.s32.totalorder %s40, 0
      %p429 = por %p427, %p428
      %s431 = sadd.s32 %s430, 1
      %p434 = scmp.eq.s32.totalorder %s34, 1
      %p435 = scmp.ne.s32.totalorder %s430, %s432
      %p436 = scmp.eq.s32.totalorder %s34, 0
      %p437 = por %p435, %p436
      %p438 = scmp.ne.s32.totalorder %s430, %s432
      %p439 = scmp.eq.s32.totalorder %s39, 1
      %p440 = por %p438, %p439
      %p441 = scmp.ne.s32.totalorder %s432, %s433
      %p442 = scmp.eq.s32.totalorder %s39, 0
      %p443 = por %p441, %p442
      %p444 = scmp.ne.s32.totalorder %s432, %s433
      %p445 = scmp.eq.s32.totalorder %s40, 1
      %p446 = por %p444, %p445
      %p448 = scmp.ne.s32.totalorder %s433, %s447
      %p449 = scmp.eq.s32.totalorder %s40, 0
      %p450 = por %p448, %p449
      %s452 = sadd.s32 %s451, 1
      %p455 = scmp.eq.s32.totalorder %s34, 1
      %p456 = scmp.ne.s32.totalorder %s451, %s453
      %p457 = scmp.eq.s32.totalorder %s34, 0
      %p458 = por %p456, %p457
      %p459 = scmp.ne.s32.totalorder %s451, %s453
      %p460 = scmp.eq.s32.totalorder %s39, 1
      %p461 = por %p459, %p460
      %p462 = scmp.ne.s32.totalorder %s453, %s454
      %p463 = scmp.eq.s32.totalorder %s39, 0
      %p464 = por %p462, %p463
      %p465 = scmp.ne.s32.totalorder %s453, %s454
      %p466 = scmp.eq.s32.totalorder %s40, 1
      %p467 = por %p465, %p466
      %p469 = scmp.ne.s32.totalorder %s454, %s468
      %p470 = scmp.eq.s32.totalorder %s40, 0
      %p471 = por %p469, %p470
      %s473 = sadd.s32 %s472, 1
      %p476 = scmp.eq.s32.totalorder %s34, 1
      %p477 = scmp.ne.s32.totalorder %s472, %s474
      %p478 = scmp.eq.s32.totalorder %s34, 0
      %p479 = por %p477, %p478
      %p480 = scmp.ne.s32.totalorder %s472, %s474
      %p481 = scmp.eq.s32.totalorder %s39, 1
      %p482 = por %p480, %p481
      %p483 = scmp.ne.s32.totalorder %s474, %s475
      %p484 = scmp.eq.s32.totalorder %s39, 0
      %p485 = por %p483, %p484
      %p486 = scmp.ne.s32.totalorder %s474, %s475
      %p487 = scmp.eq.s32.totalorder %s40, 1
      %p488 = por %p486, %p487
      %p490 = scmp.ne.s32.totalorder %s475, %s489
      %p491 = scmp.eq.s32.totalorder %s40, 0
      %p492 = por %p490, %p491
      %s493 = ssub.s32 %s34, %s41
      %p494 = scmp.eq.s32.totalorder %s493, 0
      %s496 = sadd.s32 %s495, 1
      %s497 = scalar_select %p494, %s495, %s496
      %p500 = pneg %p494
      %p501 = scmp.eq.s32.totalorder %s34, 1
      %p502 = por %p500, %p501
      %p503 = scmp.ne.s32.totalorder %s495, %s498
      %p504 = scmp.eq.s32.totalorder %s34, 0
      %p505 = por %p503, %p504
      %p506 = scmp.ne.s32.totalorder %s495, %s498
      %p507 = scmp.eq.s32.totalorder %s39, 1
      %p508 = por %p506, %p507
      %p509 = scmp.ne.s32.totalorder %s498, %s499
      %p510 = scmp.eq.s32.totalorder %s39, 0
      %p511 = por %p509, %p510
      %p512 = scmp.ne.s32.totalorder %s498, %s499
      %p513 = scmp.eq.s32.totalorder %s40, 1
      %p514 = por %p512, %p513
      %p516 = scmp.ne.s32.totalorder %s499, %s515
      %p517 = scmp.eq.s32.totalorder %s40, 0
      %p518 = por %p516, %p517
      %s519 = ssub.s32 %s34, %s41
      %p520 = scmp.eq.s32.totalorder %s519, 0
      %s522 = sadd.s32 %s521, 1
      %s523 = scalar_select %p520, %s521, %s522
      %p526 = pneg %p520
      %p527 = scmp.eq.s32.totalorder %s34, 1
      %p528 = por %p526, %p527
      %p529 = scmp.ne.s32.totalorder %s521, %s524
      %p530 = scmp.eq.s32.totalorder %s34, 0
      %p531 = por %p529, %p530
      %p532 = scmp.ne.s32.totalorder %s521, %s524
      %p533 = scmp.eq.s32.totalorder %s39, 1
      %p534 = por %p532, %p533
      %p535 = scmp.ne.s32.totalorder %s524, %s525
      %p536 = scmp.eq.s32.totalorder %s39, 0
      %p537 = por %p535, %p536
      %p538 = scmp.ne.s32.totalorder %s524, %s525
      %p539 = scmp.eq.s32.totalorder %s40, 1
      %p540 = por %p538, %p539
      %p542 = scmp.ne.s32.totalorder %s525, %s541
      %p543 = scmp.eq.s32.totalorder %s40, 0
      %p544 = por %p542, %p543
      %p545 = scmp.le.s32.totalorder 1, %s34
      %p546 = scmp.lt.s32.totalorder %s34, 3
      %p547 = pnand %p545, %p546
      %p548 = pneg %p547
      // Predicated region
      $region9: #{forward.1} parent=5 // pred_check
        _
      $region10: #{forward.1} parent=5 // pred_check_branch
        %550 = sbr.rel (%p547) target = $region12
      $region11: #{forward.1} parent=5 // pred_region
        %s551 = ssub.s32 %s34, 1
        // Predicated region
        $region13: #{forward.1} parent=11 // pred_check
          %p552 = pneg %p107
        $region14: #{forward.1} parent=11 // pred_check_branch
          %554 = sbr.rel (%p552) target = $region16
        $region15: #{forward.1} parent=11 // pred_region
          _
        $region16: #{forward.1} parent=11 // pred_fallthru
          _
        // Predicated region
        $region17: #{forward.1} parent=11 // pred_check
          %p555 = pneg %p128
        $region18: #{forward.1} parent=11 // pred_check_branch
          %557 = sbr.rel (%p555) target = $region20
        $region19: #{forward.1} parent=11 // pred_region
          _
        $region20: #{forward.1} parent=11 // pred_fallthru
          _
        // Predicated region
        $region21: #{forward.1} parent=11 // pred_check
          %p558 = pneg %p149
        $region22: #{forward.1} parent=11 // pred_check_branch
          %560 = sbr.rel (%p558) target = $region24
        $region23: #{forward.1} parent=11 // pred_region
          _
        $region24: #{forward.1} parent=11 // pred_fallthru
          _
        // Predicated region
        $region25: #{forward.1} parent=11 // pred_check
          %p561 = pneg %p170
        $region26: #{forward.1} parent=11 // pred_check_branch
          %563 = sbr.rel (%p561) target = $region28
        $region27: #{forward.1} parent=11 // pred_region
          _
        $region28: #{forward.1} parent=11 // pred_fallthru
          _
        // Predicated region
        $region29: #{forward.1} parent=11 // pred_check
          %p564 = pneg %p191
        $region30: #{forward.1} parent=11 // pred_check_branch
          %566 = sbr.rel (%p564) target = $region32
        $region31: #{forward.1} parent=11 // pred_region
          _
        $region32: #{forward.1} parent=11 // pred_fallthru
          _
        // Predicated region
        $region33: #{forward.1} parent=11 // pred_check
          %p567 = pneg %p212
        $region34: #{forward.1} parent=11 // pred_check_branch
          %569 = sbr.rel (%p567) target = $region36
        $region35: #{forward.1} parent=11 // pred_region
          _
        $region36: #{forward.1} parent=11 // pred_fallthru
          _
        // Predicated region
        $region37: #{forward.1} parent=11 // pred_check
          %p570 = pneg %p233
        $region38: #{forward.1} parent=11 // pred_check_branch
          %572 = sbr.rel (%p570) target = $region40
        $region39: #{forward.1} parent=11 // pred_region
          %574 = vsyncadd [#allocation5], 0
          %s575 = sshll.u32 %s8, 4
          %s576 = int_to_ptr.hbm [resolvable:$true] %s575
          %s577 = sshll.u32 [#allocation4], 4
          %s578 = int_to_ptr.vmem [resolvable:$true] %s577
          %583 = dma.hbm_to_vmem [thread:$0]  %s576, 1024, %s578, [#allocation5], 128, 128, 8
        $region40: #{forward.1} parent=11 // pred_fallthru
          _
        // Predicated region
        $region41: #{forward.1} parent=11 // pred_check
          %p584 = pneg %p254
        $region42: #{forward.1} parent=11 // pred_check_branch
          %586 = sbr.rel (%p584) target = $region44
        $region43: #{forward.1} parent=11 // pred_region
          %588 = vsyncadd [#allocation8], 0
          %s589 = sshll.u32 %s9, 4
          %s590 = int_to_ptr.hbm [resolvable:$true] %s589
          %s591 = sshll.u32 [#allocation7], 4
          %s592 = int_to_ptr.vmem [resolvable:$true] %s591
          %597 = dma.hbm_to_vmem [thread:$0]  %s590, 1024, %s592, [#allocation8], 128, 128, 8
        $region44: #{forward.1} parent=11 // pred_fallthru
          _
        // Predicated region
        $region45: #{forward.1} parent=11 // pred_check
          %p598 = pneg %p275
        $region46: #{forward.1} parent=11 // pred_check_branch
          %600 = sbr.rel (%p598) target = $region48
        $region47: #{forward.1} parent=11 // pred_region
          _
        $region48: #{forward.1} parent=11 // pred_fallthru
          _
        // Predicated region
        $region49: #{forward.1} parent=11 // pred_check
          %p601 = pneg %p296
        $region50: #{forward.1} parent=11 // pred_check_branch
          %603 = sbr.rel (%p601) target = $region52
        $region51: #{forward.1} parent=11 // pred_region
          %605 = vsyncadd [#allocation8], 0
          %s606 = sshll.u32 %s11, 4
          %s607 = int_to_ptr.hbm [resolvable:$true] %s606
          %s608 = sshll.u32 [#allocation9], 4
          %s609 = int_to_ptr.vmem [resolvable:$true] %s608
          %614 = dma.hbm_to_vmem [thread:$0]  %s607, 1024, %s609, [#allocation8], 128, 128, 8
        $region52: #{forward.1} parent=11 // pred_fallthru
          _
        // Predicated region
        $region53: #{forward.1} parent=11 // pred_check
          %p615 = pneg %p317
        $region54: #{forward.1} parent=11 // pred_check_branch
          %617 = sbr.rel (%p615) target = $region56
        $region55: #{forward.1} parent=11 // pred_region
          _
        $region56: #{forward.1} parent=11 // pred_fallthru
          _
        // Predicated region
        $region57: #{forward.1} parent=11 // pred_check
          %p618 = pneg %p338
        $region58: #{forward.1} parent=11 // pred_check_branch
          %620 = sbr.rel (%p618) target = $region60
        $region59: #{forward.1} parent=11 // pred_region
          _
        $region60: #{forward.1} parent=11 // pred_fallthru
          _
        // Predicated region
        $region61: #{forward.1} parent=11 // pred_check
          %p621 = pneg %p359
        $region62: #{forward.1} parent=11 // pred_check_branch
          %623 = sbr.rel (%p621) target = $region64
        $region63: #{forward.1} parent=11 // pred_region
          _
        $region64: #{forward.1} parent=11 // pred_fallthru
          _
        // Predicated region
        $region65: #{forward.1} parent=11 // pred_check
          %p624 = pneg %p380
        $region66: #{forward.1} parent=11 // pred_check_branch
          %626 = sbr.rel (%p624) target = $region68
        $region67: #{forward.1} parent=11 // pred_region
          _
        $region68: #{forward.1} parent=11 // pred_fallthru
          _
        // Predicated region
        $region69: #{forward.1} parent=11 // pred_check
          %p627 = pneg %p401
        $region70: #{forward.1} parent=11 // pred_check_branch
          %629 = sbr.rel (%p627) target = $region72
        $region71: #{forward.1} parent=11 // pred_region
          _
        $region72: #{forward.1} parent=11 // pred_fallthru
          _
        // Predicated region
        $region73: #{forward.1} parent=11 // pred_check
          %p630 = pneg %p422
        $region74: #{forward.1} parent=11 // pred_check_branch
          %632 = sbr.rel (%p630) target = $region76
        $region75: #{forward.1} parent=11 // pred_region
          _
        $region76: #{forward.1} parent=11 // pred_fallthru
          _
        // Predicated region
        $region77: #{forward.1} parent=11 // pred_check
          %p633 = pneg %p443
        $region78: #{forward.1} parent=11 // pred_check_branch
          %635 = sbr.rel (%p633) target = $region80
        $region79: #{forward.1} parent=11 // pred_region
          _
        $region80: #{forward.1} parent=11 // pred_fallthru
          _
        // Predicated region
        $region81: #{forward.1} parent=11 // pred_check
          %p636 = pneg %p464
        $region82: #{forward.1} parent=11 // pred_check_branch
          %638 = sbr.rel (%p636) target = $region84
        $region83: #{forward.1} parent=11 // pred_region
          _
        $region84: #{forward.1} parent=11 // pred_fallthru
          _
        // Predicated region
        $region85: #{forward.1} parent=11 // pred_check
          %p639 = pneg %p485
        $region86: #{forward.1} parent=11 // pred_check_branch
          %641 = sbr.rel (%p639) target = $region88
        $region87: #{forward.1} parent=11 // pred_region
          _
        $region88: #{forward.1} parent=11 // pred_fallthru
          _
      $region12: #{forward.1} parent=5 // pred_fallthru
        _
      %p642 = scmp.lt.s32.totalorder %s34, 2
      // Predicated region
      $region89: #{forward.1} parent=5 // pred_check
        %p643 = pneg %p642
      $region90: #{forward.1} parent=5 // pred_check_branch
        %645 = sbr.rel (%p643) target = $region92
      $region91: #{forward.1} parent=5 // pred_region
        // Predicated region
        $region93: #{forward.1} parent=91 // pred_check
          %p646 = pneg %p54
        $region94: #{forward.1} parent=91 // pred_check_branch
          %648 = sbr.rel (%p646) target = $region96
        $region95: #{forward.1} parent=91 // pred_region
          %p649 = scmp.lt.s32.totalorder %s34, 1
          %s650 = scalar_select %p649, %s34, 1
          %s651 = smul.addr %s650, 8
          %s652 = scalar_lea.vmem %s0, %s651
        $region96: #{forward.1} parent=91 // pred_fallthru
          _
        // Predicated region
        $region97: #{forward.1} parent=91 // pred_check
          %p653 = pneg %p80
        $region98: #{forward.1} parent=91 // pred_check_branch
          %655 = sbr.rel (%p653) target = $region100
        $region99: #{forward.1} parent=91 // pred_region
          %p656 = scmp.lt.s32.totalorder %s34, 1
          %s657 = scalar_select %p656, %s34, 1
          %s658 = smul.addr %s657, 8
          %s659 = scalar_lea.vmem %s1, %s658
        $region100: #{forward.1} parent=91 // pred_fallthru
          _
      $region92: #{forward.1} parent=5 // pred_fallthru
        _
      %p660 = scmp.le.s32.totalorder 1, %s34
      %p661 = scmp.lt.s32.totalorder %s34, 3
      %p662 = pnand %p660, %p661
      %p663 = pneg %p662
      // Predicated region
      $region101: #{forward.1} parent=5 // pred_check
        _
      $region102: #{forward.1} parent=5 // pred_check_branch
        %665 = sbr.rel (%p662) target = $region104
      $region103: #{forward.1} parent=5 // pred_region
        %s666 = ssub.s32 %s34, 1
        // Predicated region
        $region105: #{forward.1} parent=103 // pred_check
          %p667 = pneg %p233
        $region106: #{forward.1} parent=103 // pred_check_branch
          %669 = sbr.rel (%p667) target = $region108
        $region107: #{forward.1} parent=103 // pred_region
          %671 = dma.done [#allocation5], 1024
        $region108: #{forward.1} parent=103 // pred_fallthru
          _
        // Predicated region
        $region109: #{forward.1} parent=103 // pred_check
          %p672 = pneg %p254
        $region110: #{forward.1} parent=103 // pred_check_branch
          %674 = sbr.rel (%p672) target = $region112
        $region111: #{forward.1} parent=103 // pred_region
          %676 = dma.done [#allocation8], 1024
        $region112: #{forward.1} parent=103 // pred_fallthru
          _
        // Predicated region
        $region113: #{forward.1} parent=103 // pred_check
          %p677 = pneg %p296
        $region114: #{forward.1} parent=103 // pred_check_branch
          %679 = sbr.rel (%p677) target = $region116
        $region115: #{forward.1} parent=103 // pred_region
          %681 = dma.done [#allocation8], 1024
        $region116: #{forward.1} parent=103 // pred_fallthru
          _
        %p682 = scmp.lt.s32.totalorder %s39, 1
        %s683 = scalar_select %p682, %s39, 1
        %s684 = smul.addr %s683, 8
        %s685 = scalar_lea.vmem %s0, %s684
        %p686 = pneg %p60
        %p687 = pneg %p57
        %p688 = scmp.lt.s32.totalorder %s39, 1
        %s689 = scalar_select %p688, %s39, 1
        %s690 = smul.addr %s689, 8
        %s691 = scalar_lea.vmem %s1, %s690
        %p692 = pneg %p86
        %p693 = pneg %p83
        %p694 = pneg %p107
        %p695 = pneg %p104
        %p696 = pneg %p128
        %p697 = pneg %p125
        %p698 = pneg %p149
        %p699 = pneg %p146
        %p700 = pneg %p170
        %p701 = pneg %p167
        %p702 = pneg %p191
        %p703 = pneg %p188
        %p704 = pneg %p212
        %p705 = pneg %p209
        %p706 = pneg %p233
        %p707 = pneg %p230
        %p708 = pneg %p254
        %p709 = pneg %p251
        %p710 = pneg %p275
        %p711 = pneg %p272
        %p712 = pneg %p296
        %p713 = pneg %p293
        %p714 = pneg %p317
        %p715 = pneg %p314
        %p716 = pneg %p338
        %p717 = pneg %p335
        %p718 = pneg %p359
        %p719 = pneg %p356
        %p720 = pneg %p380
        %p721 = pneg %p377
        %p722 = pneg %p401
        %p723 = pneg %p398
        %p724 = pneg %p422
        %p725 = pneg %p419
        %p726 = pneg %p443
        %p727 = pneg %p440
        %p728 = pneg %p464
        %p729 = pneg %p461
        %p730 = pneg %p485
        %p731 = pneg %p482
        %p732 = pneg %p511
        %p733 = pneg %p508
        %p734 = scmp.lt.s32.totalorder %s39, 1
        %s735 = scalar_select %p734, %s39, 1
        %s736 = smul.addr %s735, 8
        %s737 = scalar_lea.vmem %s21, %s736
        %p738 = pneg %p537
        %p739 = pneg %p534
        %s740 = sand.u32 %s524, 1
        %s741 = scalar_lea.sflag [#allocation6], %s740
        %s742 = sand.u32 %s524, 1
        %s743 = smul.addr %s742, 8
        %s744 = scalar_lea.vmem [#allocation10], %s743
        %p745 = scmp.lt.s32.totalorder %s39, 1
        %s746 = scalar_select %p745, %s39, 1
        %s747 = smul.addr %s746, 8
        %s748 = scalar_lea.vmem %s0, %s747
        %p749 = scmp.lt.s32.totalorder %s39, 1
        %s750 = scalar_select %p749, %s39, 1
        %s751 = smul.addr %s750, 8
        %s752 = scalar_lea.vmem %s1, %s751
        %p753 = scmp.lt.s32.totalorder %s39, 1
        %s754 = scalar_select %p753, %s39, 1
        %s755 = smul.addr %s754, 8
        %s756 = scalar_lea.vmem %s21, %s755
        %v758 = vld [vmem:[%s748] sm:$0xff]
        %v759 = vld [vmem:[%s752] sm:$0xff]
        %v760 = vlaneseq
        %v761 = vand.u32 %v760, 127
        %v762 = vperm.slane %v758, 0
        %v763 = vlaneseq
        %v764 = vshrl.u32 %v763, 7
        %766 = vset.pattern.permute.xlu0 %v764
        %767 = vperm.xlu0 %766, %v762
        %v768 = vpop.permute.xlu0 %767
        %v769 = vlaneseq
        %v770 = vshrl.u32 %v769, 7
        %v771 = vadd.s32 %v770, 8
        %772 = vset.pattern.permute.xlu0 %v771
        %773 = vperm.xlu0 %772, %v762
        %v774 = vpop.permute.xlu0 %773
        %v775 = vperm.slane %v758, 1
        %v776 = vlaneseq
        %v777 = vshrl.u32 %v776, 7
        %779 = vset.pattern.permute.xlu0 %v777
        %780 = vperm.xlu0 %779, %v775
        %v781 = vpop.permute.xlu0 %780
        %v782 = vlaneseq
        %v783 = vshrl.u32 %v782, 7
        %v784 = vadd.s32 %v783, 8
        %785 = vset.pattern.permute.xlu0 %v784
        %786 = vperm.xlu0 %785, %v775
        %v787 = vpop.permute.xlu0 %786
        %v788 = vperm.slane %v758, 2
        %v789 = vlaneseq
        %v790 = vshrl.u32 %v789, 7
        %792 = vset.pattern.permute.xlu0 %v790
        %793 = vperm.xlu0 %792, %v788
        %v794 = vpop.permute.xlu0 %793
        %v795 = vlaneseq
        %v796 = vshrl.u32 %v795, 7
        %v797 = vadd.s32 %v796, 8
        %798 = vset.pattern.permute.xlu0 %v797
        %799 = vperm.xlu0 %798, %v788
        %v800 = vpop.permute.xlu0 %799
        %v801 = vperm.slane %v758, 3
        %v802 = vlaneseq
        %v803 = vshrl.u32 %v802, 7
        %805 = vset.pattern.permute.xlu0 %v803
        %806 = vperm.xlu0 %805, %v801
        %v807 = vpop.permute.xlu0 %806
        %v808 = vlaneseq
        %v809 = vshrl.u32 %v808, 7
        %v810 = vadd.s32 %v809, 8
        %811 = vset.pattern.permute.xlu0 %v810
        %812 = vperm.xlu0 %811, %v801
        %v813 = vpop.permute.xlu0 %812
        %v814 = vperm.slane %v758, 4
        %v815 = vlaneseq
        %v816 = vshrl.u32 %v815, 7
        %818 = vset.pattern.permute.xlu0 %v816
        %819 = vperm.xlu0 %818, %v814
        %v820 = vpop.permute.xlu0 %819
        %v821 = vlaneseq
        %v822 = vshrl.u32 %v821, 7
        %v823 = vadd.s32 %v822, 8
        %824 = vset.pattern.permute.xlu0 %v823
        %825 = vperm.xlu0 %824, %v814
        %v826 = vpop.permute.xlu0 %825
        %v827 = vperm.slane %v758, 5
        %v828 = vlaneseq
        %v829 = vshrl.u32 %v828, 7
        %831 = vset.pattern.permute.xlu0 %v829
        %832 = vperm.xlu0 %831, %v827
        %v833 = vpop.permute.xlu0 %832
        %v834 = vlaneseq
        %v835 = vshrl.u32 %v834, 7
        %v836 = vadd.s32 %v835, 8
        %837 = vset.pattern.permute.xlu0 %v836
        %838 = vperm.xlu0 %837, %v827
        %v839 = vpop.permute.xlu0 %838
        %v840 = vperm.slane %v758, 6
        %v841 = vlaneseq
        %v842 = vshrl.u32 %v841, 7
        %844 = vset.pattern.permute.xlu0 %v842
        %845 = vperm.xlu0 %844, %v840
        %v846 = vpop.permute.xlu0 %845
        %v847 = vlaneseq
        %v848 = vshrl.u32 %v847, 7
        %v849 = vadd.s32 %v848, 8
        %850 = vset.pattern.permute.xlu0 %v849
        %851 = vperm.xlu0 %850, %v840
        %v852 = vpop.permute.xlu0 %851
        %v853 = vperm.slane %v758, 7
        %v854 = vlaneseq
        %v855 = vshrl.u32 %v854, 7
        %857 = vset.pattern.permute.xlu0 %v855
        %858 = vperm.xlu0 %857, %v853
        %v859 = vpop.permute.xlu0 %858
        %v860 = vlaneseq
        %v861 = vshrl.u32 %v860, 7
        %v862 = vadd.s32 %v861, 8
        %863 = vset.pattern.permute.xlu0 %v862
        %864 = vperm.xlu0 %863, %v853
        %v865 = vpop.permute.xlu0 %864
        %vm866 = vcmp.eq.s32.totalorder %v768, %v761
        %vm867 = vcmp.eq.s32.totalorder %v774, %v761
        %vm868 = vcmp.eq.s32.totalorder %v781, %v761
        %vm869 = vcmp.eq.s32.totalorder %v787, %v761
        %vm870 = vcmp.eq.s32.totalorder %v794, %v761
        %vm871 = vcmp.eq.s32.totalorder %v800, %v761
        %vm872 = vcmp.eq.s32.totalorder %v807, %v761
        %vm873 = vcmp.eq.s32.totalorder %v813, %v761
        %vm874 = vcmp.eq.s32.totalorder %v820, %v761
        %vm875 = vcmp.eq.s32.totalorder %v826, %v761
        %vm876 = vcmp.eq.s32.totalorder %v833, %v761
        %vm877 = vcmp.eq.s32.totalorder %v839, %v761
        %vm878 = vcmp.eq.s32.totalorder %v846, %v761
        %vm879 = vcmp.eq.s32.totalorder %v852, %v761
        %vm880 = vcmp.eq.s32.totalorder %v859, %v761
        %vm881 = vcmp.eq.s32.totalorder %v865, %v761
        %v882 = vperm.slane %v759, 0
        %v883 = vlaneseq
        %v884 = vshrl.u32 %v883, 7
        %886 = vset.pattern.permute.xlu0 %v884
        %887 = vperm.xlu0 %886, %v882
        %v888 = vpop.permute.xlu0 %887
        %v889 = vlaneseq
        %v890 = vshrl.u32 %v889, 7
        %v891 = vadd.s32 %v890, 8
        %892 = vset.pattern.permute.xlu0 %v891
        %893 = vperm.xlu0 %892, %v882
        %v894 = vpop.permute.xlu0 %893
        %v895 = vperm.slane %v759, 1
        %v896 = vlaneseq
        %v897 = vshrl.u32 %v896, 7
        %899 = vset.pattern.permute.xlu0 %v897
        %900 = vperm.xlu0 %899, %v895
        %v901 = vpop.permute.xlu0 %900
        %v902 = vlaneseq
        %v903 = vshrl.u32 %v902, 7
        %v904 = vadd.s32 %v903, 8
        %905 = vset.pattern.permute.xlu0 %v904
        %906 = vperm.xlu0 %905, %v895
        %v907 = vpop.permute.xlu0 %906
        %v908 = vperm.slane %v759, 2
        %v909 = vlaneseq
        %v910 = vshrl.u32 %v909, 7
        %912 = vset.pattern.permute.xlu0 %v910
        %913 = vperm.xlu0 %912, %v908
        %v914 = vpop.permute.xlu0 %913
        %v915 = vlaneseq
        %v916 = vshrl.u32 %v915, 7
        %v917 = vadd.s32 %v916, 8
        %918 = vset.pattern.permute.xlu0 %v917
        %919 = vperm.xlu0 %918, %v908
        %v920 = vpop.permute.xlu0 %919
        %v921 = vperm.slane %v759, 3
        %v922 = vlaneseq
        %v923 = vshrl.u32 %v922, 7
        %925 = vset.pattern.permute.xlu0 %v923
        %926 = vperm.xlu0 %925, %v921
        %v927 = vpop.permute.xlu0 %926
        %v928 = vlaneseq
        %v929 = vshrl.u32 %v928, 7
        %v930 = vadd.s32 %v929, 8
        %931 = vset.pattern.permute.xlu0 %v930
        %932 = vperm.xlu0 %931, %v921
        %v933 = vpop.permute.xlu0 %932
        %v934 = vperm.slane %v759, 4
        %v935 = vlaneseq
        %v936 = vshrl.u32 %v935, 7
        %938 = vset.pattern.permute.xlu0 %v936
        %939 = vperm.xlu0 %938, %v934
        %v940 = vpop.permute.xlu0 %939
        %v941 = vlaneseq
        %v942 = vshrl.u32 %v941, 7
        %v943 = vadd.s32 %v942, 8
        %944 = vset.pattern.permute.xlu0 %v943
        %945 = vperm.xlu0 %944, %v934
        %v946 = vpop.permute.xlu0 %945
        %v947 = vperm.slane %v759, 5
        %v948 = vlaneseq
        %v949 = vshrl.u32 %v948, 7
        %951 = vset.pattern.permute.xlu0 %v949
        %952 = vperm.xlu0 %951, %v947
        %v953 = vpop.permute.xlu0 %952
        %v954 = vlaneseq
        %v955 = vshrl.u32 %v954, 7
        %v956 = vadd.s32 %v955, 8
        %957 = vset.pattern.permute.xlu0 %v956
        %958 = vperm.xlu0 %957, %v947
        %v959 = vpop.permute.xlu0 %958
        %v960 = vperm.slane %v759, 6
        %v961 = vlaneseq
        %v962 = vshrl.u32 %v961, 7
        %964 = vset.pattern.permute.xlu0 %v962
        %965 = vperm.xlu0 %964, %v960
        %v966 = vpop.permute.xlu0 %965
        %v967 = vlaneseq
        %v968 = vshrl.u32 %v967, 7
        %v969 = vadd.s32 %v968, 8
        %970 = vset.pattern.permute.xlu0 %v969
        %971 = vperm.xlu0 %970, %v960
        %v972 = vpop.permute.xlu0 %971
        %v973 = vperm.slane %v759, 7
        %v974 = vlaneseq
        %v975 = vshrl.u32 %v974, 7
        %977 = vset.pattern.permute.xlu0 %v975
        %978 = vperm.xlu0 %977, %v973
        %v979 = vpop.permute.xlu0 %978
        %v980 = vlaneseq
        %v981 = vshrl.u32 %v980, 7
        %v982 = vadd.s32 %v981, 8
        %983 = vset.pattern.permute.xlu0 %v982
        %984 = vperm.xlu0 %983, %v973
        %v985 = vpop.permute.xlu0 %984
        %vm986 = vcmp.gt.f32.partialorder %v888, 0.5
        %vm987 = vcmp.gt.f32.partialorder %v894, 0.5
        %vm988 = vcmp.gt.f32.partialorder %v901, 0.5
        %vm989 = vcmp.gt.f32.partialorder %v907, 0.5
        %vm990 = vcmp.gt.f32.partialorder %v914, 0.5
        %vm991 = vcmp.gt.f32.partialorder %v920, 0.5
        %vm992 = vcmp.gt.f32.partialorder %v927, 0.5
        %vm993 = vcmp.gt.f32.partialorder %v933, 0.5
        %vm994 = vcmp.gt.f32.partialorder %v940, 0.5
        %vm995 = vcmp.gt.f32.partialorder %v946, 0.5
        %vm996 = vcmp.gt.f32.partialorder %v953, 0.5
        %vm997 = vcmp.gt.f32.partialorder %v959, 0.5
        %vm998 = vcmp.gt.f32.partialorder %v966, 0.5
        %vm999 = vcmp.gt.f32.partialorder %v972, 0.5
        %vm1000 = vcmp.gt.f32.partialorder %v979, 0.5
        %vm1001 = vcmp.gt.f32.partialorder %v985, 0.5
        %v1002 = vsel %vm986, 1, 0
        %v1003 = vsel %vm987, 1, 0
        %v1004 = vsel %vm988, 1, 0
        %v1005 = vsel %vm989, 1, 0
        %v1006 = vsel %vm990, 1, 0
        %v1007 = vsel %vm991, 1, 0
        %v1008 = vsel %vm992, 1, 0
        %v1009 = vsel %vm993, 1, 0
        %v1010 = vsel %vm994, 1, 0
        %v1011 = vsel %vm995, 1, 0
        %v1012 = vsel %vm996, 1, 0
        %v1013 = vsel %vm997, 1, 0
        %v1014 = vsel %vm998, 1, 0
        %v1015 = vsel %vm999, 1, 0
        %v1016 = vsel %vm1000, 1, 0
        %v1017 = vsel %vm1001, 1, 0
        %vm1018 = vcmp.eq.s32.totalorder %v1002, 1
        %vm1019 = vcmp.eq.s32.totalorder %v1003, 1
        %vm1020 = vcmp.eq.s32.totalorder %v1004, 1
        %vm1021 = vcmp.eq.s32.totalorder %v1005, 1
        %vm1022 = vcmp.eq.s32.totalorder %v1006, 1
        %vm1023 = vcmp.eq.s32.totalorder %v1007, 1
        %vm1024 = vcmp.eq.s32.totalorder %v1008, 1
        %vm1025 = vcmp.eq.s32.totalorder %v1009, 1
        %vm1026 = vcmp.eq.s32.totalorder %v1010, 1
        %vm1027 = vcmp.eq.s32.totalorder %v1011, 1
        %vm1028 = vcmp.eq.s32.totalorder %v1012, 1
        %vm1029 = vcmp.eq.s32.totalorder %v1013, 1
        %vm1030 = vcmp.eq.s32.totalorder %v1014, 1
        %vm1031 = vcmp.eq.s32.totalorder %v1015, 1
        %vm1032 = vcmp.eq.s32.totalorder %v1016, 1
        %vm1033 = vcmp.eq.s32.totalorder %v1017, 1
        %vm1034 = vmand %vm866, %vm1018
        %vm1035 = vmand %vm867, %vm1019
        %vm1036 = vmand %vm868, %vm1020
        %vm1037 = vmand %vm869, %vm1021
        %vm1038 = vmand %vm870, %vm1022
        %vm1039 = vmand %vm871, %vm1023
        %vm1040 = vmand %vm872, %vm1024
        %vm1041 = vmand %vm873, %vm1025
        %vm1042 = vmand %vm874, %vm1026
        %vm1043 = vmand %vm875, %vm1027
        %vm1044 = vmand %vm876, %vm1028
        %vm1045 = vmand %vm877, %vm1029
        %vm1046 = vmand %vm878, %vm1030
        %vm1047 = vmand %vm879, %vm1031
        %vm1048 = vmand %vm880, %vm1032
        %vm1049 = vmand %vm881, %vm1033
        %v1050 = vsel %vm1034, 1.0, 0.0
        %v1051 = vsel %vm1035, 1.0, 0.0
        %v1052 = vsel %vm1036, 1.0, 0.0
        %v1053 = vsel %vm1037, 1.0, 0.0
        %v1054 = vsel %vm1038, 1.0, 0.0
        %v1055 = vsel %vm1039, 1.0, 0.0
        %v1056 = vsel %vm1040, 1.0, 0.0
        %v1057 = vsel %vm1041, 1.0, 0.0
        %v1058 = vsel %vm1042, 1.0, 0.0
        %v1059 = vsel %vm1043, 1.0, 0.0
        %v1060 = vsel %vm1044, 1.0, 0.0
        %v1061 = vsel %vm1045, 1.0, 0.0
        %v1062 = vsel %vm1046, 1.0, 0.0
        %v1063 = vsel %vm1047, 1.0, 0.0
        %v1064 = vsel %vm1048, 1.0, 0.0
        %v1065 = vsel %vm1049, 1.0, 0.0
        %v1066 = vpack.c.bf16 %v1050, %v1050
        %v1067 = vpack.c.bf16 %v1051, %v1051
        %v1068 = vpack.c.bf16 %v1052, %v1052
        %v1069 = vpack.c.bf16 %v1053, %v1053
        %v1070 = vpack.c.bf16 %v1054, %v1054
        %v1071 = vpack.c.bf16 %v1055, %v1055
        %v1072 = vpack.c.bf16 %v1056, %v1056
        %v1073 = vpack.c.bf16 %v1057, %v1057
        %v1074 = vpack.c.bf16 %v1058, %v1058
        %v1075 = vpack.c.bf16 %v1059, %v1059
        %v1076 = vpack.c.bf16 %v1060, %v1060
        %v1077 = vpack.c.bf16 %v1061, %v1061
        %v1078 = vpack.c.bf16 %v1062, %v1062
        %v1079 = vpack.c.bf16 %v1063, %v1063
        %v1080 = vpack.c.bf16 %v1064, %v1064
        %v1081 = vpack.c.bf16 %v1065, %v1065
        %v1082 = vld [vmem:[%s2] sm:$0xf]
        %v1083 = vld [vmem:[%s2 + $0x4] sm:$0xf]
        %v1084 = vld [vmem:[%s2 + $0x8] sm:$0xf]
        %v1085 = vld [vmem:[%s2 + $0xc] sm:$0xf]
        %v1086 = vld [vmem:[%s2 + $0x10] sm:$0xf]
        %v1087 = vld [vmem:[%s2 + $0x14] sm:$0xf]
        %v1088 = vld [vmem:[%s2 + $0x18] sm:$0xf]
        %v1089 = vld [vmem:[%s2 + $0x1c] sm:$0xf]
        %v1090 = vld [vmem:[%s2 + $0x20] sm:$0xf]
        %v1091 = vld [vmem:[%s2 + $0x24] sm:$0xf]
        %v1092 = vld [vmem:[%s2 + $0x28] sm:$0xf]
        %v1093 = vld [vmem:[%s2 + $0x2c] sm:$0xf]
        %v1094 = vld [vmem:[%s2 + $0x30] sm:$0xf]
        %v1095 = vld [vmem:[%s2 + $0x34] sm:$0xf]
        %v1096 = vld [vmem:[%s2 + $0x38] sm:$0xf]
        %v1097 = vld [vmem:[%s2 + $0x3c] sm:$0xf]
        %v1114 = vunpack.c.l.b16 %v1066
        %v1115 = vunpack.c.l.b16 %v1067
        %v1116 = vunpack.c.l.b16 %v1068
        %v1117 = vunpack.c.l.b16 %v1069
        %v1118 = vunpack.c.l.b16 %v1070
        %v1119 = vunpack.c.l.b16 %v1071
        %v1120 = vunpack.c.l.b16 %v1072
        %v1121 = vunpack.c.l.b16 %v1073
        %v1122 = vunpack.c.l.b16 %v1074
        %v1123 = vunpack.c.l.b16 %v1075
        %v1124 = vunpack.c.l.b16 %v1076
        %v1125 = vunpack.c.l.b16 %v1077
        %v1126 = vunpack.c.l.b16 %v1078
        %v1127 = vunpack.c.l.b16 %v1079
        %v1128 = vunpack.c.l.b16 %v1080
        %v1129 = vunpack.c.l.b16 %v1081
        %v1130 = vpack.c.b16 %v1115, %v1114
        %v1131 = vpack.c.b16 %v1117, %v1116
        %v1132 = vpack.c.b16 %v1119, %v1118
        %v1133 = vpack.c.b16 %v1121, %v1120
        %v1134 = vpack.c.b16 %v1123, %v1122
        %v1135 = vpack.c.b16 %v1125, %v1124
        %v1136 = vpack.c.b16 %v1127, %v1126
        %v1137 = vpack.c.b16 %v1129, %v1128
        %v1162 = vunpack.c.l.b16 %v1082
        %v1163 = vunpack.c.l.b16 %v1083
        %v1164 = vunpack.c.l.b16 %v1084
        %v1165 = vunpack.c.l.b16 %v1085
        %v1166 = vunpack.c.l.b16 %v1086
        %v1167 = vunpack.c.l.b16 %v1087
        %v1168 = vunpack.c.l.b16 %v1088
        %v1169 = vunpack.c.l.b16 %v1089
        %v1170 = vunpack.c.l.b16 %v1090
        %v1171 = vunpack.c.l.b16 %v1091
        %v1172 = vunpack.c.l.b16 %v1092
        %v1173 = vunpack.c.l.b16 %v1093
        %v1174 = vunpack.c.l.b16 %v1094
        %v1175 = vunpack.c.l.b16 %v1095
        %v1176 = vunpack.c.l.b16 %v1096
        %v1177 = vunpack.c.l.b16 %v1097
        %v1178 = vpack.c.b16 %v1163, %v1162
        %v1179 = vpack.c.b16 %v1165, %v1164
        %v1180 = vpack.c.b16 %v1167, %v1166
        %v1181 = vpack.c.b16 %v1169, %v1168
        %v1182 = vpack.c.b16 %v1171, %v1170
        %v1183 = vpack.c.b16 %v1173, %v1172
        %v1184 = vpack.c.b16 %v1175, %v1174
        %v1185 = vpack.c.b16 %v1177, %v1176
        %1194 = vmatpush.bf16.msra.mxu0 %v1185
        %1195 = vmatpush.bf16.msra.mxu0 %v1184
        %1196 = vmatpush.bf16.msra.mxu0 %v1183
        %1197 = vmatpush.bf16.msra.mxu0 %v1182
        %1198 = vmatpush.bf16.msra.mxu0 %v1181
        %1199 = vmatpush.bf16.msra.mxu0 %v1180
        %1200 = vmatpush.bf16.msra.mxu0 %v1179
        %1201 = vmatpush.bf16.msra.mxu0 %v1178
        %1202 = vmatmul.bf16.gmra.mxu0 %v1130
        %v1203 = vpop.f32.mrf.mxu0
        %v1204 = vadd.f32 0.0, %v1203
        %v1205 = vpop.f32.mrf.mxu0
        %v1206 = vadd.f32 0.0, %v1205
        %1207 = vmatmul.bf16.gmra.mxu0 %v1131
        %v1208 = vpop.f32.mrf.mxu0
        %v1209 = vadd.f32 0.0, %v1208
        %v1210 = vpop.f32.mrf.mxu0
        %v1211 = vadd.f32 0.0, %v1210
        %1212 = vmatmul.bf16.gmra.mxu0 %v1132
        %v1213 = vpop.f32.mrf.mxu0
        %v1214 = vadd.f32 0.0, %v1213
        %v1215 = vpop.f32.mrf.mxu0
        %v1216 = vadd.f32 0.0, %v1215
        %1217 = vmatmul.bf16.gmra.mxu0 %v1133
        %v1218 = vpop.f32.mrf.mxu0
        %v1219 = vadd.f32 0.0, %v1218
        %v1220 = vpop.f32.mrf.mxu0
        %v1221 = vadd.f32 0.0, %v1220
        %1222 = vmatmul.bf16.gmra.mxu0 %v1134
        %v1223 = vpop.f32.mrf.mxu0
        %v1224 = vadd.f32 0.0, %v1223
        %v1225 = vpop.f32.mrf.mxu0
        %v1226 = vadd.f32 0.0, %v1225
        %1227 = vmatmul.bf16.gmra.mxu0 %v1135
        %v1228 = vpop.f32.mrf.mxu0
        %v1229 = vadd.f32 0.0, %v1228
        %v1230 = vpop.f32.mrf.mxu0
        %v1231 = vadd.f32 0.0, %v1230
        %1232 = vmatmul.bf16.gmra.mxu0 %v1136
        %v1233 = vpop.f32.mrf.mxu0
        %v1234 = vadd.f32 0.0, %v1233
        %v1235 = vpop.f32.mrf.mxu0
        %v1236 = vadd.f32 0.0, %v1235
        %1237 = vmatmul.bf16.gmra.mxu0 %v1137
        %v1238 = vpop.f32.mrf.mxu0
        %v1239 = vadd.f32 0.0, %v1238
        %v1240 = vpop.f32.mrf.mxu0
        %v1241 = vadd.f32 0.0, %v1240
        %1242 = vdwg.mxu0
        %vm1243 = vcmask 523264
        %v1244 = vsel %vm1243, %v1204, 0.0
        %v1245 = vsel %vm1243, %v1206, 0.0
        %v1246 = vadd.f32 %v1244, %v1245
        %v1247 = vrot.slane %v1246, 4
        %v1248 = vadd.f32 %v1246, %v1247
        %v1249 = vrot.slane %v1248, 2
        %v1250 = vadd.f32 %v1248, %v1249
        %v1251 = vrot.slane %v1250, 1
        %v1252 = vadd.f32 %v1250, %v1251
        %v1253 = vsel %vm1243, %v1209, 0.0
        %v1254 = vsel %vm1243, %v1211, 0.0
        %v1255 = vadd.f32 %v1253, %v1254
        %v1256 = vrot.slane %v1255, 4
        %v1257 = vadd.f32 %v1255, %v1256
        %v1258 = vrot.slane %v1257, 2
        %v1259 = vadd.f32 %v1257, %v1258
        %v1260 = vrot.slane %v1259, 1
        %v1261 = vadd.f32 %v1259, %v1260
        %v1262 = vsel %vm1243, %v1214, 0.0
        %v1263 = vsel %vm1243, %v1216, 0.0
        %v1264 = vadd.f32 %v1262, %v1263
        %v1265 = vrot.slane %v1264, 4
        %v1266 = vadd.f32 %v1264, %v1265
        %v1267 = vrot.slane %v1266, 2
        %v1268 = vadd.f32 %v1266, %v1267
        %v1269 = vrot.slane %v1268, 1
        %v1270 = vadd.f32 %v1268, %v1269
        %v1271 = vsel %vm1243, %v1219, 0.0
        %v1272 = vsel %vm1243, %v1221, 0.0
        %v1273 = vadd.f32 %v1271, %v1272
        %v1274 = vrot.slane %v1273, 4
        %v1275 = vadd.f32 %v1273, %v1274
        %v1276 = vrot.slane %v1275, 2
        %v1277 = vadd.f32 %v1275, %v1276
        %v1278 = vrot.slane %v1277, 1
        %v1279 = vadd.f32 %v1277, %v1278
        %v1280 = vsel %vm1243, %v1224, 0.0
        %v1281 = vsel %vm1243, %v1226, 0.0
        %v1282 = vadd.f32 %v1280, %v1281
        %v1283 = vrot.slane %v1282, 4
        %v1284 = vadd.f32 %v1282, %v1283
        %v1285 = vrot.slane %v1284, 2
        %v1286 = vadd.f32 %v1284, %v1285
        %v1287 = vrot.slane %v1286, 1
        %v1288 = vadd.f32 %v1286, %v1287
        %v1289 = vsel %vm1243, %v1229, 0.0
        %v1290 = vsel %vm1243, %v1231, 0.0
        %v1291 = vadd.f32 %v1289, %v1290
        %v1292 = vrot.slane %v1291, 4
        %v1293 = vadd.f32 %v1291, %v1292
        %v1294 = vrot.slane %v1293, 2
        %v1295 = vadd.f32 %v1293, %v1294
        %v1296 = vrot.slane %v1295, 1
        %v1297 = vadd.f32 %v1295, %v1296
        %v1298 = vsel %vm1243, %v1234, 0.0
        %v1299 = vsel %vm1243, %v1236, 0.0
        %v1300 = vadd.f32 %v1298, %v1299
        %v1301 = vrot.slane %v1300, 4
        %v1302 = vadd.f32 %v1300, %v1301
        %v1303 = vrot.slane %v1302, 2
        %v1304 = vadd.f32 %v1302, %v1303
        %v1305 = vrot.slane %v1304, 1
        %v1306 = vadd.f32 %v1304, %v1305
        %v1307 = vsel %vm1243, %v1239, 0.0
        %v1308 = vsel %vm1243, %v1241, 0.0
        %v1309 = vadd.f32 %v1307, %v1308
        %v1310 = vrot.slane %v1309, 4
        %v1311 = vadd.f32 %v1309, %v1310
        %v1312 = vrot.slane %v1311, 2
        %v1313 = vadd.f32 %v1311, %v1312
        %v1314 = vrot.slane %v1313, 1
        %v1315 = vadd.f32 %v1313, %v1314
        %vm1316 = vcmask 130048
        %v1317 = vsel %vm1316, %v759, 0.0
        %1318 = vadd.xlane.f32.xlu0 %v1317
        %v1319 = vpop.xlane.xlu0 %1318
        %v1320 = vmax.f32 %v1319, 1.0
        %v1321 = vrcp.pop %v1320
        %v1323 = vrot.slane %v1321, 1
        %v1324 = vrot.slane %v1321, 2
        %v1325 = vrot.slane %v1321, 3
        %v1326 = vrot.slane %v1321, 4
        %v1327 = vrot.slane %v1321, 5
        %v1328 = vrot.slane %v1321, 6
        %v1329 = vrot.slane %v1321, 7
        %v1338 = vmul.f32 %v1252, %v1321
        %v1339 = vmul.f32 %v1261, %v1323
        %v1340 = vmul.f32 %v1270, %v1324
        %v1341 = vmul.f32 %v1279, %v1325
        %v1342 = vmul.f32 %v1288, %v1326
        %v1343 = vmul.f32 %v1297, %v1327
        %v1344 = vmul.f32 %v1306, %v1328
        %v1345 = vmul.f32 %v1315, %v1329
        %v1346 = vpack.c.bf16 %v1338, %v1338
        %v1347 = vpack.c.bf16 %v1339, %v1339
        %v1348 = vpack.c.bf16 %v1340, %v1340
        %v1349 = vpack.c.bf16 %v1341, %v1341
        %v1350 = vpack.c.bf16 %v1342, %v1342
        %v1351 = vpack.c.bf16 %v1343, %v1343
        %v1352 = vpack.c.bf16 %v1344, %v1344
        %v1353 = vpack.c.bf16 %v1345, %v1345
        %v1354 = vld [vmem:[%s3] sm:$0xf]
        %v1355 = vld [vmem:[%s3 + $0x4] sm:$0xf]
        %v1356 = vld [vmem:[%s3 + $0x8] sm:$0xf]
        %v1357 = vld [vmem:[%s3 + $0xc] sm:$0xf]
        %v1358 = vld [vmem:[%s3 + $0x10] sm:$0xf]
        %v1359 = vld [vmem:[%s3 + $0x14] sm:$0xf]
        %v1360 = vld [vmem:[%s3 + $0x18] sm:$0xf]
        %v1361 = vld [vmem:[%s3 + $0x1c] sm:$0xf]
        %v1362 = vld [vmem:[%s4] sm:$0x1]
        %v1364 = vperm.slane %v1362, 0
        %v1374 = vunpack.c.l.b16 %v1346
        %v1375 = vunpack.c.l.b16 %v1347
        %v1376 = vunpack.c.l.b16 %v1348
        %v1377 = vunpack.c.l.b16 %v1349
        %v1378 = vunpack.c.l.b16 %v1350
        %v1379 = vunpack.c.l.b16 %v1351
        %v1380 = vunpack.c.l.b16 %v1352
        %v1381 = vunpack.c.l.b16 %v1353
        %v1382 = vrot.slane %v1375, 7
        %vm1383 = vcmask 1041409
        %v1384 = vsel %vm1383, %v1382, %v1374
        %v1385 = vrot.slane %v1376, 6
        %vm1386 = vcmask 1042434
        %v1387 = vsel %vm1386, %v1385, %v1384
        %v1388 = vrot.slane %v1377, 5
        %vm1389 = vcmask 1043459
        %v1390 = vsel %vm1389, %v1388, %v1387
        %v1391 = vrot.slane %v1378, 4
        %vm1392 = vcmask 1044484
        %v1393 = vsel %vm1392, %v1391, %v1390
        %v1394 = vrot.slane %v1379, 3
        %vm1395 = vcmask 1045509
        %v1396 = vsel %vm1395, %v1394, %v1393
        %v1397 = vrot.slane %v1380, 2
        %vm1398 = vcmask 1046534
        %v1399 = vsel %vm1398, %v1397, %v1396
        %v1400 = vrot.slane %v1381, 1
        %vm1401 = vcmask 1047559
        %v1402 = vsel %vm1401, %v1400, %v1399
        %v1403 = vpack.c.b16 %v1402, %v1402
        %v1412 = vunpack.c.l.b16 %v1354
        %v1413 = vunpack.c.l.b16 %v1355
        %v1414 = vunpack.c.l.b16 %v1356
        %v1415 = vunpack.c.l.b16 %v1357
        %v1416 = vunpack.c.l.b16 %v1358
        %v1417 = vunpack.c.l.b16 %v1359
        %v1418 = vunpack.c.l.b16 %v1360
        %v1419 = vunpack.c.l.b16 %v1361
        %v1420 = vpack.c.b16 %v1413, %v1412
        %v1421 = vpack.c.b16 %v1415, %v1414
        %v1422 = vpack.c.b16 %v1417, %v1416
        %v1423 = vpack.c.b16 %v1419, %v1418
        %v1429 = vsel %vm1243, %v1403, 0
        %1431 = vmatpush.bf16.msra.mxu0 0
        %1432 = vmatpush.bf16.msra.mxu0 0
        %1433 = vmatpush.bf16.msra.mxu0 0
        %1434 = vmatpush.bf16.msra.mxu0 0
        %1435 = vmatpush.bf16.msra.mxu0 %v1423
        %1436 = vmatpush.bf16.msra.mxu0 %v1422
        %1437 = vmatpush.bf16.msra.mxu0 %v1421
        %1438 = vmatpush.bf16.msra.mxu0 %v1420
        %1439 = vmatmul.bf16.gmra.mxu0 %v1429
        %v1440 = vpop.f32.mrf.mxu0
        %v1441 = vadd.f32 %v1364, %v1440
        %v1442 = vpop.f32.mrf.mxu0
        %1443 = vdwg.mxu0
        %v1444 = vmax.f32 %v1441, 0.0
        %v1445 = vld [vmem:[%s5] sm:$0xff]
        %v1446 = vld [vmem:[%s5 + $0x8] sm:$0xff]
        %v1447 = vld [vmem:[%s5 + $0x10] sm:$0xff]
        %v1448 = vld [vmem:[%s5 + $0x18] sm:$0xff]
        %v1449 = vld [vmem:[%s6] sm:$0xff]
        %v1450 = vld [vmem:[%s6 + $0x8] sm:$0xff]
        %v1451 = vld [vmem:[%s6 + $0x10] sm:$0xff]
        %v1452 = vld [vmem:[%s6 + $0x18] sm:$0xff]
        %v1453 = vld [vmem:[%s6 + $0x20] sm:$0xff]
        %v1454 = vld [vmem:[%s6 + $0x28] sm:$0xff]
        %v1455 = vld [vmem:[%s6 + $0x30] sm:$0xff]
        %v1456 = vld [vmem:[%s6 + $0x38] sm:$0xff]
        %v1457 = vld [vmem:[%s7] sm:$0x3]
        %v1458 = vpack.c.bf16 %v1444, %v1444
        %v1460 = vperm.slane %v1457, 0
        %v1461 = vperm.slane %v1457, 1
        %v1468 = vunpack.c.l.b16 %v1445
        %v1469 = vunpack.c.h.b16 %v1445
        %v1470 = vunpack.c.l.b16 %v1446
        %v1471 = vunpack.c.h.b16 %v1446
        %v1472 = vunpack.c.l.b16 %v1447
        %v1473 = vunpack.c.h.b16 %v1447
        %v1474 = vunpack.c.l.b16 %v1448
        %v1475 = vunpack.c.h.b16 %v1448
        %v1476 = vpack.c.b16 %v1470, %v1468
        %v1477 = vpack.c.b16 %v1471, %v1469
        %v1478 = vpack.c.b16 %v1474, %v1472
        %v1479 = vpack.c.b16 %v1475, %v1473
        %vm1484 = vcmask 261120
        %v1486 = vsel %vm1484, %v1458, 0
        %1488 = vmatpush.bf16.msra.mxu0 0
        %1489 = vmatpush.bf16.msra.mxu0 0
        %1490 = vmatpush.bf16.msra.mxu0 0
        %1491 = vmatpush.bf16.msra.mxu0 0
        %1492 = vmatpush.bf16.msra.mxu0 0
        %1493 = vmatpush.bf16.msra.mxu0 0
        %1494 = vmatpush.bf16.msra.mxu0 %v1478
        %1495 = vmatpush.bf16.msra.mxu0 %v1476
        %1496 = vmatmul.bf16.gmra.mxu0 %v1486
        %v1497 = vpop.f32.mrf.mxu0
        %v1498 = vadd.f32 %v1460, %v1497
        %v1499 = vpop.f32.mrf.mxu0
        %1500 = vdwg.mxu0
        %1501 = vmatpush.bf16.msra.mxu0 0
        %1502 = vmatpush.bf16.msra.mxu0 0
        %1503 = vmatpush.bf16.msra.mxu0 0
        %1504 = vmatpush.bf16.msra.mxu0 0
        %1505 = vmatpush.bf16.msra.mxu0 0
        %1506 = vmatpush.bf16.msra.mxu0 0
        %1507 = vmatpush.bf16.msra.mxu0 %v1479
        %1508 = vmatpush.bf16.msra.mxu0 %v1477
        %1509 = vmatmul.bf16.gmra.mxu0 %v1486
        %v1510 = vpop.f32.mrf.mxu0
        %v1511 = vadd.f32 %v1461, %v1510
        %v1512 = vpop.f32.mrf.mxu0
        %1513 = vdwg.mxu0
        %v1516 = vrot.slane %v1498, 7
        %v1517 = vrot.slane %v1511, 7
        %v1520 = vrot.slane %v1498, 5
        %v1521 = vrot.slane %v1511, 5
        %v1524 = vrot.slane %v1498, 3
        %v1525 = vrot.slane %v1511, 3
        %v1528 = vrot.slane %v1498, 1
        %v1529 = vrot.slane %v1511, 1
        %vm1532 = vcmask 1040384
        %v1533 = vsel %vm1532, %v1516, %v1520
        %v1534 = vsel %vm1532, %v1517, %v1521
        %vm1535 = vcmask 1041408
        %v1536 = vsel %vm1535, %v1533, %v1524
        %v1537 = vsel %vm1535, %v1534, %v1525
        %vm1538 = vcmask 1042432
        %v1539 = vsel %vm1538, %v1536, %v1528
        %v1540 = vsel %vm1538, %v1537, %v1529
        %vm1541 = vcmask 1043456
        %v1542 = vsel %vm1541, %v1539, %v1516
        %v1543 = vsel %vm1541, %v1540, %v1517
        %vm1544 = vcmask 1044480
        %v1545 = vsel %vm1544, %v1542, %v1520
        %v1546 = vsel %vm1544, %v1543, %v1521
        %vm1547 = vcmask 1045504
        %v1548 = vsel %vm1547, %v1545, %v1524
        %v1549 = vsel %vm1547, %v1546, %v1525
        %vm1550 = vcmask 1046528
        %v1551 = vsel %vm1550, %v1548, %v1528
        %v1552 = vsel %vm1550, %v1549, %v1529
        %v1553 = vsel %vm1484, %v1498, %v1551
        %v1554 = vsel %vm1243, %v1553, %v1498
        %vm1555 = vcmask 785408
        %v1556 = vsel %vm1555, %v1554, %v1551
        %v1557 = vsel %vm1484, %v1511, %v1552
        %v1558 = vsel %vm1243, %v1557, %v1511
        %v1559 = vsel %vm1555, %v1558, %v1552
        %v1560 = vxor.u32 %v1556, 2147483648
        %v1561 = vxor.u32 %v1559, 2147483648
        %v1562 = vmul.f32 %v1560, 1.442695
        %v1563 = vpow.pop %v1562
        %v1564 = vmul.f32 %v1561, 1.442695
        %v1565 = vpow.pop %v1564
        %v1566 = vadd.f32 %v1563, 1.0
        %v1567 = vadd.f32 %v1565, 1.0
        %v1568 = vrcp.pop %v1566
        %v1569 = vmul.f32 %v1566, %v1568
        %v1570 = vsub.f32 1.0, %v1569
        %v1571 = vmul.f32 %v1568, %v1570
        %v1572 = vadd.f32 %v1568, %v1571
        %vm1573 = vweird.f32 %v1566
        %vm1574 = vweird.f32 %v1568
        %vm1575 = vmor %vm1573, %vm1574
        %v1576 = vsel %vm1575, %v1568, %v1572
        %v1577 = vand.u32 2147483647, %v1566
        %vm1578 = vcmp.eq.f32.partialorder %v1577, 8.507059e+37
        %v1579 = vand.u32 %v1566, 2147483648
        %v1580 = vor.u32 1.1754944e-38, %v1579
        %v1581 = vsel %vm1578, %v1580, %v1576
        %v1582 = vmul.f32 1.0, %v1581
        %v1583 = vrcp.pop %v1567
        %v1584 = vmul.f32 %v1567, %v1583
        %v1585 = vsub.f32 1.0, %v1584
        %v1586 = vmul.f32 %v1583, %v1585
        %v1587 = vadd.f32 %v1583, %v1586
        %vm1588 = vweird.f32 %v1567
        %vm1589 = vweird.f32 %v1583
        %vm1590 = vmor %vm1588, %vm1589
        %v1591 = vsel %vm1590, %v1583, %v1587
        %v1592 = vand.u32 2147483647, %v1567
        %vm1593 = vcmp.eq.f32.partialorder %v1592, 8.507059e+37
        %v1594 = vand.u32 %v1567, 2147483648
        %v1595 = vor.u32 1.1754944e-38, %v1594
        %v1596 = vsel %vm1593, %v1595, %v1591
        %v1597 = vmul.f32 1.0, %v1596
        %v1598 = vtanh.pop %v1559
        %v1599 = vmul.f32 %v1582, 0.0
        %1601 = vrot.lane.b32.xlu0 %v1598, 64
        %v1602 = vpop.permute.xlu0 %1601
        %v1604 = vmul.f32 %v1582, %v1602
        %1606 = vrot.lane.b32.xlu0 %v1604, 64
        %v1607 = vpop.permute.xlu0 %1606
        %v1609 = vadd.f32 %v1599, %v1607
        %v1610 = vtanh.pop %v1609
        %1612 = vrot.lane.b32.xlu0 %v1610, 64
        %v1613 = vpop.permute.xlu0 %1612
        %v1615 = vmul.f32 %v1597, %v1613
        %vm1616 = vcmask 253952
        %1617 = vst.msk [vmem:[#allocation2] sm:$0x1] %vm1616, %v1615
        %vm1618 = vcmask 516352
        %1619 = vst.msk [vmem:[#allocation2 + $0x7] sm:$0x1] %vm1618, %v1615
        %v1620 = vpack.c.bf16 %v1615, %v1615
        %v1629 = vunpack.c.l.b16 %v1449
        %v1630 = vunpack.c.h.b16 %v1449
        %v1631 = vunpack.c.l.b16 %v1450
        %v1632 = vunpack.c.h.b16 %v1450
        %v1633 = vunpack.c.l.b16 %v1451
        %v1634 = vunpack.c.h.b16 %v1451
        %v1635 = vunpack.c.l.b16 %v1452
        %v1636 = vunpack.c.h.b16 %v1452
        %v1637 = vunpack.c.l.b16 %v1453
        %v1638 = vunpack.c.h.b16 %v1453
        %v1639 = vunpack.c.l.b16 %v1454
        %v1640 = vunpack.c.h.b16 %v1454
        %v1641 = vunpack.c.l.b16 %v1455
        %v1642 = vunpack.c.h.b16 %v1455
        %v1643 = vunpack.c.l.b16 %v1456
        %v1644 = vunpack.c.h.b16 %v1456
        %v1645 = vpack.c.b16 %v1631, %v1629
        %v1646 = vpack.c.b16 %v1632, %v1630
        %v1647 = vpack.c.b16 %v1635, %v1633
        %v1648 = vpack.c.b16 %v1636, %v1634
        %v1649 = vpack.c.b16 %v1639, %v1637
        %v1650 = vpack.c.b16 %v1640, %v1638
        %v1651 = vpack.c.b16 %v1643, %v1641
        %v1652 = vpack.c.b16 %v1644, %v1642
        %v1663 = vrot.slane %v1556, 1
        %v1664 = vrot.slane %v1559, 1
        %v1668 = vsel %vm1243, %v1620, 0
        %1670 = vmatpush.bf16.msra.mxu0 0
        %1671 = vmatpush.bf16.msra.mxu0 0
        %1672 = vmatpush.bf16.msra.mxu0 0
        %1673 = vmatpush.bf16.msra.mxu0 0
        %1674 = vmatpush.bf16.msra.mxu0 %v1651
        %1675 = vmatpush.bf16.msra.mxu0 %v1649
        %1676 = vmatpush.bf16.msra.mxu0 %v1647
        %1677 = vmatpush.bf16.msra.mxu0 %v1645
        %1678 = vmatmul.bf16.gmra.mxu0 %v1668
        %v1679 = vpop.f32.mrf.mxu0
        %v1680 = vadd.f32 %v1663, %v1679
        %v1681 = vpop.f32.mrf.mxu0
        %1682 = vdwg.mxu0
        %1683 = vmatpush.bf16.msra.mxu0 0
        %1684 = vmatpush.bf16.msra.mxu0 0
        %1685 = vmatpush.bf16.msra.mxu0 0
        %1686 = vmatpush.bf16.msra.mxu0 0
        %1687 = vmatpush.bf16.msra.mxu0 %v1652
        %1688 = vmatpush.bf16.msra.mxu0 %v1650
        %1689 = vmatpush.bf16.msra.mxu0 %v1648
        %1690 = vmatpush.bf16.msra.mxu0 %v1646
        %1691 = vmatmul.bf16.gmra.mxu0 %v1668
        %v1692 = vpop.f32.mrf.mxu0
        %v1693 = vadd.f32 %v1664, %v1692
        %v1694 = vpop.f32.mrf.mxu0
        %1695 = vdwg.mxu0
        %v1696 = vxor.u32 %v1680, 2147483648
        %v1697 = vxor.u32 %v1693, 2147483648
        %v1698 = vmul.f32 %v1696, 1.442695
        %v1699 = vpow.pop %v1698
        %v1700 = vmul.f32 %v1697, 1.442695
        %v1701 = vpow.pop %v1700
        %v1702 = vadd.f32 %v1699, 1.0
        %v1703 = vadd.f32 %v1701, 1.0
        %v1704 = vrcp.pop %v1702
        %v1705 = vmul.f32 %v1702, %v1704
        %v1706 = vsub.f32 1.0, %v1705
        %v1707 = vmul.f32 %v1704, %v1706
        %v1708 = vadd.f32 %v1704, %v1707
        %vm1709 = vweird.f32 %v1702
        %vm1710 = vweird.f32 %v1704
        %vm1711 = vmor %vm1709, %vm1710
        %v1712 = vsel %vm1711, %v1704, %v1708
        %v1713 = vand.u32 2147483647, %v1702
        %vm1714 = vcmp.eq.f32.partialorder %v1713, 8.507059e+37
        %v1715 = vand.u32 %v1702, 2147483648
        %v1716 = vor.u32 1.1754944e-38, %v1715
        %v1717 = vsel %vm1714, %v1716, %v1712
        %v1718 = vmul.f32 1.0, %v1717
        %v1719 = vrcp.pop %v1703
        %v1720 = vmul.f32 %v1703, %v1719
        %v1721 = vsub.f32 1.0, %v1720
        %v1722 = vmul.f32 %v1719, %v1721
        %v1723 = vadd.f32 %v1719, %v1722
        %vm1724 = vweird.f32 %v1703
        %vm1725 = vweird.f32 %v1719
        %vm1726 = vmor %vm1724, %vm1725
        %v1727 = vsel %vm1726, %v1719, %v1723
        %v1728 = vand.u32 2147483647, %v1703
        %vm1729 = vcmp.eq.f32.partialorder %v1728, 8.507059e+37
        %v1730 = vand.u32 %v1703, 2147483648
        %v1731 = vor.u32 1.1754944e-38, %v1730
        %v1732 = vsel %vm1729, %v1731, %v1727
        %v1733 = vmul.f32 1.0, %v1732
        %v1734 = vtanh.pop %v1693
        %v1735 = vmul.f32 %v1718, %v1609
        %1737 = vrot.lane.b32.xlu0 %v1734, 64
        %v1738 = vpop.permute.xlu0 %1737
        %v1740 = vmul.f32 %v1718, %v1738
        %1742 = vrot.lane.b32.xlu0 %v1740, 64
        %v1743 = vpop.permute.xlu0 %1742
        %v1745 = vadd.f32 %v1735, %v1743
        %v1746 = vtanh.pop %v1745
        %1748 = vrot.lane.b32.xlu0 %v1746, 64
        %v1749 = vpop.permute.xlu0 %1748
        %v1751 = vmul.f32 %v1733, %v1749
        %1752 = vst.msk [vmem:[#allocation2 + $0x1] sm:$0x1] %vm1616, %v1751
        %1753 = vst.msk [vmem:[#allocation2 + $0x6] sm:$0x1] %vm1618, %v1751
        %v1754 = vpack.c.bf16 %v1751, %v1751
        %v1755 = vrot.slane %v1556, 2
        %v1756 = vrot.slane %v1559, 2
        %v1760 = vsel %vm1243, %v1754, 0
        %1762 = vmatpush.bf16.msra.mxu0 0
        %1763 = vmatpush.bf16.msra.mxu0 0
        %1764 = vmatpush.bf16.msra.mxu0 0
        %1765 = vmatpush.bf16.msra.mxu0 0
        %1766 = vmatpush.bf16.msra.mxu0 %v1651
        %1767 = vmatpush.bf16.msra.mxu0 %v1649
        %1768 = vmatpush.bf16.msra.mxu0 %v1647
        %1769 = vmatpush.bf16.msra.mxu0 %v1645
        %1770 = vmatmul.bf16.gmra.mxu0 %v1760
        %v1771 = vpop.f32.mrf.mxu0
        %v1772 = vadd.f32 %v1755, %v1771
        %v1773 = vpop.f32.mrf.mxu0
        %1774 = vdwg.mxu0
        %1775 = vmatpush.bf16.msra.mxu0 0
        %1776 = vmatpush.bf16.msra.mxu0 0
        %1777 = vmatpush.bf16.msra.mxu0 0
        %1778 = vmatpush.bf16.msra.mxu0 0
        %1779 = vmatpush.bf16.msra.mxu0 %v1652
        %1780 = vmatpush.bf16.msra.mxu0 %v1650
        %1781 = vmatpush.bf16.msra.mxu0 %v1648
        %1782 = vmatpush.bf16.msra.mxu0 %v1646
        %1783 = vmatmul.bf16.gmra.mxu0 %v1760
        %v1784 = vpop.f32.mrf.mxu0
        %v1785 = vadd.f32 %v1756, %v1784
        %v1786 = vpop.f32.mrf.mxu0
        %1787 = vdwg.mxu0
        %v1788 = vxor.u32 %v1772, 2147483648
        %v1789 = vxor.u32 %v1785, 2147483648
        %v1790 = vmul.f32 %v1788, 1.442695
        %v1791 = vpow.pop %v1790
        %v1792 = vmul.f32 %v1789, 1.442695
        %v1793 = vpow.pop %v1792
        %v1794 = vadd.f32 %v1791, 1.0
        %v1795 = vadd.f32 %v1793, 1.0
        %v1796 = vrcp.pop %v1794
        %v1797 = vmul.f32 %v1794, %v1796
        %v1798 = vsub.f32 1.0, %v1797
        %v1799 = vmul.f32 %v1796, %v1798
        %v1800 = vadd.f32 %v1796, %v1799
        %vm1801 = vweird.f32 %v1794
        %vm1802 = vweird.f32 %v1796
        %vm1803 = vmor %vm1801, %vm1802
        %v1804 = vsel %vm1803, %v1796, %v1800
        %v1805 = vand.u32 2147483647, %v1794
        %vm1806 = vcmp.eq.f32.partialorder %v1805, 8.507059e+37
        %v1807 = vand.u32 %v1794, 2147483648
        %v1808 = vor.u32 1.1754944e-38, %v1807
        %v1809 = vsel %vm1806, %v1808, %v1804
        %v1810 = vmul.f32 1.0, %v1809
        %v1811 = vrcp.pop %v1795
        %v1812 = vmul.f32 %v1795, %v1811
        %v1813 = vsub.f32 1.0, %v1812
        %v1814 = vmul.f32 %v1811, %v1813
        %v1815 = vadd.f32 %v1811, %v1814
        %vm1816 = vweird.f32 %v1795
        %vm1817 = vweird.f32 %v1811
        %vm1818 = vmor %vm1816, %vm1817
        %v1819 = vsel %vm1818, %v1811, %v1815
        %v1820 = vand.u32 2147483647, %v1795
        %vm1821 = vcmp.eq.f32.partialorder %v1820, 8.507059e+37
        %v1822 = vand.u32 %v1795, 2147483648
        %v1823 = vor.u32 1.1754944e-38, %v1822
        %v1824 = vsel %vm1821, %v1823, %v1819
        %v1825 = vmul.f32 1.0, %v1824
        %v1826 = vtanh.pop %v1785
        %v1827 = vmul.f32 %v1810, %v1745
        %1829 = vrot.lane.b32.xlu0 %v1826, 64
        %v1830 = vpop.permute.xlu0 %1829
        %v1832 = vmul.f32 %v1810, %v1830
        %1834 = vrot.lane.b32.xlu0 %v1832, 64
        %v1835 = vpop.permute.xlu0 %1834
        %v1837 = vadd.f32 %v1827, %v1835
        %v1838 = vtanh.pop %v1837
        %1840 = vrot.lane.b32.xlu0 %v1838, 64
        %v1841 = vpop.permute.xlu0 %1840
        %v1843 = vmul.f32 %v1825, %v1841
        %1844 = vst.msk [vmem:[#allocation2 + $0x2] sm:$0x1] %vm1616, %v1843
        %1845 = vst.msk [vmem:[#allocation2 + $0x5] sm:$0x1] %vm1618, %v1843
        %v1846 = vpack.c.bf16 %v1843, %v1843
        %v1847 = vrot.slane %v1556, 3
        %v1848 = vrot.slane %v1559, 3
        %v1852 = vsel %vm1243, %v1846, 0
        %1854 = vmatpush.bf16.msra.mxu0 0
        %1855 = vmatpush.bf16.msra.mxu0 0
        %1856 = vmatpush.bf16.msra.mxu0 0
        %1857 = vmatpush.bf16.msra.mxu0 0
        %1858 = vmatpush.bf16.msra.mxu0 %v1651
        %1859 = vmatpush.bf16.msra.mxu0 %v1649
        %1860 = vmatpush.bf16.msra.mxu0 %v1647
        %1861 = vmatpush.bf16.msra.mxu0 %v1645
        %1862 = vmatmul.bf16.gmra.mxu0 %v1852
        %v1863 = vpop.f32.mrf.mxu0
        %v1864 = vadd.f32 %v1847, %v1863
        %v1865 = vpop.f32.mrf.mxu0
        %1866 = vdwg.mxu0
        %1867 = vmatpush.bf16.msra.mxu0 0
        %1868 = vmatpush.bf16.msra.mxu0 0
        %1869 = vmatpush.bf16.msra.mxu0 0
        %1870 = vmatpush.bf16.msra.mxu0 0
        %1871 = vmatpush.bf16.msra.mxu0 %v1652
        %1872 = vmatpush.bf16.msra.mxu0 %v1650
        %1873 = vmatpush.bf16.msra.mxu0 %v1648
        %1874 = vmatpush.bf16.msra.mxu0 %v1646
        %1875 = vmatmul.bf16.gmra.mxu0 %v1852
        %v1876 = vpop.f32.mrf.mxu0
        %v1877 = vadd.f32 %v1848, %v1876
        %v1878 = vpop.f32.mrf.mxu0
        %1879 = vdwg.mxu0
        %v1880 = vxor.u32 %v1864, 2147483648
        %v1881 = vxor.u32 %v1877, 2147483648
        %v1882 = vmul.f32 %v1880, 1.442695
        %v1883 = vpow.pop %v1882
        %v1884 = vmul.f32 %v1881, 1.442695
        %v1885 = vpow.pop %v1884
        %v1886 = vadd.f32 %v1883, 1.0
        %v1887 = vadd.f32 %v1885, 1.0
        %v1888 = vrcp.pop %v1886
        %v1889 = vmul.f32 %v1886, %v1888
        %v1890 = vsub.f32 1.0, %v1889
        %v1891 = vmul.f32 %v1888, %v1890
        %v1892 = vadd.f32 %v1888, %v1891
        %vm1893 = vweird.f32 %v1886
        %vm1894 = vweird.f32 %v1888
        %vm1895 = vmor %vm1893, %vm1894
        %v1896 = vsel %vm1895, %v1888, %v1892
        %v1897 = vand.u32 2147483647, %v1886
        %vm1898 = vcmp.eq.f32.partialorder %v1897, 8.507059e+37
        %v1899 = vand.u32 %v1886, 2147483648
        %v1900 = vor.u32 1.1754944e-38, %v1899
        %v1901 = vsel %vm1898, %v1900, %v1896
        %v1902 = vmul.f32 1.0, %v1901
        %v1903 = vrcp.pop %v1887
        %v1904 = vmul.f32 %v1887, %v1903
        %v1905 = vsub.f32 1.0, %v1904
        %v1906 = vmul.f32 %v1903, %v1905
        %v1907 = vadd.f32 %v1903, %v1906
        %vm1908 = vweird.f32 %v1887
        %vm1909 = vweird.f32 %v1903
        %vm1910 = vmor %vm1908, %vm1909
        %v1911 = vsel %vm1910, %v1903, %v1907
        %v1912 = vand.u32 2147483647, %v1887
        %vm1913 = vcmp.eq.f32.partialorder %v1912, 8.507059e+37
        %v1914 = vand.u32 %v1887, 2147483648
        %v1915 = vor.u32 1.1754944e-38, %v1914
        %v1916 = vsel %vm1913, %v1915, %v1911
        %v1917 = vmul.f32 1.0, %v1916
        %v1918 = vtanh.pop %v1877
        %v1919 = vmul.f32 %v1902, %v1837
        %1921 = vrot.lane.b32.xlu0 %v1918, 64
        %v1922 = vpop.permute.xlu0 %1921
        %v1924 = vmul.f32 %v1902, %v1922
        %1926 = vrot.lane.b32.xlu0 %v1924, 64
        %v1927 = vpop.permute.xlu0 %1926
        %v1929 = vadd.f32 %v1919, %v1927
        %v1930 = vtanh.pop %v1929
        %1932 = vrot.lane.b32.xlu0 %v1930, 64
        %v1933 = vpop.permute.xlu0 %1932
        %v1935 = vmul.f32 %v1917, %v1933
        %1936 = vst.msk [vmem:[#allocation2 + $0x3] sm:$0x1] %vm1616, %v1935
        %1937 = vst.msk [vmem:[#allocation2 + $0x4] sm:$0x1] %vm1618, %v1935
        %v1938 = vpack.c.bf16 %v1935, %v1935
        %v1939 = vrot.slane %v1556, 4
        %v1940 = vrot.slane %v1559, 4
        %v1944 = vsel %vm1243, %v1938, 0
        %1946 = vmatpush.bf16.msra.mxu0 0
        %1947 = vmatpush.bf16.msra.mxu0 0
        %1948 = vmatpush.bf16.msra.mxu0 0
        %1949 = vmatpush.bf16.msra.mxu0 0
        %1950 = vmatpush.bf16.msra.mxu0 %v1651
        %1951 = vmatpush.bf16.msra.mxu0 %v1649
        %1952 = vmatpush.bf16.msra.mxu0 %v1647
        %1953 = vmatpush.bf16.msra.mxu0 %v1645
        %1954 = vmatmul.bf16.gmra.mxu0 %v1944
        %v1955 = vpop.f32.mrf.mxu0
        %v1956 = vadd.f32 %v1939, %v1955
        %v1957 = vpop.f32.mrf.mxu0
        %1958 = vdwg.mxu0
        %1959 = vmatpush.bf16.msra.mxu0 0
        %1960 = vmatpush.bf16.msra.mxu0 0
        %1961 = vmatpush.bf16.msra.mxu0 0
        %1962 = vmatpush.bf16.msra.mxu0 0
        %1963 = vmatpush.bf16.msra.mxu0 %v1652
        %1964 = vmatpush.bf16.msra.mxu0 %v1650
        %1965 = vmatpush.bf16.msra.mxu0 %v1648
        %1966 = vmatpush.bf16.msra.mxu0 %v1646
        %1967 = vmatmul.bf16.gmra.mxu0 %v1944
        %v1968 = vpop.f32.mrf.mxu0
        %v1969 = vadd.f32 %v1940, %v1968
        %v1970 = vpop.f32.mrf.mxu0
        %1971 = vdwg.mxu0
        %v1972 = vxor.u32 %v1956, 2147483648
        %v1973 = vxor.u32 %v1969, 2147483648
        %v1974 = vmul.f32 %v1972, 1.442695
        %v1975 = vpow.pop %v1974
        %v1976 = vmul.f32 %v1973, 1.442695
        %v1977 = vpow.pop %v1976
        %v1978 = vadd.f32 %v1975, 1.0
        %v1979 = vadd.f32 %v1977, 1.0
        %v1980 = vrcp.pop %v1978
        %v1981 = vmul.f32 %v1978, %v1980
        %v1982 = vsub.f32 1.0, %v1981
        %v1983 = vmul.f32 %v1980, %v1982
        %v1984 = vadd.f32 %v1980, %v1983
        %vm1985 = vweird.f32 %v1978
        %vm1986 = vweird.f32 %v1980
        %vm1987 = vmor %vm1985, %vm1986
        %v1988 = vsel %vm1987, %v1980, %v1984
        %v1989 = vand.u32 2147483647, %v1978
        %vm1990 = vcmp.eq.f32.partialorder %v1989, 8.507059e+37
        %v1991 = vand.u32 %v1978, 2147483648
        %v1992 = vor.u32 1.1754944e-38, %v1991
        %v1993 = vsel %vm1990, %v1992, %v1988
        %v1994 = vmul.f32 1.0, %v1993
        %v1995 = vrcp.pop %v1979
        %v1996 = vmul.f32 %v1979, %v1995
        %v1997 = vsub.f32 1.0, %v1996
        %v1998 = vmul.f32 %v1995, %v1997
        %v1999 = vadd.f32 %v1995, %v1998
        %vm2000 = vweird.f32 %v1979
        %vm2001 = vweird.f32 %v1995
        %vm2002 = vmor %vm2000, %vm2001
        %v2003 = vsel %vm2002, %v1995, %v1999
        %v2004 = vand.u32 2147483647, %v1979
        %vm2005 = vcmp.eq.f32.partialorder %v2004, 8.507059e+37
        %v2006 = vand.u32 %v1979, 2147483648
        %v2007 = vor.u32 1.1754944e-38, %v2006
        %v2008 = vsel %vm2005, %v2007, %v2003
        %v2009 = vmul.f32 1.0, %v2008
        %v2010 = vtanh.pop %v1969
        %v2011 = vmul.f32 %v1994, %v1929
        %2013 = vrot.lane.b32.xlu0 %v2010, 64
        %v2014 = vpop.permute.xlu0 %2013
        %v2016 = vmul.f32 %v1994, %v2014
        %2018 = vrot.lane.b32.xlu0 %v2016, 64
        %v2019 = vpop.permute.xlu0 %2018
        %v2021 = vadd.f32 %v2011, %v2019
        %v2022 = vtanh.pop %v2021
        %2024 = vrot.lane.b32.xlu0 %v2022, 64
        %v2025 = vpop.permute.xlu0 %2024
        %v2027 = vmul.f32 %v2009, %v2025
        %2028 = vst.msk [vmem:[#allocation2 + $0x4] sm:$0x1] %vm1616, %v2027
        %2029 = vst.msk [vmem:[#allocation2 + $0x3] sm:$0x1] %vm1618, %v2027
        %v2030 = vpack.c.bf16 %v2027, %v2027
        %v2031 = vrot.slane %v1556, 5
        %v2032 = vrot.slane %v1559, 5
        %v2036 = vsel %vm1243, %v2030, 0
        %2038 = vmatpush.bf16.msra.mxu0 0
        %2039 = vmatpush.bf16.msra.mxu0 0
        %2040 = vmatpush.bf16.msra.mxu0 0
        %2041 = vmatpush.bf16.msra.mxu0 0
        %2042 = vmatpush.bf16.msra.mxu0 %v1651
        %2043 = vmatpush.bf16.msra.mxu0 %v1649
        %2044 = vmatpush.bf16.msra.mxu0 %v1647
        %2045 = vmatpush.bf16.msra.mxu0 %v1645
        %2046 = vmatmul.bf16.gmra.mxu0 %v2036
        %v2047 = vpop.f32.mrf.mxu0
        %v2048 = vadd.f32 %v2031, %v2047
        %v2049 = vpop.f32.mrf.mxu0
        %2050 = vdwg.mxu0
        %2051 = vmatpush.bf16.msra.mxu0 0
        %2052 = vmatpush.bf16.msra.mxu0 0
        %2053 = vmatpush.bf16.msra.mxu0 0
        %2054 = vmatpush.bf16.msra.mxu0 0
        %2055 = vmatpush.bf16.msra.mxu0 %v1652
        %2056 = vmatpush.bf16.msra.mxu0 %v1650
        %2057 = vmatpush.bf16.msra.mxu0 %v1648
        %2058 = vmatpush.bf16.msra.mxu0 %v1646
        %2059 = vmatmul.bf16.gmra.mxu0 %v2036
        %v2060 = vpop.f32.mrf.mxu0
        %v2061 = vadd.f32 %v2032, %v2060
        %v2062 = vpop.f32.mrf.mxu0
        %2063 = vdwg.mxu0
        %v2064 = vxor.u32 %v2048, 2147483648
        %v2065 = vxor.u32 %v2061, 2147483648
        %v2066 = vmul.f32 %v2064, 1.442695
        %v2067 = vpow.pop %v2066
        %v2068 = vmul.f32 %v2065, 1.442695
        %v2069 = vpow.pop %v2068
        %v2070 = vadd.f32 %v2067, 1.0
        %v2071 = vadd.f32 %v2069, 1.0
        %v2072 = vrcp.pop %v2070
        %v2073 = vmul.f32 %v2070, %v2072
        %v2074 = vsub.f32 1.0, %v2073
        %v2075 = vmul.f32 %v2072, %v2074
        %v2076 = vadd.f32 %v2072, %v2075
        %vm2077 = vweird.f32 %v2070
        %vm2078 = vweird.f32 %v2072
        %vm2079 = vmor %vm2077, %vm2078
        %v2080 = vsel %vm2079, %v2072, %v2076
        %v2081 = vand.u32 2147483647, %v2070
        %vm2082 = vcmp.eq.f32.partialorder %v2081, 8.507059e+37
        %v2083 = vand.u32 %v2070, 2147483648
        %v2084 = vor.u32 1.1754944e-38, %v2083
        %v2085 = vsel %vm2082, %v2084, %v2080
        %v2086 = vmul.f32 1.0, %v2085
        %v2087 = vrcp.pop %v2071
        %v2088 = vmul.f32 %v2071, %v2087
        %v2089 = vsub.f32 1.0, %v2088
        %v2090 = vmul.f32 %v2087, %v2089
        %v2091 = vadd.f32 %v2087, %v2090
        %vm2092 = vweird.f32 %v2071
        %vm2093 = vweird.f32 %v2087
        %vm2094 = vmor %vm2092, %vm2093
        %v2095 = vsel %vm2094, %v2087, %v2091
        %v2096 = vand.u32 2147483647, %v2071
        %vm2097 = vcmp.eq.f32.partialorder %v2096, 8.507059e+37
        %v2098 = vand.u32 %v2071, 2147483648
        %v2099 = vor.u32 1.1754944e-38, %v2098
        %v2100 = vsel %vm2097, %v2099, %v2095
        %v2101 = vmul.f32 1.0, %v2100
        %v2102 = vtanh.pop %v2061
        %v2103 = vmul.f32 %v2086, %v2021
        %2105 = vrot.lane.b32.xlu0 %v2102, 64
        %v2106 = vpop.permute.xlu0 %2105
        %v2108 = vmul.f32 %v2086, %v2106
        %2110 = vrot.lane.b32.xlu0 %v2108, 64
        %v2111 = vpop.permute.xlu0 %2110
        %v2113 = vadd.f32 %v2103, %v2111
        %v2114 = vtanh.pop %v2113
        %2116 = vrot.lane.b32.xlu0 %v2114, 64
        %v2117 = vpop.permute.xlu0 %2116
        %v2119 = vmul.f32 %v2101, %v2117
        %2120 = vst.msk [vmem:[#allocation2 + $0x5] sm:$0x1] %vm1616, %v2119
        %2121 = vst.msk [vmem:[#allocation2 + $0x2] sm:$0x1] %vm1618, %v2119
        %v2122 = vpack.c.bf16 %v2119, %v2119
        %v2123 = vrot.slane %v1556, 6
        %v2124 = vrot.slane %v1559, 6
        %v2128 = vsel %vm1243, %v2122, 0
        %2130 = vmatpush.bf16.msra.mxu0 0
        %2131 = vmatpush.bf16.msra.mxu0 0
        %2132 = vmatpush.bf16.msra.mxu0 0
        %2133 = vmatpush.bf16.msra.mxu0 0
        %2134 = vmatpush.bf16.msra.mxu0 %v1651
        %2135 = vmatpush.bf16.msra.mxu0 %v1649
        %2136 = vmatpush.bf16.msra.mxu0 %v1647
        %2137 = vmatpush.bf16.msra.mxu0 %v1645
        %2138 = vmatmul.bf16.gmra.mxu0 %v2128
        %v2139 = vpop.f32.mrf.mxu0
        %v2140 = vadd.f32 %v2123, %v2139
        %v2141 = vpop.f32.mrf.mxu0
        %2142 = vdwg.mxu0
        %2143 = vmatpush.bf16.msra.mxu0 0
        %2144 = vmatpush.bf16.msra.mxu0 0
        %2145 = vmatpush.bf16.msra.mxu0 0
        %2146 = vmatpush.bf16.msra.mxu0 0
        %2147 = vmatpush.bf16.msra.mxu0 %v1652
        %2148 = vmatpush.bf16.msra.mxu0 %v1650
        %2149 = vmatpush.bf16.msra.mxu0 %v1648
        %2150 = vmatpush.bf16.msra.mxu0 %v1646
        %2151 = vmatmul.bf16.gmra.mxu0 %v2128
        %v2152 = vpop.f32.mrf.mxu0
        %v2153 = vadd.f32 %v2124, %v2152
        %v2154 = vpop.f32.mrf.mxu0
        %2155 = vdwg.mxu0
        %v2156 = vxor.u32 %v2140, 2147483648
        %v2157 = vxor.u32 %v2153, 2147483648
        %v2158 = vmul.f32 %v2156, 1.442695
        %v2159 = vpow.pop %v2158
        %v2160 = vmul.f32 %v2157, 1.442695
        %v2161 = vpow.pop %v2160
        %v2162 = vadd.f32 %v2159, 1.0
        %v2163 = vadd.f32 %v2161, 1.0
        %v2164 = vrcp.pop %v2162
        %v2165 = vmul.f32 %v2162, %v2164
        %v2166 = vsub.f32 1.0, %v2165
        %v2167 = vmul.f32 %v2164, %v2166
        %v2168 = vadd.f32 %v2164, %v2167
        %vm2169 = vweird.f32 %v2162
        %vm2170 = vweird.f32 %v2164
        %vm2171 = vmor %vm2169, %vm2170
        %v2172 = vsel %vm2171, %v2164, %v2168
        %v2173 = vand.u32 2147483647, %v2162
        %vm2174 = vcmp.eq.f32.partialorder %v2173, 8.507059e+37
        %v2175 = vand.u32 %v2162, 2147483648
        %v2176 = vor.u32 1.1754944e-38, %v2175
        %v2177 = vsel %vm2174, %v2176, %v2172
        %v2178 = vmul.f32 1.0, %v2177
        %v2179 = vrcp.pop %v2163
        %v2180 = vmul.f32 %v2163, %v2179
        %v2181 = vsub.f32 1.0, %v2180
        %v2182 = vmul.f32 %v2179, %v2181
        %v2183 = vadd.f32 %v2179, %v2182
        %vm2184 = vweird.f32 %v2163
        %vm2185 = vweird.f32 %v2179
        %vm2186 = vmor %vm2184, %vm2185
        %v2187 = vsel %vm2186, %v2179, %v2183
        %v2188 = vand.u32 2147483647, %v2163
        %vm2189 = vcmp.eq.f32.partialorder %v2188, 8.507059e+37
        %v2190 = vand.u32 %v2163, 2147483648
        %v2191 = vor.u32 1.1754944e-38, %v2190
        %v2192 = vsel %vm2189, %v2191, %v2187
        %v2193 = vmul.f32 1.0, %v2192
        %v2194 = vtanh.pop %v2153
        %v2195 = vmul.f32 %v2178, %v2113
        %2197 = vrot.lane.b32.xlu0 %v2194, 64
        %v2198 = vpop.permute.xlu0 %2197
        %v2200 = vmul.f32 %v2178, %v2198
        %2202 = vrot.lane.b32.xlu0 %v2200, 64
        %v2203 = vpop.permute.xlu0 %2202
        %v2205 = vadd.f32 %v2195, %v2203
        %v2206 = vtanh.pop %v2205
        %2208 = vrot.lane.b32.xlu0 %v2206, 64
        %v2209 = vpop.permute.xlu0 %2208
        %v2211 = vmul.f32 %v2193, %v2209
        %2212 = vst.msk [vmem:[#allocation2 + $0x6] sm:$0x1] %vm1616, %v2211
        %2213 = vst.msk [vmem:[#allocation2 + $0x1] sm:$0x1] %vm1618, %v2211
        %v2214 = vpack.c.bf16 %v2211, %v2211
        %v2215 = vrot.slane %v1556, 7
        %v2216 = vrot.slane %v1559, 7
        %v2220 = vsel %vm1243, %v2214, 0
        %2222 = vmatpush.bf16.msra.mxu0 0
        %2223 = vmatpush.bf16.msra.mxu0 0
        %2224 = vmatpush.bf16.msra.mxu0 0
        %2225 = vmatpush.bf16.msra.mxu0 0
        %2226 = vmatpush.bf16.msra.mxu0 %v1651
        %2227 = vmatpush.bf16.msra.mxu0 %v1649
        %2228 = vmatpush.bf16.msra.mxu0 %v1647
        %2229 = vmatpush.bf16.msra.mxu0 %v1645
        %2230 = vmatmul.bf16.gmra.mxu0 %v2220
        %v2231 = vpop.f32.mrf.mxu0
        %v2232 = vadd.f32 %v2215, %v2231
        %v2233 = vpop.f32.mrf.mxu0
        %2234 = vdwg.mxu0
        %2235 = vmatpush.bf16.msra.mxu0 0
        %2236 = vmatpush.bf16.msra.mxu0 0
        %2237 = vmatpush.bf16.msra.mxu0 0
        %2238 = vmatpush.bf16.msra.mxu0 0
        %2239 = vmatpush.bf16.msra.mxu0 %v1652
        %2240 = vmatpush.bf16.msra.mxu0 %v1650
        %2241 = vmatpush.bf16.msra.mxu0 %v1648
        %2242 = vmatpush.bf16.msra.mxu0 %v1646
        %2243 = vmatmul.bf16.gmra.mxu0 %v2220
        %v2244 = vpop.f32.mrf.mxu0
        %v2245 = vadd.f32 %v2216, %v2244
        %v2246 = vpop.f32.mrf.mxu0
        %2247 = vdwg.mxu0
        %v2248 = vxor.u32 %v2232, 2147483648
        %v2249 = vxor.u32 %v2245, 2147483648
        %v2250 = vmul.f32 %v2248, 1.442695
        %v2251 = vpow.pop %v2250
        %v2252 = vmul.f32 %v2249, 1.442695
        %v2253 = vpow.pop %v2252
        %v2254 = vadd.f32 %v2251, 1.0
        %v2255 = vadd.f32 %v2253, 1.0
        %v2256 = vrcp.pop %v2254
        %v2257 = vmul.f32 %v2254, %v2256
        %v2258 = vsub.f32 1.0, %v2257
        %v2259 = vmul.f32 %v2256, %v2258
        %v2260 = vadd.f32 %v2256, %v2259
        %vm2261 = vweird.f32 %v2254
        %vm2262 = vweird.f32 %v2256
        %vm2263 = vmor %vm2261, %vm2262
        %v2264 = vsel %vm2263, %v2256, %v2260
        %v2265 = vand.u32 2147483647, %v2254
        %vm2266 = vcmp.eq.f32.partialorder %v2265, 8.507059e+37
        %v2267 = vand.u32 %v2254, 2147483648
        %v2268 = vor.u32 1.1754944e-38, %v2267
        %v2269 = vsel %vm2266, %v2268, %v2264
        %v2270 = vmul.f32 1.0, %v2269
        %v2271 = vrcp.pop %v2255
        %v2272 = vmul.f32 %v2255, %v2271
        %v2273 = vsub.f32 1.0, %v2272
        %v2274 = vmul.f32 %v2271, %v2273
        %v2275 = vadd.f32 %v2271, %v2274
        %vm2276 = vweird.f32 %v2255
        %vm2277 = vweird.f32 %v2271
        %vm2278 = vmor %vm2276, %vm2277
        %v2279 = vsel %vm2278, %v2271, %v2275
        %v2280 = vand.u32 2147483647, %v2255
        %vm2281 = vcmp.eq.f32.partialorder %v2280, 8.507059e+37
        %v2282 = vand.u32 %v2255, 2147483648
        %v2283 = vor.u32 1.1754944e-38, %v2282
        %v2284 = vsel %vm2281, %v2283, %v2279
        %v2285 = vmul.f32 1.0, %v2284
        %v2286 = vtanh.pop %v2245
        %v2287 = vmul.f32 %v2270, %v2205
        %2289 = vrot.lane.b32.xlu0 %v2286, 64
        %v2290 = vpop.permute.xlu0 %2289
        %v2292 = vmul.f32 %v2270, %v2290
        %2294 = vrot.lane.b32.xlu0 %v2292, 64
        %v2295 = vpop.permute.xlu0 %2294
        %v2297 = vadd.f32 %v2287, %v2295
        %v2298 = vtanh.pop %v2297
        %2300 = vrot.lane.b32.xlu0 %v2298, 64
        %v2301 = vpop.permute.xlu0 %2300
        %v2303 = vmul.f32 %v2285, %v2301
        %2304 = vst.msk [vmem:[#allocation2 + $0x7] sm:$0x1] %vm1616, %v2303
        %2305 = vst.msk [vmem:[#allocation2] sm:$0x1] %vm1618, %v2303
        %v2306 = vld [vmem:[#allocation2] sm:$0xff]
        %v2307 = vld [vmem:[#allocation4] sm:$0xff]
        %v2308 = vld [vmem:[#allocation4 + $0x8] sm:$0xff]
        %v2309 = vld [vmem:[#allocation4 + $0x10] sm:$0xff]
        %v2310 = vld [vmem:[#allocation4 + $0x18] sm:$0xff]
        %v2311 = vld [vmem:[#allocation4 + $0x20] sm:$0xff]
        %v2312 = vld [vmem:[#allocation4 + $0x28] sm:$0xff]
        %v2313 = vld [vmem:[#allocation4 + $0x30] sm:$0xff]
        %v2314 = vld [vmem:[#allocation4 + $0x38] sm:$0xff]
        %v2315 = vld [vmem:[#allocation7] sm:$0xff]
        %v2316 = vld [vmem:[#allocation7 + $0x8] sm:$0xff]
        %v2317 = vld [vmem:[#allocation7 + $0x10] sm:$0xff]
        %v2318 = vld [vmem:[#allocation7 + $0x18] sm:$0xff]
        %v2319 = vld [vmem:[#allocation7 + $0x20] sm:$0xff]
        %v2320 = vld [vmem:[#allocation7 + $0x28] sm:$0xff]
        %v2321 = vld [vmem:[#allocation7 + $0x30] sm:$0xff]
        %v2322 = vld [vmem:[#allocation7 + $0x38] sm:$0xff]
        %v2323 = vld [vmem:[%s10] sm:$0x3]
        %v2324 = vpack.c.bf16 %v2306, %v2306
        %v2326 = vperm.slane %v2323, 0
        %v2327 = vperm.slane %v2323, 1
        %v2338 = vunpack.c.l.b16 %v2307
        %v2339 = vunpack.c.h.b16 %v2307
        %v2340 = vunpack.c.l.b16 %v2308
        %v2341 = vunpack.c.h.b16 %v2308
        %v2342 = vunpack.c.l.b16 %v2309
        %v2343 = vunpack.c.h.b16 %v2309
        %v2344 = vunpack.c.l.b16 %v2310
        %v2345 = vunpack.c.h.b16 %v2310
        %v2346 = vunpack.c.l.b16 %v2311
        %v2347 = vunpack.c.h.b16 %v2311
        %v2348 = vunpack.c.l.b16 %v2312
        %v2349 = vunpack.c.h.b16 %v2312
        %v2350 = vunpack.c.l.b16 %v2313
        %v2351 = vunpack.c.h.b16 %v2313
        %v2352 = vunpack.c.l.b16 %v2314
        %v2353 = vunpack.c.h.b16 %v2314
        %v2354 = vpack.c.b16 %v2340, %v2338
        %v2355 = vpack.c.b16 %v2341, %v2339
        %v2356 = vpack.c.b16 %v2344, %v2342
        %v2357 = vpack.c.b16 %v2345, %v2343
        %v2358 = vpack.c.b16 %v2348, %v2346
        %v2359 = vpack.c.b16 %v2349, %v2347
        %v2360 = vpack.c.b16 %v2352, %v2350
        %v2361 = vpack.c.b16 %v2353, %v2351
        %v2371 = vsel %vm1243, %v2324, 0
        %2373 = vmatpush.bf16.msra.mxu0 0
        %2374 = vmatpush.bf16.msra.mxu0 0
        %2375 = vmatpush.bf16.msra.mxu0 0
        %2376 = vmatpush.bf16.msra.mxu0 0
        %2377 = vmatpush.bf16.msra.mxu0 %v2360
        %2378 = vmatpush.bf16.msra.mxu0 %v2358
        %2379 = vmatpush.bf16.msra.mxu0 %v2356
        %2380 = vmatpush.bf16.msra.mxu0 %v2354
        %2381 = vmatmul.bf16.gmra.mxu0 %v2371
        %v2382 = vpop.f32.mrf.mxu0
        %v2383 = vadd.f32 %v2326, %v2382
        %v2384 = vpop.f32.mrf.mxu0
        %2385 = vdwg.mxu0
        %2386 = vmatpush.bf16.msra.mxu0 0
        %2387 = vmatpush.bf16.msra.mxu0 0
        %2388 = vmatpush.bf16.msra.mxu0 0
        %2389 = vmatpush.bf16.msra.mxu0 0
        %2390 = vmatpush.bf16.msra.mxu0 %v2361
        %2391 = vmatpush.bf16.msra.mxu0 %v2359
        %2392 = vmatpush.bf16.msra.mxu0 %v2357
        %2393 = vmatpush.bf16.msra.mxu0 %v2355
        %2394 = vmatmul.bf16.gmra.mxu0 %v2371
        %v2395 = vpop.f32.mrf.mxu0
        %v2396 = vadd.f32 %v2327, %v2395
        %v2397 = vpop.f32.mrf.mxu0
        %2398 = vdwg.mxu0
        %v2401 = vrot.slane %v2383, 7
        %v2402 = vrot.slane %v2396, 7
        %v2405 = vrot.slane %v2383, 5
        %v2406 = vrot.slane %v2396, 5
        %v2409 = vrot.slane %v2383, 3
        %v2410 = vrot.slane %v2396, 3
        %v2413 = vrot.slane %v2383, 1
        %v2414 = vrot.slane %v2396, 1
        %v2417 = vsel %vm1532, %v2401, %v2405
        %v2418 = vsel %vm1532, %v2402, %v2406
        %v2419 = vsel %vm1535, %v2417, %v2409
        %v2420 = vsel %vm1535, %v2418, %v2410
        %v2421 = vsel %vm1538, %v2419, %v2413
        %v2422 = vsel %vm1538, %v2420, %v2414
        %v2423 = vsel %vm1541, %v2421, %v2401
        %v2424 = vsel %vm1541, %v2422, %v2402
        %v2425 = vsel %vm1544, %v2423, %v2405
        %v2426 = vsel %vm1544, %v2424, %v2406
        %v2427 = vsel %vm1547, %v2425, %v2409
        %v2428 = vsel %vm1547, %v2426, %v2410
        %v2429 = vsel %vm1550, %v2427, %v2413
        %v2430 = vsel %vm1550, %v2428, %v2414
        %v2431 = vsel %vm1484, %v2383, %v2429
        %v2432 = vsel %vm1243, %v2431, %v2383
        %v2433 = vsel %vm1555, %v2432, %v2429
        %v2434 = vsel %vm1484, %v2396, %v2430
        %v2435 = vsel %vm1243, %v2434, %v2396
        %v2436 = vsel %vm1555, %v2435, %v2430
        %v2437 = vxor.u32 %v2433, 2147483648
        %v2438 = vxor.u32 %v2436, 2147483648
        %v2439 = vmul.f32 %v2437, 1.442695
        %v2440 = vpow.pop %v2439
        %v2441 = vmul.f32 %v2438, 1.442695
        %v2442 = vpow.pop %v2441
        %v2443 = vadd.f32 %v2440, 1.0
        %v2444 = vadd.f32 %v2442, 1.0
        %v2445 = vrcp.pop %v2443
        %v2446 = vmul.f32 %v2443, %v2445
        %v2447 = vsub.f32 1.0, %v2446
        %v2448 = vmul.f32 %v2445, %v2447
        %v2449 = vadd.f32 %v2445, %v2448
        %vm2450 = vweird.f32 %v2443
        %vm2451 = vweird.f32 %v2445
        %vm2452 = vmor %vm2450, %vm2451
        %v2453 = vsel %vm2452, %v2445, %v2449
        %v2454 = vand.u32 2147483647, %v2443
        %vm2455 = vcmp.eq.f32.partialorder %v2454, 8.507059e+37
        %v2456 = vand.u32 %v2443, 2147483648
        %v2457 = vor.u32 1.1754944e-38, %v2456
        %v2458 = vsel %vm2455, %v2457, %v2453
        %v2459 = vmul.f32 1.0, %v2458
        %v2460 = vrcp.pop %v2444
        %v2461 = vmul.f32 %v2444, %v2460
        %v2462 = vsub.f32 1.0, %v2461
        %v2463 = vmul.f32 %v2460, %v2462
        %v2464 = vadd.f32 %v2460, %v2463
        %vm2465 = vweird.f32 %v2444
        %vm2466 = vweird.f32 %v2460
        %vm2467 = vmor %vm2465, %vm2466
        %v2468 = vsel %vm2467, %v2460, %v2464
        %v2469 = vand.u32 2147483647, %v2444
        %vm2470 = vcmp.eq.f32.partialorder %v2469, 8.507059e+37
        %v2471 = vand.u32 %v2444, 2147483648
        %v2472 = vor.u32 1.1754944e-38, %v2471
        %v2473 = vsel %vm2470, %v2472, %v2468
        %v2474 = vmul.f32 1.0, %v2473
        %v2475 = vtanh.pop %v2436
        %v2476 = vmul.f32 %v2459, 0.0
        %2478 = vrot.lane.b32.xlu0 %v2475, 64
        %v2479 = vpop.permute.xlu0 %2478
        %v2481 = vmul.f32 %v2459, %v2479
        %2483 = vrot.lane.b32.xlu0 %v2481, 64
        %v2484 = vpop.permute.xlu0 %2483
        %v2486 = vadd.f32 %v2476, %v2484
        %v2487 = vtanh.pop %v2486
        %2489 = vrot.lane.b32.xlu0 %v2487, 64
        %v2490 = vpop.permute.xlu0 %2489
        %v2492 = vmul.f32 %v2474, %v2490
        %2493 = vst.msk [vmem:[#allocation3] sm:$0x1] %vm1616, %v2492
        %2494 = vst.msk [vmem:[#allocation3 + $0x7] sm:$0x1] %vm1618, %v2492
        %v2495 = vpack.c.bf16 %v2492, %v2492
        %v2504 = vunpack.c.l.b16 %v2315
        %v2505 = vunpack.c.h.b16 %v2315
        %v2506 = vunpack.c.l.b16 %v2316
        %v2507 = vunpack.c.h.b16 %v2316
        %v2508 = vunpack.c.l.b16 %v2317
        %v2509 = vunpack.c.h.b16 %v2317
        %v2510 = vunpack.c.l.b16 %v2318
        %v2511 = vunpack.c.h.b16 %v2318
        %v2512 = vunpack.c.l.b16 %v2319
        %v2513 = vunpack.c.h.b16 %v2319
        %v2514 = vunpack.c.l.b16 %v2320
        %v2515 = vunpack.c.h.b16 %v2320
        %v2516 = vunpack.c.l.b16 %v2321
        %v2517 = vunpack.c.h.b16 %v2321
        %v2518 = vunpack.c.l.b16 %v2322
        %v2519 = vunpack.c.h.b16 %v2322
        %v2520 = vpack.c.b16 %v2506, %v2504
        %v2521 = vpack.c.b16 %v2507, %v2505
        %v2522 = vpack.c.b16 %v2510, %v2508
        %v2523 = vpack.c.b16 %v2511, %v2509
        %v2524 = vpack.c.b16 %v2514, %v2512
        %v2525 = vpack.c.b16 %v2515, %v2513
        %v2526 = vpack.c.b16 %v2518, %v2516
        %v2527 = vpack.c.b16 %v2519, %v2517
        %v2538 = vrot.slane %v2433, 1
        %v2539 = vrot.slane %v2436, 1
        %v2543 = vsel %vm1243, %v2495, 0
        %2545 = vmatpush.bf16.msra.mxu0 0
        %2546 = vmatpush.bf16.msra.mxu0 0
        %2547 = vmatpush.bf16.msra.mxu0 0
        %2548 = vmatpush.bf16.msra.mxu0 0
        %2549 = vmatpush.bf16.msra.mxu0 %v2526
        %2550 = vmatpush.bf16.msra.mxu0 %v2524
        %2551 = vmatpush.bf16.msra.mxu0 %v2522
        %2552 = vmatpush.bf16.msra.mxu0 %v2520
        %2553 = vmatmul.bf16.gmra.mxu0 %v2543
        %v2554 = vpop.f32.mrf.mxu0
        %v2555 = vadd.f32 %v2538, %v2554
        %v2556 = vpop.f32.mrf.mxu0
        %2557 = vdwg.mxu0
        %2558 = vmatpush.bf16.msra.mxu0 0
        %2559 = vmatpush.bf16.msra.mxu0 0
        %2560 = vmatpush.bf16.msra.mxu0 0
        %2561 = vmatpush.bf16.msra.mxu0 0
        %2562 = vmatpush.bf16.msra.mxu0 %v2527
        %2563 = vmatpush.bf16.msra.mxu0 %v2525
        %2564 = vmatpush.bf16.msra.mxu0 %v2523
        %2565 = vmatpush.bf16.msra.mxu0 %v2521
        %2566 = vmatmul.bf16.gmra.mxu0 %v2543
        %v2567 = vpop.f32.mrf.mxu0
        %v2568 = vadd.f32 %v2539, %v2567
        %v2569 = vpop.f32.mrf.mxu0
        %2570 = vdwg.mxu0
        %v2571 = vxor.u32 %v2555, 2147483648
        %v2572 = vxor.u32 %v2568, 2147483648
        %v2573 = vmul.f32 %v2571, 1.442695
        %v2574 = vpow.pop %v2573
        %v2575 = vmul.f32 %v2572, 1.442695
        %v2576 = vpow.pop %v2575
        %v2577 = vadd.f32 %v2574, 1.0
        %v2578 = vadd.f32 %v2576, 1.0
        %v2579 = vrcp.pop %v2577
        %v2580 = vmul.f32 %v2577, %v2579
        %v2581 = vsub.f32 1.0, %v2580
        %v2582 = vmul.f32 %v2579, %v2581
        %v2583 = vadd.f32 %v2579, %v2582
        %vm2584 = vweird.f32 %v2577
        %vm2585 = vweird.f32 %v2579
        %vm2586 = vmor %vm2584, %vm2585
        %v2587 = vsel %vm2586, %v2579, %v2583
        %v2588 = vand.u32 2147483647, %v2577
        %vm2589 = vcmp.eq.f32.partialorder %v2588, 8.507059e+37
        %v2590 = vand.u32 %v2577, 2147483648
        %v2591 = vor.u32 1.1754944e-38, %v2590
        %v2592 = vsel %vm2589, %v2591, %v2587
        %v2593 = vmul.f32 1.0, %v2592
        %v2594 = vrcp.pop %v2578
        %v2595 = vmul.f32 %v2578, %v2594
        %v2596 = vsub.f32 1.0, %v2595
        %v2597 = vmul.f32 %v2594, %v2596
        %v2598 = vadd.f32 %v2594, %v2597
        %vm2599 = vweird.f32 %v2578
        %vm2600 = vweird.f32 %v2594
        %vm2601 = vmor %vm2599, %vm2600
        %v2602 = vsel %vm2601, %v2594, %v2598
        %v2603 = vand.u32 2147483647, %v2578
        %vm2604 = vcmp.eq.f32.partialorder %v2603, 8.507059e+37
        %v2605 = vand.u32 %v2578, 2147483648
        %v2606 = vor.u32 1.1754944e-38, %v2605
        %v2607 = vsel %vm2604, %v2606, %v2602
        %v2608 = vmul.f32 1.0, %v2607
        %v2609 = vtanh.pop %v2568
        %v2610 = vmul.f32 %v2593, %v2486
        %2612 = vrot.lane.b32.xlu0 %v2609, 64
        %v2613 = vpop.permute.xlu0 %2612
        %v2615 = vmul.f32 %v2593, %v2613
        %2617 = vrot.lane.b32.xlu0 %v2615, 64
        %v2618 = vpop.permute.xlu0 %2617
        %v2620 = vadd.f32 %v2610, %v2618
        %v2621 = vtanh.pop %v2620
        %2623 = vrot.lane.b32.xlu0 %v2621, 64
        %v2624 = vpop.permute.xlu0 %2623
        %v2626 = vmul.f32 %v2608, %v2624
        %2627 = vst.msk [vmem:[#allocation3 + $0x1] sm:$0x1] %vm1616, %v2626
        %2628 = vst.msk [vmem:[#allocation3 + $0x6] sm:$0x1] %vm1618, %v2626
        %v2629 = vpack.c.bf16 %v2626, %v2626
        %v2630 = vrot.slane %v2433, 2
        %v2631 = vrot.slane %v2436, 2
        %v2635 = vsel %vm1243, %v2629, 0
        %2637 = vmatpush.bf16.msra.mxu0 0
        %2638 = vmatpush.bf16.msra.mxu0 0
        %2639 = vmatpush.bf16.msra.mxu0 0
        %2640 = vmatpush.bf16.msra.mxu0 0
        %2641 = vmatpush.bf16.msra.mxu0 %v2526
        %2642 = vmatpush.bf16.msra.mxu0 %v2524
        %2643 = vmatpush.bf16.msra.mxu0 %v2522
        %2644 = vmatpush.bf16.msra.mxu0 %v2520
        %2645 = vmatmul.bf16.gmra.mxu0 %v2635
        %v2646 = vpop.f32.mrf.mxu0
        %v2647 = vadd.f32 %v2630, %v2646
        %v2648 = vpop.f32.mrf.mxu0
        %2649 = vdwg.mxu0
        %2650 = vmatpush.bf16.msra.mxu0 0
        %2651 = vmatpush.bf16.msra.mxu0 0
        %2652 = vmatpush.bf16.msra.mxu0 0
        %2653 = vmatpush.bf16.msra.mxu0 0
        %2654 = vmatpush.bf16.msra.mxu0 %v2527
        %2655 = vmatpush.bf16.msra.mxu0 %v2525
        %2656 = vmatpush.bf16.msra.mxu0 %v2523
        %2657 = vmatpush.bf16.msra.mxu0 %v2521
        %2658 = vmatmul.bf16.gmra.mxu0 %v2635
        %v2659 = vpop.f32.mrf.mxu0
        %v2660 = vadd.f32 %v2631, %v2659
        %v2661 = vpop.f32.mrf.mxu0
        %2662 = vdwg.mxu0
        %v2663 = vxor.u32 %v2647, 2147483648
        %v2664 = vxor.u32 %v2660, 2147483648
        %v2665 = vmul.f32 %v2663, 1.442695
        %v2666 = vpow.pop %v2665
        %v2667 = vmul.f32 %v2664, 1.442695
        %v2668 = vpow.pop %v2667
        %v2669 = vadd.f32 %v2666, 1.0
        %v2670 = vadd.f32 %v2668, 1.0
        %v2671 = vrcp.pop %v2669
        %v2672 = vmul.f32 %v2669, %v2671
        %v2673 = vsub.f32 1.0, %v2672
        %v2674 = vmul.f32 %v2671, %v2673
        %v2675 = vadd.f32 %v2671, %v2674
        %vm2676 = vweird.f32 %v2669
        %vm2677 = vweird.f32 %v2671
        %vm2678 = vmor %vm2676, %vm2677
        %v2679 = vsel %vm2678, %v2671, %v2675
        %v2680 = vand.u32 2147483647, %v2669
        %vm2681 = vcmp.eq.f32.partialorder %v2680, 8.507059e+37
        %v2682 = vand.u32 %v2669, 2147483648
        %v2683 = vor.u32 1.1754944e-38, %v2682
        %v2684 = vsel %vm2681, %v2683, %v2679
        %v2685 = vmul.f32 1.0, %v2684
        %v2686 = vrcp.pop %v2670
        %v2687 = vmul.f32 %v2670, %v2686
        %v2688 = vsub.f32 1.0, %v2687
        %v2689 = vmul.f32 %v2686, %v2688
        %v2690 = vadd.f32 %v2686, %v2689
        %vm2691 = vweird.f32 %v2670
        %vm2692 = vweird.f32 %v2686
        %vm2693 = vmor %vm2691, %vm2692
        %v2694 = vsel %vm2693, %v2686, %v2690
        %v2695 = vand.u32 2147483647, %v2670
        %vm2696 = vcmp.eq.f32.partialorder %v2695, 8.507059e+37
        %v2697 = vand.u32 %v2670, 2147483648
        %v2698 = vor.u32 1.1754944e-38, %v2697
        %v2699 = vsel %vm2696, %v2698, %v2694
        %v2700 = vmul.f32 1.0, %v2699
        %v2701 = vtanh.pop %v2660
        %v2702 = vmul.f32 %v2685, %v2620
        %2704 = vrot.lane.b32.xlu0 %v2701, 64
        %v2705 = vpop.permute.xlu0 %2704
        %v2707 = vmul.f32 %v2685, %v2705
        %2709 = vrot.lane.b32.xlu0 %v2707, 64
        %v2710 = vpop.permute.xlu0 %2709
        %v2712 = vadd.f32 %v2702, %v2710
        %v2713 = vtanh.pop %v2712
        %2715 = vrot.lane.b32.xlu0 %v2713, 64
        %v2716 = vpop.permute.xlu0 %2715
        %v2718 = vmul.f32 %v2700, %v2716
        %2719 = vst.msk [vmem:[#allocation3 + $0x2] sm:$0x1] %vm1616, %v2718
        %2720 = vst.msk [vmem:[#allocation3 + $0x5] sm:$0x1] %vm1618, %v2718
        %v2721 = vpack.c.bf16 %v2718, %v2718
        %v2722 = vrot.slane %v2433, 3
        %v2723 = vrot.slane %v2436, 3
        %v2727 = vsel %vm1243, %v2721, 0
        %2729 = vmatpush.bf16.msra.mxu0 0
        %2730 = vmatpush.bf16.msra.mxu0 0
        %2731 = vmatpush.bf16.msra.mxu0 0
        %2732 = vmatpush.bf16.msra.mxu0 0
        %2733 = vmatpush.bf16.msra.mxu0 %v2526
        %2734 = vmatpush.bf16.msra.mxu0 %v2524
        %2735 = vmatpush.bf16.msra.mxu0 %v2522
        %2736 = vmatpush.bf16.msra.mxu0 %v2520
        %2737 = vmatmul.bf16.gmra.mxu0 %v2727
        %v2738 = vpop.f32.mrf.mxu0
        %v2739 = vadd.f32 %v2722, %v2738
        %v2740 = vpop.f32.mrf.mxu0
        %2741 = vdwg.mxu0
        %2742 = vmatpush.bf16.msra.mxu0 0
        %2743 = vmatpush.bf16.msra.mxu0 0
        %2744 = vmatpush.bf16.msra.mxu0 0
        %2745 = vmatpush.bf16.msra.mxu0 0
        %2746 = vmatpush.bf16.msra.mxu0 %v2527
        %2747 = vmatpush.bf16.msra.mxu0 %v2525
        %2748 = vmatpush.bf16.msra.mxu0 %v2523
        %2749 = vmatpush.bf16.msra.mxu0 %v2521
        %2750 = vmatmul.bf16.gmra.mxu0 %v2727
        %v2751 = vpop.f32.mrf.mxu0
        %v2752 = vadd.f32 %v2723, %v2751
        %v2753 = vpop.f32.mrf.mxu0
        %2754 = vdwg.mxu0
        %v2755 = vxor.u32 %v2739, 2147483648
        %v2756 = vxor.u32 %v2752, 2147483648
        %v2757 = vmul.f32 %v2755, 1.442695
        %v2758 = vpow.pop %v2757
        %v2759 = vmul.f32 %v2756, 1.442695
        %v2760 = vpow.pop %v2759
        %v2761 = vadd.f32 %v2758, 1.0
        %v2762 = vadd.f32 %v2760, 1.0
        %v2763 = vrcp.pop %v2761
        %v2764 = vmul.f32 %v2761, %v2763
        %v2765 = vsub.f32 1.0, %v2764
        %v2766 = vmul.f32 %v2763, %v2765
        %v2767 = vadd.f32 %v2763, %v2766
        %vm2768 = vweird.f32 %v2761
        %vm2769 = vweird.f32 %v2763
        %vm2770 = vmor %vm2768, %vm2769
        %v2771 = vsel %vm2770, %v2763, %v2767
        %v2772 = vand.u32 2147483647, %v2761
        %vm2773 = vcmp.eq.f32.partialorder %v2772, 8.507059e+37
        %v2774 = vand.u32 %v2761, 2147483648
        %v2775 = vor.u32 1.1754944e-38, %v2774
        %v2776 = vsel %vm2773, %v2775, %v2771
        %v2777 = vmul.f32 1.0, %v2776
        %v2778 = vrcp.pop %v2762
        %v2779 = vmul.f32 %v2762, %v2778
        %v2780 = vsub.f32 1.0, %v2779
        %v2781 = vmul.f32 %v2778, %v2780
        %v2782 = vadd.f32 %v2778, %v2781
        %vm2783 = vweird.f32 %v2762
        %vm2784 = vweird.f32 %v2778
        %vm2785 = vmor %vm2783, %vm2784
        %v2786 = vsel %vm2785, %v2778, %v2782
        %v2787 = vand.u32 2147483647, %v2762
        %vm2788 = vcmp.eq.f32.partialorder %v2787, 8.507059e+37
        %v2789 = vand.u32 %v2762, 2147483648
        %v2790 = vor.u32 1.1754944e-38, %v2789
        %v2791 = vsel %vm2788, %v2790, %v2786
        %v2792 = vmul.f32 1.0, %v2791
        %v2793 = vtanh.pop %v2752
        %v2794 = vmul.f32 %v2777, %v2712
        %2796 = vrot.lane.b32.xlu0 %v2793, 64
        %v2797 = vpop.permute.xlu0 %2796
        %v2799 = vmul.f32 %v2777, %v2797
        %2801 = vrot.lane.b32.xlu0 %v2799, 64
        %v2802 = vpop.permute.xlu0 %2801
        %v2804 = vadd.f32 %v2794, %v2802
        %v2805 = vtanh.pop %v2804
        %2807 = vrot.lane.b32.xlu0 %v2805, 64
        %v2808 = vpop.permute.xlu0 %2807
        %v2810 = vmul.f32 %v2792, %v2808
        %2811 = vst.msk [vmem:[#allocation3 + $0x3] sm:$0x1] %vm1616, %v2810
        %2812 = vst.msk [vmem:[#allocation3 + $0x4] sm:$0x1] %vm1618, %v2810
        %v2813 = vpack.c.bf16 %v2810, %v2810
        %v2814 = vrot.slane %v2433, 4
        %v2815 = vrot.slane %v2436, 4
        %v2819 = vsel %vm1243, %v2813, 0
        %2821 = vmatpush.bf16.msra.mxu0 0
        %2822 = vmatpush.bf16.msra.mxu0 0
        %2823 = vmatpush.bf16.msra.mxu0 0
        %2824 = vmatpush.bf16.msra.mxu0 0
        %2825 = vmatpush.bf16.msra.mxu0 %v2526
        %2826 = vmatpush.bf16.msra.mxu0 %v2524
        %2827 = vmatpush.bf16.msra.mxu0 %v2522
        %2828 = vmatpush.bf16.msra.mxu0 %v2520
        %2829 = vmatmul.bf16.gmra.mxu0 %v2819
        %v2830 = vpop.f32.mrf.mxu0
        %v2831 = vadd.f32 %v2814, %v2830
        %v2832 = vpop.f32.mrf.mxu0
        %2833 = vdwg.mxu0
        %2834 = vmatpush.bf16.msra.mxu0 0
        %2835 = vmatpush.bf16.msra.mxu0 0
        %2836 = vmatpush.bf16.msra.mxu0 0
        %2837 = vmatpush.bf16.msra.mxu0 0
        %2838 = vmatpush.bf16.msra.mxu0 %v2527
        %2839 = vmatpush.bf16.msra.mxu0 %v2525
        %2840 = vmatpush.bf16.msra.mxu0 %v2523
        %2841 = vmatpush.bf16.msra.mxu0 %v2521
        %2842 = vmatmul.bf16.gmra.mxu0 %v2819
        %v2843 = vpop.f32.mrf.mxu0
        %v2844 = vadd.f32 %v2815, %v2843
        %v2845 = vpop.f32.mrf.mxu0
        %2846 = vdwg.mxu0
        %v2847 = vxor.u32 %v2831, 2147483648
        %v2848 = vxor.u32 %v2844, 2147483648
        %v2849 = vmul.f32 %v2847, 1.442695
        %v2850 = vpow.pop %v2849
        %v2851 = vmul.f32 %v2848, 1.442695
        %v2852 = vpow.pop %v2851
        %v2853 = vadd.f32 %v2850, 1.0
        %v2854 = vadd.f32 %v2852, 1.0
        %v2855 = vrcp.pop %v2853
        %v2856 = vmul.f32 %v2853, %v2855
        %v2857 = vsub.f32 1.0, %v2856
        %v2858 = vmul.f32 %v2855, %v2857
        %v2859 = vadd.f32 %v2855, %v2858
        %vm2860 = vweird.f32 %v2853
        %vm2861 = vweird.f32 %v2855
        %vm2862 = vmor %vm2860, %vm2861
        %v2863 = vsel %vm2862, %v2855, %v2859
        %v2864 = vand.u32 2147483647, %v2853
        %vm2865 = vcmp.eq.f32.partialorder %v2864, 8.507059e+37
        %v2866 = vand.u32 %v2853, 2147483648
        %v2867 = vor.u32 1.1754944e-38, %v2866
        %v2868 = vsel %vm2865, %v2867, %v2863
        %v2869 = vmul.f32 1.0, %v2868
        %v2870 = vrcp.pop %v2854
        %v2871 = vmul.f32 %v2854, %v2870
        %v2872 = vsub.f32 1.0, %v2871
        %v2873 = vmul.f32 %v2870, %v2872
        %v2874 = vadd.f32 %v2870, %v2873
        %vm2875 = vweird.f32 %v2854
        %vm2876 = vweird.f32 %v2870
        %vm2877 = vmor %vm2875, %vm2876
        %v2878 = vsel %vm2877, %v2870, %v2874
        %v2879 = vand.u32 2147483647, %v2854
        %vm2880 = vcmp.eq.f32.partialorder %v2879, 8.507059e+37
        %v2881 = vand.u32 %v2854, 2147483648
        %v2882 = vor.u32 1.1754944e-38, %v2881
        %v2883 = vsel %vm2880, %v2882, %v2878
        %v2884 = vmul.f32 1.0, %v2883
        %v2885 = vtanh.pop %v2844
        %v2886 = vmul.f32 %v2869, %v2804
        %2888 = vrot.lane.b32.xlu0 %v2885, 64
        %v2889 = vpop.permute.xlu0 %2888
        %v2891 = vmul.f32 %v2869, %v2889
        %2893 = vrot.lane.b32.xlu0 %v2891, 64
        %v2894 = vpop.permute.xlu0 %2893
        %v2896 = vadd.f32 %v2886, %v2894
        %v2897 = vtanh.pop %v2896
        %2899 = vrot.lane.b32.xlu0 %v2897, 64
        %v2900 = vpop.permute.xlu0 %2899
        %v2902 = vmul.f32 %v2884, %v2900
        %2903 = vst.msk [vmem:[#allocation3 + $0x4] sm:$0x1] %vm1616, %v2902
        %2904 = vst.msk [vmem:[#allocation3 + $0x3] sm:$0x1] %vm1618, %v2902
        %v2905 = vpack.c.bf16 %v2902, %v2902
        %v2906 = vrot.slane %v2433, 5
        %v2907 = vrot.slane %v2436, 5
        %v2911 = vsel %vm1243, %v2905, 0
        %2913 = vmatpush.bf16.msra.mxu0 0
        %2914 = vmatpush.bf16.msra.mxu0 0
        %2915 = vmatpush.bf16.msra.mxu0 0
        %2916 = vmatpush.bf16.msra.mxu0 0
        %2917 = vmatpush.bf16.msra.mxu0 %v2526
        %2918 = vmatpush.bf16.msra.mxu0 %v2524
        %2919 = vmatpush.bf16.msra.mxu0 %v2522
        %2920 = vmatpush.bf16.msra.mxu0 %v2520
        %2921 = vmatmul.bf16.gmra.mxu0 %v2911
        %v2922 = vpop.f32.mrf.mxu0
        %v2923 = vadd.f32 %v2906, %v2922
        %v2924 = vpop.f32.mrf.mxu0
        %2925 = vdwg.mxu0
        %2926 = vmatpush.bf16.msra.mxu0 0
        %2927 = vmatpush.bf16.msra.mxu0 0
        %2928 = vmatpush.bf16.msra.mxu0 0
        %2929 = vmatpush.bf16.msra.mxu0 0
        %2930 = vmatpush.bf16.msra.mxu0 %v2527
        %2931 = vmatpush.bf16.msra.mxu0 %v2525
        %2932 = vmatpush.bf16.msra.mxu0 %v2523
        %2933 = vmatpush.bf16.msra.mxu0 %v2521
        %2934 = vmatmul.bf16.gmra.mxu0 %v2911
        %v2935 = vpop.f32.mrf.mxu0
        %v2936 = vadd.f32 %v2907, %v2935
        %v2937 = vpop.f32.mrf.mxu0
        %2938 = vdwg.mxu0
        %v2939 = vxor.u32 %v2923, 2147483648
        %v2940 = vxor.u32 %v2936, 2147483648
        %v2941 = vmul.f32 %v2939, 1.442695
        %v2942 = vpow.pop %v2941
        %v2943 = vmul.f32 %v2940, 1.442695
        %v2944 = vpow.pop %v2943
        %v2945 = vadd.f32 %v2942, 1.0
        %v2946 = vadd.f32 %v2944, 1.0
        %v2947 = vrcp.pop %v2945
        %v2948 = vmul.f32 %v2945, %v2947
        %v2949 = vsub.f32 1.0, %v2948
        %v2950 = vmul.f32 %v2947, %v2949
        %v2951 = vadd.f32 %v2947, %v2950
        %vm2952 = vweird.f32 %v2945
        %vm2953 = vweird.f32 %v2947
        %vm2954 = vmor %vm2952, %vm2953
        %v2955 = vsel %vm2954, %v2947, %v2951
        %v2956 = vand.u32 2147483647, %v2945
        %vm2957 = vcmp.eq.f32.partialorder %v2956, 8.507059e+37
        %v2958 = vand.u32 %v2945, 2147483648
        %v2959 = vor.u32 1.1754944e-38, %v2958
        %v2960 = vsel %vm2957, %v2959, %v2955
        %v2961 = vmul.f32 1.0, %v2960
        %v2962 = vrcp.pop %v2946
        %v2963 = vmul.f32 %v2946, %v2962
        %v2964 = vsub.f32 1.0, %v2963
        %v2965 = vmul.f32 %v2962, %v2964
        %v2966 = vadd.f32 %v2962, %v2965
        %vm2967 = vweird.f32 %v2946
        %vm2968 = vweird.f32 %v2962
        %vm2969 = vmor %vm2967, %vm2968
        %v2970 = vsel %vm2969, %v2962, %v2966
        %v2971 = vand.u32 2147483647, %v2946
        %vm2972 = vcmp.eq.f32.partialorder %v2971, 8.507059e+37
        %v2973 = vand.u32 %v2946, 2147483648
        %v2974 = vor.u32 1.1754944e-38, %v2973
        %v2975 = vsel %vm2972, %v2974, %v2970
        %v2976 = vmul.f32 1.0, %v2975
        %v2977 = vtanh.pop %v2936
        %v2978 = vmul.f32 %v2961, %v2896
        %2980 = vrot.lane.b32.xlu0 %v2977, 64
        %v2981 = vpop.permute.xlu0 %2980
        %v2983 = vmul.f32 %v2961, %v2981
        %2985 = vrot.lane.b32.xlu0 %v2983, 64
        %v2986 = vpop.permute.xlu0 %2985
        %v2988 = vadd.f32 %v2978, %v2986
        %v2989 = vtanh.pop %v2988
        %2991 = vrot.lane.b32.xlu0 %v2989, 64
        %v2992 = vpop.permute.xlu0 %2991
        %v2994 = vmul.f32 %v2976, %v2992
        %2995 = vst.msk [vmem:[#allocation3 + $0x5] sm:$0x1] %vm1616, %v2994
        %2996 = vst.msk [vmem:[#allocation3 + $0x2] sm:$0x1] %vm1618, %v2994
        %v2997 = vpack.c.bf16 %v2994, %v2994
        %v2998 = vrot.slane %v2433, 6
        %v2999 = vrot.slane %v2436, 6
        %v3003 = vsel %vm1243, %v2997, 0
        %3005 = vmatpush.bf16.msra.mxu0 0
        %3006 = vmatpush.bf16.msra.mxu0 0
        %3007 = vmatpush.bf16.msra.mxu0 0
        %3008 = vmatpush.bf16.msra.mxu0 0
        %3009 = vmatpush.bf16.msra.mxu0 %v2526
        %3010 = vmatpush.bf16.msra.mxu0 %v2524
        %3011 = vmatpush.bf16.msra.mxu0 %v2522
        %3012 = vmatpush.bf16.msra.mxu0 %v2520
        %3013 = vmatmul.bf16.gmra.mxu0 %v3003
        %v3014 = vpop.f32.mrf.mxu0
        %v3015 = vadd.f32 %v2998, %v3014
        %v3016 = vpop.f32.mrf.mxu0
        %3017 = vdwg.mxu0
        %3018 = vmatpush.bf16.msra.mxu0 0
        %3019 = vmatpush.bf16.msra.mxu0 0
        %3020 = vmatpush.bf16.msra.mxu0 0
        %3021 = vmatpush.bf16.msra.mxu0 0
        %3022 = vmatpush.bf16.msra.mxu0 %v2527
        %3023 = vmatpush.bf16.msra.mxu0 %v2525
        %3024 = vmatpush.bf16.msra.mxu0 %v2523
        %3025 = vmatpush.bf16.msra.mxu0 %v2521
        %3026 = vmatmul.bf16.gmra.mxu0 %v3003
        %v3027 = vpop.f32.mrf.mxu0
        %v3028 = vadd.f32 %v2999, %v3027
        %v3029 = vpop.f32.mrf.mxu0
        %3030 = vdwg.mxu0
        %v3031 = vxor.u32 %v3015, 2147483648
        %v3032 = vxor.u32 %v3028, 2147483648
        %v3033 = vmul.f32 %v3031, 1.442695
        %v3034 = vpow.pop %v3033
        %v3035 = vmul.f32 %v3032, 1.442695
        %v3036 = vpow.pop %v3035
        %v3037 = vadd.f32 %v3034, 1.0
        %v3038 = vadd.f32 %v3036, 1.0
        %v3039 = vrcp.pop %v3037
        %v3040 = vmul.f32 %v3037, %v3039
        %v3041 = vsub.f32 1.0, %v3040
        %v3042 = vmul.f32 %v3039, %v3041
        %v3043 = vadd.f32 %v3039, %v3042
        %vm3044 = vweird.f32 %v3037
        %vm3045 = vweird.f32 %v3039
        %vm3046 = vmor %vm3044, %vm3045
        %v3047 = vsel %vm3046, %v3039, %v3043
        %v3048 = vand.u32 2147483647, %v3037
        %vm3049 = vcmp.eq.f32.partialorder %v3048, 8.507059e+37
        %v3050 = vand.u32 %v3037, 2147483648
        %v3051 = vor.u32 1.1754944e-38, %v3050
        %v3052 = vsel %vm3049, %v3051, %v3047
        %v3053 = vmul.f32 1.0, %v3052
        %v3054 = vrcp.pop %v3038
        %v3055 = vmul.f32 %v3038, %v3054
        %v3056 = vsub.f32 1.0, %v3055
        %v3057 = vmul.f32 %v3054, %v3056
        %v3058 = vadd.f32 %v3054, %v3057
        %vm3059 = vweird.f32 %v3038
        %vm3060 = vweird.f32 %v3054
        %vm3061 = vmor %vm3059, %vm3060
        %v3062 = vsel %vm3061, %v3054, %v3058
        %v3063 = vand.u32 2147483647, %v3038
        %vm3064 = vcmp.eq.f32.partialorder %v3063, 8.507059e+37
        %v3065 = vand.u32 %v3038, 2147483648
        %v3066 = vor.u32 1.1754944e-38, %v3065
        %v3067 = vsel %vm3064, %v3066, %v3062
        %v3068 = vmul.f32 1.0, %v3067
        %v3069 = vtanh.pop %v3028
        %v3070 = vmul.f32 %v3053, %v2988
        %3072 = vrot.lane.b32.xlu0 %v3069, 64
        %v3073 = vpop.permute.xlu0 %3072
        %v3075 = vmul.f32 %v3053, %v3073
        %3077 = vrot.lane.b32.xlu0 %v3075, 64
        %v3078 = vpop.permute.xlu0 %3077
        %v3080 = vadd.f32 %v3070, %v3078
        %v3081 = vtanh.pop %v3080
        %3083 = vrot.lane.b32.xlu0 %v3081, 64
        %v3084 = vpop.permute.xlu0 %3083
        %v3086 = vmul.f32 %v3068, %v3084
        %3087 = vst.msk [vmem:[#allocation3 + $0x6] sm:$0x1] %vm1616, %v3086
        %3088 = vst.msk [vmem:[#allocation3 + $0x1] sm:$0x1] %vm1618, %v3086
        %v3089 = vpack.c.bf16 %v3086, %v3086
        %v3090 = vrot.slane %v2433, 7
        %v3091 = vrot.slane %v2436, 7
        %v3095 = vsel %vm1243, %v3089, 0
        %3097 = vmatpush.bf16.msra.mxu0 0
        %3098 = vmatpush.bf16.msra.mxu0 0
        %3099 = vmatpush.bf16.msra.mxu0 0
        %3100 = vmatpush.bf16.msra.mxu0 0
        %3101 = vmatpush.bf16.msra.mxu0 %v2526
        %3102 = vmatpush.bf16.msra.mxu0 %v2524
        %3103 = vmatpush.bf16.msra.mxu0 %v2522
        %3104 = vmatpush.bf16.msra.mxu0 %v2520
        %3105 = vmatmul.bf16.gmra.mxu0 %v3095
        %v3106 = vpop.f32.mrf.mxu0
        %v3107 = vadd.f32 %v3090, %v3106
        %v3108 = vpop.f32.mrf.mxu0
        %3109 = vdwg.mxu0
        %3110 = vmatpush.bf16.msra.mxu0 0
        %3111 = vmatpush.bf16.msra.mxu0 0
        %3112 = vmatpush.bf16.msra.mxu0 0
        %3113 = vmatpush.bf16.msra.mxu0 0
        %3114 = vmatpush.bf16.msra.mxu0 %v2527
        %3115 = vmatpush.bf16.msra.mxu0 %v2525
        %3116 = vmatpush.bf16.msra.mxu0 %v2523
        %3117 = vmatpush.bf16.msra.mxu0 %v2521
        %3118 = vmatmul.bf16.gmra.mxu0 %v3095
        %v3119 = vpop.f32.mrf.mxu0
        %v3120 = vadd.f32 %v3091, %v3119
        %v3121 = vpop.f32.mrf.mxu0
        %3122 = vdwg.mxu0
        %v3123 = vxor.u32 %v3107, 2147483648
        %v3124 = vxor.u32 %v3120, 2147483648
        %v3125 = vmul.f32 %v3123, 1.442695
        %v3126 = vpow.pop %v3125
        %v3127 = vmul.f32 %v3124, 1.442695
        %v3128 = vpow.pop %v3127
        %v3129 = vadd.f32 %v3126, 1.0
        %v3130 = vadd.f32 %v3128, 1.0
        %v3131 = vrcp.pop %v3129
        %v3132 = vmul.f32 %v3129, %v3131
        %v3133 = vsub.f32 1.0, %v3132
        %v3134 = vmul.f32 %v3131, %v3133
        %v3135 = vadd.f32 %v3131, %v3134
        %vm3136 = vweird.f32 %v3129
        %vm3137 = vweird.f32 %v3131
        %vm3138 = vmor %vm3136, %vm3137
        %v3139 = vsel %vm3138, %v3131, %v3135
        %v3140 = vand.u32 2147483647, %v3129
        %vm3141 = vcmp.eq.f32.partialorder %v3140, 8.507059e+37
        %v3142 = vand.u32 %v3129, 2147483648
        %v3143 = vor.u32 1.1754944e-38, %v3142
        %v3144 = vsel %vm3141, %v3143, %v3139
        %v3145 = vmul.f32 1.0, %v3144
        %v3146 = vrcp.pop %v3130
        %v3147 = vmul.f32 %v3130, %v3146
        %v3148 = vsub.f32 1.0, %v3147
        %v3149 = vmul.f32 %v3146, %v3148
        %v3150 = vadd.f32 %v3146, %v3149
        %vm3151 = vweird.f32 %v3130
        %vm3152 = vweird.f32 %v3146
        %vm3153 = vmor %vm3151, %vm3152
        %v3154 = vsel %vm3153, %v3146, %v3150
        %v3155 = vand.u32 2147483647, %v3130
        %vm3156 = vcmp.eq.f32.partialorder %v3155, 8.507059e+37
        %v3157 = vand.u32 %v3130, 2147483648
        %v3158 = vor.u32 1.1754944e-38, %v3157
        %v3159 = vsel %vm3156, %v3158, %v3154
        %v3160 = vmul.f32 1.0, %v3159
        %v3161 = vtanh.pop %v3120
        %v3162 = vmul.f32 %v3145, %v3080
        %3164 = vrot.lane.b32.xlu0 %v3161, 64
        %v3165 = vpop.permute.xlu0 %3164
        %v3167 = vmul.f32 %v3145, %v3165
        %3169 = vrot.lane.b32.xlu0 %v3167, 64
        %v3170 = vpop.permute.xlu0 %3169
        %v3172 = vadd.f32 %v3162, %v3170
        %v3173 = vtanh.pop %v3172
        %3175 = vrot.lane.b32.xlu0 %v3173, 64
        %v3176 = vpop.permute.xlu0 %3175
        %v3178 = vmul.f32 %v3160, %v3176
        %3179 = vst.msk [vmem:[#allocation3 + $0x7] sm:$0x1] %vm1616, %v3178
        %3180 = vst.msk [vmem:[#allocation3] sm:$0x1] %vm1618, %v3178
        %v3181 = vld [vmem:[#allocation3] sm:$0xff]
        %v3182 = vpack.c.bf16 %v3181, %v3181
        %v3183 = vld [vmem:[#allocation9] sm:$0xff]
        %v3184 = vld [vmem:[#allocation9 + $0x8] sm:$0xff]
        %v3185 = vld [vmem:[#allocation9 + $0x10] sm:$0xff]
        %v3186 = vld [vmem:[#allocation9 + $0x18] sm:$0xff]
        %v3187 = vld [vmem:[#allocation9 + $0x20] sm:$0xff]
        %v3188 = vld [vmem:[#allocation9 + $0x28] sm:$0xff]
        %v3189 = vld [vmem:[#allocation9 + $0x30] sm:$0xff]
        %v3190 = vld [vmem:[#allocation9 + $0x38] sm:$0xff]
        %v3191 = vld [vmem:[%s12] sm:$0x3]
        %v3193 = vperm.slane %v3191, 0
        %v3194 = vperm.slane %v3191, 1
        %v3205 = vunpack.c.l.b16 %v3183
        %v3206 = vunpack.c.h.b16 %v3183
        %v3207 = vunpack.c.l.b16 %v3184
        %v3208 = vunpack.c.h.b16 %v3184
        %v3209 = vunpack.c.l.b16 %v3185
        %v3210 = vunpack.c.h.b16 %v3185
        %v3211 = vunpack.c.l.b16 %v3186
        %v3212 = vunpack.c.h.b16 %v3186
        %v3213 = vunpack.c.l.b16 %v3187
        %v3214 = vunpack.c.h.b16 %v3187
        %v3215 = vunpack.c.l.b16 %v3188
        %v3216 = vunpack.c.h.b16 %v3188
        %v3217 = vunpack.c.l.b16 %v3189
        %v3218 = vunpack.c.h.b16 %v3189
        %v3219 = vunpack.c.l.b16 %v3190
        %v3220 = vunpack.c.h.b16 %v3190
        %v3221 = vpack.c.b16 %v3207, %v3205
        %v3222 = vpack.c.b16 %v3208, %v3206
        %v3223 = vpack.c.b16 %v3211, %v3209
        %v3224 = vpack.c.b16 %v3212, %v3210
        %v3225 = vpack.c.b16 %v3215, %v3213
        %v3226 = vpack.c.b16 %v3216, %v3214
        %v3227 = vpack.c.b16 %v3219, %v3217
        %v3228 = vpack.c.b16 %v3220, %v3218
        %v3238 = vsel %vm1243, %v3182, 0
        %3240 = vmatpush.bf16.msra.mxu0 0
        %3241 = vmatpush.bf16.msra.mxu0 0
        %3242 = vmatpush.bf16.msra.mxu0 0
        %3243 = vmatpush.bf16.msra.mxu0 0
        %3244 = vmatpush.bf16.msra.mxu0 %v3227
        %3245 = vmatpush.bf16.msra.mxu0 %v3225
        %3246 = vmatpush.bf16.msra.mxu0 %v3223
        %3247 = vmatpush.bf16.msra.mxu0 %v3221
        %3248 = vmatmul.bf16.gmra.mxu0 %v3238
        %v3249 = vpop.f32.mrf.mxu0
        %v3250 = vadd.f32 %v3193, %v3249
        %v3251 = vpop.f32.mrf.mxu0
        %3252 = vdwg.mxu0
        %3253 = vmatpush.bf16.msra.mxu0 0
        %3254 = vmatpush.bf16.msra.mxu0 0
        %3255 = vmatpush.bf16.msra.mxu0 0
        %3256 = vmatpush.bf16.msra.mxu0 0
        %3257 = vmatpush.bf16.msra.mxu0 %v3228
        %3258 = vmatpush.bf16.msra.mxu0 %v3226
        %3259 = vmatpush.bf16.msra.mxu0 %v3224
        %3260 = vmatpush.bf16.msra.mxu0 %v3222
        %3261 = vmatmul.bf16.gmra.mxu0 %v3238
        %v3262 = vpop.f32.mrf.mxu0
        %v3263 = vadd.f32 %v3194, %v3262
        %v3264 = vpop.f32.mrf.mxu0
        %3265 = vdwg.mxu0
        %v3266 = vmul.f32 %v3250, 0.35355338
        %3268 = vrot.lane.b32.xlu0 %v3266, 120
        %v3269 = vpop.permute.xlu0 %3268
        %3271 = vrot.lane.b32.xlu0 %v3266, 112
        %v3272 = vpop.permute.xlu0 %3271
        %3274 = vrot.lane.b32.xlu0 %v3266, 104
        %v3275 = vpop.permute.xlu0 %3274
        %3277 = vrot.lane.b32.xlu0 %v3266, 96
        %v3278 = vpop.permute.xlu0 %3277
        %3280 = vrot.lane.b32.xlu0 %v3266, 88
        %v3281 = vpop.permute.xlu0 %3280
        %3283 = vrot.lane.b32.xlu0 %v3266, 80
        %v3284 = vpop.permute.xlu0 %3283
        %3286 = vrot.lane.b32.xlu0 %v3266, 72
        %v3287 = vpop.permute.xlu0 %3286
        %v3289 = vrot.slane %v3272, 4
        %vm3290 = vcmask 1047556
        %v3291 = vsel %vm3290, %v3289, %v3266
        %v3292 = vrot.slane %v3266, 4
        %v3293 = vsel %vm3290, %v3272, %v3292
        %v3295 = vunpack.c.l.s4 1983009808
        %v3296 = vunpack.c.0.s8 %v3295
        %v3297 = vperm.slane %v3291, %v3296
        %v3299 = vunpack.c.l.s4 1983009808
        %v3300 = vunpack.c.0.s8 %v3299
        %v3301 = vperm.slane %v3293, %v3300
        %v3302 = vrot.slane %v3275, 4
        %v3303 = vsel %vm3290, %v3302, %v3269
        %v3304 = vrot.slane %v3269, 4
        %v3305 = vsel %vm3290, %v3275, %v3304
        %v3307 = vunpack.c.l.s4 1983009808
        %v3308 = vunpack.c.0.s8 %v3307
        %v3309 = vperm.slane %v3303, %v3308
        %v3311 = vunpack.c.l.s4 1983009808
        %v3312 = vunpack.c.0.s8 %v3311
        %v3313 = vperm.slane %v3305, %v3312
        %v3314 = vrot.slane %v3284, 4
        %v3315 = vsel %vm3290, %v3314, %v3278
        %v3316 = vrot.slane %v3278, 4
        %v3317 = vsel %vm3290, %v3284, %v3316
        %v3319 = vunpack.c.l.s4 1983009808
        %v3320 = vunpack.c.0.s8 %v3319
        %v3321 = vperm.slane %v3315, %v3320
        %v3323 = vunpack.c.l.s4 1983009808
        %v3324 = vunpack.c.0.s8 %v3323
        %v3325 = vperm.slane %v3317, %v3324
        %v3326 = vrot.slane %v3287, 4
        %v3327 = vsel %vm3290, %v3326, %v3281
        %v3328 = vrot.slane %v3281, 4
        %v3329 = vsel %vm3290, %v3287, %v3328
        %v3331 = vunpack.c.l.s4 1983009808
        %v3332 = vunpack.c.0.s8 %v3331
        %v3333 = vperm.slane %v3327, %v3332
        %v3335 = vunpack.c.l.s4 1983009808
        %v3336 = vunpack.c.0.s8 %v3335
        %v3337 = vperm.slane %v3329, %v3336
        %v3338 = vrot.slane %v3309, 4
        %v3339 = vsel %vm3290, %v3338, %v3297
        %v3340 = vrot.slane %v3297, 4
        %v3341 = vsel %vm3290, %v3309, %v3340
        %v3343 = vunpack.c.l.s4 1934713408
        %v3344 = vunpack.c.0.s8 %v3343
        %v3345 = vperm.slane %v3339, %v3344
        %v3347 = vunpack.c.l.s4 1934713408
        %v3348 = vunpack.c.0.s8 %v3347
        %v3349 = vperm.slane %v3341, %v3348
        %v3350 = vrot.slane %v3313, 4
        %v3351 = vsel %vm3290, %v3350, %v3301
        %v3352 = vrot.slane %v3301, 4
        %v3353 = vsel %vm3290, %v3313, %v3352
        %v3355 = vunpack.c.l.s4 1934713408
        %v3356 = vunpack.c.0.s8 %v3355
        %v3357 = vperm.slane %v3351, %v3356
        %v3359 = vunpack.c.l.s4 1934713408
        %v3360 = vunpack.c.0.s8 %v3359
        %v3361 = vperm.slane %v3353, %v3360
        %v3362 = vrot.slane %v3333, 4
        %v3363 = vsel %vm3290, %v3362, %v3321
        %v3364 = vrot.slane %v3321, 4
        %v3365 = vsel %vm3290, %v3333, %v3364
        %v3367 = vunpack.c.l.s4 1934713408
        %v3368 = vunpack.c.0.s8 %v3367
        %v3369 = vperm.slane %v3363, %v3368
        %v3371 = vunpack.c.l.s4 1934713408
        %v3372 = vunpack.c.0.s8 %v3371
        %v3373 = vperm.slane %v3365, %v3372
        %v3374 = vrot.slane %v3337, 4
        %v3375 = vsel %vm3290, %v3374, %v3325
        %v3376 = vrot.slane %v3325, 4
        %v3377 = vsel %vm3290, %v3337, %v3376
        %v3379 = vunpack.c.l.s4 1934713408
        %v3380 = vunpack.c.0.s8 %v3379
        %v3381 = vperm.slane %v3375, %v3380
        %v3383 = vunpack.c.l.s4 1934713408
        %v3384 = vunpack.c.0.s8 %v3383
        %v3385 = vperm.slane %v3377, %v3384
        %v3386 = vrot.slane %v3369, 4
        %v3387 = vsel %vm3290, %v3386, %v3345
        %v3388 = vrot.slane %v3345, 4
        %v3389 = vsel %vm3290, %v3369, %v3388
        %v3390 = vrot.slane %v3373, 4
        %v3391 = vsel %vm3290, %v3390, %v3349
        %v3392 = vrot.slane %v3349, 4
        %v3393 = vsel %vm3290, %v3373, %v3392
        %v3394 = vrot.slane %v3381, 4
        %v3395 = vsel %vm3290, %v3394, %v3357
        %v3396 = vrot.slane %v3357, 4
        %v3397 = vsel %vm3290, %v3381, %v3396
        %v3398 = vrot.slane %v3385, 4
        %v3399 = vsel %vm3290, %v3398, %v3361
        %v3400 = vrot.slane %v3361, 4
        %v3401 = vsel %vm3290, %v3385, %v3400
        %3403 = vrot.lane.b32.xlu0 %v3250, 120
        %v3404 = vpop.permute.xlu0 %3403
        %3405 = vrot.lane.b32.xlu0 %v3250, 112
        %v3406 = vpop.permute.xlu0 %3405
        %3407 = vrot.lane.b32.xlu0 %v3250, 104
        %v3408 = vpop.permute.xlu0 %3407
        %3409 = vrot.lane.b32.xlu0 %v3250, 96
        %v3410 = vpop.permute.xlu0 %3409
        %3411 = vrot.lane.b32.xlu0 %v3250, 88
        %v3412 = vpop.permute.xlu0 %3411
        %3413 = vrot.lane.b32.xlu0 %v3250, 80
        %v3414 = vpop.permute.xlu0 %3413
        %3415 = vrot.lane.b32.xlu0 %v3250, 72
        %v3416 = vpop.permute.xlu0 %3415
        %3417 = vrot.lane.b32.xlu0 %v3250, 64
        %v3418 = vpop.permute.xlu0 %3417
        %3419 = vrot.lane.b32.xlu0 %v3404, 64
        %v3420 = vpop.permute.xlu0 %3419
        %3421 = vrot.lane.b32.xlu0 %v3406, 64
        %v3422 = vpop.permute.xlu0 %3421
        %3423 = vrot.lane.b32.xlu0 %v3408, 64
        %v3424 = vpop.permute.xlu0 %3423
        %3425 = vrot.lane.b32.xlu0 %v3410, 64
        %v3426 = vpop.permute.xlu0 %3425
        %3427 = vrot.lane.b32.xlu0 %v3412, 64
        %v3428 = vpop.permute.xlu0 %3427
        %3429 = vrot.lane.b32.xlu0 %v3414, 64
        %v3430 = vpop.permute.xlu0 %3429
        %3431 = vrot.lane.b32.xlu0 %v3416, 64
        %v3432 = vpop.permute.xlu0 %3431
        %v3441 = vrot.slane %v3422, 4
        %v3442 = vsel %vm3290, %v3441, %v3418
        %v3443 = vrot.slane %v3418, 4
        %v3444 = vsel %vm3290, %v3422, %v3443
        %v3446 = vunpack.c.l.s4 1983009808
        %v3447 = vunpack.c.0.s8 %v3446
        %v3448 = vperm.slane %v3442, %v3447
        %v3450 = vunpack.c.l.s4 1983009808
        %v3451 = vunpack.c.0.s8 %v3450
        %v3452 = vperm.slane %v3444, %v3451
        %v3453 = vrot.slane %v3424, 4
        %v3454 = vsel %vm3290, %v3453, %v3420
        %v3455 = vrot.slane %v3420, 4
        %v3456 = vsel %vm3290, %v3424, %v3455
        %v3458 = vunpack.c.l.s4 1983009808
        %v3459 = vunpack.c.0.s8 %v3458
        %v3460 = vperm.slane %v3454, %v3459
        %v3462 = vunpack.c.l.s4 1983009808
        %v3463 = vunpack.c.0.s8 %v3462
        %v3464 = vperm.slane %v3456, %v3463
        %v3465 = vrot.slane %v3430, 4
        %v3466 = vsel %vm3290, %v3465, %v3426
        %v3467 = vrot.slane %v3426, 4
        %v3468 = vsel %vm3290, %v3430, %v3467
        %v3470 = vunpack.c.l.s4 1983009808
        %v3471 = vunpack.c.0.s8 %v3470
        %v3472 = vperm.slane %v3466, %v3471
        %v3474 = vunpack.c.l.s4 1983009808
        %v3475 = vunpack.c.0.s8 %v3474
        %v3476 = vperm.slane %v3468, %v3475
        %v3477 = vrot.slane %v3432, 4
        %v3478 = vsel %vm3290, %v3477, %v3428
        %v3479 = vrot.slane %v3428, 4
        %v3480 = vsel %vm3290, %v3432, %v3479
        %v3482 = vunpack.c.l.s4 1983009808
        %v3483 = vunpack.c.0.s8 %v3482
        %v3484 = vperm.slane %v3478, %v3483
        %v3486 = vunpack.c.l.s4 1983009808
        %v3487 = vunpack.c.0.s8 %v3486
        %v3488 = vperm.slane %v3480, %v3487
        %v3489 = vrot.slane %v3460, 4
        %v3490 = vsel %vm3290, %v3489, %v3448
        %v3491 = vrot.slane %v3448, 4
        %v3492 = vsel %vm3290, %v3460, %v3491
        %v3494 = vunpack.c.l.s4 1934713408
        %v3495 = vunpack.c.0.s8 %v3494
        %v3496 = vperm.slane %v3490, %v3495
        %v3498 = vunpack.c.l.s4 1934713408
        %v3499 = vunpack.c.0.s8 %v3498
        %v3500 = vperm.slane %v3492, %v3499
        %v3501 = vrot.slane %v3464, 4
        %v3502 = vsel %vm3290, %v3501, %v3452
        %v3503 = vrot.slane %v3452, 4
        %v3504 = vsel %vm3290, %v3464, %v3503
        %v3506 = vunpack.c.l.s4 1934713408
        %v3507 = vunpack.c.0.s8 %v3506
        %v3508 = vperm.slane %v3502, %v3507
        %v3510 = vunpack.c.l.s4 1934713408
        %v3511 = vunpack.c.0.s8 %v3510
        %v3512 = vperm.slane %v3504, %v3511
        %v3513 = vrot.slane %v3484, 4
        %v3514 = vsel %vm3290, %v3513, %v3472
        %v3515 = vrot.slane %v3472, 4
        %v3516 = vsel %vm3290, %v3484, %v3515
        %v3518 = vunpack.c.l.s4 1934713408
        %v3519 = vunpack.c.0.s8 %v3518
        %v3520 = vperm.slane %v3514, %v3519
        %v3522 = vunpack.c.l.s4 1934713408
        %v3523 = vunpack.c.0.s8 %v3522
        %v3524 = vperm.slane %v3516, %v3523
        %v3525 = vrot.slane %v3488, 4
        %v3526 = vsel %vm3290, %v3525, %v3476
        %v3527 = vrot.slane %v3476, 4
        %v3528 = vsel %vm3290, %v3488, %v3527
        %v3530 = vunpack.c.l.s4 1934713408
        %v3531 = vunpack.c.0.s8 %v3530
        %v3532 = vperm.slane %v3526, %v3531
        %v3534 = vunpack.c.l.s4 1934713408
        %v3535 = vunpack.c.0.s8 %v3534
        %v3536 = vperm.slane %v3528, %v3535
        %v3537 = vrot.slane %v3520, 4
        %v3538 = vsel %vm3290, %v3537, %v3496
        %v3539 = vrot.slane %v3496, 4
        %v3540 = vsel %vm3290, %v3520, %v3539
        %v3541 = vrot.slane %v3524, 4
        %v3542 = vsel %vm3290, %v3541, %v3500
        %v3543 = vrot.slane %v3500, 4
        %v3544 = vsel %vm3290, %v3524, %v3543
        %v3545 = vrot.slane %v3532, 4
        %v3546 = vsel %vm3290, %v3545, %v3508
        %v3547 = vrot.slane %v3508, 4
        %v3548 = vsel %vm3290, %v3532, %v3547
        %v3549 = vrot.slane %v3536, 4
        %v3550 = vsel %vm3290, %v3549, %v3512
        %v3551 = vrot.slane %v3512, 4
        %v3552 = vsel %vm3290, %v3536, %v3551
        %3554 = vrot.lane.b32.xlu0 %v3263, 120
        %v3555 = vpop.permute.xlu0 %3554
        %3557 = vrot.lane.b32.xlu0 %v3263, 112
        %v3558 = vpop.permute.xlu0 %3557
        %3560 = vrot.lane.b32.xlu0 %v3263, 104
        %v3561 = vpop.permute.xlu0 %3560
        %3563 = vrot.lane.b32.xlu0 %v3263, 96
        %v3564 = vpop.permute.xlu0 %3563
        %3566 = vrot.lane.b32.xlu0 %v3263, 88
        %v3567 = vpop.permute.xlu0 %3566
        %3569 = vrot.lane.b32.xlu0 %v3263, 80
        %v3570 = vpop.permute.xlu0 %3569
        %3572 = vrot.lane.b32.xlu0 %v3263, 72
        %v3573 = vpop.permute.xlu0 %3572
        %v3575 = vrot.slane %v3558, 4
        %v3576 = vsel %vm3290, %v3575, %v3263
        %v3577 = vrot.slane %v3263, 4
        %v3578 = vsel %vm3290, %v3558, %v3577
        %v3580 = vunpack.c.l.s4 1983009808
        %v3581 = vunpack.c.0.s8 %v3580
        %v3582 = vperm.slane %v3576, %v3581
        %v3584 = vunpack.c.l.s4 1983009808
        %v3585 = vunpack.c.0.s8 %v3584
        %v3586 = vperm.slane %v3578, %v3585
        %v3587 = vrot.slane %v3561, 4
        %v3588 = vsel %vm3290, %v3587, %v3555
        %v3589 = vrot.slane %v3555, 4
        %v3590 = vsel %vm3290, %v3561, %v3589
        %v3592 = vunpack.c.l.s4 1983009808
        %v3593 = vunpack.c.0.s8 %v3592
        %v3594 = vperm.slane %v3588, %v3593
        %v3596 = vunpack.c.l.s4 1983009808
        %v3597 = vunpack.c.0.s8 %v3596
        %v3598 = vperm.slane %v3590, %v3597
        %v3599 = vrot.slane %v3570, 4
        %v3600 = vsel %vm3290, %v3599, %v3564
        %v3601 = vrot.slane %v3564, 4
        %v3602 = vsel %vm3290, %v3570, %v3601
        %v3604 = vunpack.c.l.s4 1983009808
        %v3605 = vunpack.c.0.s8 %v3604
        %v3606 = vperm.slane %v3600, %v3605
        %v3608 = vunpack.c.l.s4 1983009808
        %v3609 = vunpack.c.0.s8 %v3608
        %v3610 = vperm.slane %v3602, %v3609
        %v3611 = vrot.slane %v3573, 4
        %v3612 = vsel %vm3290, %v3611, %v3567
        %v3613 = vrot.slane %v3567, 4
        %v3614 = vsel %vm3290, %v3573, %v3613
        %v3616 = vunpack.c.l.s4 1983009808
        %v3617 = vunpack.c.0.s8 %v3616
        %v3618 = vperm.slane %v3612, %v3617
        %v3620 = vunpack.c.l.s4 1983009808
        %v3621 = vunpack.c.0.s8 %v3620
        %v3622 = vperm.slane %v3614, %v3621
        %v3623 = vrot.slane %v3594, 4
        %v3624 = vsel %vm3290, %v3623, %v3582
        %v3625 = vrot.slane %v3582, 4
        %v3626 = vsel %vm3290, %v3594, %v3625
        %v3628 = vunpack.c.l.s4 1934713408
        %v3629 = vunpack.c.0.s8 %v3628
        %v3630 = vperm.slane %v3624, %v3629
        %v3632 = vunpack.c.l.s4 1934713408
        %v3633 = vunpack.c.0.s8 %v3632
        %v3634 = vperm.slane %v3626, %v3633
        %v3635 = vrot.slane %v3598, 4
        %v3636 = vsel %vm3290, %v3635, %v3586
        %v3637 = vrot.slane %v3586, 4
        %v3638 = vsel %vm3290, %v3598, %v3637
        %v3640 = vunpack.c.l.s4 1934713408
        %v3641 = vunpack.c.0.s8 %v3640
        %v3642 = vperm.slane %v3636, %v3641
        %v3644 = vunpack.c.l.s4 1934713408
        %v3645 = vunpack.c.0.s8 %v3644
        %v3646 = vperm.slane %v3638, %v3645
        %v3647 = vrot.slane %v3618, 4
        %v3648 = vsel %vm3290, %v3647, %v3606
        %v3649 = vrot.slane %v3606, 4
        %v3650 = vsel %vm3290, %v3618, %v3649
        %v3652 = vunpack.c.l.s4 1934713408
        %v3653 = vunpack.c.0.s8 %v3652
        %v3654 = vperm.slane %v3648, %v3653
        %v3656 = vunpack.c.l.s4 1934713408
        %v3657 = vunpack.c.0.s8 %v3656
        %v3658 = vperm.slane %v3650, %v3657
        %v3659 = vrot.slane %v3622, 4
        %v3660 = vsel %vm3290, %v3659, %v3610
        %v3661 = vrot.slane %v3610, 4
        %v3662 = vsel %vm3290, %v3622, %v3661
        %v3664 = vunpack.c.l.s4 1934713408
        %v3665 = vunpack.c.0.s8 %v3664
        %v3666 = vperm.slane %v3660, %v3665
        %v3668 = vunpack.c.l.s4 1934713408
        %v3669 = vunpack.c.0.s8 %v3668
        %v3670 = vperm.slane %v3662, %v3669
        %v3671 = vrot.slane %v3654, 4
        %v3672 = vsel %vm3290, %v3671, %v3630
        %v3673 = vrot.slane %v3630, 4
        %v3674 = vsel %vm3290, %v3654, %v3673
        %v3675 = vrot.slane %v3658, 4
        %v3676 = vsel %vm3290, %v3675, %v3634
        %v3677 = vrot.slane %v3634, 4
        %v3678 = vsel %vm3290, %v3658, %v3677
        %v3679 = vrot.slane %v3666, 4
        %v3680 = vsel %vm3290, %v3679, %v3642
        %v3681 = vrot.slane %v3642, 4
        %v3682 = vsel %vm3290, %v3666, %v3681
        %v3683 = vrot.slane %v3670, 4
        %v3684 = vsel %vm3290, %v3683, %v3646
        %v3685 = vrot.slane %v3646, 4
        %v3686 = vsel %vm3290, %v3670, %v3685
        %v3687 = vpack.c.bf16 %v3387, %v3387
        %v3688 = vpack.c.bf16 %v3389, %v3389
        %v3689 = vpack.c.bf16 %v3391, %v3391
        %v3690 = vpack.c.bf16 %v3393, %v3393
        %v3691 = vpack.c.bf16 %v3395, %v3395
        %v3692 = vpack.c.bf16 %v3397, %v3397
        %v3693 = vpack.c.bf16 %v3399, %v3399
        %v3694 = vpack.c.bf16 %v3401, %v3401
        %v3695 = vpack.c.bf16 %v3538, %v3538
        %v3696 = vpack.c.bf16 %v3540, %v3540
        %v3697 = vpack.c.bf16 %v3542, %v3542
        %v3698 = vpack.c.bf16 %v3544, %v3544
        %v3699 = vpack.c.bf16 %v3546, %v3546
        %v3700 = vpack.c.bf16 %v3548, %v3548
        %v3701 = vpack.c.bf16 %v3550, %v3550
        %v3702 = vpack.c.bf16 %v3552, %v3552
        %v3703 = vrot.slane %v3691, 4
        %vm3704 = vcmask 1047556
        %v3705 = vsel %vm3704, %v3703, %v3687
        %v3707 = vunpack.c.l.s4 1983009808
        %v3708 = vunpack.c.0.s8 %v3707
        %v3709 = vperm.slane %v3705, %v3708
        %v3710 = vrot.slane %v3693, 4
        %v3711 = vsel %vm3704, %v3710, %v3689
        %v3713 = vunpack.c.l.s4 1983009808
        %v3714 = vunpack.c.0.s8 %v3713
        %v3715 = vperm.slane %v3711, %v3714
        %v3716 = vrot.slane %v3715, 4
        %v3717 = vsel %vm3704, %v3716, %v3709
        %v3718 = vrot.slane %v3709, 4
        %v3719 = vsel %vm3704, %v3715, %v3718
        %v3721 = vunpack.c.l.s4 1934713408
        %v3722 = vunpack.c.0.s8 %v3721
        %v3723 = vperm.slane %v3717, %v3722
        %v3725 = vunpack.c.l.s4 1934713408
        %v3726 = vunpack.c.0.s8 %v3725
        %v3727 = vperm.slane %v3719, %v3726
        %v3728 = vrot.slane %v3723, 4
        %v3729 = vsel %vm3704, 0, %v3728
        %v3730 = vrot.slane %v3727, 4
        %v3731 = vsel %vm3704, 0, %v3730
        %v3732 = vrot.slane %v3692, 4
        %v3733 = vsel %vm3704, %v3732, %v3688
        %v3735 = vunpack.c.l.s4 1983009808
        %v3736 = vunpack.c.0.s8 %v3735
        %v3737 = vperm.slane %v3733, %v3736
        %v3738 = vrot.slane %v3694, 4
        %v3739 = vsel %vm3704, %v3738, %v3690
        %v3741 = vunpack.c.l.s4 1983009808
        %v3742 = vunpack.c.0.s8 %v3741
        %v3743 = vperm.slane %v3739, %v3742
        %v3744 = vrot.slane %v3743, 4
        %v3745 = vsel %vm3704, %v3744, %v3737
        %v3746 = vrot.slane %v3737, 4
        %v3747 = vsel %vm3704, %v3743, %v3746
        %v3749 = vunpack.c.l.s4 1934713408
        %v3750 = vunpack.c.0.s8 %v3749
        %v3751 = vperm.slane %v3745, %v3750
        %v3753 = vunpack.c.l.s4 1934713408
        %v3754 = vunpack.c.0.s8 %v3753
        %v3755 = vperm.slane %v3747, %v3754
        %v3756 = vrot.slane %v3751, 4
        %v3757 = vsel %vm3704, 0, %v3756
        %v3758 = vrot.slane %v3755, 4
        %v3759 = vsel %vm3704, 0, %v3758
        %v3762 = vpack.i.b16 %v3751, %v3723
        %v3763 = vshrl.u32 %v3723, 16
        %v3764 = vshrl.u32 %v3751, 16
        %v3765 = vpack.i.b16 %v3764, %v3763
        %v3768 = vpack.i.b16 %v3757, %v3729
        %v3769 = vshrl.u32 %v3729, 16
        %v3770 = vshrl.u32 %v3757, 16
        %v3771 = vpack.i.b16 %v3770, %v3769
        %v3774 = vpack.i.b16 %v3755, %v3727
        %v3775 = vshrl.u32 %v3727, 16
        %v3776 = vshrl.u32 %v3755, 16
        %v3777 = vpack.i.b16 %v3776, %v3775
        %v3780 = vpack.i.b16 %v3759, %v3731
        %v3781 = vshrl.u32 %v3731, 16
        %v3782 = vshrl.u32 %v3759, 16
        %v3783 = vpack.i.b16 %v3782, %v3781
        %3784 = vxpose.xlu0.c.b16.start [1/8] %v3695, 128
        %3785 = vxpose.xlu0.c.b16.cont [2/8] 0, 128
        %3786 = vxpose.xlu0.c.b16.cont [3/8] 0, 128
        %3787 = vxpose.xlu0.c.b16.cont [4/8] 0, 128
        %3788 = vxpose.xlu0.c.b16.cont [5/8] 0, 128
        %3789 = vxpose.xlu0.c.b16.cont [6/8] 0, 128
        %3790 = vxpose.xlu0.c.b16.cont [7/8] 0, 128
        %3791 = vxpose.xlu0.c.b16.end [8/8] 0, 128
        %v3792 = vpop.trf.xlu0
        %v3793 = vpop.trf.xlu0
        %v3794 = vpop.trf.xlu0
        %v3795 = vpop.trf.xlu0
        %v3796 = vpop.trf.xlu0
        %v3797 = vpop.trf.xlu0
        %v3798 = vpop.trf.xlu0
        %v3799 = vpop.trf.xlu0
        %3800 = vxpose.xlu0.c.b16.start [1/8] %v3696, 128
        %3801 = vxpose.xlu0.c.b16.cont [2/8] 0, 128
        %3802 = vxpose.xlu0.c.b16.cont [3/8] 0, 128
        %3803 = vxpose.xlu0.c.b16.cont [4/8] 0, 128
        %3804 = vxpose.xlu0.c.b16.cont [5/8] 0, 128
        %3805 = vxpose.xlu0.c.b16.cont [6/8] 0, 128
        %3806 = vxpose.xlu0.c.b16.cont [7/8] 0, 128
        %3807 = vxpose.xlu0.c.b16.end [8/8] 0, 128
        %v3808 = vpop.trf.xlu0
        %v3809 = vpop.trf.xlu0
        %v3810 = vpop.trf.xlu0
        %v3811 = vpop.trf.xlu0
        %v3812 = vpop.trf.xlu0
        %v3813 = vpop.trf.xlu0
        %v3814 = vpop.trf.xlu0
        %v3815 = vpop.trf.xlu0
        %3816 = vxpose.xlu0.c.b16.start [1/8] %v3697, 128
        %3817 = vxpose.xlu0.c.b16.cont [2/8] 0, 128
        %3818 = vxpose.xlu0.c.b16.cont [3/8] 0, 128
        %3819 = vxpose.xlu0.c.b16.cont [4/8] 0, 128
        %3820 = vxpose.xlu0.c.b16.cont [5/8] 0, 128
        %3821 = vxpose.xlu0.c.b16.cont [6/8] 0, 128
        %3822 = vxpose.xlu0.c.b16.cont [7/8] 0, 128
        %3823 = vxpose.xlu0.c.b16.end [8/8] 0, 128
        %v3824 = vpop.trf.xlu0
        %v3825 = vpop.trf.xlu0
        %v3826 = vpop.trf.xlu0
        %v3827 = vpop.trf.xlu0
        %v3828 = vpop.trf.xlu0
        %v3829 = vpop.trf.xlu0
        %v3830 = vpop.trf.xlu0
        %v3831 = vpop.trf.xlu0
        %3832 = vxpose.xlu0.c.b16.start [1/8] %v3698, 128
        %3833 = vxpose.xlu0.c.b16.cont [2/8] 0, 128
        %3834 = vxpose.xlu0.c.b16.cont [3/8] 0, 128
        %3835 = vxpose.xlu0.c.b16.cont [4/8] 0, 128
        %3836 = vxpose.xlu0.c.b16.cont [5/8] 0, 128
        %3837 = vxpose.xlu0.c.b16.cont [6/8] 0, 128
        %3838 = vxpose.xlu0.c.b16.cont [7/8] 0, 128
        %3839 = vxpose.xlu0.c.b16.end [8/8] 0, 128
        %v3840 = vpop.trf.xlu0
        %v3841 = vpop.trf.xlu0
        %v3842 = vpop.trf.xlu0
        %v3843 = vpop.trf.xlu0
        %v3844 = vpop.trf.xlu0
        %v3845 = vpop.trf.xlu0
        %v3846 = vpop.trf.xlu0
        %v3847 = vpop.trf.xlu0
        %3848 = vxpose.xlu0.c.b16.start [1/8] %v3699, 128
        %3849 = vxpose.xlu0.c.b16.cont [2/8] 0, 128
        %3850 = vxpose.xlu0.c.b16.cont [3/8] 0, 128
        %3851 = vxpose.xlu0.c.b16.cont [4/8] 0, 128
        %3852 = vxpose.xlu0.c.b16.cont [5/8] 0, 128
        %3853 = vxpose.xlu0.c.b16.cont [6/8] 0, 128
        %3854 = vxpose.xlu0.c.b16.cont [7/8] 0, 128
        %3855 = vxpose.xlu0.c.b16.end [8/8] 0, 128
        %v3856 = vpop.trf.xlu0
        %v3857 = vpop.trf.xlu0
        %v3858 = vpop.trf.xlu0
        %v3859 = vpop.trf.xlu0
        %v3860 = vpop.trf.xlu0
        %v3861 = vpop.trf.xlu0
        %v3862 = vpop.trf.xlu0
        %v3863 = vpop.trf.xlu0
        %3864 = vxpose.xlu0.c.b16.start [1/8] %v3700, 128
        %3865 = vxpose.xlu0.c.b16.cont [2/8] 0, 128
        %3866 = vxpose.xlu0.c.b16.cont [3/8] 0, 128
        %3867 = vxpose.xlu0.c.b16.cont [4/8] 0, 128
        %3868 = vxpose.xlu0.c.b16.cont [5/8] 0, 128
        %3869 = vxpose.xlu0.c.b16.cont [6/8] 0, 128
        %3870 = vxpose.xlu0.c.b16.cont [7/8] 0, 128
        %3871 = vxpose.xlu0.c.b16.end [8/8] 0, 128
        %v3872 = vpop.trf.xlu0
        %v3873 = vpop.trf.xlu0
        %v3874 = vpop.trf.xlu0
        %v3875 = vpop.trf.xlu0
        %v3876 = vpop.trf.xlu0
        %v3877 = vpop.trf.xlu0
        %v3878 = vpop.trf.xlu0
        %v3879 = vpop.trf.xlu0
        %3880 = vxpose.xlu0.c.b16.start [1/8] %v3701, 128
        %3881 = vxpose.xlu0.c.b16.cont [2/8] 0, 128
        %3882 = vxpose.xlu0.c.b16.cont [3/8] 0, 128
        %3883 = vxpose.xlu0.c.b16.cont [4/8] 0, 128
        %3884 = vxpose.xlu0.c.b16.cont [5/8] 0, 128
        %3885 = vxpose.xlu0.c.b16.cont [6/8] 0, 128
        %3886 = vxpose.xlu0.c.b16.cont [7/8] 0, 128
        %3887 = vxpose.xlu0.c.b16.end [8/8] 0, 128
        %v3888 = vpop.trf.xlu0
        %v3889 = vpop.trf.xlu0
        %v3890 = vpop.trf.xlu0
        %v3891 = vpop.trf.xlu0
        %v3892 = vpop.trf.xlu0
        %v3893 = vpop.trf.xlu0
        %v3894 = vpop.trf.xlu0
        %v3895 = vpop.trf.xlu0
        %3896 = vxpose.xlu0.c.b16.start [1/8] %v3702, 128
        %3897 = vxpose.xlu0.c.b16.cont [2/8] 0, 128
        %3898 = vxpose.xlu0.c.b16.cont [3/8] 0, 128
        %3899 = vxpose.xlu0.c.b16.cont [4/8] 0, 128
        %3900 = vxpose.xlu0.c.b16.cont [5/8] 0, 128
        %3901 = vxpose.xlu0.c.b16.cont [6/8] 0, 128
        %3902 = vxpose.xlu0.c.b16.cont [7/8] 0, 128
        %3903 = vxpose.xlu0.c.b16.end [8/8] 0, 128
        %v3904 = vpop.trf.xlu0
        %v3905 = vpop.trf.xlu0
        %v3906 = vpop.trf.xlu0
        %v3907 = vpop.trf.xlu0
        %v3908 = vpop.trf.xlu0
        %v3909 = vpop.trf.xlu0
        %v3910 = vpop.trf.xlu0
        %v3911 = vpop.trf.xlu0
        %v3912 = vrot.slane %v3856, 4
        %v3913 = vsel %vm3704, %v3912, %v3792
        %v3915 = vunpack.c.l.s4 1983009808
        %v3916 = vunpack.c.0.s8 %v3915
        %v3917 = vperm.slane %v3913, %v3916
        %v3918 = vrot.slane %v3888, 4
        %v3919 = vsel %vm3704, %v3918, %v3824
        %v3921 = vunpack.c.l.s4 1983009808
        %v3922 = vunpack.c.0.s8 %v3921
        %v3923 = vperm.slane %v3919, %v3922
        %v3924 = vrot.slane %v3923, 4
        %v3925 = vsel %vm3704, %v3924, %v3917
        %v3926 = vrot.slane %v3917, 4
        %v3927 = vsel %vm3704, %v3923, %v3926
        %v3929 = vunpack.c.l.s4 1934713408
        %v3930 = vunpack.c.0.s8 %v3929
        %v3931 = vperm.slane %v3925, %v3930
        %v3933 = vunpack.c.l.s4 1934713408
        %v3934 = vunpack.c.0.s8 %v3933
        %v3935 = vperm.slane %v3927, %v3934
        %v3936 = vrot.slane %v3931, 4
        %v3937 = vsel %vm3704, 0, %v3936
        %v3938 = vrot.slane %v3935, 4
        %v3939 = vsel %vm3704, 0, %v3938
        %v3940 = vrot.slane %v3872, 4
        %v3941 = vsel %vm3704, %v3940, %v3808
        %v3943 = vunpack.c.l.s4 1983009808
        %v3944 = vunpack.c.0.s8 %v3943
        %v3945 = vperm.slane %v3941, %v3944
        %v3946 = vrot.slane %v3904, 4
        %v3947 = vsel %vm3704, %v3946, %v3840
        %v3949 = vunpack.c.l.s4 1983009808
        %v3950 = vunpack.c.0.s8 %v3949
        %v3951 = vperm.slane %v3947, %v3950
        %v3952 = vrot.slane %v3951, 4
        %v3953 = vsel %vm3704, %v3952, %v3945
        %v3954 = vrot.slane %v3945, 4
        %v3955 = vsel %vm3704, %v3951, %v3954
        %v3957 = vunpack.c.l.s4 1934713408
        %v3958 = vunpack.c.0.s8 %v3957
        %v3959 = vperm.slane %v3953, %v3958
        %v3961 = vunpack.c.l.s4 1934713408
        %v3962 = vunpack.c.0.s8 %v3961
        %v3963 = vperm.slane %v3955, %v3962
        %v3964 = vrot.slane %v3959, 4
        %v3965 = vsel %vm3704, 0, %v3964
        %v3966 = vrot.slane %v3963, 4
        %v3967 = vsel %vm3704, 0, %v3966
        %v3970 = vpack.i.b16 %v3959, %v3931
        %v3972 = vshrl.u32 %v3931, 16
        %v3973 = vshrl.u32 %v3959, 16
        %v3974 = vpack.i.b16 %v3973, %v3972
        %v3978 = vpack.i.b16 %v3965, %v3937
        %v3980 = vshrl.u32 %v3937, 16
        %v3981 = vshrl.u32 %v3965, 16
        %v3982 = vpack.i.b16 %v3981, %v3980
        %v3986 = vpack.i.b16 %v3963, %v3935
        %v3988 = vshrl.u32 %v3935, 16
        %v3989 = vshrl.u32 %v3963, 16
        %v3990 = vpack.i.b16 %v3989, %v3988
        %v3994 = vpack.i.b16 %v3967, %v3939
        %v3996 = vshrl.u32 %v3939, 16
        %v3997 = vshrl.u32 %v3967, 16
        %v3998 = vpack.i.b16 %v3997, %v3996
        %4000 = vxpose.xlu0.c.b16.start [1/8] %v3970, 128
        %4001 = vxpose.xlu0.c.b16.cont [2/8] 0, 128
        %4002 = vxpose.xlu0.c.b16.cont [3/8] 0, 128
        %4003 = vxpose.xlu0.c.b16.cont [4/8] 0, 128
        %4004 = vxpose.xlu0.c.b16.cont [5/8] 0, 128
        %4005 = vxpose.xlu0.c.b16.cont [6/8] 0, 128
        %4006 = vxpose.xlu0.c.b16.cont [7/8] 0, 128
        %4007 = vxpose.xlu0.c.b16.end [8/8] 0, 128
        %v4008 = vpop.trf.xlu0
        %v4009 = vpop.trf.xlu0
        %v4010 = vpop.trf.xlu0
        %v4011 = vpop.trf.xlu0
        %v4012 = vpop.trf.xlu0
        %v4013 = vpop.trf.xlu0
        %v4014 = vpop.trf.xlu0
        %v4015 = vpop.trf.xlu0
        %4016 = vxpose.xlu0.c.b16.start [1/8] %v3974, 128
        %4017 = vxpose.xlu0.c.b16.cont [2/8] 0, 128
        %4018 = vxpose.xlu0.c.b16.cont [3/8] 0, 128
        %4019 = vxpose.xlu0.c.b16.cont [4/8] 0, 128
        %4020 = vxpose.xlu0.c.b16.cont [5/8] 0, 128
        %4021 = vxpose.xlu0.c.b16.cont [6/8] 0, 128
        %4022 = vxpose.xlu0.c.b16.cont [7/8] 0, 128
        %4023 = vxpose.xlu0.c.b16.end [8/8] 0, 128
        %v4024 = vpop.trf.xlu0
        %v4025 = vpop.trf.xlu0
        %v4026 = vpop.trf.xlu0
        %v4027 = vpop.trf.xlu0
        %v4028 = vpop.trf.xlu0
        %v4029 = vpop.trf.xlu0
        %v4030 = vpop.trf.xlu0
        %v4031 = vpop.trf.xlu0
        %4032 = vxpose.xlu0.c.b16.start [1/8] %v3978, 128
        %4033 = vxpose.xlu0.c.b16.cont [2/8] 0, 128
        %4034 = vxpose.xlu0.c.b16.cont [3/8] 0, 128
        %4035 = vxpose.xlu0.c.b16.cont [4/8] 0, 128
        %4036 = vxpose.xlu0.c.b16.cont [5/8] 0, 128
        %4037 = vxpose.xlu0.c.b16.cont [6/8] 0, 128
        %4038 = vxpose.xlu0.c.b16.cont [7/8] 0, 128
        %4039 = vxpose.xlu0.c.b16.end [8/8] 0, 128
        %v4040 = vpop.trf.xlu0
        %v4041 = vpop.trf.xlu0
        %v4042 = vpop.trf.xlu0
        %v4043 = vpop.trf.xlu0
        %v4044 = vpop.trf.xlu0
        %v4045 = vpop.trf.xlu0
        %v4046 = vpop.trf.xlu0
        %v4047 = vpop.trf.xlu0
        %4048 = vxpose.xlu0.c.b16.start [1/8] %v3982, 128
        %4049 = vxpose.xlu0.c.b16.cont [2/8] 0, 128
        %4050 = vxpose.xlu0.c.b16.cont [3/8] 0, 128
        %4051 = vxpose.xlu0.c.b16.cont [4/8] 0, 128
        %4052 = vxpose.xlu0.c.b16.cont [5/8] 0, 128
        %4053 = vxpose.xlu0.c.b16.cont [6/8] 0, 128
        %4054 = vxpose.xlu0.c.b16.cont [7/8] 0, 128
        %4055 = vxpose.xlu0.c.b16.end [8/8] 0, 128
        %v4056 = vpop.trf.xlu0
        %v4057 = vpop.trf.xlu0
        %v4058 = vpop.trf.xlu0
        %v4059 = vpop.trf.xlu0
        %v4060 = vpop.trf.xlu0
        %v4061 = vpop.trf.xlu0
        %v4062 = vpop.trf.xlu0
        %v4063 = vpop.trf.xlu0
        %4064 = vxpose.xlu0.c.b16.start [1/8] %v3986, 128
        %4065 = vxpose.xlu0.c.b16.cont [2/8] 0, 128
        %4066 = vxpose.xlu0.c.b16.cont [3/8] 0, 128
        %4067 = vxpose.xlu0.c.b16.cont [4/8] 0, 128
        %4068 = vxpose.xlu0.c.b16.cont [5/8] 0, 128
        %4069 = vxpose.xlu0.c.b16.cont [6/8] 0, 128
        %4070 = vxpose.xlu0.c.b16.cont [7/8] 0, 128
        %4071 = vxpose.xlu0.c.b16.end [8/8] 0, 128
        %v4072 = vpop.trf.xlu0
        %v4073 = vpop.trf.xlu0
        %v4074 = vpop.trf.xlu0
        %v4075 = vpop.trf.xlu0
        %v4076 = vpop.trf.xlu0
        %v4077 = vpop.trf.xlu0
        %v4078 = vpop.trf.xlu0
        %v4079 = vpop.trf.xlu0
        %4080 = vxpose.xlu0.c.b16.start [1/8] %v3990, 128
        %4081 = vxpose.xlu0.c.b16.cont [2/8] 0, 128
        %4082 = vxpose.xlu0.c.b16.cont [3/8] 0, 128
        %4083 = vxpose.xlu0.c.b16.cont [4/8] 0, 128
        %4084 = vxpose.xlu0.c.b16.cont [5/8] 0, 128
        %4085 = vxpose.xlu0.c.b16.cont [6/8] 0, 128
        %4086 = vxpose.xlu0.c.b16.cont [7/8] 0, 128
        %4087 = vxpose.xlu0.c.b16.end [8/8] 0, 128
        %v4088 = vpop.trf.xlu0
        %v4089 = vpop.trf.xlu0
        %v4090 = vpop.trf.xlu0
        %v4091 = vpop.trf.xlu0
        %v4092 = vpop.trf.xlu0
        %v4093 = vpop.trf.xlu0
        %v4094 = vpop.trf.xlu0
        %v4095 = vpop.trf.xlu0
        %4096 = vxpose.xlu0.c.b16.start [1/8] %v3994, 128
        %4097 = vxpose.xlu0.c.b16.cont [2/8] 0, 128
        %4098 = vxpose.xlu0.c.b16.cont [3/8] 0, 128
        %4099 = vxpose.xlu0.c.b16.cont [4/8] 0, 128
        %4100 = vxpose.xlu0.c.b16.cont [5/8] 0, 128
        %4101 = vxpose.xlu0.c.b16.cont [6/8] 0, 128
        %4102 = vxpose.xlu0.c.b16.cont [7/8] 0, 128
        %4103 = vxpose.xlu0.c.b16.end [8/8] 0, 128
        %v4104 = vpop.trf.xlu0
        %v4105 = vpop.trf.xlu0
        %v4106 = vpop.trf.xlu0
        %v4107 = vpop.trf.xlu0
        %v4108 = vpop.trf.xlu0
        %v4109 = vpop.trf.xlu0
        %v4110 = vpop.trf.xlu0
        %v4111 = vpop.trf.xlu0
        %4112 = vxpose.xlu0.c.b16.start [1/8] %v3998, 128
        %4113 = vxpose.xlu0.c.b16.cont [2/8] 0, 128
        %4114 = vxpose.xlu0.c.b16.cont [3/8] 0, 128
        %4115 = vxpose.xlu0.c.b16.cont [4/8] 0, 128
        %4116 = vxpose.xlu0.c.b16.cont [5/8] 0, 128
        %4117 = vxpose.xlu0.c.b16.cont [6/8] 0, 128
        %4118 = vxpose.xlu0.c.b16.cont [7/8] 0, 128
        %4119 = vxpose.xlu0.c.b16.end [8/8] 0, 128
        %v4120 = vpop.trf.xlu0
        %v4121 = vpop.trf.xlu0
        %v4122 = vpop.trf.xlu0
        %v4123 = vpop.trf.xlu0
        %v4124 = vpop.trf.xlu0
        %v4125 = vpop.trf.xlu0
        %v4126 = vpop.trf.xlu0
        %v4127 = vpop.trf.xlu0
        %v4128 = vrot.slane %v4072, 4
        %v4129 = vsel %vm3704, %v4128, %v4008
        %v4131 = vunpack.c.l.s4 1983009808
        %v4132 = vunpack.c.0.s8 %v4131
        %v4133 = vperm.slane %v4129, %v4132
        %v4134 = vrot.slane %v4104, 4
        %v4135 = vsel %vm3704, %v4134, %v4040
        %v4137 = vunpack.c.l.s4 1983009808
        %v4138 = vunpack.c.0.s8 %v4137
        %v4139 = vperm.slane %v4135, %v4138
        %v4140 = vrot.slane %v4139, 4
        %v4141 = vsel %vm3704, %v4140, %v4133
        %v4142 = vrot.slane %v4133, 4
        %v4143 = vsel %vm3704, %v4139, %v4142
        %v4145 = vunpack.c.l.s4 1934713408
        %v4146 = vunpack.c.0.s8 %v4145
        %v4147 = vperm.slane %v4141, %v4146
        %v4149 = vunpack.c.l.s4 1934713408
        %v4150 = vunpack.c.0.s8 %v4149
        %v4151 = vperm.slane %v4143, %v4150
        %v4152 = vrot.slane %v4147, 4
        %v4153 = vsel %vm3704, 0, %v4152
        %v4154 = vrot.slane %v4151, 4
        %v4155 = vsel %vm3704, 0, %v4154
        %v4156 = vrot.slane %v4088, 4
        %v4157 = vsel %vm3704, %v4156, %v4024
        %v4159 = vunpack.c.l.s4 1983009808
        %v4160 = vunpack.c.0.s8 %v4159
        %v4161 = vperm.slane %v4157, %v4160
        %v4162 = vrot.slane %v4120, 4
        %v4163 = vsel %vm3704, %v4162, %v4056
        %v4165 = vunpack.c.l.s4 1983009808
        %v4166 = vunpack.c.0.s8 %v4165
        %v4167 = vperm.slane %v4163, %v4166
        %v4168 = vrot.slane %v4167, 4
        %v4169 = vsel %vm3704, %v4168, %v4161
        %v4170 = vrot.slane %v4161, 4
        %v4171 = vsel %vm3704, %v4167, %v4170
        %v4173 = vunpack.c.l.s4 1934713408
        %v4174 = vunpack.c.0.s8 %v4173
        %v4175 = vperm.slane %v4169, %v4174
        %v4177 = vunpack.c.l.s4 1934713408
        %v4178 = vunpack.c.0.s8 %v4177
        %v4179 = vperm.slane %v4171, %v4178
        %v4180 = vrot.slane %v4175, 4
        %v4181 = vsel %vm3704, 0, %v4180
        %v4182 = vrot.slane %v4179, 4
        %v4183 = vsel %vm3704, 0, %v4182
        %v4186 = vpack.i.b16 %v4175, %v4147
        %v4187 = vshrl.u32 %v4147, 16
        %v4188 = vshrl.u32 %v4175, 16
        %v4189 = vpack.i.b16 %v4188, %v4187
        %v4192 = vpack.i.b16 %v4181, %v4153
        %v4193 = vshrl.u32 %v4153, 16
        %v4194 = vshrl.u32 %v4181, 16
        %v4195 = vpack.i.b16 %v4194, %v4193
        %v4198 = vpack.i.b16 %v4179, %v4151
        %v4199 = vshrl.u32 %v4151, 16
        %v4200 = vshrl.u32 %v4179, 16
        %v4201 = vpack.i.b16 %v4200, %v4199
        %v4204 = vpack.i.b16 %v4183, %v4155
        %v4205 = vshrl.u32 %v4155, 16
        %v4206 = vshrl.u32 %v4183, 16
        %v4207 = vpack.i.b16 %v4206, %v4205
        %vm4208 = vcmask 64512
        %v4210 = vsel %vm4208, %v3762, 0
        %v4213 = vsel %vm1541, %v4186, 0
        %4215 = vmatpush.bf16.msra.mxu0 0
        %4216 = vmatpush.bf16.msra.mxu0 0
        %4217 = vmatpush.bf16.msra.mxu0 0
        %4218 = vmatpush.bf16.msra.mxu0 0
        %4219 = vmatpush.bf16.msra.mxu0 0
        %4220 = vmatpush.bf16.msra.mxu0 0
        %4221 = vmatpush.bf16.msra.mxu0 0
        %4222 = vmatpush.bf16.msra.mxu0 %v4213
        %4223 = vmatmul.bf16.gmra.mxu0 %v4210
        %v4224 = vpop.f32.mrf.mxu0
        %v4225 = vadd.f32 0.0, %v4224
        %v4226 = vpop.f32.mrf.mxu0
        %4227 = vdwg.mxu0
        %v4229 = vsel %vm4208, %v3765, 0
        %v4232 = vsel %vm1541, %v4189, 0
        %4234 = vmatpush.bf16.msra.mxu0 0
        %4235 = vmatpush.bf16.msra.mxu0 0
        %4236 = vmatpush.bf16.msra.mxu0 0
        %4237 = vmatpush.bf16.msra.mxu0 0
        %4238 = vmatpush.bf16.msra.mxu0 0
        %4239 = vmatpush.bf16.msra.mxu0 0
        %4240 = vmatpush.bf16.msra.mxu0 0
        %4241 = vmatpush.bf16.msra.mxu0 %v4232
        %4242 = vmatmul.bf16.gmra.mxu0 %v4229
        %v4243 = vpop.f32.mrf.mxu0
        %v4244 = vadd.f32 0.0, %v4243
        %v4245 = vpop.f32.mrf.mxu0
        %4246 = vdwg.mxu0
        %v4248 = vsel %vm4208, %v3768, 0
        %v4251 = vsel %vm1541, %v4192, 0
        %4253 = vmatpush.bf16.msra.mxu0 0
        %4254 = vmatpush.bf16.msra.mxu0 0
        %4255 = vmatpush.bf16.msra.mxu0 0
        %4256 = vmatpush.bf16.msra.mxu0 0
        %4257 = vmatpush.bf16.msra.mxu0 0
        %4258 = vmatpush.bf16.msra.mxu0 0
        %4259 = vmatpush.bf16.msra.mxu0 0
        %4260 = vmatpush.bf16.msra.mxu0 %v4251
        %4261 = vmatmul.bf16.gmra.mxu0 %v4248
        %v4262 = vpop.f32.mrf.mxu0
        %v4263 = vadd.f32 0.0, %v4262
        %v4264 = vpop.f32.mrf.mxu0
        %4265 = vdwg.mxu0
        %v4267 = vsel %vm4208, %v3771, 0
        %v4270 = vsel %vm1541, %v4195, 0
        %4272 = vmatpush.bf16.msra.mxu0 0
        %4273 = vmatpush.bf16.msra.mxu0 0
        %4274 = vmatpush.bf16.msra.mxu0 0
        %4275 = vmatpush.bf16.msra.mxu0 0
        %4276 = vmatpush.bf16.msra.mxu0 0
        %4277 = vmatpush.bf16.msra.mxu0 0
        %4278 = vmatpush.bf16.msra.mxu0 0
        %4279 = vmatpush.bf16.msra.mxu0 %v4270
        %4280 = vmatmul.bf16.gmra.mxu0 %v4267
        %v4281 = vpop.f32.mrf.mxu0
        %v4282 = vadd.f32 0.0, %v4281
        %v4283 = vpop.f32.mrf.mxu0
        %4284 = vdwg.mxu0
        %v4286 = vsel %vm4208, %v3774, 0
        %v4289 = vsel %vm1541, %v4198, 0
        %4291 = vmatpush.bf16.msra.mxu0 0
        %4292 = vmatpush.bf16.msra.mxu0 0
        %4293 = vmatpush.bf16.msra.mxu0 0
        %4294 = vmatpush.bf16.msra.mxu0 0
        %4295 = vmatpush.bf16.msra.mxu0 0
        %4296 = vmatpush.bf16.msra.mxu0 0
        %4297 = vmatpush.bf16.msra.mxu0 0
        %4298 = vmatpush.bf16.msra.mxu0 %v4289
        %4299 = vmatmul.bf16.gmra.mxu0 %v4286
        %v4300 = vpop.f32.mrf.mxu0
        %v4301 = vadd.f32 0.0, %v4300
        %v4302 = vpop.f32.mrf.mxu0
        %4303 = vdwg.mxu0
        %v4305 = vsel %vm4208, %v3777, 0
        %v4308 = vsel %vm1541, %v4201, 0
        %4310 = vmatpush.bf16.msra.mxu0 0
        %4311 = vmatpush.bf16.msra.mxu0 0
        %4312 = vmatpush.bf16.msra.mxu0 0
        %4313 = vmatpush.bf16.msra.mxu0 0
        %4314 = vmatpush.bf16.msra.mxu0 0
        %4315 = vmatpush.bf16.msra.mxu0 0
        %4316 = vmatpush.bf16.msra.mxu0 0
        %4317 = vmatpush.bf16.msra.mxu0 %v4308
        %4318 = vmatmul.bf16.gmra.mxu0 %v4305
        %v4319 = vpop.f32.mrf.mxu0
        %v4320 = vadd.f32 0.0, %v4319
        %v4321 = vpop.f32.mrf.mxu0
        %4322 = vdwg.mxu0
        %v4324 = vsel %vm4208, %v3780, 0
        %v4327 = vsel %vm1541, %v4204, 0
        %4329 = vmatpush.bf16.msra.mxu0 0
        %4330 = vmatpush.bf16.msra.mxu0 0
        %4331 = vmatpush.bf16.msra.mxu0 0
        %4332 = vmatpush.bf16.msra.mxu0 0
        %4333 = vmatpush.bf16.msra.mxu0 0
        %4334 = vmatpush.bf16.msra.mxu0 0
        %4335 = vmatpush.bf16.msra.mxu0 0
        %4336 = vmatpush.bf16.msra.mxu0 %v4327
        %4337 = vmatmul.bf16.gmra.mxu0 %v4324
        %v4338 = vpop.f32.mrf.mxu0
        %v4339 = vadd.f32 0.0, %v4338
        %v4340 = vpop.f32.mrf.mxu0
        %4341 = vdwg.mxu0
        %v4343 = vsel %vm4208, %v3783, 0
        %v4346 = vsel %vm1541, %v4207, 0
        %4348 = vmatpush.bf16.msra.mxu0 0
        %4349 = vmatpush.bf16.msra.mxu0 0
        %4350 = vmatpush.bf16.msra.mxu0 0
        %4351 = vmatpush.bf16.msra.mxu0 0
        %4352 = vmatpush.bf16.msra.mxu0 0
        %4353 = vmatpush.bf16.msra.mxu0 0
        %4354 = vmatpush.bf16.msra.mxu0 0
        %4355 = vmatpush.bf16.msra.mxu0 %v4346
        %4356 = vmatmul.bf16.gmra.mxu0 %v4343
        %v4357 = vpop.f32.mrf.mxu0
        %v4358 = vadd.f32 0.0, %v4357
        %v4359 = vpop.f32.mrf.mxu0
        %4360 = vdwg.mxu0
        %v4361 = vsel %vm4208, %v4225, -inf
        %4362 = vmax.xlane.f32.xlu0 %v4361
        %v4363 = vpop.xlane.xlu0 %4362
        %v4364 = vsel %vm4208, %v4244, -inf
        %4365 = vmax.xlane.f32.xlu0 %v4364
        %v4366 = vpop.xlane.xlu0 %4365
        %v4367 = vsel %vm4208, %v4263, -inf
        %4368 = vmax.xlane.f32.xlu0 %v4367
        %v4369 = vpop.xlane.xlu0 %4368
        %v4370 = vsel %vm4208, %v4282, -inf
        %4371 = vmax.xlane.f32.xlu0 %v4370
        %v4372 = vpop.xlane.xlu0 %4371
        %v4373 = vsel %vm4208, %v4301, -inf
        %4374 = vmax.xlane.f32.xlu0 %v4373
        %v4375 = vpop.xlane.xlu0 %4374
        %v4376 = vsel %vm4208, %v4320, -inf
        %4377 = vmax.xlane.f32.xlu0 %v4376
        %v4378 = vpop.xlane.xlu0 %4377
        %v4379 = vsel %vm4208, %v4339, -inf
        %4380 = vmax.xlane.f32.xlu0 %v4379
        %v4381 = vpop.xlane.xlu0 %4380
        %v4382 = vsel %vm4208, %v4358, -inf
        %4383 = vmax.xlane.f32.xlu0 %v4382
        %v4384 = vpop.xlane.xlu0 %4383
        %v4385 = vsub.f32 %v4225, %v4363
        %v4386 = vsub.f32 %v4244, %v4366
        %v4387 = vsub.f32 %v4263, %v4369
        %v4388 = vsub.f32 %v4282, %v4372
        %v4389 = vsub.f32 %v4301, %v4375
        %v4390 = vsub.f32 %v4320, %v4378
        %v4391 = vsub.f32 %v4339, %v4381
        %v4392 = vsub.f32 %v4358, %v4384
        %v4393 = vmul.f32 %v4385, 1.442695
        %v4394 = vpow.pop %v4393
        %v4395 = vmul.f32 %v4386, 1.442695
        %v4396 = vpow.pop %v4395
        %v4397 = vmul.f32 %v4387, 1.442695
        %v4398 = vpow.pop %v4397
        %v4399 = vmul.f32 %v4388, 1.442695
        %v4400 = vpow.pop %v4399
        %v4401 = vmul.f32 %v4389, 1.442695
        %v4402 = vpow.pop %v4401
        %v4403 = vmul.f32 %v4390, 1.442695
        %v4404 = vpow.pop %v4403
        %v4405 = vmul.f32 %v4391, 1.442695
        %v4406 = vpow.pop %v4405
        %v4407 = vmul.f32 %v4392, 1.442695
        %v4408 = vpow.pop %v4407
        %v4409 = vsel %vm4208, %v4394, 0.0
        %4410 = vadd.xlane.f32.xlu0 %v4409
        %v4411 = vpop.xlane.xlu0 %4410
        %v4412 = vsel %vm4208, %v4396, 0.0
        %4413 = vadd.xlane.f32.xlu0 %v4412
        %v4414 = vpop.xlane.xlu0 %4413
        %v4415 = vsel %vm4208, %v4398, 0.0
        %4416 = vadd.xlane.f32.xlu0 %v4415
        %v4417 = vpop.xlane.xlu0 %4416
        %v4418 = vsel %vm4208, %v4400, 0.0
        %4419 = vadd.xlane.f32.xlu0 %v4418
        %v4420 = vpop.xlane.xlu0 %4419
        %v4421 = vsel %vm4208, %v4402, 0.0
        %4422 = vadd.xlane.f32.xlu0 %v4421
        %v4423 = vpop.xlane.xlu0 %4422
        %v4424 = vsel %vm4208, %v4404, 0.0
        %4425 = vadd.xlane.f32.xlu0 %v4424
        %v4426 = vpop.xlane.xlu0 %4425
        %v4427 = vsel %vm4208, %v4406, 0.0
        %4428 = vadd.xlane.f32.xlu0 %v4427
        %v4429 = vpop.xlane.xlu0 %4428
        %v4430 = vsel %vm4208, %v4408, 0.0
        %4431 = vadd.xlane.f32.xlu0 %v4430
        %v4432 = vpop.xlane.xlu0 %4431
        %v4433 = vrcp.pop %v4411
        %v4434 = vrcp.pop %v4414
        %v4435 = vrcp.pop %v4417
        %v4436 = vrcp.pop %v4420
        %v4437 = vrcp.pop %v4423
        %v4438 = vrcp.pop %v4426
        %v4439 = vrcp.pop %v4429
        %v4440 = vrcp.pop %v4432
        %v4441 = vmul.f32 %v4394, %v4433
        %v4442 = vmul.f32 %v4396, %v4434
        %v4443 = vmul.f32 %v4398, %v4435
        %v4444 = vmul.f32 %v4400, %v4436
        %v4445 = vmul.f32 %v4402, %v4437
        %v4446 = vmul.f32 %v4404, %v4438
        %v4447 = vmul.f32 %v4406, %v4439
        %v4448 = vmul.f32 %v4408, %v4440
        %v4449 = vpack.c.bf16 %v4441, %v4441
        %v4450 = vpack.c.bf16 %v4442, %v4442
        %v4451 = vpack.c.bf16 %v4443, %v4443
        %v4452 = vpack.c.bf16 %v4444, %v4444
        %v4453 = vpack.c.bf16 %v4445, %v4445
        %v4454 = vpack.c.bf16 %v4446, %v4446
        %v4455 = vpack.c.bf16 %v4447, %v4447
        %v4456 = vpack.c.bf16 %v4448, %v4448
        %v4457 = vpack.c.bf16 %v3672, %v3672
        %v4458 = vpack.c.bf16 %v3674, %v3674
        %v4459 = vpack.c.bf16 %v3676, %v3676
        %v4460 = vpack.c.bf16 %v3678, %v3678
        %v4461 = vpack.c.bf16 %v3680, %v3680
        %v4462 = vpack.c.bf16 %v3682, %v3682
        %v4463 = vpack.c.bf16 %v3684, %v3684
        %v4464 = vpack.c.bf16 %v3686, %v3686
        %4465 = vxpose.xlu0.c.b16.start [1/8] %v4457, 128
        %4466 = vxpose.xlu0.c.b16.cont [2/8] 0, 128
        %4467 = vxpose.xlu0.c.b16.cont [3/8] 0, 128
        %4468 = vxpose.xlu0.c.b16.cont [4/8] 0, 128
        %4469 = vxpose.xlu0.c.b16.cont [5/8] 0, 128
        %4470 = vxpose.xlu0.c.b16.cont [6/8] 0, 128
        %4471 = vxpose.xlu0.c.b16.cont [7/8] 0, 128
        %4472 = vxpose.xlu0.c.b16.end [8/8] 0, 128
        %v4473 = vpop.trf.xlu0
        %v4474 = vpop.trf.xlu0
        %v4475 = vpop.trf.xlu0
        %v4476 = vpop.trf.xlu0
        %v4477 = vpop.trf.xlu0
        %v4478 = vpop.trf.xlu0
        %v4479 = vpop.trf.xlu0
        %v4480 = vpop.trf.xlu0
        %4481 = vxpose.xlu0.c.b16.start [1/8] %v4458, 128
        %4482 = vxpose.xlu0.c.b16.cont [2/8] 0, 128
        %4483 = vxpose.xlu0.c.b16.cont [3/8] 0, 128
        %4484 = vxpose.xlu0.c.b16.cont [4/8] 0, 128
        %4485 = vxpose.xlu0.c.b16.cont [5/8] 0, 128
        %4486 = vxpose.xlu0.c.b16.cont [6/8] 0, 128
        %4487 = vxpose.xlu0.c.b16.cont [7/8] 0, 128
        %4488 = vxpose.xlu0.c.b16.end [8/8] 0, 128
        %v4489 = vpop.trf.xlu0
        %v4490 = vpop.trf.xlu0
        %v4491 = vpop.trf.xlu0
        %v4492 = vpop.trf.xlu0
        %v4493 = vpop.trf.xlu0
        %v4494 = vpop.trf.xlu0
        %v4495 = vpop.trf.xlu0
        %v4496 = vpop.trf.xlu0
        %4497 = vxpose.xlu0.c.b16.start [1/8] %v4459, 128
        %4498 = vxpose.xlu0.c.b16.cont [2/8] 0, 128
        %4499 = vxpose.xlu0.c.b16.cont [3/8] 0, 128
        %4500 = vxpose.xlu0.c.b16.cont [4/8] 0, 128
        %4501 = vxpose.xlu0.c.b16.cont [5/8] 0, 128
        %4502 = vxpose.xlu0.c.b16.cont [6/8] 0, 128
        %4503 = vxpose.xlu0.c.b16.cont [7/8] 0, 128
        %4504 = vxpose.xlu0.c.b16.end [8/8] 0, 128
        %v4505 = vpop.trf.xlu0
        %v4506 = vpop.trf.xlu0
        %v4507 = vpop.trf.xlu0
        %v4508 = vpop.trf.xlu0
        %v4509 = vpop.trf.xlu0
        %v4510 = vpop.trf.xlu0
        %v4511 = vpop.trf.xlu0
        %v4512 = vpop.trf.xlu0
        %4513 = vxpose.xlu0.c.b16.start [1/8] %v4460, 128
        %4514 = vxpose.xlu0.c.b16.cont [2/8] 0, 128
        %4515 = vxpose.xlu0.c.b16.cont [3/8] 0, 128
        %4516 = vxpose.xlu0.c.b16.cont [4/8] 0, 128
        %4517 = vxpose.xlu0.c.b16.cont [5/8] 0, 128
        %4518 = vxpose.xlu0.c.b16.cont [6/8] 0, 128
        %4519 = vxpose.xlu0.c.b16.cont [7/8] 0, 128
        %4520 = vxpose.xlu0.c.b16.end [8/8] 0, 128
        %v4521 = vpop.trf.xlu0
        %v4522 = vpop.trf.xlu0
        %v4523 = vpop.trf.xlu0
        %v4524 = vpop.trf.xlu0
        %v4525 = vpop.trf.xlu0
        %v4526 = vpop.trf.xlu0
        %v4527 = vpop.trf.xlu0
        %v4528 = vpop.trf.xlu0
        %4529 = vxpose.xlu0.c.b16.start [1/8] %v4461, 128
        %4530 = vxpose.xlu0.c.b16.cont [2/8] 0, 128
        %4531 = vxpose.xlu0.c.b16.cont [3/8] 0, 128
        %4532 = vxpose.xlu0.c.b16.cont [4/8] 0, 128
        %4533 = vxpose.xlu0.c.b16.cont [5/8] 0, 128
        %4534 = vxpose.xlu0.c.b16.cont [6/8] 0, 128
        %4535 = vxpose.xlu0.c.b16.cont [7/8] 0, 128
        %4536 = vxpose.xlu0.c.b16.end [8/8] 0, 128
        %v4537 = vpop.trf.xlu0
        %v4538 = vpop.trf.xlu0
        %v4539 = vpop.trf.xlu0
        %v4540 = vpop.trf.xlu0
        %v4541 = vpop.trf.xlu0
        %v4542 = vpop.trf.xlu0
        %v4543 = vpop.trf.xlu0
        %v4544 = vpop.trf.xlu0
        %4545 = vxpose.xlu0.c.b16.start [1/8] %v4462, 128
        %4546 = vxpose.xlu0.c.b16.cont [2/8] 0, 128
        %4547 = vxpose.xlu0.c.b16.cont [3/8] 0, 128
        %4548 = vxpose.xlu0.c.b16.cont [4/8] 0, 128
        %4549 = vxpose.xlu0.c.b16.cont [5/8] 0, 128
        %4550 = vxpose.xlu0.c.b16.cont [6/8] 0, 128
        %4551 = vxpose.xlu0.c.b16.cont [7/8] 0, 128
        %4552 = vxpose.xlu0.c.b16.end [8/8] 0, 128
        %v4553 = vpop.trf.xlu0
        %v4554 = vpop.trf.xlu0
        %v4555 = vpop.trf.xlu0
        %v4556 = vpop.trf.xlu0
        %v4557 = vpop.trf.xlu0
        %v4558 = vpop.trf.xlu0
        %v4559 = vpop.trf.xlu0
        %v4560 = vpop.trf.xlu0
        %4561 = vxpose.xlu0.c.b16.start [1/8] %v4463, 128
        %4562 = vxpose.xlu0.c.b16.cont [2/8] 0, 128
        %4563 = vxpose.xlu0.c.b16.cont [3/8] 0, 128
        %4564 = vxpose.xlu0.c.b16.cont [4/8] 0, 128
        %4565 = vxpose.xlu0.c.b16.cont [5/8] 0, 128
        %4566 = vxpose.xlu0.c.b16.cont [6/8] 0, 128
        %4567 = vxpose.xlu0.c.b16.cont [7/8] 0, 128
        %4568 = vxpose.xlu0.c.b16.end [8/8] 0, 128
        %v4569 = vpop.trf.xlu0
        %v4570 = vpop.trf.xlu0
        %v4571 = vpop.trf.xlu0
        %v4572 = vpop.trf.xlu0
        %v4573 = vpop.trf.xlu0
        %v4574 = vpop.trf.xlu0
        %v4575 = vpop.trf.xlu0
        %v4576 = vpop.trf.xlu0
        %4577 = vxpose.xlu0.c.b16.start [1/8] %v4464, 128
        %4578 = vxpose.xlu0.c.b16.cont [2/8] 0, 128
        %4579 = vxpose.xlu0.c.b16.cont [3/8] 0, 128
        %4580 = vxpose.xlu0.c.b16.cont [4/8] 0, 128
        %4581 = vxpose.xlu0.c.b16.cont [5/8] 0, 128
        %4582 = vxpose.xlu0.c.b16.cont [6/8] 0, 128
        %4583 = vxpose.xlu0.c.b16.cont [7/8] 0, 128
        %4584 = vxpose.xlu0.c.b16.end [8/8] 0, 128
        %v4585 = vpop.trf.xlu0
        %v4586 = vpop.trf.xlu0
        %v4587 = vpop.trf.xlu0
        %v4588 = vpop.trf.xlu0
        %v4589 = vpop.trf.xlu0
        %v4590 = vpop.trf.xlu0
        %v4591 = vpop.trf.xlu0
        %v4592 = vpop.trf.xlu0
        %v4593 = vrot.slane %v4537, 4
        %v4594 = vsel %vm3704, %v4593, %v4473
        %v4596 = vunpack.c.l.s4 1983009808
        %v4597 = vunpack.c.0.s8 %v4596
        %v4598 = vperm.slane %v4594, %v4597
        %v4599 = vrot.slane %v4569, 4
        %v4600 = vsel %vm3704, %v4599, %v4505
        %v4602 = vunpack.c.l.s4 1983009808
        %v4603 = vunpack.c.0.s8 %v4602
        %v4604 = vperm.slane %v4600, %v4603
        %v4605 = vrot.slane %v4604, 4
        %v4606 = vsel %vm3704, %v4605, %v4598
        %v4607 = vrot.slane %v4598, 4
        %v4608 = vsel %vm3704, %v4604, %v4607
        %v4610 = vunpack.c.l.s4 1934713408
        %v4611 = vunpack.c.0.s8 %v4610
        %v4612 = vperm.slane %v4606, %v4611
        %v4614 = vunpack.c.l.s4 1934713408
        %v4615 = vunpack.c.0.s8 %v4614
        %v4616 = vperm.slane %v4608, %v4615
        %v4617 = vrot.slane %v4612, 4
        %v4618 = vsel %vm3704, 0, %v4617
        %v4619 = vrot.slane %v4616, 4
        %v4620 = vsel %vm3704, 0, %v4619
        %v4621 = vrot.slane %v4553, 4
        %v4622 = vsel %vm3704, %v4621, %v4489
        %v4624 = vunpack.c.l.s4 1983009808
        %v4625 = vunpack.c.0.s8 %v4624
        %v4626 = vperm.slane %v4622, %v4625
        %v4627 = vrot.slane %v4585, 4
        %v4628 = vsel %vm3704, %v4627, %v4521
        %v4630 = vunpack.c.l.s4 1983009808
        %v4631 = vunpack.c.0.s8 %v4630
        %v4632 = vperm.slane %v4628, %v4631
        %v4633 = vrot.slane %v4632, 4
        %v4634 = vsel %vm3704, %v4633, %v4626
        %v4635 = vrot.slane %v4626, 4
        %v4636 = vsel %vm3704, %v4632, %v4635
        %v4638 = vunpack.c.l.s4 1934713408
        %v4639 = vunpack.c.0.s8 %v4638
        %v4640 = vperm.slane %v4634, %v4639
        %v4642 = vunpack.c.l.s4 1934713408
        %v4643 = vunpack.c.0.s8 %v4642
        %v4644 = vperm.slane %v4636, %v4643
        %v4645 = vrot.slane %v4640, 4
        %v4646 = vsel %vm3704, 0, %v4645
        %v4647 = vrot.slane %v4644, 4
        %v4648 = vsel %vm3704, 0, %v4647
        %v4651 = vpack.i.b16 %v4640, %v4612
        %v4653 = vshrl.u32 %v4612, 16
        %v4654 = vshrl.u32 %v4640, 16
        %v4655 = vpack.i.b16 %v4654, %v4653
        %v4659 = vpack.i.b16 %v4646, %v4618
        %v4661 = vshrl.u32 %v4618, 16
        %v4662 = vshrl.u32 %v4646, 16
        %v4663 = vpack.i.b16 %v4662, %v4661
        %v4667 = vpack.i.b16 %v4644, %v4616
        %v4669 = vshrl.u32 %v4616, 16
        %v4670 = vshrl.u32 %v4644, 16
        %v4671 = vpack.i.b16 %v4670, %v4669
        %v4675 = vpack.i.b16 %v4648, %v4620
        %v4677 = vshrl.u32 %v4620, 16
        %v4678 = vshrl.u32 %v4648, 16
        %v4679 = vpack.i.b16 %v4678, %v4677
        %4681 = vxpose.xlu0.c.b16.start [1/8] %v4651, 128
        %4682 = vxpose.xlu0.c.b16.cont [2/8] 0, 128
        %4683 = vxpose.xlu0.c.b16.cont [3/8] 0, 128
        %4684 = vxpose.xlu0.c.b16.cont [4/8] 0, 128
        %4685 = vxpose.xlu0.c.b16.cont [5/8] 0, 128
        %4686 = vxpose.xlu0.c.b16.cont [6/8] 0, 128
        %4687 = vxpose.xlu0.c.b16.cont [7/8] 0, 128
        %4688 = vxpose.xlu0.c.b16.end [8/8] 0, 128
        %v4689 = vpop.trf.xlu0
        %v4690 = vpop.trf.xlu0
        %v4691 = vpop.trf.xlu0
        %v4692 = vpop.trf.xlu0
        %v4693 = vpop.trf.xlu0
        %v4694 = vpop.trf.xlu0
        %v4695 = vpop.trf.xlu0
        %v4696 = vpop.trf.xlu0
        %4697 = vxpose.xlu0.c.b16.start [1/8] %v4655, 128
        %4698 = vxpose.xlu0.c.b16.cont [2/8] 0, 128
        %4699 = vxpose.xlu0.c.b16.cont [3/8] 0, 128
        %4700 = vxpose.xlu0.c.b16.cont [4/8] 0, 128
        %4701 = vxpose.xlu0.c.b16.cont [5/8] 0, 128
        %4702 = vxpose.xlu0.c.b16.cont [6/8] 0, 128
        %4703 = vxpose.xlu0.c.b16.cont [7/8] 0, 128
        %4704 = vxpose.xlu0.c.b16.end [8/8] 0, 128
        %v4705 = vpop.trf.xlu0
        %v4706 = vpop.trf.xlu0
        %v4707 = vpop.trf.xlu0
        %v4708 = vpop.trf.xlu0
        %v4709 = vpop.trf.xlu0
        %v4710 = vpop.trf.xlu0
        %v4711 = vpop.trf.xlu0
        %v4712 = vpop.trf.xlu0
        %4713 = vxpose.xlu0.c.b16.start [1/8] %v4659, 128
        %4714 = vxpose.xlu0.c.b16.cont [2/8] 0, 128
        %4715 = vxpose.xlu0.c.b16.cont [3/8] 0, 128
        %4716 = vxpose.xlu0.c.b16.cont [4/8] 0, 128
        %4717 = vxpose.xlu0.c.b16.cont [5/8] 0, 128
        %4718 = vxpose.xlu0.c.b16.cont [6/8] 0, 128
        %4719 = vxpose.xlu0.c.b16.cont [7/8] 0, 128
        %4720 = vxpose.xlu0.c.b16.end [8/8] 0, 128
        %v4721 = vpop.trf.xlu0
        %v4722 = vpop.trf.xlu0
        %v4723 = vpop.trf.xlu0
        %v4724 = vpop.trf.xlu0
        %v4725 = vpop.trf.xlu0
        %v4726 = vpop.trf.xlu0
        %v4727 = vpop.trf.xlu0
        %v4728 = vpop.trf.xlu0
        %4729 = vxpose.xlu0.c.b16.start [1/8] %v4663, 128
        %4730 = vxpose.xlu0.c.b16.cont [2/8] 0, 128
        %4731 = vxpose.xlu0.c.b16.cont [3/8] 0, 128
        %4732 = vxpose.xlu0.c.b16.cont [4/8] 0, 128
        %4733 = vxpose.xlu0.c.b16.cont [5/8] 0, 128
        %4734 = vxpose.xlu0.c.b16.cont [6/8] 0, 128
        %4735 = vxpose.xlu0.c.b16.cont [7/8] 0, 128
        %4736 = vxpose.xlu0.c.b16.end [8/8] 0, 128
        %v4737 = vpop.trf.xlu0
        %v4738 = vpop.trf.xlu0
        %v4739 = vpop.trf.xlu0
        %v4740 = vpop.trf.xlu0
        %v4741 = vpop.trf.xlu0
        %v4742 = vpop.trf.xlu0
        %v4743 = vpop.trf.xlu0
        %v4744 = vpop.trf.xlu0
        %4745 = vxpose.xlu0.c.b16.start [1/8] %v4667, 128
        %4746 = vxpose.xlu0.c.b16.cont [2/8] 0, 128
        %4747 = vxpose.xlu0.c.b16.cont [3/8] 0, 128
        %4748 = vxpose.xlu0.c.b16.cont [4/8] 0, 128
        %4749 = vxpose.xlu0.c.b16.cont [5/8] 0, 128
        %4750 = vxpose.xlu0.c.b16.cont [6/8] 0, 128
        %4751 = vxpose.xlu0.c.b16.cont [7/8] 0, 128
        %4752 = vxpose.xlu0.c.b16.end [8/8] 0, 128
        %v4753 = vpop.trf.xlu0
        %v4754 = vpop.trf.xlu0
        %v4755 = vpop.trf.xlu0
        %v4756 = vpop.trf.xlu0
        %v4757 = vpop.trf.xlu0
        %v4758 = vpop.trf.xlu0
        %v4759 = vpop.trf.xlu0
        %v4760 = vpop.trf.xlu0
        %4761 = vxpose.xlu0.c.b16.start [1/8] %v4671, 128
        %4762 = vxpose.xlu0.c.b16.cont [2/8] 0, 128
        %4763 = vxpose.xlu0.c.b16.cont [3/8] 0, 128
        %4764 = vxpose.xlu0.c.b16.cont [4/8] 0, 128
        %4765 = vxpose.xlu0.c.b16.cont [5/8] 0, 128
        %4766 = vxpose.xlu0.c.b16.cont [6/8] 0, 128
        %4767 = vxpose.xlu0.c.b16.cont [7/8] 0, 128
        %4768 = vxpose.xlu0.c.b16.end [8/8] 0, 128
        %v4769 = vpop.trf.xlu0
        %v4770 = vpop.trf.xlu0
        %v4771 = vpop.trf.xlu0
        %v4772 = vpop.trf.xlu0
        %v4773 = vpop.trf.xlu0
        %v4774 = vpop.trf.xlu0
        %v4775 = vpop.trf.xlu0
        %v4776 = vpop.trf.xlu0
        %4777 = vxpose.xlu0.c.b16.start [1/8] %v4675, 128
        %4778 = vxpose.xlu0.c.b16.cont [2/8] 0, 128
        %4779 = vxpose.xlu0.c.b16.cont [3/8] 0, 128
        %4780 = vxpose.xlu0.c.b16.cont [4/8] 0, 128
        %4781 = vxpose.xlu0.c.b16.cont [5/8] 0, 128
        %4782 = vxpose.xlu0.c.b16.cont [6/8] 0, 128
        %4783 = vxpose.xlu0.c.b16.cont [7/8] 0, 128
        %4784 = vxpose.xlu0.c.b16.end [8/8] 0, 128
        %v4785 = vpop.trf.xlu0
        %v4786 = vpop.trf.xlu0
        %v4787 = vpop.trf.xlu0
        %v4788 = vpop.trf.xlu0
        %v4789 = vpop.trf.xlu0
        %v4790 = vpop.trf.xlu0
        %v4791 = vpop.trf.xlu0
        %v4792 = vpop.trf.xlu0
        %4793 = vxpose.xlu0.c.b16.start [1/8] %v4679, 128
        %4794 = vxpose.xlu0.c.b16.cont [2/8] 0, 128
        %4795 = vxpose.xlu0.c.b16.cont [3/8] 0, 128
        %4796 = vxpose.xlu0.c.b16.cont [4/8] 0, 128
        %4797 = vxpose.xlu0.c.b16.cont [5/8] 0, 128
        %4798 = vxpose.xlu0.c.b16.cont [6/8] 0, 128
        %4799 = vxpose.xlu0.c.b16.cont [7/8] 0, 128
        %4800 = vxpose.xlu0.c.b16.end [8/8] 0, 128
        %v4801 = vpop.trf.xlu0
        %v4802 = vpop.trf.xlu0
        %v4803 = vpop.trf.xlu0
        %v4804 = vpop.trf.xlu0
        %v4805 = vpop.trf.xlu0
        %v4806 = vpop.trf.xlu0
        %v4807 = vpop.trf.xlu0
        %v4808 = vpop.trf.xlu0
        %v4809 = vrot.slane %v4753, 4
        %v4810 = vsel %vm3704, %v4809, %v4689
        %v4812 = vunpack.c.l.s4 1983009808
        %v4813 = vunpack.c.0.s8 %v4812
        %v4814 = vperm.slane %v4810, %v4813
        %v4815 = vrot.slane %v4785, 4
        %v4816 = vsel %vm3704, %v4815, %v4721
        %v4818 = vunpack.c.l.s4 1983009808
        %v4819 = vunpack.c.0.s8 %v4818
        %v4820 = vperm.slane %v4816, %v4819
        %v4821 = vrot.slane %v4820, 4
        %v4822 = vsel %vm3704, %v4821, %v4814
        %v4823 = vrot.slane %v4814, 4
        %v4824 = vsel %vm3704, %v4820, %v4823
        %v4826 = vunpack.c.l.s4 1934713408
        %v4827 = vunpack.c.0.s8 %v4826
        %v4828 = vperm.slane %v4822, %v4827
        %v4830 = vunpack.c.l.s4 1934713408
        %v4831 = vunpack.c.0.s8 %v4830
        %v4832 = vperm.slane %v4824, %v4831
        %v4833 = vrot.slane %v4828, 4
        %v4834 = vsel %vm3704, 0, %v4833
        %v4835 = vrot.slane %v4832, 4
        %v4836 = vsel %vm3704, 0, %v4835
        %v4837 = vrot.slane %v4769, 4
        %v4838 = vsel %vm3704, %v4837, %v4705
        %v4840 = vunpack.c.l.s4 1983009808
        %v4841 = vunpack.c.0.s8 %v4840
        %v4842 = vperm.slane %v4838, %v4841
        %v4843 = vrot.slane %v4801, 4
        %v4844 = vsel %vm3704, %v4843, %v4737
        %v4846 = vunpack.c.l.s4 1983009808
        %v4847 = vunpack.c.0.s8 %v4846
        %v4848 = vperm.slane %v4844, %v4847
        %v4849 = vrot.slane %v4848, 4
        %v4850 = vsel %vm3704, %v4849, %v4842
        %v4851 = vrot.slane %v4842, 4
        %v4852 = vsel %vm3704, %v4848, %v4851
        %v4854 = vunpack.c.l.s4 1934713408
        %v4855 = vunpack.c.0.s8 %v4854
        %v4856 = vperm.slane %v4850, %v4855
        %v4858 = vunpack.c.l.s4 1934713408
        %v4859 = vunpack.c.0.s8 %v4858
        %v4860 = vperm.slane %v4852, %v4859
        %v4861 = vrot.slane %v4856, 4
        %v4862 = vsel %vm3704, 0, %v4861
        %v4863 = vrot.slane %v4860, 4
        %v4864 = vsel %vm3704, 0, %v4863
        %v4867 = vpack.i.b16 %v4856, %v4828
        %v4868 = vshrl.u32 %v4828, 16
        %v4869 = vshrl.u32 %v4856, 16
        %v4870 = vpack.i.b16 %v4869, %v4868
        %v4873 = vpack.i.b16 %v4862, %v4834
        %v4874 = vshrl.u32 %v4834, 16
        %v4875 = vshrl.u32 %v4862, 16
        %v4876 = vpack.i.b16 %v4875, %v4874
        %v4879 = vpack.i.b16 %v4860, %v4832
        %v4880 = vshrl.u32 %v4832, 16
        %v4881 = vshrl.u32 %v4860, 16
        %v4882 = vpack.i.b16 %v4881, %v4880
        %v4885 = vpack.i.b16 %v4864, %v4836
        %v4886 = vshrl.u32 %v4836, 16
        %v4887 = vshrl.u32 %v4864, 16
        %v4888 = vpack.i.b16 %v4887, %v4886
        %v4890 = vsel %vm4208, %v4867, 0
        %v4893 = vsel %vm4208, %v4449, 0
        %4895 = vmatpush.bf16.xpose.msra.mxu0 0
        %4896 = vmatpush.bf16.xpose.msra.mxu0 0
        %4897 = vmatpush.bf16.xpose.msra.mxu0 0
        %4898 = vmatpush.bf16.xpose.msra.mxu0 0
        %4899 = vmatpush.bf16.xpose.msra.mxu0 0
        %4900 = vmatpush.bf16.xpose.msra.mxu0 0
        %4901 = vmatpush.bf16.xpose.msra.mxu0 0
        %4902 = vmatpush.bf16.xpose.msra.mxu0 %v4893
        %4903 = vmatmul.bf16.gmra.mxu0 %v4890
        %v4904 = vpop.f32.mrf.mxu0
        %v4905 = vadd.f32 0.0, %v4904
        %v4906 = vpop.f32.mrf.mxu0
        %4907 = vdwg.mxu0
        %v4909 = vsel %vm4208, %v4870, 0
        %v4912 = vsel %vm4208, %v4450, 0
        %4914 = vmatpush.bf16.xpose.msra.mxu0 0
        %4915 = vmatpush.bf16.xpose.msra.mxu0 0
        %4916 = vmatpush.bf16.xpose.msra.mxu0 0
        %4917 = vmatpush.bf16.xpose.msra.mxu0 0
        %4918 = vmatpush.bf16.xpose.msra.mxu0 0
        %4919 = vmatpush.bf16.xpose.msra.mxu0 0
        %4920 = vmatpush.bf16.xpose.msra.mxu0 0
        %4921 = vmatpush.bf16.xpose.msra.mxu0 %v4912
        %4922 = vmatmul.bf16.gmra.mxu0 %v4909
        %v4923 = vpop.f32.mrf.mxu0
        %v4924 = vadd.f32 0.0, %v4923
        %v4925 = vpop.f32.mrf.mxu0
        %4926 = vdwg.mxu0
        %v4928 = vsel %vm4208, %v4873, 0
        %v4931 = vsel %vm4208, %v4451, 0
        %4933 = vmatpush.bf16.xpose.msra.mxu0 0
        %4934 = vmatpush.bf16.xpose.msra.mxu0 0
        %4935 = vmatpush.bf16.xpose.msra.mxu0 0
        %4936 = vmatpush.bf16.xpose.msra.mxu0 0
        %4937 = vmatpush.bf16.xpose.msra.mxu0 0
        %4938 = vmatpush.bf16.xpose.msra.mxu0 0
        %4939 = vmatpush.bf16.xpose.msra.mxu0 0
        %4940 = vmatpush.bf16.xpose.msra.mxu0 %v4931
        %4941 = vmatmul.bf16.gmra.mxu0 %v4928
        %v4942 = vpop.f32.mrf.mxu0
        %v4943 = vadd.f32 0.0, %v4942
        %v4944 = vpop.f32.mrf.mxu0
        %4945 = vdwg.mxu0
        %v4947 = vsel %vm4208, %v4876, 0
        %v4950 = vsel %vm4208, %v4452, 0
        %4952 = vmatpush.bf16.xpose.msra.mxu0 0
        %4953 = vmatpush.bf16.xpose.msra.mxu0 0
        %4954 = vmatpush.bf16.xpose.msra.mxu0 0
        %4955 = vmatpush.bf16.xpose.msra.mxu0 0
        %4956 = vmatpush.bf16.xpose.msra.mxu0 0
        %4957 = vmatpush.bf16.xpose.msra.mxu0 0
        %4958 = vmatpush.bf16.xpose.msra.mxu0 0
        %4959 = vmatpush.bf16.xpose.msra.mxu0 %v4950
        %4960 = vmatmul.bf16.gmra.mxu0 %v4947
        %v4961 = vpop.f32.mrf.mxu0
        %v4962 = vadd.f32 0.0, %v4961
        %v4963 = vpop.f32.mrf.mxu0
        %4964 = vdwg.mxu0
        %v4966 = vsel %vm4208, %v4879, 0
        %v4969 = vsel %vm4208, %v4453, 0
        %4971 = vmatpush.bf16.xpose.msra.mxu0 0
        %4972 = vmatpush.bf16.xpose.msra.mxu0 0
        %4973 = vmatpush.bf16.xpose.msra.mxu0 0
        %4974 = vmatpush.bf16.xpose.msra.mxu0 0
        %4975 = vmatpush.bf16.xpose.msra.mxu0 0
        %4976 = vmatpush.bf16.xpose.msra.mxu0 0
        %4977 = vmatpush.bf16.xpose.msra.mxu0 0
        %4978 = vmatpush.bf16.xpose.msra.mxu0 %v4969
        %4979 = vmatmul.bf16.gmra.mxu0 %v4966
        %v4980 = vpop.f32.mrf.mxu0
        %v4981 = vadd.f32 0.0, %v4980
        %v4982 = vpop.f32.mrf.mxu0
        %4983 = vdwg.mxu0
        %v4985 = vsel %vm4208, %v4882, 0
        %v4988 = vsel %vm4208, %v4454, 0
        %4990 = vmatpush.bf16.xpose.msra.mxu0 0
        %4991 = vmatpush.bf16.xpose.msra.mxu0 0
        %4992 = vmatpush.bf16.xpose.msra.mxu0 0
        %4993 = vmatpush.bf16.xpose.msra.mxu0 0
        %4994 = vmatpush.bf16.xpose.msra.mxu0 0
        %4995 = vmatpush.bf16.xpose.msra.mxu0 0
        %4996 = vmatpush.bf16.xpose.msra.mxu0 0
        %4997 = vmatpush.bf16.xpose.msra.mxu0 %v4988
        %4998 = vmatmul.bf16.gmra.mxu0 %v4985
        %v4999 = vpop.f32.mrf.mxu0
        %v5000 = vadd.f32 0.0, %v4999
        %v5001 = vpop.f32.mrf.mxu0
        %5002 = vdwg.mxu0
        %v5004 = vsel %vm4208, %v4885, 0
        %v5007 = vsel %vm4208, %v4455, 0
        %5009 = vmatpush.bf16.xpose.msra.mxu0 0
        %5010 = vmatpush.bf16.xpose.msra.mxu0 0
        %5011 = vmatpush.bf16.xpose.msra.mxu0 0
        %5012 = vmatpush.bf16.xpose.msra.mxu0 0
        %5013 = vmatpush.bf16.xpose.msra.mxu0 0
        %5014 = vmatpush.bf16.xpose.msra.mxu0 0
        %5015 = vmatpush.bf16.xpose.msra.mxu0 0
        %5016 = vmatpush.bf16.xpose.msra.mxu0 %v5007
        %5017 = vmatmul.bf16.gmra.mxu0 %v5004
        %v5018 = vpop.f32.mrf.mxu0
        %v5019 = vadd.f32 0.0, %v5018
        %v5020 = vpop.f32.mrf.mxu0
        %5021 = vdwg.mxu0
        %v5023 = vsel %vm4208, %v4888, 0
        %v5026 = vsel %vm4208, %v4456, 0
        %5028 = vmatpush.bf16.xpose.msra.mxu0 0
        %5029 = vmatpush.bf16.xpose.msra.mxu0 0
        %5030 = vmatpush.bf16.xpose.msra.mxu0 0
        %5031 = vmatpush.bf16.xpose.msra.mxu0 0
        %5032 = vmatpush.bf16.xpose.msra.mxu0 0
        %5033 = vmatpush.bf16.xpose.msra.mxu0 0
        %5034 = vmatpush.bf16.xpose.msra.mxu0 0
        %5035 = vmatpush.bf16.xpose.msra.mxu0 %v5026
        %5036 = vmatmul.bf16.gmra.mxu0 %v5023
        %v5037 = vpop.f32.mrf.mxu0
        %v5038 = vadd.f32 0.0, %v5037
        %v5039 = vpop.f32.mrf.mxu0
        %5040 = vdwg.mxu0
        %5041 = vxpose.xlu0.b32.start [1/16] %v4905, 128
        %5042 = vxpose.xlu0.b32.cont [2/16] 0.0, 128
        %5043 = vxpose.xlu0.b32.cont [3/16] 0.0, 128
        %5044 = vxpose.xlu0.b32.cont [4/16] 0.0, 128
        %5045 = vxpose.xlu0.b32.cont [5/16] 0.0, 128
        %5046 = vxpose.xlu0.b32.cont [6/16] 0.0, 128
        %5047 = vxpose.xlu0.b32.cont [7/16] 0.0, 128
        %5048 = vxpose.xlu0.b32.cont [8/16] 0.0, 128
        %5049 = vxpose.xlu0.b32.cont [9/16] 0.0, 128
        %5050 = vxpose.xlu0.b32.cont [10/16] 0.0, 128
        %5051 = vxpose.xlu0.b32.cont [11/16] 0.0, 128
        %5052 = vxpose.xlu0.b32.cont [12/16] 0.0, 128
        %5053 = vxpose.xlu0.b32.cont [13/16] 0.0, 128
        %5054 = vxpose.xlu0.b32.cont [14/16] 0.0, 128
        %5055 = vxpose.xlu0.b32.cont [15/16] 0.0, 128
        %5056 = vxpose.xlu0.b32.end [16/16] 0.0, 128
        %v5057 = vpop.trf.xlu0
        %v5058 = vpop.trf.xlu0
        %v5059 = vpop.trf.xlu0
        %v5060 = vpop.trf.xlu0
        %v5061 = vpop.trf.xlu0
        %v5062 = vpop.trf.xlu0
        %v5063 = vpop.trf.xlu0
        %v5064 = vpop.trf.xlu0
        %v5065 = vpop.trf.xlu0
        %v5066 = vpop.trf.xlu0
        %v5067 = vpop.trf.xlu0
        %v5068 = vpop.trf.xlu0
        %v5069 = vpop.trf.xlu0
        %v5070 = vpop.trf.xlu0
        %v5071 = vpop.trf.xlu0
        %v5072 = vpop.trf.xlu0
        %5073 = vxpose.xlu0.b32.start [1/16] %v4924, 128
        %5074 = vxpose.xlu0.b32.cont [2/16] 0.0, 128
        %5075 = vxpose.xlu0.b32.cont [3/16] 0.0, 128
        %5076 = vxpose.xlu0.b32.cont [4/16] 0.0, 128
        %5077 = vxpose.xlu0.b32.cont [5/16] 0.0, 128
        %5078 = vxpose.xlu0.b32.cont [6/16] 0.0, 128
        %5079 = vxpose.xlu0.b32.cont [7/16] 0.0, 128
        %5080 = vxpose.xlu0.b32.cont [8/16] 0.0, 128
        %5081 = vxpose.xlu0.b32.cont [9/16] 0.0, 128
        %5082 = vxpose.xlu0.b32.cont [10/16] 0.0, 128
        %5083 = vxpose.xlu0.b32.cont [11/16] 0.0, 128
        %5084 = vxpose.xlu0.b32.cont [12/16] 0.0, 128
        %5085 = vxpose.xlu0.b32.cont [13/16] 0.0, 128
        %5086 = vxpose.xlu0.b32.cont [14/16] 0.0, 128
        %5087 = vxpose.xlu0.b32.cont [15/16] 0.0, 128
        %5088 = vxpose.xlu0.b32.end [16/16] 0.0, 128
        %v5089 = vpop.trf.xlu0
        %v5090 = vpop.trf.xlu0
        %v5091 = vpop.trf.xlu0
        %v5092 = vpop.trf.xlu0
        %v5093 = vpop.trf.xlu0
        %v5094 = vpop.trf.xlu0
        %v5095 = vpop.trf.xlu0
        %v5096 = vpop.trf.xlu0
        %v5097 = vpop.trf.xlu0
        %v5098 = vpop.trf.xlu0
        %v5099 = vpop.trf.xlu0
        %v5100 = vpop.trf.xlu0
        %v5101 = vpop.trf.xlu0
        %v5102 = vpop.trf.xlu0
        %v5103 = vpop.trf.xlu0
        %v5104 = vpop.trf.xlu0
        %5105 = vxpose.xlu0.b32.start [1/16] %v4943, 128
        %5106 = vxpose.xlu0.b32.cont [2/16] 0.0, 128
        %5107 = vxpose.xlu0.b32.cont [3/16] 0.0, 128
        %5108 = vxpose.xlu0.b32.cont [4/16] 0.0, 128
        %5109 = vxpose.xlu0.b32.cont [5/16] 0.0, 128
        %5110 = vxpose.xlu0.b32.cont [6/16] 0.0, 128
        %5111 = vxpose.xlu0.b32.cont [7/16] 0.0, 128
        %5112 = vxpose.xlu0.b32.cont [8/16] 0.0, 128
        %5113 = vxpose.xlu0.b32.cont [9/16] 0.0, 128
        %5114 = vxpose.xlu0.b32.cont [10/16] 0.0, 128
        %5115 = vxpose.xlu0.b32.cont [11/16] 0.0, 128
        %5116 = vxpose.xlu0.b32.cont [12/16] 0.0, 128
        %5117 = vxpose.xlu0.b32.cont [13/16] 0.0, 128
        %5118 = vxpose.xlu0.b32.cont [14/16] 0.0, 128
        %5119 = vxpose.xlu0.b32.cont [15/16] 0.0, 128
        %5120 = vxpose.xlu0.b32.end [16/16] 0.0, 128
        %v5121 = vpop.trf.xlu0
        %v5122 = vpop.trf.xlu0
        %v5123 = vpop.trf.xlu0
        %v5124 = vpop.trf.xlu0
        %v5125 = vpop.trf.xlu0
        %v5126 = vpop.trf.xlu0
        %v5127 = vpop.trf.xlu0
        %v5128 = vpop.trf.xlu0
        %v5129 = vpop.trf.xlu0
        %v5130 = vpop.trf.xlu0
        %v5131 = vpop.trf.xlu0
        %v5132 = vpop.trf.xlu0
        %v5133 = vpop.trf.xlu0
        %v5134 = vpop.trf.xlu0
        %v5135 = vpop.trf.xlu0
        %v5136 = vpop.trf.xlu0
        %5137 = vxpose.xlu0.b32.start [1/16] %v4962, 128
        %5138 = vxpose.xlu0.b32.cont [2/16] 0.0, 128
        %5139 = vxpose.xlu0.b32.cont [3/16] 0.0, 128
        %5140 = vxpose.xlu0.b32.cont [4/16] 0.0, 128
        %5141 = vxpose.xlu0.b32.cont [5/16] 0.0, 128
        %5142 = vxpose.xlu0.b32.cont [6/16] 0.0, 128
        %5143 = vxpose.xlu0.b32.cont [7/16] 0.0, 128
        %5144 = vxpose.xlu0.b32.cont [8/16] 0.0, 128
        %5145 = vxpose.xlu0.b32.cont [9/16] 0.0, 128
        %5146 = vxpose.xlu0.b32.cont [10/16] 0.0, 128
        %5147 = vxpose.xlu0.b32.cont [11/16] 0.0, 128
        %5148 = vxpose.xlu0.b32.cont [12/16] 0.0, 128
        %5149 = vxpose.xlu0.b32.cont [13/16] 0.0, 128
        %5150 = vxpose.xlu0.b32.cont [14/16] 0.0, 128
        %5151 = vxpose.xlu0.b32.cont [15/16] 0.0, 128
        %5152 = vxpose.xlu0.b32.end [16/16] 0.0, 128
        %v5153 = vpop.trf.xlu0
        %v5154 = vpop.trf.xlu0
        %v5155 = vpop.trf.xlu0
        %v5156 = vpop.trf.xlu0
        %v5157 = vpop.trf.xlu0
        %v5158 = vpop.trf.xlu0
        %v5159 = vpop.trf.xlu0
        %v5160 = vpop.trf.xlu0
        %v5161 = vpop.trf.xlu0
        %v5162 = vpop.trf.xlu0
        %v5163 = vpop.trf.xlu0
        %v5164 = vpop.trf.xlu0
        %v5165 = vpop.trf.xlu0
        %v5166 = vpop.trf.xlu0
        %v5167 = vpop.trf.xlu0
        %v5168 = vpop.trf.xlu0
        %5169 = vxpose.xlu0.b32.start [1/16] %v4981, 128
        %5170 = vxpose.xlu0.b32.cont [2/16] 0.0, 128
        %5171 = vxpose.xlu0.b32.cont [3/16] 0.0, 128
        %5172 = vxpose.xlu0.b32.cont [4/16] 0.0, 128
        %5173 = vxpose.xlu0.b32.cont [5/16] 0.0, 128
        %5174 = vxpose.xlu0.b32.cont [6/16] 0.0, 128
        %5175 = vxpose.xlu0.b32.cont [7/16] 0.0, 128
        %5176 = vxpose.xlu0.b32.cont [8/16] 0.0, 128
        %5177 = vxpose.xlu0.b32.cont [9/16] 0.0, 128
        %5178 = vxpose.xlu0.b32.cont [10/16] 0.0, 128
        %5179 = vxpose.xlu0.b32.cont [11/16] 0.0, 128
        %5180 = vxpose.xlu0.b32.cont [12/16] 0.0, 128
        %5181 = vxpose.xlu0.b32.cont [13/16] 0.0, 128
        %5182 = vxpose.xlu0.b32.cont [14/16] 0.0, 128
        %5183 = vxpose.xlu0.b32.cont [15/16] 0.0, 128
        %5184 = vxpose.xlu0.b32.end [16/16] 0.0, 128
        %v5185 = vpop.trf.xlu0
        %v5186 = vpop.trf.xlu0
        %v5187 = vpop.trf.xlu0
        %v5188 = vpop.trf.xlu0
        %v5189 = vpop.trf.xlu0
        %v5190 = vpop.trf.xlu0
        %v5191 = vpop.trf.xlu0
        %v5192 = vpop.trf.xlu0
        %v5193 = vpop.trf.xlu0
        %v5194 = vpop.trf.xlu0
        %v5195 = vpop.trf.xlu0
        %v5196 = vpop.trf.xlu0
        %v5197 = vpop.trf.xlu0
        %v5198 = vpop.trf.xlu0
        %v5199 = vpop.trf.xlu0
        %v5200 = vpop.trf.xlu0
        %5201 = vxpose.xlu0.b32.start [1/16] %v5000, 128
        %5202 = vxpose.xlu0.b32.cont [2/16] 0.0, 128
        %5203 = vxpose.xlu0.b32.cont [3/16] 0.0, 128
        %5204 = vxpose.xlu0.b32.cont [4/16] 0.0, 128
        %5205 = vxpose.xlu0.b32.cont [5/16] 0.0, 128
        %5206 = vxpose.xlu0.b32.cont [6/16] 0.0, 128
        %5207 = vxpose.xlu0.b32.cont [7/16] 0.0, 128
        %5208 = vxpose.xlu0.b32.cont [8/16] 0.0, 128
        %5209 = vxpose.xlu0.b32.cont [9/16] 0.0, 128
        %5210 = vxpose.xlu0.b32.cont [10/16] 0.0, 128
        %5211 = vxpose.xlu0.b32.cont [11/16] 0.0, 128
        %5212 = vxpose.xlu0.b32.cont [12/16] 0.0, 128
        %5213 = vxpose.xlu0.b32.cont [13/16] 0.0, 128
        %5214 = vxpose.xlu0.b32.cont [14/16] 0.0, 128
        %5215 = vxpose.xlu0.b32.cont [15/16] 0.0, 128
        %5216 = vxpose.xlu0.b32.end [16/16] 0.0, 128
        %v5217 = vpop.trf.xlu0
        %v5218 = vpop.trf.xlu0
        %v5219 = vpop.trf.xlu0
        %v5220 = vpop.trf.xlu0
        %v5221 = vpop.trf.xlu0
        %v5222 = vpop.trf.xlu0
        %v5223 = vpop.trf.xlu0
        %v5224 = vpop.trf.xlu0
        %v5225 = vpop.trf.xlu0
        %v5226 = vpop.trf.xlu0
        %v5227 = vpop.trf.xlu0
        %v5228 = vpop.trf.xlu0
        %v5229 = vpop.trf.xlu0
        %v5230 = vpop.trf.xlu0
        %v5231 = vpop.trf.xlu0
        %v5232 = vpop.trf.xlu0
        %5233 = vxpose.xlu0.b32.start [1/16] %v5019, 128
        %5234 = vxpose.xlu0.b32.cont [2/16] 0.0, 128
        %5235 = vxpose.xlu0.b32.cont [3/16] 0.0, 128
        %5236 = vxpose.xlu0.b32.cont [4/16] 0.0, 128
        %5237 = vxpose.xlu0.b32.cont [5/16] 0.0, 128
        %5238 = vxpose.xlu0.b32.cont [6/16] 0.0, 128
        %5239 = vxpose.xlu0.b32.cont [7/16] 0.0, 128
        %5240 = vxpose.xlu0.b32.cont [8/16] 0.0, 128
        %5241 = vxpose.xlu0.b32.cont [9/16] 0.0, 128
        %5242 = vxpose.xlu0.b32.cont [10/16] 0.0, 128
        %5243 = vxpose.xlu0.b32.cont [11/16] 0.0, 128
        %5244 = vxpose.xlu0.b32.cont [12/16] 0.0, 128
        %5245 = vxpose.xlu0.b32.cont [13/16] 0.0, 128
        %5246 = vxpose.xlu0.b32.cont [14/16] 0.0, 128
        %5247 = vxpose.xlu0.b32.cont [15/16] 0.0, 128
        %5248 = vxpose.xlu0.b32.end [16/16] 0.0, 128
        %v5249 = vpop.trf.xlu0
        %v5250 = vpop.trf.xlu0
        %v5251 = vpop.trf.xlu0
        %v5252 = vpop.trf.xlu0
        %v5253 = vpop.trf.xlu0
        %v5254 = vpop.trf.xlu0
        %v5255 = vpop.trf.xlu0
        %v5256 = vpop.trf.xlu0
        %v5257 = vpop.trf.xlu0
        %v5258 = vpop.trf.xlu0
        %v5259 = vpop.trf.xlu0
        %v5260 = vpop.trf.xlu0
        %v5261 = vpop.trf.xlu0
        %v5262 = vpop.trf.xlu0
        %v5263 = vpop.trf.xlu0
        %v5264 = vpop.trf.xlu0
        %5265 = vxpose.xlu0.b32.start [1/16] %v5038, 128
        %5266 = vxpose.xlu0.b32.cont [2/16] 0.0, 128
        %5267 = vxpose.xlu0.b32.cont [3/16] 0.0, 128
        %5268 = vxpose.xlu0.b32.cont [4/16] 0.0, 128
        %5269 = vxpose.xlu0.b32.cont [5/16] 0.0, 128
        %5270 = vxpose.xlu0.b32.cont [6/16] 0.0, 128
        %5271 = vxpose.xlu0.b32.cont [7/16] 0.0, 128
        %5272 = vxpose.xlu0.b32.cont [8/16] 0.0, 128
        %5273 = vxpose.xlu0.b32.cont [9/16] 0.0, 128
        %5274 = vxpose.xlu0.b32.cont [10/16] 0.0, 128
        %5275 = vxpose.xlu0.b32.cont [11/16] 0.0, 128
        %5276 = vxpose.xlu0.b32.cont [12/16] 0.0, 128
        %5277 = vxpose.xlu0.b32.cont [13/16] 0.0, 128
        %5278 = vxpose.xlu0.b32.cont [14/16] 0.0, 128
        %5279 = vxpose.xlu0.b32.cont [15/16] 0.0, 128
        %5280 = vxpose.xlu0.b32.end [16/16] 0.0, 128
        %v5281 = vpop.trf.xlu0
        %v5282 = vpop.trf.xlu0
        %v5283 = vpop.trf.xlu0
        %v5284 = vpop.trf.xlu0
        %v5285 = vpop.trf.xlu0
        %v5286 = vpop.trf.xlu0
        %v5287 = vpop.trf.xlu0
        %v5288 = vpop.trf.xlu0
        %v5289 = vpop.trf.xlu0
        %v5290 = vpop.trf.xlu0
        %v5291 = vpop.trf.xlu0
        %v5292 = vpop.trf.xlu0
        %v5293 = vpop.trf.xlu0
        %v5294 = vpop.trf.xlu0
        %v5295 = vpop.trf.xlu0
        %v5296 = vpop.trf.xlu0
        %v5297 = vrot.slane %v5121, 4
        %v5298 = vsel %vm3290, %v5297, %v5057
        %v5299 = vrot.slane %v5057, 4
        %v5300 = vsel %vm3290, %v5121, %v5299
        %v5302 = vunpack.c.l.s4 1983009808
        %v5303 = vunpack.c.0.s8 %v5302
        %v5304 = vperm.slane %v5298, %v5303
        %v5306 = vunpack.c.l.s4 1983009808
        %v5307 = vunpack.c.0.s8 %v5306
        %v5308 = vperm.slane %v5300, %v5307
        %v5309 = vrot.slane %v5153, 4
        %v5310 = vsel %vm3290, %v5309, %v5089
        %v5311 = vrot.slane %v5089, 4
        %v5312 = vsel %vm3290, %v5153, %v5311
        %v5314 = vunpack.c.l.s4 1983009808
        %v5315 = vunpack.c.0.s8 %v5314
        %v5316 = vperm.slane %v5310, %v5315
        %v5318 = vunpack.c.l.s4 1983009808
        %v5319 = vunpack.c.0.s8 %v5318
        %v5320 = vperm.slane %v5312, %v5319
        %v5321 = vrot.slane %v5249, 4
        %v5322 = vsel %vm3290, %v5321, %v5185
        %v5323 = vrot.slane %v5185, 4
        %v5324 = vsel %vm3290, %v5249, %v5323
        %v5326 = vunpack.c.l.s4 1983009808
        %v5327 = vunpack.c.0.s8 %v5326
        %v5328 = vperm.slane %v5322, %v5327
        %v5330 = vunpack.c.l.s4 1983009808
        %v5331 = vunpack.c.0.s8 %v5330
        %v5332 = vperm.slane %v5324, %v5331
        %v5333 = vrot.slane %v5281, 4
        %v5334 = vsel %vm3290, %v5333, %v5217
        %v5335 = vrot.slane %v5217, 4
        %v5336 = vsel %vm3290, %v5281, %v5335
        %v5338 = vunpack.c.l.s4 1983009808
        %v5339 = vunpack.c.0.s8 %v5338
        %v5340 = vperm.slane %v5334, %v5339
        %v5342 = vunpack.c.l.s4 1983009808
        %v5343 = vunpack.c.0.s8 %v5342
        %v5344 = vperm.slane %v5336, %v5343
        %v5345 = vrot.slane %v5316, 4
        %v5346 = vsel %vm3290, %v5345, %v5304
        %v5347 = vrot.slane %v5304, 4
        %v5348 = vsel %vm3290, %v5316, %v5347
        %v5350 = vunpack.c.l.s4 1934713408
        %v5351 = vunpack.c.0.s8 %v5350
        %v5352 = vperm.slane %v5346, %v5351
        %v5354 = vunpack.c.l.s4 1934713408
        %v5355 = vunpack.c.0.s8 %v5354
        %v5356 = vperm.slane %v5348, %v5355
        %v5357 = vrot.slane %v5320, 4
        %v5358 = vsel %vm3290, %v5357, %v5308
        %v5359 = vrot.slane %v5308, 4
        %v5360 = vsel %vm3290, %v5320, %v5359
        %v5362 = vunpack.c.l.s4 1934713408
        %v5363 = vunpack.c.0.s8 %v5362
        %v5364 = vperm.slane %v5358, %v5363
        %v5366 = vunpack.c.l.s4 1934713408
        %v5367 = vunpack.c.0.s8 %v5366
        %v5368 = vperm.slane %v5360, %v5367
        %v5369 = vrot.slane %v5340, 4
        %v5370 = vsel %vm3290, %v5369, %v5328
        %v5371 = vrot.slane %v5328, 4
        %v5372 = vsel %vm3290, %v5340, %v5371
        %v5374 = vunpack.c.l.s4 1934713408
        %v5375 = vunpack.c.0.s8 %v5374
        %v5376 = vperm.slane %v5370, %v5375
        %v5378 = vunpack.c.l.s4 1934713408
        %v5379 = vunpack.c.0.s8 %v5378
        %v5380 = vperm.slane %v5372, %v5379
        %v5381 = vrot.slane %v5344, 4
        %v5382 = vsel %vm3290, %v5381, %v5332
        %v5383 = vrot.slane %v5332, 4
        %v5384 = vsel %vm3290, %v5344, %v5383
        %v5386 = vunpack.c.l.s4 1934713408
        %v5387 = vunpack.c.0.s8 %v5386
        %v5388 = vperm.slane %v5382, %v5387
        %v5390 = vunpack.c.l.s4 1934713408
        %v5391 = vunpack.c.0.s8 %v5390
        %v5392 = vperm.slane %v5384, %v5391
        %v5393 = vrot.slane %v5376, 4
        %v5394 = vsel %vm3290, %v5393, %v5352
        %v5395 = vrot.slane %v5352, 4
        %v5396 = vsel %vm3290, %v5376, %v5395
        %v5397 = vrot.slane %v5380, 4
        %v5398 = vsel %vm3290, %v5397, %v5356
        %v5399 = vrot.slane %v5356, 4
        %v5400 = vsel %vm3290, %v5380, %v5399
        %v5401 = vrot.slane %v5388, 4
        %v5402 = vsel %vm3290, %v5401, %v5364
        %v5403 = vrot.slane %v5364, 4
        %v5404 = vsel %vm3290, %v5388, %v5403
        %v5405 = vrot.slane %v5392, 4
        %v5406 = vsel %vm3290, %v5405, %v5368
        %v5407 = vrot.slane %v5368, 4
        %v5408 = vsel %vm3290, %v5392, %v5407
        %v5409 = vrot.slane %v5398, 4
        %v5410 = vsel %vm3290, %v5409, %v5394
        %v5411 = vrot.slane %v5394, 4
        %v5412 = vsel %vm3290, %v5398, %v5411
        %v5414 = vunpack.c.l.s4 1983009808
        %v5415 = vunpack.c.0.s8 %v5414
        %v5416 = vperm.slane %v5410, %v5415
        %v5418 = vunpack.c.l.s4 1983009808
        %v5419 = vunpack.c.0.s8 %v5418
        %v5420 = vperm.slane %v5412, %v5419
        %v5421 = vrot.slane %v5400, 4
        %v5422 = vsel %vm3290, %v5421, %v5396
        %v5423 = vrot.slane %v5396, 4
        %v5424 = vsel %vm3290, %v5400, %v5423
        %v5426 = vunpack.c.l.s4 1983009808
        %v5427 = vunpack.c.0.s8 %v5426
        %v5428 = vperm.slane %v5422, %v5427
        %v5430 = vunpack.c.l.s4 1983009808
        %v5431 = vunpack.c.0.s8 %v5430
        %v5432 = vperm.slane %v5424, %v5431
        %v5433 = vrot.slane %v5406, 4
        %v5434 = vsel %vm3290, %v5433, %v5402
        %v5435 = vrot.slane %v5402, 4
        %v5436 = vsel %vm3290, %v5406, %v5435
        %v5438 = vunpack.c.l.s4 1983009808
        %v5439 = vunpack.c.0.s8 %v5438
        %v5440 = vperm.slane %v5434, %v5439
        %v5442 = vunpack.c.l.s4 1983009808
        %v5443 = vunpack.c.0.s8 %v5442
        %v5444 = vperm.slane %v5436, %v5443
        %v5445 = vrot.slane %v5408, 4
        %v5446 = vsel %vm3290, %v5445, %v5404
        %v5447 = vrot.slane %v5404, 4
        %v5448 = vsel %vm3290, %v5408, %v5447
        %v5450 = vunpack.c.l.s4 1983009808
        %v5451 = vunpack.c.0.s8 %v5450
        %v5452 = vperm.slane %v5446, %v5451
        %v5454 = vunpack.c.l.s4 1983009808
        %v5455 = vunpack.c.0.s8 %v5454
        %v5456 = vperm.slane %v5448, %v5455
        %v5457 = vrot.slane %v5428, 4
        %v5458 = vsel %vm3290, %v5457, %v5416
        %v5459 = vrot.slane %v5416, 4
        %v5460 = vsel %vm3290, %v5428, %v5459
        %v5462 = vunpack.c.l.s4 1934713408
        %v5463 = vunpack.c.0.s8 %v5462
        %v5464 = vperm.slane %v5458, %v5463
        %v5466 = vunpack.c.l.s4 1934713408
        %v5467 = vunpack.c.0.s8 %v5466
        %v5468 = vperm.slane %v5460, %v5467
        %v5469 = vrot.slane %v5432, 4
        %v5470 = vsel %vm3290, %v5469, %v5420
        %v5471 = vrot.slane %v5420, 4
        %v5472 = vsel %vm3290, %v5432, %v5471
        %v5474 = vunpack.c.l.s4 1934713408
        %v5475 = vunpack.c.0.s8 %v5474
        %v5476 = vperm.slane %v5470, %v5475
        %v5478 = vunpack.c.l.s4 1934713408
        %v5479 = vunpack.c.0.s8 %v5478
        %v5480 = vperm.slane %v5472, %v5479
        %v5481 = vrot.slane %v5452, 4
        %v5482 = vsel %vm3290, %v5481, %v5440
        %v5483 = vrot.slane %v5440, 4
        %v5484 = vsel %vm3290, %v5452, %v5483
        %v5486 = vunpack.c.l.s4 1934713408
        %v5487 = vunpack.c.0.s8 %v5486
        %v5488 = vperm.slane %v5482, %v5487
        %v5490 = vunpack.c.l.s4 1934713408
        %v5491 = vunpack.c.0.s8 %v5490
        %v5492 = vperm.slane %v5484, %v5491
        %v5493 = vrot.slane %v5456, 4
        %v5494 = vsel %vm3290, %v5493, %v5444
        %v5495 = vrot.slane %v5444, 4
        %v5496 = vsel %vm3290, %v5456, %v5495
        %v5498 = vunpack.c.l.s4 1934713408
        %v5499 = vunpack.c.0.s8 %v5498
        %v5500 = vperm.slane %v5494, %v5499
        %v5502 = vunpack.c.l.s4 1934713408
        %v5503 = vunpack.c.0.s8 %v5502
        %v5504 = vperm.slane %v5496, %v5503
        %v5505 = vrot.slane %v5488, 4
        %v5506 = vsel %vm3290, %v5505, %v5464
        %v5507 = vrot.slane %v5464, 4
        %v5508 = vsel %vm3290, %v5488, %v5507
        %v5509 = vrot.slane %v5492, 4
        %v5510 = vsel %vm3290, %v5509, %v5468
        %v5511 = vrot.slane %v5468, 4
        %v5512 = vsel %vm3290, %v5492, %v5511
        %v5513 = vrot.slane %v5500, 4
        %v5514 = vsel %vm3290, %v5513, %v5476
        %v5515 = vrot.slane %v5476, 4
        %v5516 = vsel %vm3290, %v5500, %v5515
        %v5517 = vrot.slane %v5504, 4
        %v5518 = vsel %vm3290, %v5517, %v5480
        %v5519 = vrot.slane %v5480, 4
        %v5520 = vsel %vm3290, %v5504, %v5519
        %5522 = vrot.lane.b32.xlu0 %v5508, 8
        %v5523 = vpop.permute.xlu0 %5522
        %5526 = vrot.lane.b32.xlu0 %v5510, 16
        %v5527 = vpop.permute.xlu0 %5526
        %5530 = vrot.lane.b32.xlu0 %v5512, 24
        %v5531 = vpop.permute.xlu0 %5530
        %5534 = vrot.lane.b32.xlu0 %v5514, 32
        %v5535 = vpop.permute.xlu0 %5534
        %5538 = vrot.lane.b32.xlu0 %v5516, 40
        %v5539 = vpop.permute.xlu0 %5538
        %5542 = vrot.lane.b32.xlu0 %v5518, 48
        %v5543 = vpop.permute.xlu0 %5542
        %5546 = vrot.lane.b32.xlu0 %v5520, 56
        %v5547 = vpop.permute.xlu0 %5546
        %v5549 = vsel %vm4208, %v5506, %v5523
        %v5550 = vsel %vm1316, %v5549, %v5527
        %vm5551 = vcmask 195584
        %v5552 = vsel %vm5551, %v5550, %v5531
        %v5553 = vsel %vm1484, %v5552, %v5535
        %vm5554 = vcmask 326656
        %v5555 = vsel %vm5554, %v5553, %v5539
        %vm5556 = vcmask 392192
        %v5557 = vsel %vm5556, %v5555, %v5543
        %vm5558 = vcmask 457728
        %v5559 = vsel %vm5558, %v5557, %v5547
        %v5560 = vpack.c.bf16 %v5559, %v5559
        %v5561 = vld [vmem:[%s13] sm:$0xf]
        %v5562 = vld [vmem:[%s13 + $0x4] sm:$0xf]
        %v5563 = vld [vmem:[%s13 + $0x8] sm:$0xf]
        %v5564 = vld [vmem:[%s13 + $0xc] sm:$0xf]
        %v5565 = vld [vmem:[%s13 + $0x10] sm:$0xf]
        %v5566 = vld [vmem:[%s13 + $0x14] sm:$0xf]
        %v5567 = vld [vmem:[%s13 + $0x18] sm:$0xf]
        %v5568 = vld [vmem:[%s13 + $0x1c] sm:$0xf]
        %v5569 = vld [vmem:[%s14] sm:$0x1]
        %v5571 = vperm.slane %v5569, 0
        %v5581 = vunpack.c.l.b16 %v5561
        %v5582 = vunpack.c.l.b16 %v5562
        %v5583 = vunpack.c.l.b16 %v5563
        %v5584 = vunpack.c.l.b16 %v5564
        %v5585 = vunpack.c.l.b16 %v5565
        %v5586 = vunpack.c.l.b16 %v5566
        %v5587 = vunpack.c.l.b16 %v5567
        %v5588 = vunpack.c.l.b16 %v5568
        %v5589 = vpack.c.b16 %v5582, %v5581
        %v5590 = vpack.c.b16 %v5584, %v5583
        %v5591 = vpack.c.b16 %v5586, %v5585
        %v5592 = vpack.c.b16 %v5588, %v5587
        %v5598 = vsel %vm1243, %v5560, 0
        %5600 = vmatpush.bf16.msra.mxu0 0
        %5601 = vmatpush.bf16.msra.mxu0 0
        %5602 = vmatpush.bf16.msra.mxu0 0
        %5603 = vmatpush.bf16.msra.mxu0 0
        %5604 = vmatpush.bf16.msra.mxu0 %v5592
        %5605 = vmatpush.bf16.msra.mxu0 %v5591
        %5606 = vmatpush.bf16.msra.mxu0 %v5590
        %5607 = vmatpush.bf16.msra.mxu0 %v5589
        %5608 = vmatmul.bf16.gmra.mxu0 %v5598
        %v5609 = vpop.f32.mrf.mxu0
        %v5610 = vadd.f32 %v5571, %v5609
        %v5611 = vpop.f32.mrf.mxu0
        %5612 = vdwg.mxu0
        %v5613 = vsel %vm4208, %v4441, 0.0
        %v5614 = vsel %vm4208, %v4442, 0.0
        %v5615 = vadd.f32 %v5613, %v5614
        %v5616 = vsel %vm4208, %v4443, 0.0
        %v5617 = vadd.f32 %v5615, %v5616
        %v5618 = vsel %vm4208, %v4444, 0.0
        %v5619 = vadd.f32 %v5617, %v5618
        %v5620 = vsel %vm4208, %v4445, 0.0
        %v5621 = vadd.f32 %v5619, %v5620
        %v5622 = vsel %vm4208, %v4446, 0.0
        %v5623 = vadd.f32 %v5621, %v5622
        %v5624 = vsel %vm4208, %v4447, 0.0
        %v5625 = vadd.f32 %v5623, %v5624
        %v5626 = vsel %vm4208, %v4448, 0.0
        %v5627 = vadd.f32 %v5625, %v5626
        %v5628 = vmul.f32 %v5627, 0.125
        %v5629 = vsel %vm4208, %v5628, 0.0
        %5630 = vst [vmem:[%s744] sm:$0xff] %v5629
        %v5631 = vpack.c.bf16 %v5610, %v5610
        %v5632 = vld [vmem:[%s15] sm:$0xf]
        %v5633 = vld [vmem:[%s15 + $0x4] sm:$0xf]
        %v5634 = vld [vmem:[%s15 + $0x8] sm:$0xf]
        %v5635 = vld [vmem:[%s15 + $0xc] sm:$0xf]
        %v5636 = vld [vmem:[%s15 + $0x10] sm:$0xf]
        %v5637 = vld [vmem:[%s15 + $0x14] sm:$0xf]
        %v5638 = vld [vmem:[%s15 + $0x18] sm:$0xf]
        %v5639 = vld [vmem:[%s15 + $0x1c] sm:$0xf]
        %v5640 = vld [vmem:[%s16] sm:$0x1]
        %v5642 = vperm.slane %v5640, 0
        %v5652 = vunpack.c.l.b16 %v5632
        %v5653 = vunpack.c.l.b16 %v5633
        %v5654 = vunpack.c.l.b16 %v5634
        %v5655 = vunpack.c.l.b16 %v5635
        %v5656 = vunpack.c.l.b16 %v5636
        %v5657 = vunpack.c.l.b16 %v5637
        %v5658 = vunpack.c.l.b16 %v5638
        %v5659 = vunpack.c.l.b16 %v5639
        %v5660 = vpack.c.b16 %v5653, %v5652
        %v5661 = vpack.c.b16 %v5655, %v5654
        %v5662 = vpack.c.b16 %v5657, %v5656
        %v5663 = vpack.c.b16 %v5659, %v5658
        %v5669 = vsel %vm1243, %v5631, 0
        %5671 = vmatpush.bf16.msra.mxu0 0
        %5672 = vmatpush.bf16.msra.mxu0 0
        %5673 = vmatpush.bf16.msra.mxu0 0
        %5674 = vmatpush.bf16.msra.mxu0 0
        %5675 = vmatpush.bf16.msra.mxu0 %v5663
        %5676 = vmatpush.bf16.msra.mxu0 %v5662
        %5677 = vmatpush.bf16.msra.mxu0 %v5661
        %5678 = vmatpush.bf16.msra.mxu0 %v5660
        %5679 = vmatmul.bf16.gmra.mxu0 %v5669
        %v5680 = vpop.f32.mrf.mxu0
        %v5681 = vadd.f32 %v5642, %v5680
        %v5682 = vpop.f32.mrf.mxu0
        %5683 = vdwg.mxu0
        %v5684 = vmax.f32 %v5681, 0.0
        %v5685 = vpack.c.bf16 %v5684, %v5684
        %v5686 = vld [vmem:[%s17] sm:$0xf]
        %v5687 = vld [vmem:[%s17 + $0x4] sm:$0xf]
        %v5688 = vld [vmem:[%s17 + $0x8] sm:$0xf]
        %v5689 = vld [vmem:[%s17 + $0xc] sm:$0xf]
        %v5690 = vld [vmem:[%s18] sm:$0x1]
        %v5692 = vperm.slane %v5690, 0
        %v5698 = vunpack.c.l.b16 %v5686
        %v5699 = vunpack.c.l.b16 %v5687
        %v5700 = vunpack.c.l.b16 %v5688
        %v5701 = vunpack.c.l.b16 %v5689
        %v5702 = vpack.c.b16 %v5699, %v5698
        %v5703 = vpack.c.b16 %v5701, %v5700
        %v5707 = vsel %vm1484, %v5685, 0
        %5709 = vmatpush.bf16.msra.mxu0 0
        %5710 = vmatpush.bf16.msra.mxu0 0
        %5711 = vmatpush.bf16.msra.mxu0 0
        %5712 = vmatpush.bf16.msra.mxu0 0
        %5713 = vmatpush.bf16.msra.mxu0 0
        %5714 = vmatpush.bf16.msra.mxu0 0
        %5715 = vmatpush.bf16.msra.mxu0 %v5703
        %5716 = vmatpush.bf16.msra.mxu0 %v5702
        %5717 = vmatmul.bf16.gmra.mxu0 %v5707
        %v5718 = vpop.f32.mrf.mxu0
        %v5719 = vadd.f32 %v5692, %v5718
        %v5720 = vpop.f32.mrf.mxu0
        %5721 = vdwg.mxu0
        %v5722 = vmax.f32 %v5719, 0.0
        %v5723 = vpack.c.bf16 %v5722, %v5722
        %v5724 = vld [vmem:[%s19] sm:$0xf]
        %v5725 = vld [vmem:[%s19 + $0x4] sm:$0xf]
        %v5726 = vld [vmem:[%s20] sm:$0x1]
        %v5728 = vperm.slane %v5726, 0
        %v5732 = vunpack.c.l.b16 %v5724
        %v5733 = vunpack.c.l.b16 %v5725
        %v5734 = vpack.c.b16 %v5733, %v5732
        %v5737 = vsel %vm1316, %v5723, 0
        %5739 = vmatpush.bf16.msra.mxu0 0
        %5740 = vmatpush.bf16.msra.mxu0 0
        %5741 = vmatpush.bf16.msra.mxu0 0
        %5742 = vmatpush.bf16.msra.mxu0 0
        %5743 = vmatpush.bf16.msra.mxu0 0
        %5744 = vmatpush.bf16.msra.mxu0 0
        %5745 = vmatpush.bf16.msra.mxu0 0
        %5746 = vmatpush.bf16.msra.mxu0 %v5734
        %5747 = vmatmul.bf16.gmra.mxu0 %v5737
        %v5748 = vpop.f32.mrf.mxu0
        %v5749 = vadd.f32 %v5728, %v5748
        %v5750 = vpop.f32.mrf.mxu0
        %5751 = vdwg.mxu0
        %5752 = vst [vmem:[%s756] sm:$0xff] %v5749
        %p5753 = scmp.lt.s32.totalorder %s39, 1
        %s5754 = scalar_select %p5753, %s39, 1
        %s5755 = smul.addr %s5754, 8
        %s5756 = scalar_lea.vmem %s21, %s5755
        %s5757 = sand.u32 %s524, 1
        %s5758 = scalar_lea.sflag [#allocation6], %s5757
        %s5759 = sand.u32 %s524, 1
        %s5760 = smul.addr %s5759, 8
        %s5761 = scalar_lea.vmem [#allocation10], %s5760
        // Predicated region
        $region117: #{forward.1} parent=103 // pred_check
          %p5762 = pneg %p508
        $region118: #{forward.1} parent=103 // pred_check_branch
          %5764 = sbr.rel (%p5762) target = $region120
        $region119: #{forward.1} parent=103 // pred_region
          _
        $region120: #{forward.1} parent=103 // pred_fallthru
          _
        // Predicated region
        $region121: #{forward.1} parent=103 // pred_check
          %p5765 = pneg %p534
        $region122: #{forward.1} parent=103 // pred_check_branch
          %5767 = sbr.rel (%p5765) target = $region124
        $region123: #{forward.1} parent=103 // pred_region
          %5769 = vsyncadd %s5758, 0
          %s5770 = smul.addr %s39, 8
          %s5771 = scalar_lea.hbm %s22, %s5770
          %s5773 = sshll.u32 %s5761, 4
          %s5774 = int_to_ptr.vmem [resolvable:$true] %s5773
          %s5775 = sshll.u32 %s5771, 4
          %s5776 = int_to_ptr.hbm [resolvable:$true] %s5775
          %5778 = dma.vmem_to_hbm [thread:$0]  %s5774, 128, %s5776, %s5758
        $region124: #{forward.1} parent=103 // pred_fallthru
          _
      $region104: #{forward.1} parent=5 // pred_fallthru
        _
      %p5779 = scmp.le.s32.totalorder 2, %s34
      // Predicated region
      $region125: #{forward.1} parent=5 // pred_check
        %p5780 = pneg %p5779
      $region126: #{forward.1} parent=5 // pred_check_branch
        %5782 = sbr.rel (%p5780) target = $region128
      $region127: #{forward.1} parent=5 // pred_region
        %s5783 = ssub.s32 %s34, 2
        // Predicated region
        $region129: #{forward.1} parent=127 // pred_check
          %p5784 = pneg %p514
        $region130: #{forward.1} parent=127 // pred_check_branch
          %5786 = sbr.rel (%p5784) target = $region132
        $region131: #{forward.1} parent=127 // pred_region
          %p5787 = scmp.lt.s32.totalorder %s40, 1
          %s5788 = scalar_select %p5787, %s40, 1
          %s5789 = smul.addr %s5788, 8
          %s5790 = scalar_lea.vmem %s21, %s5789
        $region132: #{forward.1} parent=127 // pred_fallthru
          _
        // Predicated region
        $region133: #{forward.1} parent=127 // pred_check
          %p5791 = pneg %p540
        $region134: #{forward.1} parent=127 // pred_check_branch
          %5793 = sbr.rel (%p5791) target = $region136
        $region135: #{forward.1} parent=127 // pred_region
          %s5794 = sand.u32 %s525, 1
          %s5795 = scalar_lea.sflag [#allocation6], %s5794
          %s5796 = sand.u32 %s525, 1
          %s5797 = smul.addr %s5796, 8
          %s5798 = scalar_lea.vmem [#allocation10], %s5797
          %5800 = dma.done %s5795, 128
        $region136: #{forward.1} parent=127 // pred_fallthru
          _
      $region128: #{forward.1} parent=5 // pred_fallthru
        _
    $region6: #{forward.1} parent=1 // loop_footer
      %s38 = sadd.s32 1, %s34
    $region7: #{forward.1} parent=1 // loop_footer_branch
      %33 = sbr.rel target = $region3
    $region8: #{forward.1} parent=1 // loop_exit
      _
    %5801 = vsyncpa [#allocation5], 1
    %s5802 = scalar_lea.sflag [#allocation5], 1
    %5803 = vsyncpa %s5802, 1
    %5804 = vsyncpa [#allocation8], 1
    %5805 = vsyncpa [#allocation6], 1
    %s5806 = scalar_lea.sflag [#allocation6], 1
    %5807 = vsyncpa %s5806, 1

</llo_original>
